<compile_context>
chip_gen: v7x
topology: tpu7x:2x2x1
jax: 0.10.0
libtpu: 0.0.40
codegen_flags: <defaults>
</compile_context>

<pallas_src>
import functools
import math

import jax
import jax.numpy as jnp
from jax.experimental import pallas as pl
from jax.experimental.pallas import tpu as pltpu


# ------------------------------ shared math ----------------------------------
def _layernorm(x, gamma, beta, eps=1e-5):
    mu = jnp.mean(x, axis=-1, keepdims=True)
    var = jnp.mean((x - mu) ** 2, axis=-1, keepdims=True)
    return (x - mu) * jax.lax.rsqrt(var + eps) * gamma + beta


# --------------------------- in-kernel attention ------------------------------
def _split_heads(t, bt, seq, n, d):
    """(bt*seq, n*d) -> (bt*n, seq, d): H lane slices + one stack.

    Only leading-dim reshapes are used (no minor-dim split, which Mosaic may
    not lower for d < 128)."""
    heads = [t[:, i * d:(i + 1) * d].reshape(bt, seq, d) for i in range(n)]
    return jnp.stack(heads, axis=1).reshape(bt * n, seq, d)


def _merge_heads(ctx, bt, seq, n, d):
    """(bt*n, seq, d) -> (bt*seq, n*d): heads back onto lanes with one concat."""
    ctx = ctx.reshape(bt, n, seq, d)
    ctx = jnp.concatenate([ctx[:, h] for h in range(n)], axis=-1)
    return ctx.reshape(bt * seq, n * d)


def _attention(q, k, v, bias, wz, bz, bt, H, dk, dv, Tq, Sk, scale):
    """Multi-head attention + output projection for one (batch, query) tile.

    q:(bt*Tq,H*dk) k:(bt*Sk,H*dk) v:(bt*Sk,H*dv) f32; bias:(bt,Tq,Sk) f32
    additive (-1e9 at masked positions); wz:(H*dv,E) bf16.  Returns the
    z-projection (bt*Tq,E) f32 -- head reassembly feeds a single matmul.
    Note: a fully-masked bias row degrades to a uniform distribution over the
    masked keys (all scores equal), matching the reference masked_fill."""
    bf = jnp.bfloat16
    qh = _split_heads((q * scale).astype(bf), bt, Tq, H, dk)   # (bt*H,Tq,dk)
    kh = _split_heads(k.astype(bf), bt, Sk, H, dk)             # (bt*H,Sk,dk)
    vh = _split_heads(v.astype(bf), bt, Sk, H, dv)             # (bt*H,Sk,dv)

    s = jnp.einsum("gqd,gkd->gqk", qh, kh,
                   preferred_element_type=jnp.float32)         # (bt*H,Tq,Sk)
    # Additive bias broadcast across heads: mask is never replicated per head.
    s = (s.reshape(bt, H, Tq, Sk) + bias[:, None, :, :]).reshape(bt * H, Tq, Sk)
    # f32 softmax chain; EUP approximate reciprocal for the normalization.
    s = s - jnp.max(s, axis=-1, keepdims=True)
    p = jnp.exp(s)
    p = p * pl.reciprocal(jnp.sum(p, axis=-1, keepdims=True), approx=True)
    ctx = jnp.einsum("gqk,gkd->gqd", p.astype(bf), vh,
                     preferred_element_type=jnp.float32)       # (bt*H,Tq,dv)
    ctx = _merge_heads(ctx, bt, Tq, H, dv)                     # (bt*Tq,H*dv)
    return jnp.dot(ctx.astype(bf), wz, preferred_element_type=jnp.float32) + bz


# --------------------------------- kernel -------------------------------------
def _decoder_block_kernel(head, dk, dv,
                          xq_ref, xkv_ref, enc_ref, bias1_ref, bias2_ref,
                          *rest):
    wrefs = rest[:-1]
    out_ref = rest[-1]
    (wq1, bq1, wkv1, bkv1, wz1, bz1, g1, b1,
     wq2, bq2, wkv2, bkv2, wz2, bz2, g2, b2,
     wf1, bf1, wf2, bf2, g3, b3) = [r[...] for r in wrefs]

    bt, Tq, E = xq_ref.shape      # query tile of the batch tile
    _, Skv, _ = xkv_ref.shape     # full decoder sequence (self-attn keys)
    _, Se, _ = enc_ref.shape      # encoder sequence (cross-attn keys)
    H = head
    bf = jnp.bfloat16
    scale = 1.0 / math.sqrt(dk)

    # Fold batch (and query tile) into the matmul row dimension.
    xq = xq_ref[...].reshape(bt * Tq, E)
    xkv = xkv_ref[...].reshape(bt * Skv, E)
    enc = enc_ref[...].reshape(bt * Se, E)
    bias1 = bias1_ref[...].astype(jnp.float32)
    bias2 = bias2_ref[...].astype(jnp.float32)

    # ---- masked self-attention (fused K/V proj) + z_linear1 + addnorm1 ----
    q1 = jnp.dot(xq.astype(bf), wq1, preferred_element_type=jnp.float32) + bq1
    kv1 = jnp.dot(xkv.astype(bf), wkv1, preferred_element_type=jnp.float32) + bkv1
    z1 = _attention(q1, kv1[:, :H * dk], kv1[:, H * dk:], bias1,
                    wz1, bz1, bt, H, dk, dv, Tq, Skv, scale)
    out1 = _layernorm(z1 + xq, g1, b1)

    # ---- cross-attention (fused K/V proj on encoder) + z_linear2 + addnorm2 --
    q2 = jnp.dot(out1.astype(bf), wq2, preferred_element_type=jnp.float32) + bq2
    kv2 = jnp.dot(enc.astype(bf), wkv2, preferred_element_type=jnp.float32) + bkv2
    z2 = _attention(q2, kv2[:, :H * dk], kv2[:, H * dk:], bias2,
                    wz2, bz2, bt, H, dk, dv, Tq, Se, scale)
    out2 = _layernorm(z2 + out1, g2, b2)

    # ---- feed-forward + addnorm3 ----
    f = jnp.dot(out2.astype(bf), wf1, preferred_element_type=jnp.float32) + bf1
    f = jnp.maximum(f, 0.0)
    f = jnp.dot(f.astype(bf), wf2, preferred_element_type=jnp.float32) + bf2
    out3 = _layernorm(f + out2, g3, b3)

    out_ref[...] = out3.reshape(bt, Tq, E)


# -------------------------------- wrapper --------------------------------------
def _cost_estimate(B, Sq, Sk, E, H, dk, dv, F, bytes_accessed):
    mm = lambda m, k, n: 2 * m * k * n
    flops = (mm(B * Sq, E, H * dk) + mm(B * Sq, E, H * (dk + dv))
             + B * H * (mm(Sq, dk, Sq) + mm(Sq, Sq, dv)) + mm(B * Sq, H * dv, E)
             + mm(B * Sq, E, H * dk) + mm(B * Sk, E, H * (dk + dv))
             + B * H * (mm(Sq, dk, Sk) + mm(Sq, Sk, dv)) + mm(B * Sq, H * dv, E)
             + mm(B * Sq, E, F) + mm(B * Sq, F, E))
    transcendentals = B * H * Sq * (Sq + Sk)   # exp in the two softmaxes
    return pl.CostEstimate(flops=flops, transcendentals=transcendentals,
                           bytes_accessed=int(bytes_accessed))


def decoder_block(x, encoder_z, first_attn_mask, second_attn_mask, weights,
                  head, q_k_size, v_size, batch_tile=None, query_tile=None,
                  single_buffer_weights=True,
                  vmem_limit_bytes=64 * 1024 * 1024):
    B, Sq, E = x.shape
    _, Sk, _ = encoder_z.shape
    dk, dv = q_k_size, v_size

    # Default: batch fully folded into matmul rows (single-TC v5e/v6e optimum
    # and max MXU row occupancy).  On v7x keep bt = B and pass query_tile to
    # split independent query tiles across the two TensorCores.
    bt = B if batch_tile is None else batch_tile
    tq = Sq if query_tile is None else query_tile
    assert B % bt == 0 and Sq % tq == 0
    grid = (B // bt, Sq // tq)

    (wq1, bq1, wk1, bk1, wv1, bv1, wz1, bz1, g1, b1,
     wq2, bq2, wk2, bk2, wv2, bv2, wz2, bz2, g2, b2,
     wf1, bf1, wf2, bf2, g3, b3) = weights

    bf16 = jnp.bfloat16
    # bf16 MXU operands (accumulated in f32 in-kernel); self/cross K/V weights
    # fused so each attention source needs one lane-dense matmul.  Biases and
    # LayerNorm parameters stay f32.
    fused = (wq1.astype(bf16), bq1,
             jnp.concatenate([wk1, wv1], axis=1).astype(bf16),
             jnp.concatenate([bk1, bv1], axis=1),
             wz1.astype(bf16), bz1, g1, b1,
             wq2.astype(bf16), bq2,
             jnp.concatenate([wk2, wv2], axis=1).astype(bf16),
             jnp.concatenate([bk2, bv2], axis=1),
             wz2.astype(bf16), bz2, g2, b2,
             wf1.astype(bf16), bf1, wf2.astype(bf16), bf2, g3, b3)

    # Masks -> additive bias (bf16 in HBM -> half the mask traffic); replaces
    # the in-kernel compare+select on the score tensor with a single add.
    bias1 = (first_attn_mask * jnp.float32(-1e9)).astype(bf16)
    bias2 = (second_attn_mask * jnp.float32(-1e9)).astype(bf16)

    kernel = functools.partial(_decoder_block_kernel, head, dk, dv)

    data_specs = [
        pl.BlockSpec((bt, tq, E), lambda i, j: (i, j, 0)),    # x (query tile)
        pl.BlockSpec((bt, Sq, E), lambda i, j: (i, 0, 0)),    # x (full: self K/V)
        pl.BlockSpec((bt, Sk, E), lambda i, j: (i, 0, 0)),    # encoder_z
        pl.BlockSpec((bt, tq, Sq), lambda i, j: (i, j, 0)),   # self-attn bias
        pl.BlockSpec((bt, tq, Sk), lambda i, j: (i, j, 0)),   # cross-attn bias
    ]
    out_spec = pl.BlockSpec((bt, tq, E), lambda i, j: (i, j, 0))

    def weight_spec(w, single_buffer):
        zeros = (0,) * w.ndim                 # constant index map -> DMA'd once
        index_map = lambda i, j: zeros
        if single_buffer:
            return pl.BlockSpec(tuple(w.shape), index_map,
                                pipeline_mode=pl.Buffered(1))
        return pl.BlockSpec(tuple(w.shape), index_map)

    bytes_accessed = (2 * x.nbytes + encoder_z.nbytes + bias1.nbytes
                      + bias2.nbytes + sum(int(w.nbytes) for w in fused)
                      + x.nbytes)             # output (B,Sq,E) f32 == x.nbytes
    cost = _cost_estimate(B, Sq, Sk, E, head, dk, dv, wf1.shape[1],
                          bytes_accessed)

    def run(single_buffer):
        call = pl.pallas_call(
            kernel,
            out_shape=jax.ShapeDtypeStruct((B, Sq, E), jnp.float32),
            grid_spec=pltpu.PrefetchScalarGridSpec(
                num_scalar_prefetch=0,
                grid=grid,
                in_specs=data_specs + [weight_spec(w, single_buffer)
                                       for w in fused],
                out_specs=out_spec),
            compiler_params=pltpu.CompilerParams(
                dimension_semantics=("parallel", "parallel"),
                vmem_limit_bytes=vmem_limit_bytes),
            cost_estimate=cost,
        )
        return jax.block_until_ready(call(x, x, encoder_z, bias1, bias2, *fused))

    if single_buffer_weights:
        try:
            return run(True)
        except Exception:
            # TODO(synk): this JAX build rejects pl.Buffered(1); fall back to
            # default buffering (constant index maps still mean a single DMA).
            pass
    return run(False)


# --------------------------- pure-JAX references --------------------------------
def _mm(a, b, bf16_ops):
    if bf16_ops:
        a = a.astype(jnp.bfloat16)
        b = b.astype(jnp.bfloat16)
    return jnp.dot(a, b, preferred_element_type=jnp.float32)


def _ref_mha(xq, xkv, mask, wq, bq, wk, bk, wv, bv, head, dk, dv, bf16_ops):
    q = _mm(xq, wq, bf16_ops) + bq
    k = _mm(xkv, wk, bf16_ops) + bk
    v = _mm(xkv, wv, bf16_ops) + bv
    scale = 1.0 / math.sqrt(dk)
    outs = []
    for h in range(head):
        qh = q[:, h * dk:(h + 1) * dk] * scale
        kh = k[:, h * dk:(h + 1) * dk]
        vh = v[:, h * dv:(h + 1) * dv]
        s = _mm(qh, kh.T, bf16_ops)
        s = jnp.where(mask > 0.5, -1e9, s)
        s = s - jnp.max(s, axis=-1, keepdims=True)
        p = jnp.exp(s)
        p = p / jnp.sum(p, axis=-1, keepdims=True)
        outs.append(_mm(p, vh, bf16_ops))
    return jnp.concatenate(outs, axis=-1)


def _ref_forward_one(x, enc, m1, m2, w, head, dk, dv, bf16_ops=False):
    (wq1, bq1, wk1, bk1, wv1, bv1, wz1, bz1, g1, b1,
     wq2, bq2, wk2, bk2, wv2, bv2, wz2, bz2, g2, b2,
     wf1, bf1, wf2, bf2, g3, b3) = w
    z = _ref_mha(x, x, m1, wq1, bq1, wk1, bk1, wv1, bv1, head, dk, dv, bf16_ops)
    z = _mm(z, wz1, bf16_ops) + bz1
    out1 = _layernorm(z + x, g1, b1)
    z = _ref_mha(out1, enc, m2, wq2, bq2, wk2, bk2, wv2, bv2, head, dk, dv,
                 bf16_ops)
    z = _mm(z, wz2, bf16_ops) + bz2
    out2 = _layernorm(z + out1, g2, b2)
    f = jnp.maximum(_mm(out2, wf1, bf16_ops) + bf1, 0.0)
    f = _mm(f, wf2, bf16_ops) + bf2
    return _layernorm(f + out2, g3, b3)


# --------------------------- deterministic params ------------------------------
def init_weights(key, emb_size, q_k_size, v_size, f_size, head):
    def lin(k, din, dout):
        k1, k2 = jax.random.split(k)
        w = jax.random.normal(k1, (din, dout), jnp.float32) * 0.05
        b = jax.random.normal(k2, (1, dout), jnp.float32) * 0.05
        return w, b

    ks = jax.random.split(key, 10)
    wq1, bq1 = lin(ks[0], emb_size, head * q_k_size)
    wk1, bk1 = lin(ks[1], emb_size, head * q_k_size)
    wv1, bv1 = lin(ks[2], emb_size, head * v_size)
    wz1, bz1 = lin(ks[3], head * v_size, emb_size)
    g1 = jnp.ones((1, emb_size), jnp.float32)
    b1 = jnp.zeros((1, emb_size), jnp.float32)
    wq2, bq2 = lin(ks[4], emb_size, head * q_k_size)
    wk2, bk2 = lin(ks[5], emb_size, head * q_k_size)
    wv2, bv2 = lin(ks[6], emb_size, head * v_size)
    wz2, bz2 = lin(ks[7], head * v_size, emb_size)
    g2 = jnp.ones((1, emb_size), jnp.float32)
    b2 = jnp.zeros((1, emb_size), jnp.float32)
    wf1, bf1 = lin(ks[8], emb_size, f_size)
    wf2, bf2 = lin(ks[9], f_size, emb_size)
    g3 = jnp.ones((1, emb_size), jnp.float32)
    b3 = jnp.zeros((1, emb_size), jnp.float32)
    return (wq1, bq1, wk1, bk1, wv1, bv1, wz1, bz1, g1, b1,
            wq2, bq2, wk2, bk2, wv2, bv2, wz2, bz2, g2, b2,
            wf1, bf1, wf2, bf2, g3, b3)


# ----------------------------------- main ---------------------------------------
if __name__ == "__main__":
    B, Sq, Sk = 2, 32, 32
    emb_size, q_k_size, v_size, f_size, head = 32, 16, 16, 64, 4

    key = jax.random.PRNGKey(0)
    k_x, k_e, k_w = jax.random.split(key, 3)
    x = jax.random.normal(k_x, (B, Sq, emb_size), jnp.float32)
    encoder_z = jax.random.normal(k_e, (B, Sk, emb_size), jnp.float32)

    # causal mask for decoder self-attention (1.0 = masked / future position)
    causal = (jnp.arange(Sq)[:, None] < jnp.arange(Sq)[None, :]).astype(jnp.float32)
    first_attn_mask = jnp.broadcast_to(causal, (B, Sq, Sq))
    # no padding in this synthetic example -> nothing masked in cross-attention
    second_attn_mask = jnp.zeros((B, Sq, Sk), jnp.float32)

    weights = init_weights(k_w, emb_size, q_k_size, v_size, f_size, head)

    # Config A (v5e/v6e default): batch + sequence fully folded, single step.
    out_a = decoder_block(x, encoder_z, first_attn_mask, second_attn_mask,
                          weights, head, q_k_size, v_size)
    # Config B (v7x): batch stays folded; two independent query tiles give the
    # two TensorCores parallel work without shrinking the matmul M dimension.
    out_b = decoder_block(x, encoder_z, first_attn_mask, second_attn_mask,
                          weights, head, q_k_size, v_size, query_tile=Sq // 2)
    out_a, out_b = jax.block_until_ready((out_a, out_b))

    ref_bf16 = jax.vmap(lambda xi, ei, m1, m2: _ref_forward_one(
        xi, ei, m1, m2, weights, head, q_k_size, v_size, bf16_ops=True))(
            x, encoder_z, first_attn_mask, second_attn_mask)
    ref_f32 = jax.vmap(lambda xi, ei, m1, m2: _ref_forward_one(
        xi, ei, m1, m2, weights, head, q_k_size, v_size, bf16_ops=False))(
            x, encoder_z, first_attn_mask, second_attn_mask)

    assert out_a.shape == (B, Sq, emb_size)
    assert out_b.shape == (B, Sq, emb_size)
    # Precision-matched check (bf16 matmul operands, f32 accumulation, f32
    # softmax/LN): catches structural bugs; slack covers the EUP approximate
    # reciprocal in the kernel softmax normalization.
    assert jnp.allclose(out_a, ref_bf16, atol=1e-2, rtol=1e-2), "config A mismatch"
    assert jnp.allclose(out_b, ref_bf16, atol=1e-2, rtol=1e-2), "config B mismatch"
    # Bound the bf16 quantization drift against the exact f32 module.
    assert jnp.allclose(out_a, ref_f32, atol=5e-2, rtol=5e-2), "bf16 drift too large"
    assert jnp.allclose(out_a, out_b, atol=1e-3, rtol=1e-3), "tiling configs disagree"
    print("KERNEL_OK")
</pallas_src>

<mosaic_0001>
module attributes {stable_mosaic.version = 11 : i64} {
  func.func @_decoder_block_kernel(%arg0: i32, %arg1: i32, %arg2: memref<2x32x32xf32, #tpu.memory_space<vmem>>, %arg3: memref<2x32x32xf32, #tpu.memory_space<vmem>>, %arg4: memref<2x32x32xf32, #tpu.memory_space<vmem>>, %arg5: memref<2x32x32xbf16, #tpu.memory_space<vmem>>, %arg6: memref<2x32x32xbf16, #tpu.memory_space<vmem>>, %arg7: memref<32x64xbf16, #tpu.memory_space<vmem>>, %arg8: memref<1x64xf32, #tpu.memory_space<vmem>>, %arg9: memref<32x128xbf16, #tpu.memory_space<vmem>>, %arg10: memref<1x128xf32, #tpu.memory_space<vmem>>, %arg11: memref<64x32xbf16, #tpu.memory_space<vmem>>, %arg12: memref<1x32xf32, #tpu.memory_space<vmem>>, %arg13: memref<1x32xf32, #tpu.memory_space<vmem>>, %arg14: memref<1x32xf32, #tpu.memory_space<vmem>>, %arg15: memref<32x64xbf16, #tpu.memory_space<vmem>>, %arg16: memref<1x64xf32, #tpu.memory_space<vmem>>, %arg17: memref<32x128xbf16, #tpu.memory_space<vmem>>, %arg18: memref<1x128xf32, #tpu.memory_space<vmem>>, %arg19: memref<64x32xbf16, #tpu.memory_space<vmem>>, %arg20: memref<1x32xf32, #tpu.memory_space<vmem>>, %arg21: memref<1x32xf32, #tpu.memory_space<vmem>>, %arg22: memref<1x32xf32, #tpu.memory_space<vmem>>, %arg23: memref<32x64xbf16, #tpu.memory_space<vmem>>, %arg24: memref<1x64xf32, #tpu.memory_space<vmem>>, %arg25: memref<64x32xbf16, #tpu.memory_space<vmem>>, %arg26: memref<1x32xf32, #tpu.memory_space<vmem>>, %arg27: memref<1x32xf32, #tpu.memory_space<vmem>>, %arg28: memref<1x32xf32, #tpu.memory_space<vmem>>, %arg29: memref<2x32x32xf32, #tpu.memory_space<vmem>>) attributes {dimension_semantics = [#tpu.dimension_semantics<parallel>, #tpu.dimension_semantics<parallel>], iteration_bounds = array<i64: 1, 1>, scalar_prefetch = 0 : i64, scratch_operands = 0 : i64, tpu.core_type = #tpu.core_type<tc>, window_params = [{transform_indices = @transform_0, window_bounds = array<i64: 2, 32, 32>}, {transform_indices = @transform_1, window_bounds = array<i64: 2, 32, 32>}, {transform_indices = @transform_2, window_bounds = array<i64: 2, 32, 32>}, {transform_indices = @transform_3, window_bounds = array<i64: 2, 32, 32>}, {transform_indices = @transform_4, window_bounds = array<i64: 2, 32, 32>}, {pipeline_mode = #tpu.pipeline_mode<synchronous>, transform_indices = @transform_5, window_bounds = array<i64: 32, 64>}, {pipeline_mode = #tpu.pipeline_mode<synchronous>, transform_indices = @transform_6, window_bounds = array<i64: 1, 64>}, {pipeline_mode = #tpu.pipeline_mode<synchronous>, transform_indices = @transform_7, window_bounds = array<i64: 32, 128>}, {pipeline_mode = #tpu.pipeline_mode<synchronous>, transform_indices = @transform_8, window_bounds = array<i64: 1, 128>}, {pipeline_mode = #tpu.pipeline_mode<synchronous>, transform_indices = @transform_9, window_bounds = array<i64: 64, 32>}, {pipeline_mode = #tpu.pipeline_mode<synchronous>, transform_indices = @transform_10, window_bounds = array<i64: 1, 32>}, {pipeline_mode = #tpu.pipeline_mode<synchronous>, transform_indices = @transform_11, window_bounds = array<i64: 1, 32>}, {pipeline_mode = #tpu.pipeline_mode<synchronous>, transform_indices = @transform_12, window_bounds = array<i64: 1, 32>}, {pipeline_mode = #tpu.pipeline_mode<synchronous>, transform_indices = @transform_13, window_bounds = array<i64: 32, 64>}, {pipeline_mode = #tpu.pipeline_mode<synchronous>, transform_indices = @transform_14, window_bounds = array<i64: 1, 64>}, {pipeline_mode = #tpu.pipeline_mode<synchronous>, transform_indices = @transform_15, window_bounds = array<i64: 32, 128>}, {pipeline_mode = #tpu.pipeline_mode<synchronous>, transform_indices = @transform_16, window_bounds = array<i64: 1, 128>}, {pipeline_mode = #tpu.pipeline_mode<synchronous>, transform_indices = @transform_17, window_bounds = array<i64: 64, 32>}, {pipeline_mode = #tpu.pipeline_mode<synchronous>, transform_indices = @transform_18, window_bounds = array<i64: 1, 32>}, {pipeline_mode = #tpu.pipeline_mode<synchronous>, transform_indices = @transform_19, window_bounds = array<i64: 1, 32>}, {pipeline_mode = #tpu.pipeline_mode<synchronous>, transform_indices = @transform_20, window_bounds = array<i64: 1, 32>}, {pipeline_mode = #tpu.pipeline_mode<synchronous>, transform_indices = @transform_21, window_bounds = array<i64: 32, 64>}, {pipeline_mode = #tpu.pipeline_mode<synchronous>, transform_indices = @transform_22, window_bounds = array<i64: 1, 64>}, {pipeline_mode = #tpu.pipeline_mode<synchronous>, transform_indices = @transform_23, window_bounds = array<i64: 64, 32>}, {pipeline_mode = #tpu.pipeline_mode<synchronous>, transform_indices = @transform_24, window_bounds = array<i64: 1, 32>}, {pipeline_mode = #tpu.pipeline_mode<synchronous>, transform_indices = @transform_25, window_bounds = array<i64: 1, 32>}, {pipeline_mode = #tpu.pipeline_mode<synchronous>, transform_indices = @transform_26, window_bounds = array<i64: 1, 32>}, {transform_indices = @transform_27, window_bounds = array<i64: 2, 32, 32>}]} {
    %c0 = arith.constant 0 : index
    %c0_0 = arith.constant 0 : index
    %0 = vector.load %arg7[%c0, %c0_0] : memref<32x64xbf16, #tpu.memory_space<vmem>>, vector<32x64xbf16>
    %c0_1 = arith.constant 0 : index
    %c0_2 = arith.constant 0 : index
    %1 = vector.load %arg8[%c0_1, %c0_2] : memref<1x64xf32, #tpu.memory_space<vmem>>, vector<1x64xf32>
    %c0_3 = arith.constant 0 : index
    %c0_4 = arith.constant 0 : index
    %2 = vector.load %arg9[%c0_3, %c0_4] : memref<32x128xbf16, #tpu.memory_space<vmem>>, vector<32x128xbf16>
    %c0_5 = arith.constant 0 : index
    %c0_6 = arith.constant 0 : index
    %3 = vector.load %arg10[%c0_5, %c0_6] : memref<1x128xf32, #tpu.memory_space<vmem>>, vector<1x128xf32>
    %c0_7 = arith.constant 0 : index
    %c0_8 = arith.constant 0 : index
    %4 = vector.load %arg11[%c0_7, %c0_8] : memref<64x32xbf16, #tpu.memory_space<vmem>>, vector<64x32xbf16>
    %c0_9 = arith.constant 0 : index
    %c0_10 = arith.constant 0 : index
    %5 = vector.load %arg12[%c0_9, %c0_10] : memref<1x32xf32, #tpu.memory_space<vmem>>, vector<1x32xf32>
    %c0_11 = arith.constant 0 : index
    %c0_12 = arith.constant 0 : index
    %6 = vector.load %arg13[%c0_11, %c0_12] : memref<1x32xf32, #tpu.memory_space<vmem>>, vector<1x32xf32>
    %c0_13 = arith.constant 0 : index
    %c0_14 = arith.constant 0 : index
    %7 = vector.load %arg14[%c0_13, %c0_14] : memref<1x32xf32, #tpu.memory_space<vmem>>, vector<1x32xf32>
    %c0_15 = arith.constant 0 : index
    %c0_16 = arith.constant 0 : index
    %8 = vector.load %arg15[%c0_15, %c0_16] : memref<32x64xbf16, #tpu.memory_space<vmem>>, vector<32x64xbf16>
    %c0_17 = arith.constant 0 : index
    %c0_18 = arith.constant 0 : index
    %9 = vector.load %arg16[%c0_17, %c0_18] : memref<1x64xf32, #tpu.memory_space<vmem>>, vector<1x64xf32>
    %c0_19 = arith.constant 0 : index
    %c0_20 = arith.constant 0 : index
    %10 = vector.load %arg17[%c0_19, %c0_20] : memref<32x128xbf16, #tpu.memory_space<vmem>>, vector<32x128xbf16>
    %c0_21 = arith.constant 0 : index
    %c0_22 = arith.constant 0 : index
    %11 = vector.load %arg18[%c0_21, %c0_22] : memref<1x128xf32, #tpu.memory_space<vmem>>, vector<1x128xf32>
    %c0_23 = arith.constant 0 : index
    %c0_24 = arith.constant 0 : index
    %12 = vector.load %arg19[%c0_23, %c0_24] : memref<64x32xbf16, #tpu.memory_space<vmem>>, vector<64x32xbf16>
    %c0_25 = arith.constant 0 : index
    %c0_26 = arith.constant 0 : index
    %13 = vector.load %arg20[%c0_25, %c0_26] : memref<1x32xf32, #tpu.memory_space<vmem>>, vector<1x32xf32>
    %c0_27 = arith.constant 0 : index
    %c0_28 = arith.constant 0 : index
    %14 = vector.load %arg21[%c0_27, %c0_28] : memref<1x32xf32, #tpu.memory_space<vmem>>, vector<1x32xf32>
    %c0_29 = arith.constant 0 : index
    %c0_30 = arith.constant 0 : index
    %15 = vector.load %arg22[%c0_29, %c0_30] : memref<1x32xf32, #tpu.memory_space<vmem>>, vector<1x32xf32>
    %c0_31 = arith.constant 0 : index
    %c0_32 = arith.constant 0 : index
    %16 = vector.load %arg23[%c0_31, %c0_32] : memref<32x64xbf16, #tpu.memory_space<vmem>>, vector<32x64xbf16>
    %c0_33 = arith.constant 0 : index
    %c0_34 = arith.constant 0 : index
    %17 = vector.load %arg24[%c0_33, %c0_34] : memref<1x64xf32, #tpu.memory_space<vmem>>, vector<1x64xf32>
    %c0_35 = arith.constant 0 : index
    %c0_36 = arith.constant 0 : index
    %18 = vector.load %arg25[%c0_35, %c0_36] : memref<64x32xbf16, #tpu.memory_space<vmem>>, vector<64x32xbf16>
    %c0_37 = arith.constant 0 : index
    %c0_38 = arith.constant 0 : index
    %19 = vector.load %arg26[%c0_37, %c0_38] : memref<1x32xf32, #tpu.memory_space<vmem>>, vector<1x32xf32>
    %c0_39 = arith.constant 0 : index
    %c0_40 = arith.constant 0 : index
    %20 = vector.load %arg27[%c0_39, %c0_40] : memref<1x32xf32, #tpu.memory_space<vmem>>, vector<1x32xf32>
    %c0_41 = arith.constant 0 : index
    %c0_42 = arith.constant 0 : index
    %21 = vector.load %arg28[%c0_41, %c0_42] : memref<1x32xf32, #tpu.memory_space<vmem>>, vector<1x32xf32>
    %c0_43 = arith.constant 0 : index
    %c0_44 = arith.constant 0 : index
    %c0_45 = arith.constant 0 : index
    %22 = vector.load %arg2[%c0_43, %c0_44, %c0_45] : memref<2x32x32xf32, #tpu.memory_space<vmem>>, vector<2x32x32xf32>
    %23 = vector.shape_cast %22 : vector<2x32x32xf32> to vector<64x32xf32>
    %c0_46 = arith.constant 0 : index
    %c0_47 = arith.constant 0 : index
    %c0_48 = arith.constant 0 : index
    %24 = vector.load %arg3[%c0_46, %c0_47, %c0_48] : memref<2x32x32xf32, #tpu.memory_space<vmem>>, vector<2x32x32xf32>
    %25 = vector.shape_cast %24 : vector<2x32x32xf32> to vector<64x32xf32>
    %c0_49 = arith.constant 0 : index
    %c0_50 = arith.constant 0 : index
    %c0_51 = arith.constant 0 : index
    %26 = vector.load %arg4[%c0_49, %c0_50, %c0_51] : memref<2x32x32xf32, #tpu.memory_space<vmem>>, vector<2x32x32xf32>
    %27 = vector.shape_cast %26 : vector<2x32x32xf32> to vector<64x32xf32>
    %c0_52 = arith.constant 0 : index
    %c0_53 = arith.constant 0 : index
    %c0_54 = arith.constant 0 : index
    %28 = vector.load %arg5[%c0_52, %c0_53, %c0_54] : memref<2x32x32xbf16, #tpu.memory_space<vmem>>, vector<2x32x32xbf16>
    %29 = arith.extf %28 : vector<2x32x32xbf16> to vector<2x32x32xf32>
    %c0_55 = arith.constant 0 : index
    %c0_56 = arith.constant 0 : index
    %c0_57 = arith.constant 0 : index
    %30 = vector.load %arg6[%c0_55, %c0_56, %c0_57] : memref<2x32x32xbf16, #tpu.memory_space<vmem>>, vector<2x32x32xbf16>
    %31 = arith.extf %30 : vector<2x32x32xbf16> to vector<2x32x32xf32>
    %32 = arith.truncf %23 : vector<64x32xf32> to vector<64x32xbf16>
    %cst = arith.constant dense<0.000000e+00> : vector<64x64xf32>
    %33 = tpu.matmul %32, %0, %cst {dimension_numbers = #tpu.dot_dimension_numbers<[1], [0], [0], [1], [0, 0, 1, 1], [], []>} : vector<64x32xbf16>, vector<32x64xbf16>, vector<64x64xf32> -> vector<64x64xf32>
    %34 = vector.broadcast %1 : vector<1x64xf32> to vector<64x64xf32>
    %35 = arith.addf %33, %34 : vector<64x64xf32>
    %36 = arith.truncf %25 : vector<64x32xf32> to vector<64x32xbf16>
    %cst_58 = arith.constant dense<0.000000e+00> : vector<64x128xf32>
    %37 = tpu.matmul %36, %2, %cst_58 {dimension_numbers = #tpu.dot_dimension_numbers<[1], [0], [0], [1], [0, 0, 1, 1], [], []>} : vector<64x32xbf16>, vector<32x128xbf16>, vector<64x128xf32> -> vector<64x128xf32>
    %38 = vector.broadcast %3 : vector<1x128xf32> to vector<64x128xf32>
    %39 = arith.addf %37, %38 : vector<64x128xf32>
    %40 = vector.extract_strided_slice %39 {offsets = [0, 0], sizes = [64, 64], strides = [1, 1]} : vector<64x128xf32> to vector<64x64xf32>
    %41 = vector.extract_strided_slice %39 {offsets = [0, 64], sizes = [64, 64], strides = [1, 1]} : vector<64x128xf32> to vector<64x64xf32>
    %cst_59 = arith.constant 2.500000e-01 : f32
    %42 = vector.broadcast %cst_59 : f32 to vector<64x64xf32>
    %43 = arith.mulf %35, %42 : vector<64x64xf32>
    %44 = arith.truncf %43 : vector<64x64xf32> to vector<64x64xbf16>
    %45 = vector.extract_strided_slice %44 {offsets = [0, 0], sizes = [64, 16], strides = [1, 1]} : vector<64x64xbf16> to vector<64x16xbf16>
    %46 = vector.shape_cast %45 : vector<64x16xbf16> to vector<2x32x16xbf16>
    %47 = vector.extract_strided_slice %44 {offsets = [0, 16], sizes = [64, 16], strides = [1, 1]} : vector<64x64xbf16> to vector<64x16xbf16>
    %48 = vector.shape_cast %47 : vector<64x16xbf16> to vector<2x32x16xbf16>
    %49 = vector.extract_strided_slice %44 {offsets = [0, 32], sizes = [64, 16], strides = [1, 1]} : vector<64x64xbf16> to vector<64x16xbf16>
    %50 = vector.shape_cast %49 : vector<64x16xbf16> to vector<2x32x16xbf16>
    %51 = vector.extract_strided_slice %44 {offsets = [0, 48], sizes = [64, 16], strides = [1, 1]} : vector<64x64xbf16> to vector<64x16xbf16>
    %52 = vector.shape_cast %51 : vector<64x16xbf16> to vector<2x32x16xbf16>
    %53 = vector.shape_cast %46 : vector<2x32x16xbf16> to vector<2x1x32x16xbf16>
    %54 = vector.shape_cast %48 : vector<2x32x16xbf16> to vector<2x1x32x16xbf16>
    %55 = vector.shape_cast %50 : vector<2x32x16xbf16> to vector<2x1x32x16xbf16>
    %56 = vector.shape_cast %52 : vector<2x32x16xbf16> to vector<2x1x32x16xbf16>
    %57 = tpu.concatenate %53, %54, %55, %56 in 1 : vector<2x1x32x16xbf16>, vector<2x1x32x16xbf16>, vector<2x1x32x16xbf16>, vector<2x1x32x16xbf16> -> vector<2x4x32x16xbf16>
    %58 = vector.shape_cast %57 : vector<2x4x32x16xbf16> to vector<8x32x16xbf16>
    %59 = arith.truncf %40 : vector<64x64xf32> to vector<64x64xbf16>
    %60 = vector.extract_strided_slice %59 {offsets = [0, 0], sizes = [64, 16], strides = [1, 1]} : vector<64x64xbf16> to vector<64x16xbf16>
    %61 = vector.shape_cast %60 : vector<64x16xbf16> to vector<2x32x16xbf16>
    %62 = vector.extract_strided_slice %59 {offsets = [0, 16], sizes = [64, 16], strides = [1, 1]} : vector<64x64xbf16> to vector<64x16xbf16>
    %63 = vector.shape_cast %62 : vector<64x16xbf16> to vector<2x32x16xbf16>
    %64 = vector.extract_strided_slice %59 {offsets = [0, 32], sizes = [64, 16], strides = [1, 1]} : vector<64x64xbf16> to vector<64x16xbf16>
    %65 = vector.shape_cast %64 : vector<64x16xbf16> to vector<2x32x16xbf16>
    %66 = vector.extract_strided_slice %59 {offsets = [0, 48], sizes = [64, 16], strides = [1, 1]} : vector<64x64xbf16> to vector<64x16xbf16>
    %67 = vector.shape_cast %66 : vector<64x16xbf16> to vector<2x32x16xbf16>
    %68 = vector.shape_cast %61 : vector<2x32x16xbf16> to vector<2x1x32x16xbf16>
    %69 = vector.shape_cast %63 : vector<2x32x16xbf16> to vector<2x1x32x16xbf16>
    %70 = vector.shape_cast %65 : vector<2x32x16xbf16> to vector<2x1x32x16xbf16>
    %71 = vector.shape_cast %67 : vector<2x32x16xbf16> to vector<2x1x32x16xbf16>
    %72 = tpu.concatenate %68, %69, %70, %71 in 1 : vector<2x1x32x16xbf16>, vector<2x1x32x16xbf16>, vector<2x1x32x16xbf16>, vector<2x1x32x16xbf16> -> vector<2x4x32x16xbf16>
    %73 = vector.shape_cast %72 : vector<2x4x32x16xbf16> to vector<8x32x16xbf16>
    %74 = arith.truncf %41 : vector<64x64xf32> to vector<64x64xbf16>
    %75 = vector.extract_strided_slice %74 {offsets = [0, 0], sizes = [64, 16], strides = [1, 1]} : vector<64x64xbf16> to vector<64x16xbf16>
    %76 = vector.shape_cast %75 : vector<64x16xbf16> to vector<2x32x16xbf16>
    %77 = vector.extract_strided_slice %74 {offsets = [0, 16], sizes = [64, 16], strides = [1, 1]} : vector<64x64xbf16> to vector<64x16xbf16>
    %78 = vector.shape_cast %77 : vector<64x16xbf16> to vector<2x32x16xbf16>
    %79 = vector.extract_strided_slice %74 {offsets = [0, 32], sizes = [64, 16], strides = [1, 1]} : vector<64x64xbf16> to vector<64x16xbf16>
    %80 = vector.shape_cast %79 : vector<64x16xbf16> to vector<2x32x16xbf16>
    %81 = vector.extract_strided_slice %74 {offsets = [0, 48], sizes = [64, 16], strides = [1, 1]} : vector<64x64xbf16> to vector<64x16xbf16>
    %82 = vector.shape_cast %81 : vector<64x16xbf16> to vector<2x32x16xbf16>
    %83 = vector.shape_cast %76 : vector<2x32x16xbf16> to vector<2x1x32x16xbf16>
    %84 = vector.shape_cast %78 : vector<2x32x16xbf16> to vector<2x1x32x16xbf16>
    %85 = vector.shape_cast %80 : vector<2x32x16xbf16> to vector<2x1x32x16xbf16>
    %86 = vector.shape_cast %82 : vector<2x32x16xbf16> to vector<2x1x32x16xbf16>
    %87 = tpu.concatenate %83, %84, %85, %86 in 1 : vector<2x1x32x16xbf16>, vector<2x1x32x16xbf16>, vector<2x1x32x16xbf16>, vector<2x1x32x16xbf16> -> vector<2x4x32x16xbf16>
    %88 = vector.shape_cast %87 : vector<2x4x32x16xbf16> to vector<8x32x16xbf16>
    "tpu.trace_start"() <{level = 10 : i32, message = "gqd,gkd->gqk"}> : () -> ()
    %cst_60 = arith.constant dense<0.000000e+00> : vector<8x32x32xf32>
    %89 = tpu.matmul %58, %73, %cst_60 {dimension_numbers = #tpu.dot_dimension_numbers<[2], [2], [1], [1], [0, 0, 0, 1, 1, 1], [0], [0]>} : vector<8x32x16xbf16>, vector<8x32x16xbf16>, vector<8x32x32xf32> -> vector<8x32x32xf32>
    "tpu.trace_stop"() : () -> ()
    %90 = vector.shape_cast %89 : vector<8x32x32xf32> to vector<2x4x32x32xf32>
    %91 = vector.shape_cast %29 : vector<2x32x32xf32> to vector<2x1x32x32xf32>
    %92 = vector.broadcast %91 : vector<2x1x32x32xf32> to vector<2x4x32x32xf32>
    %93 = arith.addf %90, %92 : vector<2x4x32x32xf32>
    %94 = vector.shape_cast %93 : vector<2x4x32x32xf32> to vector<8x32x32xf32>
    %cst_61 = arith.constant dense<0xFF800000> : vector<8x32xf32>
    %95 = vector.multi_reduction <maximumf>, %94, %cst_61 [2] : vector<8x32x32xf32> to vector<8x32xf32>
    %96 = vector.shape_cast %95 : vector<8x32xf32> to vector<8x32x1xf32>
    %97 = vector.broadcast %96 : vector<8x32x1xf32> to vector<8x32x32xf32>
    %98 = arith.subf %94, %97 : vector<8x32x32xf32>
    %99 = math.exp %98 : vector<8x32x32xf32>
    %cst_62 = arith.constant dense<0.000000e+00> : vector<8x32xf32>
    %100 = vector.multi_reduction <add>, %99, %cst_62 [2] : vector<8x32x32xf32> to vector<8x32xf32>
    %101 = vector.shape_cast %100 : vector<8x32xf32> to vector<8x32x1xf32>
    %102 = tpu.reciprocal %101 {approx = true} : vector<8x32x1xf32> -> vector<8x32x1xf32>
    %103 = vector.broadcast %102 : vector<8x32x1xf32> to vector<8x32x32xf32>
    %104 = arith.mulf %99, %103 : vector<8x32x32xf32>
    %105 = arith.truncf %104 : vector<8x32x32xf32> to vector<8x32x32xbf16>
    "tpu.trace_start"() <{level = 10 : i32, message = "gqk,gkd->gqd"}> : () -> ()
    %cst_63 = arith.constant dense<0.000000e+00> : vector<8x32x16xf32>
    %106 = tpu.matmul %105, %88, %cst_63 {dimension_numbers = #tpu.dot_dimension_numbers<[2], [1], [1], [2], [0, 0, 0, 1, 1, 2], [0], [0]>} : vector<8x32x32xbf16>, vector<8x32x16xbf16>, vector<8x32x16xf32> -> vector<8x32x16xf32>
    "tpu.trace_stop"() : () -> ()
    %107 = vector.shape_cast %106 : vector<8x32x16xf32> to vector<2x4x32x16xf32>
    %108 = vector.extract_strided_slice %107 {offsets = [0, 0, 0, 0], sizes = [2, 1, 32, 16], strides = [1, 1, 1, 1]} : vector<2x4x32x16xf32> to vector<2x1x32x16xf32>
    %109 = vector.shape_cast %108 : vector<2x1x32x16xf32> to vector<2x32x16xf32>
    %110 = vector.extract_strided_slice %107 {offsets = [0, 1, 0, 0], sizes = [2, 1, 32, 16], strides = [1, 1, 1, 1]} : vector<2x4x32x16xf32> to vector<2x1x32x16xf32>
    %111 = vector.shape_cast %110 : vector<2x1x32x16xf32> to vector<2x32x16xf32>
    %112 = vector.extract_strided_slice %107 {offsets = [0, 2, 0, 0], sizes = [2, 1, 32, 16], strides = [1, 1, 1, 1]} : vector<2x4x32x16xf32> to vector<2x1x32x16xf32>
    %113 = vector.shape_cast %112 : vector<2x1x32x16xf32> to vector<2x32x16xf32>
    %114 = vector.extract_strided_slice %107 {offsets = [0, 3, 0, 0], sizes = [2, 1, 32, 16], strides = [1, 1, 1, 1]} : vector<2x4x32x16xf32> to vector<2x1x32x16xf32>
    %115 = vector.shape_cast %114 : vector<2x1x32x16xf32> to vector<2x32x16xf32>
    %116 = tpu.concatenate %109, %111, %113, %115 in 2 : vector<2x32x16xf32>, vector<2x32x16xf32>, vector<2x32x16xf32>, vector<2x32x16xf32> -> vector<2x32x64xf32>
    %117 = vector.shape_cast %116 : vector<2x32x64xf32> to vector<64x64xf32>
    %118 = arith.truncf %117 : vector<64x64xf32> to vector<64x64xbf16>
    %cst_64 = arith.constant dense<0.000000e+00> : vector<64x32xf32>
    %119 = tpu.matmul %118, %4, %cst_64 {dimension_numbers = #tpu.dot_dimension_numbers<[1], [0], [0], [1], [0, 0, 1, 1], [], []>} : vector<64x64xbf16>, vector<64x32xbf16>, vector<64x32xf32> -> vector<64x32xf32>
    %120 = vector.broadcast %5 : vector<1x32xf32> to vector<64x32xf32>
    %121 = arith.addf %119, %120 : vector<64x32xf32>
    %122 = arith.addf %121, %23 : vector<64x32xf32>
    %cst_65 = arith.constant dense<0.000000e+00> : vector<64xf32>
    %123 = vector.multi_reduction <add>, %122, %cst_65 [1] : vector<64x32xf32> to vector<64xf32>
    %124 = vector.shape_cast %123 : vector<64xf32> to vector<64x1xf32>
    %cst_66 = arith.constant 3.200000e+01 : f32
    %125 = vector.broadcast %cst_66 : f32 to vector<64x1xf32>
    %126 = arith.divf %124, %125 : vector<64x1xf32>
    %127 = vector.broadcast %126 : vector<64x1xf32> to vector<64x32xf32>
    %128 = arith.subf %122, %127 : vector<64x32xf32>
    %129 = arith.mulf %128, %128 : vector<64x32xf32>
    %cst_67 = arith.constant dense<0.000000e+00> : vector<64xf32>
    %130 = vector.multi_reduction <add>, %129, %cst_67 [1] : vector<64x32xf32> to vector<64xf32>
    %131 = vector.shape_cast %130 : vector<64xf32> to vector<64x1xf32>
    %cst_68 = arith.constant 3.200000e+01 : f32
    %132 = vector.broadcast %cst_68 : f32 to vector<64x1xf32>
    %133 = arith.divf %131, %132 : vector<64x1xf32>
    %134 = vector.broadcast %126 : vector<64x1xf32> to vector<64x32xf32>
    %135 = arith.subf %122, %134 : vector<64x32xf32>
    %cst_69 = arith.constant 9.99999974E-6 : f32
    %136 = vector.broadcast %cst_69 : f32 to vector<64x1xf32>
    %137 = arith.addf %133, %136 : vector<64x1xf32>
    %138 = math.rsqrt %137 : vector<64x1xf32>
    %139 = vector.broadcast %138 : vector<64x1xf32> to vector<64x32xf32>
    %140 = arith.mulf %135, %139 : vector<64x32xf32>
    %141 = vector.broadcast %6 : vector<1x32xf32> to vector<64x32xf32>
    %142 = arith.mulf %140, %141 : vector<64x32xf32>
    %143 = vector.broadcast %7 : vector<1x32xf32> to vector<64x32xf32>
    %144 = arith.addf %142, %143 : vector<64x32xf32>
    %145 = arith.truncf %144 : vector<64x32xf32> to vector<64x32xbf16>
    %cst_70 = arith.constant dense<0.000000e+00> : vector<64x64xf32>
    %146 = tpu.matmul %145, %8, %cst_70 {dimension_numbers = #tpu.dot_dimension_numbers<[1], [0], [0], [1], [0, 0, 1, 1], [], []>} : vector<64x32xbf16>, vector<32x64xbf16>, vector<64x64xf32> -> vector<64x64xf32>
    %147 = vector.broadcast %9 : vector<1x64xf32> to vector<64x64xf32>
    %148 = arith.addf %146, %147 : vector<64x64xf32>
    %149 = arith.truncf %27 : vector<64x32xf32> to vector<64x32xbf16>
    %cst_71 = arith.constant dense<0.000000e+00> : vector<64x128xf32>
    %150 = tpu.matmul %149, %10, %cst_71 {dimension_numbers = #tpu.dot_dimension_numbers<[1], [0], [0], [1], [0, 0, 1, 1], [], []>} : vector<64x32xbf16>, vector<32x128xbf16>, vector<64x128xf32> -> vector<64x128xf32>
    %151 = vector.broadcast %11 : vector<1x128xf32> to vector<64x128xf32>
    %152 = arith.addf %150, %151 : vector<64x128xf32>
    %153 = vector.extract_strided_slice %152 {offsets = [0, 0], sizes = [64, 64], strides = [1, 1]} : vector<64x128xf32> to vector<64x64xf32>
    %154 = vector.extract_strided_slice %152 {offsets = [0, 64], sizes = [64, 64], strides = [1, 1]} : vector<64x128xf32> to vector<64x64xf32>
    %cst_72 = arith.constant 2.500000e-01 : f32
    %155 = vector.broadcast %cst_72 : f32 to vector<64x64xf32>
    %156 = arith.mulf %148, %155 : vector<64x64xf32>
    %157 = arith.truncf %156 : vector<64x64xf32> to vector<64x64xbf16>
    %158 = vector.extract_strided_slice %157 {offsets = [0, 0], sizes = [64, 16], strides = [1, 1]} : vector<64x64xbf16> to vector<64x16xbf16>
    %159 = vector.shape_cast %158 : vector<64x16xbf16> to vector<2x32x16xbf16>
    %160 = vector.extract_strided_slice %157 {offsets = [0, 16], sizes = [64, 16], strides = [1, 1]} : vector<64x64xbf16> to vector<64x16xbf16>
    %161 = vector.shape_cast %160 : vector<64x16xbf16> to vector<2x32x16xbf16>
    %162 = vector.extract_strided_slice %157 {offsets = [0, 32], sizes = [64, 16], strides = [1, 1]} : vector<64x64xbf16> to vector<64x16xbf16>
    %163 = vector.shape_cast %162 : vector<64x16xbf16> to vector<2x32x16xbf16>
    %164 = vector.extract_strided_slice %157 {offsets = [0, 48], sizes = [64, 16], strides = [1, 1]} : vector<64x64xbf16> to vector<64x16xbf16>
    %165 = vector.shape_cast %164 : vector<64x16xbf16> to vector<2x32x16xbf16>
    %166 = vector.shape_cast %159 : vector<2x32x16xbf16> to vector<2x1x32x16xbf16>
    %167 = vector.shape_cast %161 : vector<2x32x16xbf16> to vector<2x1x32x16xbf16>
    %168 = vector.shape_cast %163 : vector<2x32x16xbf16> to vector<2x1x32x16xbf16>
    %169 = vector.shape_cast %165 : vector<2x32x16xbf16> to vector<2x1x32x16xbf16>
    %170 = tpu.concatenate %166, %167, %168, %169 in 1 : vector<2x1x32x16xbf16>, vector<2x1x32x16xbf16>, vector<2x1x32x16xbf16>, vector<2x1x32x16xbf16> -> vector<2x4x32x16xbf16>
    %171 = vector.shape_cast %170 : vector<2x4x32x16xbf16> to vector<8x32x16xbf16>
    %172 = arith.truncf %153 : vector<64x64xf32> to vector<64x64xbf16>
    %173 = vector.extract_strided_slice %172 {offsets = [0, 0], sizes = [64, 16], strides = [1, 1]} : vector<64x64xbf16> to vector<64x16xbf16>
    %174 = vector.shape_cast %173 : vector<64x16xbf16> to vector<2x32x16xbf16>
    %175 = vector.extract_strided_slice %172 {offsets = [0, 16], sizes = [64, 16], strides = [1, 1]} : vector<64x64xbf16> to vector<64x16xbf16>
    %176 = vector.shape_cast %175 : vector<64x16xbf16> to vector<2x32x16xbf16>
    %177 = vector.extract_strided_slice %172 {offsets = [0, 32], sizes = [64, 16], strides = [1, 1]} : vector<64x64xbf16> to vector<64x16xbf16>
    %178 = vector.shape_cast %177 : vector<64x16xbf16> to vector<2x32x16xbf16>
    %179 = vector.extract_strided_slice %172 {offsets = [0, 48], sizes = [64, 16], strides = [1, 1]} : vector<64x64xbf16> to vector<64x16xbf16>
    %180 = vector.shape_cast %179 : vector<64x16xbf16> to vector<2x32x16xbf16>
    %181 = vector.shape_cast %174 : vector<2x32x16xbf16> to vector<2x1x32x16xbf16>
    %182 = vector.shape_cast %176 : vector<2x32x16xbf16> to vector<2x1x32x16xbf16>
    %183 = vector.shape_cast %178 : vector<2x32x16xbf16> to vector<2x1x32x16xbf16>
    %184 = vector.shape_cast %180 : vector<2x32x16xbf16> to vector<2x1x32x16xbf16>
    %185 = tpu.concatenate %181, %182, %183, %184 in 1 : vector<2x1x32x16xbf16>, vector<2x1x32x16xbf16>, vector<2x1x32x16xbf16>, vector<2x1x32x16xbf16> -> vector<2x4x32x16xbf16>
    %186 = vector.shape_cast %185 : vector<2x4x32x16xbf16> to vector<8x32x16xbf16>
    %187 = arith.truncf %154 : vector<64x64xf32> to vector<64x64xbf16>
    %188 = vector.extract_strided_slice %187 {offsets = [0, 0], sizes = [64, 16], strides = [1, 1]} : vector<64x64xbf16> to vector<64x16xbf16>
    %189 = vector.shape_cast %188 : vector<64x16xbf16> to vector<2x32x16xbf16>
    %190 = vector.extract_strided_slice %187 {offsets = [0, 16], sizes = [64, 16], strides = [1, 1]} : vector<64x64xbf16> to vector<64x16xbf16>
    %191 = vector.shape_cast %190 : vector<64x16xbf16> to vector<2x32x16xbf16>
    %192 = vector.extract_strided_slice %187 {offsets = [0, 32], sizes = [64, 16], strides = [1, 1]} : vector<64x64xbf16> to vector<64x16xbf16>
    %193 = vector.shape_cast %192 : vector<64x16xbf16> to vector<2x32x16xbf16>
    %194 = vector.extract_strided_slice %187 {offsets = [0, 48], sizes = [64, 16], strides = [1, 1]} : vector<64x64xbf16> to vector<64x16xbf16>
    %195 = vector.shape_cast %194 : vector<64x16xbf16> to vector<2x32x16xbf16>
    %196 = vector.shape_cast %189 : vector<2x32x16xbf16> to vector<2x1x32x16xbf16>
    %197 = vector.shape_cast %191 : vector<2x32x16xbf16> to vector<2x1x32x16xbf16>
    %198 = vector.shape_cast %193 : vector<2x32x16xbf16> to vector<2x1x32x16xbf16>
    %199 = vector.shape_cast %195 : vector<2x32x16xbf16> to vector<2x1x32x16xbf16>
    %200 = tpu.concatenate %196, %197, %198, %199 in 1 : vector<2x1x32x16xbf16>, vector<2x1x32x16xbf16>, vector<2x1x32x16xbf16>, vector<2x1x32x16xbf16> -> vector<2x4x32x16xbf16>
    %201 = vector.shape_cast %200 : vector<2x4x32x16xbf16> to vector<8x32x16xbf16>
    "tpu.trace_start"() <{level = 10 : i32, message = "gqd,gkd->gqk"}> : () -> ()
    %cst_73 = arith.constant dense<0.000000e+00> : vector<8x32x32xf32>
    %202 = tpu.matmul %171, %186, %cst_73 {dimension_numbers = #tpu.dot_dimension_numbers<[2], [2], [1], [1], [0, 0, 0, 1, 1, 1], [0], [0]>} : vector<8x32x16xbf16>, vector<8x32x16xbf16>, vector<8x32x32xf32> -> vector<8x32x32xf32>
    "tpu.trace_stop"() : () -> ()
    %203 = vector.shape_cast %202 : vector<8x32x32xf32> to vector<2x4x32x32xf32>
    %204 = vector.shape_cast %31 : vector<2x32x32xf32> to vector<2x1x32x32xf32>
    %205 = vector.broadcast %204 : vector<2x1x32x32xf32> to vector<2x4x32x32xf32>
    %206 = arith.addf %203, %205 : vector<2x4x32x32xf32>
    %207 = vector.shape_cast %206 : vector<2x4x32x32xf32> to vector<8x32x32xf32>
    %cst_74 = arith.constant dense<0xFF800000> : vector<8x32xf32>
    %208 = vector.multi_reduction <maximumf>, %207, %cst_74 [2] : vector<8x32x32xf32> to vector<8x32xf32>
    %209 = vector.shape_cast %208 : vector<8x32xf32> to vector<8x32x1xf32>
    %210 = vector.broadcast %209 : vector<8x32x1xf32> to vector<8x32x32xf32>
    %211 = arith.subf %207, %210 : vector<8x32x32xf32>
    %212 = math.exp %211 : vector<8x32x32xf32>
    %cst_75 = arith.constant dense<0.000000e+00> : vector<8x32xf32>
    %213 = vector.multi_reduction <add>, %212, %cst_75 [2] : vector<8x32x32xf32> to vector<8x32xf32>
    %214 = vector.shape_cast %213 : vector<8x32xf32> to vector<8x32x1xf32>
    %215 = tpu.reciprocal %214 {approx = true} : vector<8x32x1xf32> -> vector<8x32x1xf32>
    %216 = vector.broadcast %215 : vector<8x32x1xf32> to vector<8x32x32xf32>
    %217 = arith.mulf %212, %216 : vector<8x32x32xf32>
    %218 = arith.truncf %217 : vector<8x32x32xf32> to vector<8x32x32xbf16>
    "tpu.trace_start"() <{level = 10 : i32, message = "gqk,gkd->gqd"}> : () -> ()
    %cst_76 = arith.constant dense<0.000000e+00> : vector<8x32x16xf32>
    %219 = tpu.matmul %218, %201, %cst_76 {dimension_numbers = #tpu.dot_dimension_numbers<[2], [1], [1], [2], [0, 0, 0, 1, 1, 2], [0], [0]>} : vector<8x32x32xbf16>, vector<8x32x16xbf16>, vector<8x32x16xf32> -> vector<8x32x16xf32>
    "tpu.trace_stop"() : () -> ()
    %220 = vector.shape_cast %219 : vector<8x32x16xf32> to vector<2x4x32x16xf32>
    %221 = vector.extract_strided_slice %220 {offsets = [0, 0, 0, 0], sizes = [2, 1, 32, 16], strides = [1, 1, 1, 1]} : vector<2x4x32x16xf32> to vector<2x1x32x16xf32>
    %222 = vector.shape_cast %221 : vector<2x1x32x16xf32> to vector<2x32x16xf32>
    %223 = vector.extract_strided_slice %220 {offsets = [0, 1, 0, 0], sizes = [2, 1, 32, 16], strides = [1, 1, 1, 1]} : vector<2x4x32x16xf32> to vector<2x1x32x16xf32>
    %224 = vector.shape_cast %223 : vector<2x1x32x16xf32> to vector<2x32x16xf32>
    %225 = vector.extract_strided_slice %220 {offsets = [0, 2, 0, 0], sizes = [2, 1, 32, 16], strides = [1, 1, 1, 1]} : vector<2x4x32x16xf32> to vector<2x1x32x16xf32>
    %226 = vector.shape_cast %225 : vector<2x1x32x16xf32> to vector<2x32x16xf32>
    %227 = vector.extract_strided_slice %220 {offsets = [0, 3, 0, 0], sizes = [2, 1, 32, 16], strides = [1, 1, 1, 1]} : vector<2x4x32x16xf32> to vector<2x1x32x16xf32>
    %228 = vector.shape_cast %227 : vector<2x1x32x16xf32> to vector<2x32x16xf32>
    %229 = tpu.concatenate %222, %224, %226, %228 in 2 : vector<2x32x16xf32>, vector<2x32x16xf32>, vector<2x32x16xf32>, vector<2x32x16xf32> -> vector<2x32x64xf32>
    %230 = vector.shape_cast %229 : vector<2x32x64xf32> to vector<64x64xf32>
    %231 = arith.truncf %230 : vector<64x64xf32> to vector<64x64xbf16>
    %cst_77 = arith.constant dense<0.000000e+00> : vector<64x32xf32>
    %232 = tpu.matmul %231, %12, %cst_77 {dimension_numbers = #tpu.dot_dimension_numbers<[1], [0], [0], [1], [0, 0, 1, 1], [], []>} : vector<64x64xbf16>, vector<64x32xbf16>, vector<64x32xf32> -> vector<64x32xf32>
    %233 = vector.broadcast %13 : vector<1x32xf32> to vector<64x32xf32>
    %234 = arith.addf %232, %233 : vector<64x32xf32>
    %235 = arith.addf %234, %144 : vector<64x32xf32>
    %cst_78 = arith.constant dense<0.000000e+00> : vector<64xf32>
    %236 = vector.multi_reduction <add>, %235, %cst_78 [1] : vector<64x32xf32> to vector<64xf32>
    %237 = vector.shape_cast %236 : vector<64xf32> to vector<64x1xf32>
    %cst_79 = arith.constant 3.200000e+01 : f32
    %238 = vector.broadcast %cst_79 : f32 to vector<64x1xf32>
    %239 = arith.divf %237, %238 : vector<64x1xf32>
    %240 = vector.broadcast %239 : vector<64x1xf32> to vector<64x32xf32>
    %241 = arith.subf %235, %240 : vector<64x32xf32>
    %242 = arith.mulf %241, %241 : vector<64x32xf32>
    %cst_80 = arith.constant dense<0.000000e+00> : vector<64xf32>
    %243 = vector.multi_reduction <add>, %242, %cst_80 [1] : vector<64x32xf32> to vector<64xf32>
    %244 = vector.shape_cast %243 : vector<64xf32> to vector<64x1xf32>
    %cst_81 = arith.constant 3.200000e+01 : f32
    %245 = vector.broadcast %cst_81 : f32 to vector<64x1xf32>
    %246 = arith.divf %244, %245 : vector<64x1xf32>
    %247 = vector.broadcast %239 : vector<64x1xf32> to vector<64x32xf32>
    %248 = arith.subf %235, %247 : vector<64x32xf32>
    %cst_82 = arith.constant 9.99999974E-6 : f32
    %249 = vector.broadcast %cst_82 : f32 to vector<64x1xf32>
    %250 = arith.addf %246, %249 : vector<64x1xf32>
    %251 = math.rsqrt %250 : vector<64x1xf32>
    %252 = vector.broadcast %251 : vector<64x1xf32> to vector<64x32xf32>
    %253 = arith.mulf %248, %252 : vector<64x32xf32>
    %254 = vector.broadcast %14 : vector<1x32xf32> to vector<64x32xf32>
    %255 = arith.mulf %253, %254 : vector<64x32xf32>
    %256 = vector.broadcast %15 : vector<1x32xf32> to vector<64x32xf32>
    %257 = arith.addf %255, %256 : vector<64x32xf32>
    %258 = arith.truncf %257 : vector<64x32xf32> to vector<64x32xbf16>
    %cst_83 = arith.constant dense<0.000000e+00> : vector<64x64xf32>
    %259 = tpu.matmul %258, %16, %cst_83 {dimension_numbers = #tpu.dot_dimension_numbers<[1], [0], [0], [1], [0, 0, 1, 1], [], []>} : vector<64x32xbf16>, vector<32x64xbf16>, vector<64x64xf32> -> vector<64x64xf32>
    %260 = vector.broadcast %17 : vector<1x64xf32> to vector<64x64xf32>
    %261 = arith.addf %259, %260 : vector<64x64xf32>
    %cst_84 = arith.constant 0.000000e+00 : f32
    %262 = vector.broadcast %cst_84 : f32 to vector<64x64xf32>
    %263 = arith.maximumf %261, %262 : vector<64x64xf32>
    %264 = arith.truncf %263 : vector<64x64xf32> to vector<64x64xbf16>
    %cst_85 = arith.constant dense<0.000000e+00> : vector<64x32xf32>
    %265 = tpu.matmul %264, %18, %cst_85 {dimension_numbers = #tpu.dot_dimension_numbers<[1], [0], [0], [1], [0, 0, 1, 1], [], []>} : vector<64x64xbf16>, vector<64x32xbf16>, vector<64x32xf32> -> vector<64x32xf32>
    %266 = vector.broadcast %19 : vector<1x32xf32> to vector<64x32xf32>
    %267 = arith.addf %265, %266 : vector<64x32xf32>
    %268 = arith.addf %267, %257 : vector<64x32xf32>
    %cst_86 = arith.constant dense<0.000000e+00> : vector<64xf32>
    %269 = vector.multi_reduction <add>, %268, %cst_86 [1] : vector<64x32xf32> to vector<64xf32>
    %270 = vector.shape_cast %269 : vector<64xf32> to vector<64x1xf32>
    %cst_87 = arith.constant 3.200000e+01 : f32
    %271 = vector.broadcast %cst_87 : f32 to vector<64x1xf32>
    %272 = arith.divf %270, %271 : vector<64x1xf32>
    %273 = vector.broadcast %272 : vector<64x1xf32> to vector<64x32xf32>
    %274 = arith.subf %268, %273 : vector<64x32xf32>
    %275 = arith.mulf %274, %274 : vector<64x32xf32>
    %cst_88 = arith.constant dense<0.000000e+00> : vector<64xf32>
    %276 = vector.multi_reduction <add>, %275, %cst_88 [1] : vector<64x32xf32> to vector<64xf32>
    %277 = vector.shape_cast %276 : vector<64xf32> to vector<64x1xf32>
    %cst_89 = arith.constant 3.200000e+01 : f32
    %278 = vector.broadcast %cst_89 : f32 to vector<64x1xf32>
    %279 = arith.divf %277, %278 : vector<64x1xf32>
    %280 = vector.broadcast %272 : vector<64x1xf32> to vector<64x32xf32>
    %281 = arith.subf %268, %280 : vector<64x32xf32>
    %cst_90 = arith.constant 9.99999974E-6 : f32
    %282 = vector.broadcast %cst_90 : f32 to vector<64x1xf32>
    %283 = arith.addf %279, %282 : vector<64x1xf32>
    %284 = math.rsqrt %283 : vector<64x1xf32>
    %285 = vector.broadcast %284 : vector<64x1xf32> to vector<64x32xf32>
    %286 = arith.mulf %281, %285 : vector<64x32xf32>
    %287 = vector.broadcast %20 : vector<1x32xf32> to vector<64x32xf32>
    %288 = arith.mulf %286, %287 : vector<64x32xf32>
    %289 = vector.broadcast %21 : vector<1x32xf32> to vector<64x32xf32>
    %290 = arith.addf %288, %289 : vector<64x32xf32>
    %291 = vector.shape_cast %290 : vector<64x32xf32> to vector<2x32x32xf32>
    %c0_91 = arith.constant 0 : index
    %c0_92 = arith.constant 0 : index
    %c0_93 = arith.constant 0 : index
    %292 = vector.load %arg29[%c0_91, %c0_92, %c0_93] : memref<2x32x32xf32, #tpu.memory_space<vmem>>, vector<2x32x32xf32>
    tpu.vector_store %arg29[%c0_91, %c0_92, %c0_93], %291 {strides = array<i32>} : memref<2x32x32xf32, #tpu.memory_space<vmem>>, vector<2x32x32xf32>,
    return
  }
  func.func @transform_0(%arg0: i32, %arg1: i32) -> (i32, i32, i32) {
    %c0_i32 = arith.constant 0 : i32
    %c0_i32_0 = arith.constant 0 : i32
    return %arg0, %arg1, %c0_i32 : i32, i32, i32
  }
  func.func @transform_1(%arg0: i32, %arg1: i32) -> (i32, i32, i32) {
    %c0_i32 = arith.constant 0 : i32
    %c0_i32_0 = arith.constant 0 : i32
    %c0_i32_1 = arith.constant 0 : i32
    return %arg0, %c0_i32, %c0_i32_0 : i32, i32, i32
  }
  func.func @transform_2(%arg0: i32, %arg1: i32) -> (i32, i32, i32) {
    %c0_i32 = arith.constant 0 : i32
    %c0_i32_0 = arith.constant 0 : i32
    %c0_i32_1 = arith.constant 0 : i32
    return %arg0, %c0_i32, %c0_i32_0 : i32, i32, i32
  }
  func.func @transform_3(%arg0: i32, %arg1: i32) -> (i32, i32, i32) {
    %c0_i32 = arith.constant 0 : i32
    %c0_i32_0 = arith.constant 0 : i32
    return %arg0, %arg1, %c0_i32 : i32, i32, i32
  }
  func.func @transform_4(%arg0: i32, %arg1: i32) -> (i32, i32, i32) {
    %c0_i32 = arith.constant 0 : i32
    %c0_i32_0 = arith.constant 0 : i32
    return %arg0, %arg1, %c0_i32 : i32, i32, i32
  }
  func.func @transform_5(%arg0: i32, %arg1: i32) -> (i32, i32) {
    %c0_i32 = arith.constant 0 : i32
    %c0_i32_0 = arith.constant 0 : i32
    %c0_i32_1 = arith.constant 0 : i32
    return %c0_i32, %c0_i32_0 : i32, i32
  }
  func.func @transform_6(%arg0: i32, %arg1: i32) -> (i32, i32) {
    %c0_i32 = arith.constant 0 : i32
    %c0_i32_0 = arith.constant 0 : i32
    %c0_i32_1 = arith.constant 0 : i32
    return %c0_i32, %c0_i32_0 : i32, i32
  }
  func.func @transform_7(%arg0: i32, %arg1: i32) -> (i32, i32) {
    %c0_i32 = arith.constant 0 : i32
    %c0_i32_0 = arith.constant 0 : i32
    %c0_i32_1 = arith.constant 0 : i32
    return %c0_i32, %c0_i32_0 : i32, i32
  }
  func.func @transform_8(%arg0: i32, %arg1: i32) -> (i32, i32) {
    %c0_i32 = arith.constant 0 : i32
    %c0_i32_0 = arith.constant 0 : i32
    %c0_i32_1 = arith.constant 0 : i32
    return %c0_i32, %c0_i32_0 : i32, i32
  }
  func.func @transform_9(%arg0: i32, %arg1: i32) -> (i32, i32) {
    %c0_i32 = arith.constant 0 : i32
    %c0_i32_0 = arith.constant 0 : i32
    %c0_i32_1 = arith.constant 0 : i32
    return %c0_i32, %c0_i32_0 : i32, i32
  }
  func.func @transform_10(%arg0: i32, %arg1: i32) -> (i32, i32) {
    %c0_i32 = arith.constant 0 : i32
    %c0_i32_0 = arith.constant 0 : i32
    %c0_i32_1 = arith.constant 0 : i32
    return %c0_i32, %c0_i32_0 : i32, i32
  }
  func.func @transform_11(%arg0: i32, %arg1: i32) -> (i32, i32) {
    %c0_i32 = arith.constant 0 : i32
    %c0_i32_0 = arith.constant 0 : i32
    %c0_i32_1 = arith.constant 0 : i32
    return %c0_i32, %c0_i32_0 : i32, i32
  }
  func.func @transform_12(%arg0: i32, %arg1: i32) -> (i32, i32) {
    %c0_i32 = arith.constant 0 : i32
    %c0_i32_0 = arith.constant 0 : i32
    %c0_i32_1 = arith.constant 0 : i32
    return %c0_i32, %c0_i32_0 : i32, i32
  }
  func.func @transform_13(%arg0: i32, %arg1: i32) -> (i32, i32) {
    %c0_i32 = arith.constant 0 : i32
    %c0_i32_0 = arith.constant 0 : i32
    %c0_i32_1 = arith.constant 0 : i32
    return %c0_i32, %c0_i32_0 : i32, i32
  }
  func.func @transform_14(%arg0: i32, %arg1: i32) -> (i32, i32) {
    %c0_i32 = arith.constant 0 : i32
    %c0_i32_0 = arith.constant 0 : i32
    %c0_i32_1 = arith.constant 0 : i32
    return %c0_i32, %c0_i32_0 : i32, i32
  }
  func.func @transform_15(%arg0: i32, %arg1: i32) -> (i32, i32) {
    %c0_i32 = arith.constant 0 : i32
    %c0_i32_0 = arith.constant 0 : i32
    %c0_i32_1 = arith.constant 0 : i32
    return %c0_i32, %c0_i32_0 : i32, i32
  }
  func.func @transform_16(%arg0: i32, %arg1: i32) -> (i32, i32) {
    %c0_i32 = arith.constant 0 : i32
    %c0_i32_0 = arith.constant 0 : i32
    %c0_i32_1 = arith.constant 0 : i32
    return %c0_i32, %c0_i32_0 : i32, i32
  }
  func.func @transform_17(%arg0: i32, %arg1: i32) -> (i32, i32) {
    %c0_i32 = arith.constant 0 : i32
    %c0_i32_0 = arith.constant 0 : i32
    %c0_i32_1 = arith.constant 0 : i32
    return %c0_i32, %c0_i32_0 : i32, i32
  }
  func.func @transform_18(%arg0: i32, %arg1: i32) -> (i32, i32) {
    %c0_i32 = arith.constant 0 : i32
    %c0_i32_0 = arith.constant 0 : i32
    %c0_i32_1 = arith.constant 0 : i32
    return %c0_i32, %c0_i32_0 : i32, i32
  }
  func.func @transform_19(%arg0: i32, %arg1: i32) -> (i32, i32) {
    %c0_i32 = arith.constant 0 : i32
    %c0_i32_0 = arith.constant 0 : i32
    %c0_i32_1 = arith.constant 0 : i32
    return %c0_i32, %c0_i32_0 : i32, i32
  }
  func.func @transform_20(%arg0: i32, %arg1: i32) -> (i32, i32) {
    %c0_i32 = arith.constant 0 : i32
    %c0_i32_0 = arith.constant 0 : i32
    %c0_i32_1 = arith.constant 0 : i32
    return %c0_i32, %c0_i32_0 : i32, i32
  }
  func.func @transform_21(%arg0: i32, %arg1: i32) -> (i32, i32) {
    %c0_i32 = arith.constant 0 : i32
    %c0_i32_0 = arith.constant 0 : i32
    %c0_i32_1 = arith.constant 0 : i32
    return %c0_i32, %c0_i32_0 : i32, i32
  }
  func.func @transform_22(%arg0: i32, %arg1: i32) -> (i32, i32) {
    %c0_i32 = arith.constant 0 : i32
    %c0_i32_0 = arith.constant 0 : i32
    %c0_i32_1 = arith.constant 0 : i32
    return %c0_i32, %c0_i32_0 : i32, i32
  }
  func.func @transform_23(%arg0: i32, %arg1: i32) -> (i32, i32) {
    %c0_i32 = arith.constant 0 : i32
    %c0_i32_0 = arith.constant 0 : i32
    %c0_i32_1 = arith.constant 0 : i32
    return %c0_i32, %c0_i32_0 : i32, i32
  }
  func.func @transform_24(%arg0: i32, %arg1: i32) -> (i32, i32) {
    %c0_i32 = arith.constant 0 : i32
    %c0_i32_0 = arith.constant 0 : i32
    %c0_i32_1 = arith.constant 0 : i32
    return %c0_i32, %c0_i32_0 : i32, i32
  }
  func.func @transform_25(%arg0: i32, %arg1: i32) -> (i32, i32) {
    %c0_i32 = arith.constant 0 : i32
    %c0_i32_0 = arith.constant 0 : i32
    %c0_i32_1 = arith.constant 0 : i32
    return %c0_i32, %c0_i32_0 : i32, i32
  }
  func.func @transform_26(%arg0: i32, %arg1: i32) -> (i32, i32) {
    %c0_i32 = arith.constant 0 : i32
    %c0_i32_0 = arith.constant 0 : i32
    %c0_i32_1 = arith.constant 0 : i32
    return %c0_i32, %c0_i32_0 : i32, i32
  }
  func.func @transform_27(%arg0: i32, %arg1: i32) -> (i32, i32, i32) {
    %c0_i32 = arith.constant 0 : i32
    %c0_i32_0 = arith.constant 0 : i32
    return %arg0, %arg1, %c0_i32 : i32, i32, i32
  }
}

module attributes {stable_mosaic.version = 11 : i64} {
  func.func @_decoder_block_kernel(%arg0: i32, %arg1: i32, %arg2: memref<2x32x32xf32, #tpu.memory_space<vmem>>, %arg3: memref<2x32x32xf32, #tpu.memory_space<vmem>>, %arg4: memref<2x32x32xf32, #tpu.memory_space<vmem>>, %arg5: memref<2x32x32xbf16, #tpu.memory_space<vmem>>, %arg6: memref<2x32x32xbf16, #tpu.memory_space<vmem>>, %arg7: memref<32x64xbf16, #tpu.memory_space<vmem>>, %arg8: memref<1x64xf32, #tpu.memory_space<vmem>>, %arg9: memref<32x128xbf16, #tpu.memory_space<vmem>>, %arg10: memref<1x128xf32, #tpu.memory_space<vmem>>, %arg11: memref<64x32xbf16, #tpu.memory_space<vmem>>, %arg12: memref<1x32xf32, #tpu.memory_space<vmem>>, %arg13: memref<1x32xf32, #tpu.memory_space<vmem>>, %arg14: memref<1x32xf32, #tpu.memory_space<vmem>>, %arg15: memref<32x64xbf16, #tpu.memory_space<vmem>>, %arg16: memref<1x64xf32, #tpu.memory_space<vmem>>, %arg17: memref<32x128xbf16, #tpu.memory_space<vmem>>, %arg18: memref<1x128xf32, #tpu.memory_space<vmem>>, %arg19: memref<64x32xbf16, #tpu.memory_space<vmem>>, %arg20: memref<1x32xf32, #tpu.memory_space<vmem>>, %arg21: memref<1x32xf32, #tpu.memory_space<vmem>>, %arg22: memref<1x32xf32, #tpu.memory_space<vmem>>, %arg23: memref<32x64xbf16, #tpu.memory_space<vmem>>, %arg24: memref<1x64xf32, #tpu.memory_space<vmem>>, %arg25: memref<64x32xbf16, #tpu.memory_space<vmem>>, %arg26: memref<1x32xf32, #tpu.memory_space<vmem>>, %arg27: memref<1x32xf32, #tpu.memory_space<vmem>>, %arg28: memref<1x32xf32, #tpu.memory_space<vmem>>, %arg29: memref<2x32x32xf32, #tpu.memory_space<vmem>>) attributes {dimension_semantics = [#tpu.dimension_semantics<parallel>, #tpu.dimension_semantics<parallel>], iteration_bounds = array<i64: 1, 1>, scalar_prefetch = 0 : i64, scratch_operands = 0 : i64, tpu.core_type = #tpu.core_type<tc>, window_params = [{transform_indices = @transform_0, window_bounds = array<i64: 2, 32, 32>}, {transform_indices = @transform_1, window_bounds = array<i64: 2, 32, 32>}, {transform_indices = @transform_2, window_bounds = array<i64: 2, 32, 32>}, {transform_indices = @transform_3, window_bounds = array<i64: 2, 32, 32>}, {transform_indices = @transform_4, window_bounds = array<i64: 2, 32, 32>}, {pipeline_mode = #tpu.pipeline_mode<synchronous>, transform_indices = @transform_5, window_bounds = array<i64: 32, 64>}, {pipeline_mode = #tpu.pipeline_mode<synchronous>, transform_indices = @transform_6, window_bounds = array<i64: 1, 64>}, {pipeline_mode = #tpu.pipeline_mode<synchronous>, transform_indices = @transform_7, window_bounds = array<i64: 32, 128>}, {pipeline_mode = #tpu.pipeline_mode<synchronous>, transform_indices = @transform_8, window_bounds = array<i64: 1, 128>}, {pipeline_mode = #tpu.pipeline_mode<synchronous>, transform_indices = @transform_9, window_bounds = array<i64: 64, 32>}, {pipeline_mode = #tpu.pipeline_mode<synchronous>, transform_indices = @transform_10, window_bounds = array<i64: 1, 32>}, {pipeline_mode = #tpu.pipeline_mode<synchronous>, transform_indices = @transform_11, window_bounds = array<i64: 1, 32>}, {pipeline_mode = #tpu.pipeline_mode<synchronous>, transform_indices = @transform_12, window_bounds = array<i64: 1, 32>}, {pipeline_mode = #tpu.pipeline_mode<synchronous>, transform_indices = @transform_13, window_bounds = array<i64: 32, 64>}, {pipeline_mode = #tpu.pipeline_mode<synchronous>, transform_indices = @transform_14, window_bounds = array<i64: 1, 64>}, {pipeline_mode = #tpu.pipeline_mode<synchronous>, transform_indices = @transform_15, window_bounds = array<i64: 32, 128>}, {pipeline_mode = #tpu.pipeline_mode<synchronous>, transform_indices = @transform_16, window_bounds = array<i64: 1, 128>}, {pipeline_mode = #tpu.pipeline_mode<synchronous>, transform_indices = @transform_17, window_bounds = array<i64: 64, 32>}, {pipeline_mode = #tpu.pipeline_mode<synchronous>, transform_indices = @transform_18, window_bounds = array<i64: 1, 32>}, {pipeline_mode = #tpu.pipeline_mode<synchronous>, transform_indices = @transform_19, window_bounds = array<i64: 1, 32>}, {pipeline_mode = #tpu.pipeline_mode<synchronous>, transform_indices = @transform_20, window_bounds = array<i64: 1, 32>}, {pipeline_mode = #tpu.pipeline_mode<synchronous>, transform_indices = @transform_21, window_bounds = array<i64: 32, 64>}, {pipeline_mode = #tpu.pipeline_mode<synchronous>, transform_indices = @transform_22, window_bounds = array<i64: 1, 64>}, {pipeline_mode = #tpu.pipeline_mode<synchronous>, transform_indices = @transform_23, window_bounds = array<i64: 64, 32>}, {pipeline_mode = #tpu.pipeline_mode<synchronous>, transform_indices = @transform_24, window_bounds = array<i64: 1, 32>}, {pipeline_mode = #tpu.pipeline_mode<synchronous>, transform_indices = @transform_25, window_bounds = array<i64: 1, 32>}, {pipeline_mode = #tpu.pipeline_mode<synchronous>, transform_indices = @transform_26, window_bounds = array<i64: 1, 32>}, {transform_indices = @transform_27, window_bounds = array<i64: 2, 32, 32>}]} {
    %c0 = arith.constant 0 : index
    %c0_0 = arith.constant 0 : index
    %0 = vector.load %arg7[%c0, %c0_0] : memref<32x64xbf16, #tpu.memory_space<vmem>>, vector<32x64xbf16>
    %c0_1 = arith.constant 0 : index
    %c0_2 = arith.constant 0 : index
    %1 = vector.load %arg8[%c0_1, %c0_2] : memref<1x64xf32, #tpu.memory_space<vmem>>, vector<1x64xf32>
    %c0_3 = arith.constant 0 : index
    %c0_4 = arith.constant 0 : index
    %2 = vector.load %arg9[%c0_3, %c0_4] : memref<32x128xbf16, #tpu.memory_space<vmem>>, vector<32x128xbf16>
    %c0_5 = arith.constant 0 : index
    %c0_6 = arith.constant 0 : index
    %3 = vector.load %arg10[%c0_5, %c0_6] : memref<1x128xf32, #tpu.memory_space<vmem>>, vector<1x128xf32>
    %c0_7 = arith.constant 0 : index
    %c0_8 = arith.constant 0 : index
    %4 = vector.load %arg11[%c0_7, %c0_8] : memref<64x32xbf16, #tpu.memory_space<vmem>>, vector<64x32xbf16>
    %c0_9 = arith.constant 0 : index
    %c0_10 = arith.constant 0 : index
    %5 = vector.load %arg12[%c0_9, %c0_10] : memref<1x32xf32, #tpu.memory_space<vmem>>, vector<1x32xf32>
    %c0_11 = arith.constant 0 : index
    %c0_12 = arith.constant 0 : index
    %6 = vector.load %arg13[%c0_11, %c0_12] : memref<1x32xf32, #tpu.memory_space<vmem>>, vector<1x32xf32>
    %c0_13 = arith.constant 0 : index
    %c0_14 = arith.constant 0 : index
    %7 = vector.load %arg14[%c0_13, %c0_14] : memref<1x32xf32, #tpu.memory_space<vmem>>, vector<1x32xf32>
    %c0_15 = arith.constant 0 : index
    %c0_16 = arith.constant 0 : index
    %8 = vector.load %arg15[%c0_15, %c0_16] : memref<32x64xbf16, #tpu.memory_space<vmem>>, vector<32x64xbf16>
    %c0_17 = arith.constant 0 : index
    %c0_18 = arith.constant 0 : index
    %9 = vector.load %arg16[%c0_17, %c0_18] : memref<1x64xf32, #tpu.memory_space<vmem>>, vector<1x64xf32>
    %c0_19 = arith.constant 0 : index
    %c0_20 = arith.constant 0 : index
    %10 = vector.load %arg17[%c0_19, %c0_20] : memref<32x128xbf16, #tpu.memory_space<vmem>>, vector<32x128xbf16>
    %c0_21 = arith.constant 0 : index
    %c0_22 = arith.constant 0 : index
    %11 = vector.load %arg18[%c0_21, %c0_22] : memref<1x128xf32, #tpu.memory_space<vmem>>, vector<1x128xf32>
    %c0_23 = arith.constant 0 : index
    %c0_24 = arith.constant 0 : index
    %12 = vector.load %arg19[%c0_23, %c0_24] : memref<64x32xbf16, #tpu.memory_space<vmem>>, vector<64x32xbf16>
    %c0_25 = arith.constant 0 : index
    %c0_26 = arith.constant 0 : index
    %13 = vector.load %arg20[%c0_25, %c0_26] : memref<1x32xf32, #tpu.memory_space<vmem>>, vector<1x32xf32>
    %c0_27 = arith.constant 0 : index
    %c0_28 = arith.constant 0 : index
    %14 = vector.load %arg21[%c0_27, %c0_28] : memref<1x32xf32, #tpu.memory_space<vmem>>, vector<1x32xf32>
    %c0_29 = arith.constant 0 : index
    %c0_30 = arith.constant 0 : index
    %15 = vector.load %arg22[%c0_29, %c0_30] : memref<1x32xf32, #tpu.memory_space<vmem>>, vector<1x32xf32>
    %c0_31 = arith.constant 0 : index
    %c0_32 = arith.constant 0 : index
    %16 = vector.load %arg23[%c0_31, %c0_32] : memref<32x64xbf16, #tpu.memory_space<vmem>>, vector<32x64xbf16>
    %c0_33 = arith.constant 0 : index
    %c0_34 = arith.constant 0 : index
    %17 = vector.load %arg24[%c0_33, %c0_34] : memref<1x64xf32, #tpu.memory_space<vmem>>, vector<1x64xf32>
    %c0_35 = arith.constant 0 : index
    %c0_36 = arith.constant 0 : index
    %18 = vector.load %arg25[%c0_35, %c0_36] : memref<64x32xbf16, #tpu.memory_space<vmem>>, vector<64x32xbf16>
    %c0_37 = arith.constant 0 : index
    %c0_38 = arith.constant 0 : index
    %19 = vector.load %arg26[%c0_37, %c0_38] : memref<1x32xf32, #tpu.memory_space<vmem>>, vector<1x32xf32>
    %c0_39 = arith.constant 0 : index
    %c0_40 = arith.constant 0 : index
    %20 = vector.load %arg27[%c0_39, %c0_40] : memref<1x32xf32, #tpu.memory_space<vmem>>, vector<1x32xf32>
    %c0_41 = arith.constant 0 : index
    %c0_42 = arith.constant 0 : index
    %21 = vector.load %arg28[%c0_41, %c0_42] : memref<1x32xf32, #tpu.memory_space<vmem>>, vector<1x32xf32>
    %c0_43 = arith.constant 0 : index
    %c0_44 = arith.constant 0 : index
    %c0_45 = arith.constant 0 : index
    %22 = vector.load %arg2[%c0_43, %c0_44, %c0_45] : memref<2x32x32xf32, #tpu.memory_space<vmem>>, vector<2x32x32xf32>
    %23 = vector.shape_cast %22 : vector<2x32x32xf32> to vector<64x32xf32>
    %c0_46 = arith.constant 0 : index
    %c0_47 = arith.constant 0 : index
    %c0_48 = arith.constant 0 : index
    %24 = vector.load %arg3[%c0_46, %c0_47, %c0_48] : memref<2x32x32xf32, #tpu.memory_space<vmem>>, vector<2x32x32xf32>
    %25 = vector.shape_cast %24 : vector<2x32x32xf32> to vector<64x32xf32>
    %c0_49 = arith.constant 0 : index
    %c0_50 = arith.constant 0 : index
    %c0_51 = arith.constant 0 : index
    %26 = vector.load %arg4[%c0_49, %c0_50, %c0_51] : memref<2x32x32xf32, #tpu.memory_space<vmem>>, vector<2x32x32xf32>
    %27 = vector.shape_cast %26 : vector<2x32x32xf32> to vector<64x32xf32>
    %c0_52 = arith.constant 0 : index
    %c0_53 = arith.constant 0 : index
    %c0_54 = arith.constant 0 : index
    %28 = vector.load %arg5[%c0_52, %c0_53, %c0_54] : memref<2x32x32xbf16, #tpu.memory_space<vmem>>, vector<2x32x32xbf16>
    %29 = arith.extf %28 : vector<2x32x32xbf16> to vector<2x32x32xf32>
    %c0_55 = arith.constant 0 : index
    %c0_56 = arith.constant 0 : index
    %c0_57 = arith.constant 0 : index
    %30 = vector.load %arg6[%c0_55, %c0_56, %c0_57] : memref<2x32x32xbf16, #tpu.memory_space<vmem>>, vector<2x32x32xbf16>
    %31 = arith.extf %30 : vector<2x32x32xbf16> to vector<2x32x32xf32>
    %32 = arith.truncf %23 : vector<64x32xf32> to vector<64x32xbf16>
    %cst = arith.constant dense<0.000000e+00> : vector<64x64xf32>
    %33 = tpu.matmul %32, %0, %cst {dimension_numbers = #tpu.dot_dimension_numbers<[1], [0], [0], [1], [0, 0, 1, 1], [], []>} : vector<64x32xbf16>, vector<32x64xbf16>, vector<64x64xf32> -> vector<64x64xf32>
    %34 = vector.broadcast %1 : vector<1x64xf32> to vector<64x64xf32>
    %35 = arith.addf %33, %34 : vector<64x64xf32>
    %36 = arith.truncf %25 : vector<64x32xf32> to vector<64x32xbf16>
    %cst_58 = arith.constant dense<0.000000e+00> : vector<64x128xf32>
    %37 = tpu.matmul %36, %2, %cst_58 {dimension_numbers = #tpu.dot_dimension_numbers<[1], [0], [0], [1], [0, 0, 1, 1], [], []>} : vector<64x32xbf16>, vector<32x128xbf16>, vector<64x128xf32> -> vector<64x128xf32>
    %38 = vector.broadcast %3 : vector<1x128xf32> to vector<64x128xf32>
    %39 = arith.addf %37, %38 : vector<64x128xf32>
    %40 = vector.extract_strided_slice %39 {offsets = [0, 0], sizes = [64, 64], strides = [1, 1]} : vector<64x128xf32> to vector<64x64xf32>
    %41 = vector.extract_strided_slice %39 {offsets = [0, 64], sizes = [64, 64], strides = [1, 1]} : vector<64x128xf32> to vector<64x64xf32>
    %cst_59 = arith.constant 2.500000e-01 : f32
    %42 = vector.broadcast %cst_59 : f32 to vector<64x64xf32>
    %43 = arith.mulf %35, %42 : vector<64x64xf32>
    %44 = arith.truncf %43 : vector<64x64xf32> to vector<64x64xbf16>
    %45 = vector.extract_strided_slice %44 {offsets = [0, 0], sizes = [64, 16], strides = [1, 1]} : vector<64x64xbf16> to vector<64x16xbf16>
    %46 = vector.shape_cast %45 : vector<64x16xbf16> to vector<2x32x16xbf16>
    %47 = vector.extract_strided_slice %44 {offsets = [0, 16], sizes = [64, 16], strides = [1, 1]} : vector<64x64xbf16> to vector<64x16xbf16>
    %48 = vector.shape_cast %47 : vector<64x16xbf16> to vector<2x32x16xbf16>
    %49 = vector.extract_strided_slice %44 {offsets = [0, 32], sizes = [64, 16], strides = [1, 1]} : vector<64x64xbf16> to vector<64x16xbf16>
    %50 = vector.shape_cast %49 : vector<64x16xbf16> to vector<2x32x16xbf16>
    %51 = vector.extract_strided_slice %44 {offsets = [0, 48], sizes = [64, 16], strides = [1, 1]} : vector<64x64xbf16> to vector<64x16xbf16>
    %52 = vector.shape_cast %51 : vector<64x16xbf16> to vector<2x32x16xbf16>
    %53 = vector.shape_cast %46 : vector<2x32x16xbf16> to vector<2x1x32x16xbf16>
    %54 = vector.shape_cast %48 : vector<2x32x16xbf16> to vector<2x1x32x16xbf16>
    %55 = vector.shape_cast %50 : vector<2x32x16xbf16> to vector<2x1x32x16xbf16>
    %56 = vector.shape_cast %52 : vector<2x32x16xbf16> to vector<2x1x32x16xbf16>
    %57 = tpu.concatenate %53, %54, %55, %56 in 1 : vector<2x1x32x16xbf16>, vector<2x1x32x16xbf16>, vector<2x1x32x16xbf16>, vector<2x1x32x16xbf16> -> vector<2x4x32x16xbf16>
    %58 = vector.shape_cast %57 : vector<2x4x32x16xbf16> to vector<8x32x16xbf16>
    %59 = arith.truncf %40 : vector<64x64xf32> to vector<64x64xbf16>
    %60 = vector.extract_strided_slice %59 {offsets = [0, 0], sizes = [64, 16], strides = [1, 1]} : vector<64x64xbf16> to vector<64x16xbf16>
    %61 = vector.shape_cast %60 : vector<64x16xbf16> to vector<2x32x16xbf16>
    %62 = vector.extract_strided_slice %59 {offsets = [0, 16], sizes = [64, 16], strides = [1, 1]} : vector<64x64xbf16> to vector<64x16xbf16>
    %63 = vector.shape_cast %62 : vector<64x16xbf16> to vector<2x32x16xbf16>
    %64 = vector.extract_strided_slice %59 {offsets = [0, 32], sizes = [64, 16], strides = [1, 1]} : vector<64x64xbf16> to vector<64x16xbf16>
    %65 = vector.shape_cast %64 : vector<64x16xbf16> to vector<2x32x16xbf16>
    %66 = vector.extract_strided_slice %59 {offsets = [0, 48], sizes = [64, 16], strides = [1, 1]} : vector<64x64xbf16> to vector<64x16xbf16>
    %67 = vector.shape_cast %66 : vector<64x16xbf16> to vector<2x32x16xbf16>
    %68 = vector.shape_cast %61 : vector<2x32x16xbf16> to vector<2x1x32x16xbf16>
    %69 = vector.shape_cast %63 : vector<2x32x16xbf16> to vector<2x1x32x16xbf16>
    %70 = vector.shape_cast %65 : vector<2x32x16xbf16> to vector<2x1x32x16xbf16>
    %71 = vector.shape_cast %67 : vector<2x32x16xbf16> to vector<2x1x32x16xbf16>
    %72 = tpu.concatenate %68, %69, %70, %71 in 1 : vector<2x1x32x16xbf16>, vector<2x1x32x16xbf16>, vector<2x1x32x16xbf16>, vector<2x1x32x16xbf16> -> vector<2x4x32x16xbf16>
    %73 = vector.shape_cast %72 : vector<2x4x32x16xbf16> to vector<8x32x16xbf16>
    %74 = arith.truncf %41 : vector<64x64xf32> to vector<64x64xbf16>
    %75 = vector.extract_strided_slice %74 {offsets = [0, 0], sizes = [64, 16], strides = [1, 1]} : vector<64x64xbf16> to vector<64x16xbf16>
    %76 = vector.shape_cast %75 : vector<64x16xbf16> to vector<2x32x16xbf16>
    %77 = vector.extract_strided_slice %74 {offsets = [0, 16], sizes = [64, 16], strides = [1, 1]} : vector<64x64xbf16> to vector<64x16xbf16>
    %78 = vector.shape_cast %77 : vector<64x16xbf16> to vector<2x32x16xbf16>
    %79 = vector.extract_strided_slice %74 {offsets = [0, 32], sizes = [64, 16], strides = [1, 1]} : vector<64x64xbf16> to vector<64x16xbf16>
    %80 = vector.shape_cast %79 : vector<64x16xbf16> to vector<2x32x16xbf16>
    %81 = vector.extract_strided_slice %74 {offsets = [0, 48], sizes = [64, 16], strides = [1, 1]} : vector<64x64xbf16> to vector<64x16xbf16>
    %82 = vector.shape_cast %81 : vector<64x16xbf16> to vector<2x32x16xbf16>
    %83 = vector.shape_cast %76 : vector<2x32x16xbf16> to vector<2x1x32x16xbf16>
    %84 = vector.shape_cast %78 : vector<2x32x16xbf16> to vector<2x1x32x16xbf16>
    %85 = vector.shape_cast %80 : vector<2x32x16xbf16> to vector<2x1x32x16xbf16>
    %86 = vector.shape_cast %82 : vector<2x32x16xbf16> to vector<2x1x32x16xbf16>
    %87 = tpu.concatenate %83, %84, %85, %86 in 1 : vector<2x1x32x16xbf16>, vector<2x1x32x16xbf16>, vector<2x1x32x16xbf16>, vector<2x1x32x16xbf16> -> vector<2x4x32x16xbf16>
    %88 = vector.shape_cast %87 : vector<2x4x32x16xbf16> to vector<8x32x16xbf16>
    "tpu.trace_start"() <{level = 10 : i32, message = "gqd,gkd->gqk"}> : () -> ()
    %cst_60 = arith.constant dense<0.000000e+00> : vector<8x32x32xf32>
    %89 = tpu.matmul %58, %73, %cst_60 {dimension_numbers = #tpu.dot_dimension_numbers<[2], [2], [1], [1], [0, 0, 0, 1, 1, 1], [0], [0]>} : vector<8x32x16xbf16>, vector<8x32x16xbf16>, vector<8x32x32xf32> -> vector<8x32x32xf32>
    "tpu.trace_stop"() : () -> ()
    %90 = vector.shape_cast %89 : vector<8x32x32xf32> to vector<2x4x32x32xf32>
    %91 = vector.shape_cast %29 : vector<2x32x32xf32> to vector<2x1x32x32xf32>
    %92 = vector.broadcast %91 : vector<2x1x32x32xf32> to vector<2x4x32x32xf32>
    %93 = arith.addf %90, %92 : vector<2x4x32x32xf32>
    %94 = vector.shape_cast %93 : vector<2x4x32x32xf32> to vector<8x32x32xf32>
    %cst_61 = arith.constant dense<0xFF800000> : vector<8x32xf32>
    %95 = vector.multi_reduction <maximumf>, %94, %cst_61 [2] : vector<8x32x32xf32> to vector<8x32xf32>
    %96 = vector.shape_cast %95 : vector<8x32xf32> to vector<8x32x1xf32>
    %97 = vector.broadcast %96 : vector<8x32x1xf32> to vector<8x32x32xf32>
    %98 = arith.subf %94, %97 : vector<8x32x32xf32>
    %99 = math.exp %98 : vector<8x32x32xf32>
    %cst_62 = arith.constant dense<0.000000e+00> : vector<8x32xf32>
    %100 = vector.multi_reduction <add>, %99, %cst_62 [2] : vector<8x32x32xf32> to vector<8x32xf32>
    %101 = vector.shape_cast %100 : vector<8x32xf32> to vector<8x32x1xf32>
    %102 = tpu.reciprocal %101 {approx = true} : vector<8x32x1xf32> -> vector<8x32x1xf32>
    %103 = vector.broadcast %102 : vector<8x32x1xf32> to vector<8x32x32xf32>
    %104 = arith.mulf %99, %103 : vector<8x32x32xf32>
    %105 = arith.truncf %104 : vector<8x32x32xf32> to vector<8x32x32xbf16>
    "tpu.trace_start"() <{level = 10 : i32, message = "gqk,gkd->gqd"}> : () -> ()
    %cst_63 = arith.constant dense<0.000000e+00> : vector<8x32x16xf32>
    %106 = tpu.matmul %105, %88, %cst_63 {dimension_numbers = #tpu.dot_dimension_numbers<[2], [1], [1], [2], [0, 0, 0, 1, 1, 2], [0], [0]>} : vector<8x32x32xbf16>, vector<8x32x16xbf16>, vector<8x32x16xf32> -> vector<8x32x16xf32>
    "tpu.trace_stop"() : () -> ()
    %107 = vector.shape_cast %106 : vector<8x32x16xf32> to vector<2x4x32x16xf32>
    %108 = vector.extract_strided_slice %107 {offsets = [0, 0, 0, 0], sizes = [2, 1, 32, 16], strides = [1, 1, 1, 1]} : vector<2x4x32x16xf32> to vector<2x1x32x16xf32>
    %109 = vector.shape_cast %108 : vector<2x1x32x16xf32> to vector<2x32x16xf32>
    %110 = vector.extract_strided_slice %107 {offsets = [0, 1, 0, 0], sizes = [2, 1, 32, 16], strides = [1, 1, 1, 1]} : vector<2x4x32x16xf32> to vector<2x1x32x16xf32>
    %111 = vector.shape_cast %110 : vector<2x1x32x16xf32> to vector<2x32x16xf32>
    %112 = vector.extract_strided_slice %107 {offsets = [0, 2, 0, 0], sizes = [2, 1, 32, 16], strides = [1, 1, 1, 1]} : vector<2x4x32x16xf32> to vector<2x1x32x16xf32>
    %113 = vector.shape_cast %112 : vector<2x1x32x16xf32> to vector<2x32x16xf32>
    %114 = vector.extract_strided_slice %107 {offsets = [0, 3, 0, 0], sizes = [2, 1, 32, 16], strides = [1, 1, 1, 1]} : vector<2x4x32x16xf32> to vector<2x1x32x16xf32>
    %115 = vector.shape_cast %114 : vector<2x1x32x16xf32> to vector<2x32x16xf32>
    %116 = tpu.concatenate %109, %111, %113, %115 in 2 : vector<2x32x16xf32>, vector<2x32x16xf32>, vector<2x32x16xf32>, vector<2x32x16xf32> -> vector<2x32x64xf32>
    %117 = vector.shape_cast %116 : vector<2x32x64xf32> to vector<64x64xf32>
    %118 = arith.truncf %117 : vector<64x64xf32> to vector<64x64xbf16>
    %cst_64 = arith.constant dense<0.000000e+00> : vector<64x32xf32>
    %119 = tpu.matmul %118, %4, %cst_64 {dimension_numbers = #tpu.dot_dimension_numbers<[1], [0], [0], [1], [0, 0, 1, 1], [], []>} : vector<64x64xbf16>, vector<64x32xbf16>, vector<64x32xf32> -> vector<64x32xf32>
    %120 = vector.broadcast %5 : vector<1x32xf32> to vector<64x32xf32>
    %121 = arith.addf %119, %120 : vector<64x32xf32>
    %122 = arith.addf %121, %23 : vector<64x32xf32>
    %cst_65 = arith.constant dense<0.000000e+00> : vector<64xf32>
    %123 = vector.multi_reduction <add>, %122, %cst_65 [1] : vector<64x32xf32> to vector<64xf32>
    %124 = vector.shape_cast %123 : vector<64xf32> to vector<64x1xf32>
    %cst_66 = arith.constant 3.200000e+01 : f32
    %125 = vector.broadcast %cst_66 : f32 to vector<64x1xf32>
    %126 = arith.divf %124, %125 : vector<64x1xf32>
    %127 = vector.broadcast %126 : vector<64x1xf32> to vector<64x32xf32>
    %128 = arith.subf %122, %127 : vector<64x32xf32>
    %129 = arith.mulf %128, %128 : vector<64x32xf32>
    %cst_67 = arith.constant dense<0.000000e+00> : vector<64xf32>
    %130 = vector.multi_reduction <add>, %129, %cst_67 [1] : vector<64x32xf32> to vector<64xf32>
    %131 = vector.shape_cast %130 : vector<64xf32> to vector<64x1xf32>
    %cst_68 = arith.constant 3.200000e+01 : f32
    %132 = vector.broadcast %cst_68 : f32 to vector<64x1xf32>
    %133 = arith.divf %131, %132 : vector<64x1xf32>
    %134 = vector.broadcast %126 : vector<64x1xf32> to vector<64x32xf32>
    %135 = arith.subf %122, %134 : vector<64x32xf32>
    %cst_69 = arith.constant 9.99999974E-6 : f32
    %136 = vector.broadcast %cst_69 : f32 to vector<64x1xf32>
    %137 = arith.addf %133, %136 : vector<64x1xf32>
    %138 = math.rsqrt %137 : vector<64x1xf32>
    %139 = vector.broadcast %138 : vector<64x1xf32> to vector<64x32xf32>
    %140 = arith.mulf %135, %139 : vector<64x32xf32>
    %141 = vector.broadcast %6 : vector<1x32xf32> to vector<64x32xf32>
    %142 = arith.mulf %140, %141 : vector<64x32xf32>
    %143 = vector.broadcast %7 : vector<1x32xf32> to vector<64x32xf32>
    %144 = arith.addf %142, %143 : vector<64x32xf32>
    %145 = arith.truncf %144 : vector<64x32xf32> to vector<64x32xbf16>
    %cst_70 = arith.constant dense<0.000000e+00> : vector<64x64xf32>
    %146 = tpu.matmul %145, %8, %cst_70 {dimension_numbers = #tpu.dot_dimension_numbers<[1], [0], [0], [1], [0, 0, 1, 1], [], []>} : vector<64x32xbf16>, vector<32x64xbf16>, vector<64x64xf32> -> vector<64x64xf32>
    %147 = vector.broadcast %9 : vector<1x64xf32> to vector<64x64xf32>
    %148 = arith.addf %146, %147 : vector<64x64xf32>
    %149 = arith.truncf %27 : vector<64x32xf32> to vector<64x32xbf16>
    %cst_71 = arith.constant dense<0.000000e+00> : vector<64x128xf32>
    %150 = tpu.matmul %149, %10, %cst_71 {dimension_numbers = #tpu.dot_dimension_numbers<[1], [0], [0], [1], [0, 0, 1, 1], [], []>} : vector<64x32xbf16>, vector<32x128xbf16>, vector<64x128xf32> -> vector<64x128xf32>
    %151 = vector.broadcast %11 : vector<1x128xf32> to vector<64x128xf32>
    %152 = arith.addf %150, %151 : vector<64x128xf32>
    %153 = vector.extract_strided_slice %152 {offsets = [0, 0], sizes = [64, 64], strides = [1, 1]} : vector<64x128xf32> to vector<64x64xf32>
    %154 = vector.extract_strided_slice %152 {offsets = [0, 64], sizes = [64, 64], strides = [1, 1]} : vector<64x128xf32> to vector<64x64xf32>
    %cst_72 = arith.constant 2.500000e-01 : f32
    %155 = vector.broadcast %cst_72 : f32 to vector<64x64xf32>
    %156 = arith.mulf %148, %155 : vector<64x64xf32>
    %157 = arith.truncf %156 : vector<64x64xf32> to vector<64x64xbf16>
    %158 = vector.extract_strided_slice %157 {offsets = [0, 0], sizes = [64, 16], strides = [1, 1]} : vector<64x64xbf16> to vector<64x16xbf16>
    %159 = vector.shape_cast %158 : vector<64x16xbf16> to vector<2x32x16xbf16>
    %160 = vector.extract_strided_slice %157 {offsets = [0, 16], sizes = [64, 16], strides = [1, 1]} : vector<64x64xbf16> to vector<64x16xbf16>
    %161 = vector.shape_cast %160 : vector<64x16xbf16> to vector<2x32x16xbf16>
    %162 = vector.extract_strided_slice %157 {offsets = [0, 32], sizes = [64, 16], strides = [1, 1]} : vector<64x64xbf16> to vector<64x16xbf16>
    %163 = vector.shape_cast %162 : vector<64x16xbf16> to vector<2x32x16xbf16>
    %164 = vector.extract_strided_slice %157 {offsets = [0, 48], sizes = [64, 16], strides = [1, 1]} : vector<64x64xbf16> to vector<64x16xbf16>
    %165 = vector.shape_cast %164 : vector<64x16xbf16> to vector<2x32x16xbf16>
    %166 = vector.shape_cast %159 : vector<2x32x16xbf16> to vector<2x1x32x16xbf16>
    %167 = vector.shape_cast %161 : vector<2x32x16xbf16> to vector<2x1x32x16xbf16>
    %168 = vector.shape_cast %163 : vector<2x32x16xbf16> to vector<2x1x32x16xbf16>
    %169 = vector.shape_cast %165 : vector<2x32x16xbf16> to vector<2x1x32x16xbf16>
    %170 = tpu.concatenate %166, %167, %168, %169 in 1 : vector<2x1x32x16xbf16>, vector<2x1x32x16xbf16>, vector<2x1x32x16xbf16>, vector<2x1x32x16xbf16> -> vector<2x4x32x16xbf16>
    %171 = vector.shape_cast %170 : vector<2x4x32x16xbf16> to vector<8x32x16xbf16>
    %172 = arith.truncf %153 : vector<64x64xf32> to vector<64x64xbf16>
    %173 = vector.extract_strided_slice %172 {offsets = [0, 0], sizes = [64, 16], strides = [1, 1]} : vector<64x64xbf16> to vector<64x16xbf16>
    %174 = vector.shape_cast %173 : vector<64x16xbf16> to vector<2x32x16xbf16>
    %175 = vector.extract_strided_slice %172 {offsets = [0, 16], sizes = [64, 16], strides = [1, 1]} : vector<64x64xbf16> to vector<64x16xbf16>
    %176 = vector.shape_cast %175 : vector<64x16xbf16> to vector<2x32x16xbf16>
    %177 = vector.extract_strided_slice %172 {offsets = [0, 32], sizes = [64, 16], strides = [1, 1]} : vector<64x64xbf16> to vector<64x16xbf16>
    %178 = vector.shape_cast %177 : vector<64x16xbf16> to vector<2x32x16xbf16>
    %179 = vector.extract_strided_slice %172 {offsets = [0, 48], sizes = [64, 16], strides = [1, 1]} : vector<64x64xbf16> to vector<64x16xbf16>
    %180 = vector.shape_cast %179 : vector<64x16xbf16> to vector<2x32x16xbf16>
    %181 = vector.shape_cast %174 : vector<2x32x16xbf16> to vector<2x1x32x16xbf16>
    %182 = vector.shape_cast %176 : vector<2x32x16xbf16> to vector<2x1x32x16xbf16>
    %183 = vector.shape_cast %178 : vector<2x32x16xbf16> to vector<2x1x32x16xbf16>
    %184 = vector.shape_cast %180 : vector<2x32x16xbf16> to vector<2x1x32x16xbf16>
    %185 = tpu.concatenate %181, %182, %183, %184 in 1 : vector<2x1x32x16xbf16>, vector<2x1x32x16xbf16>, vector<2x1x32x16xbf16>, vector<2x1x32x16xbf16> -> vector<2x4x32x16xbf16>
    %186 = vector.shape_cast %185 : vector<2x4x32x16xbf16> to vector<8x32x16xbf16>
    %187 = arith.truncf %154 : vector<64x64xf32> to vector<64x64xbf16>
    %188 = vector.extract_strided_slice %187 {offsets = [0, 0], sizes = [64, 16], strides = [1, 1]} : vector<64x64xbf16> to vector<64x16xbf16>
    %189 = vector.shape_cast %188 : vector<64x16xbf16> to vector<2x32x16xbf16>
    %190 = vector.extract_strided_slice %187 {offsets = [0, 16], sizes = [64, 16], strides = [1, 1]} : vector<64x64xbf16> to vector<64x16xbf16>
    %191 = vector.shape_cast %190 : vector<64x16xbf16> to vector<2x32x16xbf16>
    %192 = vector.extract_strided_slice %187 {offsets = [0, 32], sizes = [64, 16], strides = [1, 1]} : vector<64x64xbf16> to vector<64x16xbf16>
    %193 = vector.shape_cast %192 : vector<64x16xbf16> to vector<2x32x16xbf16>
    %194 = vector.extract_strided_slice %187 {offsets = [0, 48], sizes = [64, 16], strides = [1, 1]} : vector<64x64xbf16> to vector<64x16xbf16>
    %195 = vector.shape_cast %194 : vector<64x16xbf16> to vector<2x32x16xbf16>
    %196 = vector.shape_cast %189 : vector<2x32x16xbf16> to vector<2x1x32x16xbf16>
    %197 = vector.shape_cast %191 : vector<2x32x16xbf16> to vector<2x1x32x16xbf16>
    %198 = vector.shape_cast %193 : vector<2x32x16xbf16> to vector<2x1x32x16xbf16>
    %199 = vector.shape_cast %195 : vector<2x32x16xbf16> to vector<2x1x32x16xbf16>
    %200 = tpu.concatenate %196, %197, %198, %199 in 1 : vector<2x1x32x16xbf16>, vector<2x1x32x16xbf16>, vector<2x1x32x16xbf16>, vector<2x1x32x16xbf16> -> vector<2x4x32x16xbf16>
    %201 = vector.shape_cast %200 : vector<2x4x32x16xbf16> to vector<8x32x16xbf16>
    "tpu.trace_start"() <{level = 10 : i32, message = "gqd,gkd->gqk"}> : () -> ()
    %cst_73 = arith.constant dense<0.000000e+00> : vector<8x32x32xf32>
    %202 = tpu.matmul %171, %186, %cst_73 {dimension_numbers = #tpu.dot_dimension_numbers<[2], [2], [1], [1], [0, 0, 0, 1, 1, 1], [0], [0]>} : vector<8x32x16xbf16>, vector<8x32x16xbf16>, vector<8x32x32xf32> -> vector<8x32x32xf32>
    "tpu.trace_stop"() : () -> ()
    %203 = vector.shape_cast %202 : vector<8x32x32xf32> to vector<2x4x32x32xf32>
    %204 = vector.shape_cast %31 : vector<2x32x32xf32> to vector<2x1x32x32xf32>
    %205 = vector.broadcast %204 : vector<2x1x32x32xf32> to vector<2x4x32x32xf32>
    %206 = arith.addf %203, %205 : vector<2x4x32x32xf32>
    %207 = vector.shape_cast %206 : vector<2x4x32x32xf32> to vector<8x32x32xf32>
    %cst_74 = arith.constant dense<0xFF800000> : vector<8x32xf32>
    %208 = vector.multi_reduction <maximumf>, %207, %cst_74 [2] : vector<8x32x32xf32> to vector<8x32xf32>
    %209 = vector.shape_cast %208 : vector<8x32xf32> to vector<8x32x1xf32>
    %210 = vector.broadcast %209 : vector<8x32x1xf32> to vector<8x32x32xf32>
    %211 = arith.subf %207, %210 : vector<8x32x32xf32>
    %212 = math.exp %211 : vector<8x32x32xf32>
    %cst_75 = arith.constant dense<0.000000e+00> : vector<8x32xf32>
    %213 = vector.multi_reduction <add>, %212, %cst_75 [2] : vector<8x32x32xf32> to vector<8x32xf32>
    %214 = vector.shape_cast %213 : vector<8x32xf32> to vector<8x32x1xf32>
    %215 = tpu.reciprocal %214 {approx = true} : vector<8x32x1xf32> -> vector<8x32x1xf32>
    %216 = vector.broadcast %215 : vector<8x32x1xf32> to vector<8x32x32xf32>
    %217 = arith.mulf %212, %216 : vector<8x32x32xf32>
    %218 = arith.truncf %217 : vector<8x32x32xf32> to vector<8x32x32xbf16>
    "tpu.trace_start"() <{level = 10 : i32, message = "gqk,gkd->gqd"}> : () -> ()
    %cst_76 = arith.constant dense<0.000000e+00> : vector<8x32x16xf32>
    %219 = tpu.matmul %218, %201, %cst_76 {dimension_numbers = #tpu.dot_dimension_numbers<[2], [1], [1], [2], [0, 0, 0, 1, 1, 2], [0], [0]>} : vector<8x32x32xbf16>, vector<8x32x16xbf16>, vector<8x32x16xf32> -> vector<8x32x16xf32>
    "tpu.trace_stop"() : () -> ()
    %220 = vector.shape_cast %219 : vector<8x32x16xf32> to vector<2x4x32x16xf32>
    %221 = vector.extract_strided_slice %220 {offsets = [0, 0, 0, 0], sizes = [2, 1, 32, 16], strides = [1, 1, 1, 1]} : vector<2x4x32x16xf32> to vector<2x1x32x16xf32>
    %222 = vector.shape_cast %221 : vector<2x1x32x16xf32> to vector<2x32x16xf32>
    %223 = vector.extract_strided_slice %220 {offsets = [0, 1, 0, 0], sizes = [2, 1, 32, 16], strides = [1, 1, 1, 1]} : vector<2x4x32x16xf32> to vector<2x1x32x16xf32>
    %224 = vector.shape_cast %223 : vector<2x1x32x16xf32> to vector<2x32x16xf32>
    %225 = vector.extract_strided_slice %220 {offsets = [0, 2, 0, 0], sizes = [2, 1, 32, 16], strides = [1, 1, 1, 1]} : vector<2x4x32x16xf32> to vector<2x1x32x16xf32>
    %226 = vector.shape_cast %225 : vector<2x1x32x16xf32> to vector<2x32x16xf32>
    %227 = vector.extract_strided_slice %220 {offsets = [0, 3, 0, 0], sizes = [2, 1, 32, 16], strides = [1, 1, 1, 1]} : vector<2x4x32x16xf32> to vector<2x1x32x16xf32>
    %228 = vector.shape_cast %227 : vector<2x1x32x16xf32> to vector<2x32x16xf32>
    %229 = tpu.concatenate %222, %224, %226, %228 in 2 : vector<2x32x16xf32>, vector<2x32x16xf32>, vector<2x32x16xf32>, vector<2x32x16xf32> -> vector<2x32x64xf32>
    %230 = vector.shape_cast %229 : vector<2x32x64xf32> to vector<64x64xf32>
    %231 = arith.truncf %230 : vector<64x64xf32> to vector<64x64xbf16>
    %cst_77 = arith.constant dense<0.000000e+00> : vector<64x32xf32>
    %232 = tpu.matmul %231, %12, %cst_77 {dimension_numbers = #tpu.dot_dimension_numbers<[1], [0], [0], [1], [0, 0, 1, 1], [], []>} : vector<64x64xbf16>, vector<64x32xbf16>, vector<64x32xf32> -> vector<64x32xf32>
    %233 = vector.broadcast %13 : vector<1x32xf32> to vector<64x32xf32>
    %234 = arith.addf %232, %233 : vector<64x32xf32>
    %235 = arith.addf %234, %144 : vector<64x32xf32>
    %cst_78 = arith.constant dense<0.000000e+00> : vector<64xf32>
    %236 = vector.multi_reduction <add>, %235, %cst_78 [1] : vector<64x32xf32> to vector<64xf32>
    %237 = vector.shape_cast %236 : vector<64xf32> to vector<64x1xf32>
    %cst_79 = arith.constant 3.200000e+01 : f32
    %238 = vector.broadcast %cst_79 : f32 to vector<64x1xf32>
    %239 = arith.divf %237, %238 : vector<64x1xf32>
    %240 = vector.broadcast %239 : vector<64x1xf32> to vector<64x32xf32>
    %241 = arith.subf %235, %240 : vector<64x32xf32>
    %242 = arith.mulf %241, %241 : vector<64x32xf32>
    %cst_80 = arith.constant dense<0.000000e+00> : vector<64xf32>
    %243 = vector.multi_reduction <add>, %242, %cst_80 [1] : vector<64x32xf32> to vector<64xf32>
    %244 = vector.shape_cast %243 : vector<64xf32> to vector<64x1xf32>
    %cst_81 = arith.constant 3.200000e+01 : f32
    %245 = vector.broadcast %cst_81 : f32 to vector<64x1xf32>
    %246 = arith.divf %244, %245 : vector<64x1xf32>
    %247 = vector.broadcast %239 : vector<64x1xf32> to vector<64x32xf32>
    %248 = arith.subf %235, %247 : vector<64x32xf32>
    %cst_82 = arith.constant 9.99999974E-6 : f32
    %249 = vector.broadcast %cst_82 : f32 to vector<64x1xf32>
    %250 = arith.addf %246, %249 : vector<64x1xf32>
    %251 = math.rsqrt %250 : vector<64x1xf32>
    %252 = vector.broadcast %251 : vector<64x1xf32> to vector<64x32xf32>
    %253 = arith.mulf %248, %252 : vector<64x32xf32>
    %254 = vector.broadcast %14 : vector<1x32xf32> to vector<64x32xf32>
    %255 = arith.mulf %253, %254 : vector<64x32xf32>
    %256 = vector.broadcast %15 : vector<1x32xf32> to vector<64x32xf32>
    %257 = arith.addf %255, %256 : vector<64x32xf32>
    %258 = arith.truncf %257 : vector<64x32xf32> to vector<64x32xbf16>
    %cst_83 = arith.constant dense<0.000000e+00> : vector<64x64xf32>
    %259 = tpu.matmul %258, %16, %cst_83 {dimension_numbers = #tpu.dot_dimension_numbers<[1], [0], [0], [1], [0, 0, 1, 1], [], []>} : vector<64x32xbf16>, vector<32x64xbf16>, vector<64x64xf32> -> vector<64x64xf32>
    %260 = vector.broadcast %17 : vector<1x64xf32> to vector<64x64xf32>
    %261 = arith.addf %259, %260 : vector<64x64xf32>
    %cst_84 = arith.constant 0.000000e+00 : f32
    %262 = vector.broadcast %cst_84 : f32 to vector<64x64xf32>
    %263 = arith.maximumf %261, %262 : vector<64x64xf32>
    %264 = arith.truncf %263 : vector<64x64xf32> to vector<64x64xbf16>
    %cst_85 = arith.constant dense<0.000000e+00> : vector<64x32xf32>
    %265 = tpu.matmul %264, %18, %cst_85 {dimension_numbers = #tpu.dot_dimension_numbers<[1], [0], [0], [1], [0, 0, 1, 1], [], []>} : vector<64x64xbf16>, vector<64x32xbf16>, vector<64x32xf32> -> vector<64x32xf32>
    %266 = vector.broadcast %19 : vector<1x32xf32> to vector<64x32xf32>
    %267 = arith.addf %265, %266 : vector<64x32xf32>
    %268 = arith.addf %267, %257 : vector<64x32xf32>
    %cst_86 = arith.constant dense<0.000000e+00> : vector<64xf32>
    %269 = vector.multi_reduction <add>, %268, %cst_86 [1] : vector<64x32xf32> to vector<64xf32>
    %270 = vector.shape_cast %269 : vector<64xf32> to vector<64x1xf32>
    %cst_87 = arith.constant 3.200000e+01 : f32
    %271 = vector.broadcast %cst_87 : f32 to vector<64x1xf32>
    %272 = arith.divf %270, %271 : vector<64x1xf32>
    %273 = vector.broadcast %272 : vector<64x1xf32> to vector<64x32xf32>
    %274 = arith.subf %268, %273 : vector<64x32xf32>
    %275 = arith.mulf %274, %274 : vector<64x32xf32>
    %cst_88 = arith.constant dense<0.000000e+00> : vector<64xf32>
    %276 = vector.multi_reduction <add>, %275, %cst_88 [1] : vector<64x32xf32> to vector<64xf32>
    %277 = vector.shape_cast %276 : vector<64xf32> to vector<64x1xf32>
    %cst_89 = arith.constant 3.200000e+01 : f32
    %278 = vector.broadcast %cst_89 : f32 to vector<64x1xf32>
    %279 = arith.divf %277, %278 : vector<64x1xf32>
    %280 = vector.broadcast %272 : vector<64x1xf32> to vector<64x32xf32>
    %281 = arith.subf %268, %280 : vector<64x32xf32>
    %cst_90 = arith.constant 9.99999974E-6 : f32
    %282 = vector.broadcast %cst_90 : f32 to vector<64x1xf32>
    %283 = arith.addf %279, %282 : vector<64x1xf32>
    %284 = math.rsqrt %283 : vector<64x1xf32>
    %285 = vector.broadcast %284 : vector<64x1xf32> to vector<64x32xf32>
    %286 = arith.mulf %281, %285 : vector<64x32xf32>
    %287 = vector.broadcast %20 : vector<1x32xf32> to vector<64x32xf32>
    %288 = arith.mulf %286, %287 : vector<64x32xf32>
    %289 = vector.broadcast %21 : vector<1x32xf32> to vector<64x32xf32>
    %290 = arith.addf %288, %289 : vector<64x32xf32>
    %291 = vector.shape_cast %290 : vector<64x32xf32> to vector<2x32x32xf32>
    %c0_91 = arith.constant 0 : index
    %c0_92 = arith.constant 0 : index
    %c0_93 = arith.constant 0 : index
    %292 = vector.load %arg29[%c0_91, %c0_92, %c0_93] : memref<2x32x32xf32, #tpu.memory_space<vmem>>, vector<2x32x32xf32>
    tpu.vector_store %arg29[%c0_91, %c0_92, %c0_93], %291 {strides = array<i32>} : memref<2x32x32xf32, #tpu.memory_space<vmem>>, vector<2x32x32xf32>,
    return
  }
  func.func @transform_0(%arg0: i32, %arg1: i32) -> (i32, i32, i32) {
    %c0_i32 = arith.constant 0 : i32
    %c0_i32_0 = arith.constant 0 : i32
    return %arg0, %arg1, %c0_i32 : i32, i32, i32
  }
  func.func @transform_1(%arg0: i32, %arg1: i32) -> (i32, i32, i32) {
    %c0_i32 = arith.constant 0 : i32
    %c0_i32_0 = arith.constant 0 : i32
    %c0_i32_1 = arith.constant 0 : i32
    return %arg0, %c0_i32, %c0_i32_0 : i32, i32, i32
  }
  func.func @transform_2(%arg0: i32, %arg1: i32) -> (i32, i32, i32) {
    %c0_i32 = arith.constant 0 : i32
    %c0_i32_0 = arith.constant 0 : i32
    %c0_i32_1 = arith.constant 0 : i32
    return %arg0, %c0_i32, %c0_i32_0 : i32, i32, i32
  }
  func.func @transform_3(%arg0: i32, %arg1: i32) -> (i32, i32, i32) {
    %c0_i32 = arith.constant 0 : i32
    %c0_i32_0 = arith.constant 0 : i32
    return %arg0, %arg1, %c0_i32 : i32, i32, i32
  }
  func.func @transform_4(%arg0: i32, %arg1: i32) -> (i32, i32, i32) {
    %c0_i32 = arith.constant 0 : i32
    %c0_i32_0 = arith.constant 0 : i32
    return %arg0, %arg1, %c0_i32 : i32, i32, i32
  }
  func.func @transform_5(%arg0: i32, %arg1: i32) -> (i32, i32) {
    %c0_i32 = arith.constant 0 : i32
    %c0_i32_0 = arith.constant 0 : i32
    %c0_i32_1 = arith.constant 0 : i32
    return %c0_i32, %c0_i32_0 : i32, i32
  }
  func.func @transform_6(%arg0: i32, %arg1: i32) -> (i32, i32) {
    %c0_i32 = arith.constant 0 : i32
    %c0_i32_0 = arith.constant 0 : i32
    %c0_i32_1 = arith.constant 0 : i32
    return %c0_i32, %c0_i32_0 : i32, i32
  }
  func.func @transform_7(%arg0: i32, %arg1: i32) -> (i32, i32) {
    %c0_i32 = arith.constant 0 : i32
    %c0_i32_0 = arith.constant 0 : i32
    %c0_i32_1 = arith.constant 0 : i32
    return %c0_i32, %c0_i32_0 : i32, i32
  }
  func.func @transform_8(%arg0: i32, %arg1: i32) -> (i32, i32) {
    %c0_i32 = arith.constant 0 : i32
    %c0_i32_0 = arith.constant 0 : i32
    %c0_i32_1 = arith.constant 0 : i32
    return %c0_i32, %c0_i32_0 : i32, i32
  }
  func.func @transform_9(%arg0: i32, %arg1: i32) -> (i32, i32) {
    %c0_i32 = arith.constant 0 : i32
    %c0_i32_0 = arith.constant 0 : i32
    %c0_i32_1 = arith.constant 0 : i32
    return %c0_i32, %c0_i32_0 : i32, i32
  }
  func.func @transform_10(%arg0: i32, %arg1: i32) -> (i32, i32) {
    %c0_i32 = arith.constant 0 : i32
    %c0_i32_0 = arith.constant 0 : i32
    %c0_i32_1 = arith.constant 0 : i32
    return %c0_i32, %c0_i32_0 : i32, i32
  }
  func.func @transform_11(%arg0: i32, %arg1: i32) -> (i32, i32) {
    %c0_i32 = arith.constant 0 : i32
    %c0_i32_0 = arith.constant 0 : i32
    %c0_i32_1 = arith.constant 0 : i32
    return %c0_i32, %c0_i32_0 : i32, i32
  }
  func.func @transform_12(%arg0: i32, %arg1: i32) -> (i32, i32) {
    %c0_i32 = arith.constant 0 : i32
    %c0_i32_0 = arith.constant 0 : i32
    %c0_i32_1 = arith.constant 0 : i32
    return %c0_i32, %c0_i32_0 : i32, i32
  }
  func.func @transform_13(%arg0: i32, %arg1: i32) -> (i32, i32) {
    %c0_i32 = arith.constant 0 : i32
    %c0_i32_0 = arith.constant 0 : i32
    %c0_i32_1 = arith.constant 0 : i32
    return %c0_i32, %c0_i32_0 : i32, i32
  }
  func.func @transform_14(%arg0: i32, %arg1: i32) -> (i32, i32) {
    %c0_i32 = arith.constant 0 : i32
    %c0_i32_0 = arith.constant 0 : i32
    %c0_i32_1 = arith.constant 0 : i32
    return %c0_i32, %c0_i32_0 : i32, i32
  }
  func.func @transform_15(%arg0: i32, %arg1: i32) -> (i32, i32) {
    %c0_i32 = arith.constant 0 : i32
    %c0_i32_0 = arith.constant 0 : i32
    %c0_i32_1 = arith.constant 0 : i32
    return %c0_i32, %c0_i32_0 : i32, i32
  }
  func.func @transform_16(%arg0: i32, %arg1: i32) -> (i32, i32) {
    %c0_i32 = arith.constant 0 : i32
    %c0_i32_0 = arith.constant 0 : i32
    %c0_i32_1 = arith.constant 0 : i32
    return %c0_i32, %c0_i32_0 : i32, i32
  }
  func.func @transform_17(%arg0: i32, %arg1: i32) -> (i32, i32) {
    %c0_i32 = arith.constant 0 : i32
    %c0_i32_0 = arith.constant 0 : i32
    %c0_i32_1 = arith.constant 0 : i32
    return %c0_i32, %c0_i32_0 : i32, i32
  }
  func.func @transform_18(%arg0: i32, %arg1: i32) -> (i32, i32) {
    %c0_i32 = arith.constant 0 : i32
    %c0_i32_0 = arith.constant 0 : i32
    %c0_i32_1 = arith.constant 0 : i32
    return %c0_i32, %c0_i32_0 : i32, i32
  }
  func.func @transform_19(%arg0: i32, %arg1: i32) -> (i32, i32) {
    %c0_i32 = arith.constant 0 : i32
    %c0_i32_0 = arith.constant 0 : i32
    %c0_i32_1 = arith.constant 0 : i32
    return %c0_i32, %c0_i32_0 : i32, i32
  }
  func.func @transform_20(%arg0: i32, %arg1: i32) -> (i32, i32) {
    %c0_i32 = arith.constant 0 : i32
    %c0_i32_0 = arith.constant 0 : i32
    %c0_i32_1 = arith.constant 0 : i32
    return %c0_i32, %c0_i32_0 : i32, i32
  }
  func.func @transform_21(%arg0: i32, %arg1: i32) -> (i32, i32) {
    %c0_i32 = arith.constant 0 : i32
    %c0_i32_0 = arith.constant 0 : i32
    %c0_i32_1 = arith.constant 0 : i32
    return %c0_i32, %c0_i32_0 : i32, i32
  }
  func.func @transform_22(%arg0: i32, %arg1: i32) -> (i32, i32) {
    %c0_i32 = arith.constant 0 : i32
    %c0_i32_0 = arith.constant 0 : i32
    %c0_i32_1 = arith.constant 0 : i32
    return %c0_i32, %c0_i32_0 : i32, i32
  }
  func.func @transform_23(%arg0: i32, %arg1: i32) -> (i32, i32) {
    %c0_i32 = arith.constant 0 : i32
    %c0_i32_0 = arith.constant 0 : i32
    %c0_i32_1 = arith.constant 0 : i32
    return %c0_i32, %c0_i32_0 : i32, i32
  }
  func.func @transform_24(%arg0: i32, %arg1: i32) -> (i32, i32) {
    %c0_i32 = arith.constant 0 : i32
    %c0_i32_0 = arith.constant 0 : i32
    %c0_i32_1 = arith.constant 0 : i32
    return %c0_i32, %c0_i32_0 : i32, i32
  }
  func.func @transform_25(%arg0: i32, %arg1: i32) -> (i32, i32) {
    %c0_i32 = arith.constant 0 : i32
    %c0_i32_0 = arith.constant 0 : i32
    %c0_i32_1 = arith.constant 0 : i32
    return %c0_i32, %c0_i32_0 : i32, i32
  }
  func.func @transform_26(%arg0: i32, %arg1: i32) -> (i32, i32) {
    %c0_i32 = arith.constant 0 : i32
    %c0_i32_0 = arith.constant 0 : i32
    %c0_i32_1 = arith.constant 0 : i32
    return %c0_i32, %c0_i32_0 : i32, i32
  }
  func.func @transform_27(%arg0: i32, %arg1: i32) -> (i32, i32, i32) {
    %c0_i32 = arith.constant 0 : i32
    %c0_i32_0 = arith.constant 0 : i32
    return %arg0, %arg1, %c0_i32 : i32, i32, i32
  }
}

</mosaic_0001>

<llo_original>
// kernel: tpu_custom_call.1
$region0: #{tpu_custom_call.1}
  #allocation0 [shape = 'u32[]', space=smem, size = 0x4, offset = 0x4, fixed_abs, tag = 'smem constant byte address 0x4 - core index']
  #allocation1 [shape = 'u32[144,128]{1,0:T(1,128)}', space=vmem, size = 0x12000, scoped, tag = 'internal scratch']
  %s0 = inlined_call_operand.hbm [shape: f32[2,32,32], index: 0, kind: input, shape index: {}]
  %s1 = inlined_call_operand.hbm [shape: f32[2,32,32], index: 1, kind: input, shape index: {}]
  %s2 = inlined_call_operand.hbm [shape: f32[2,32,32], index: 2, kind: input, shape index: {}]
  %s3 = inlined_call_operand.hbm [shape: bf16[2,32,32], index: 3, kind: input, shape index: {}]
  %s4 = inlined_call_operand.hbm [shape: bf16[2,32,32], index: 4, kind: input, shape index: {}]
  %s5 = inlined_call_operand.hbm [shape: bf16[32,64], index: 5, kind: input, shape index: {}]
  %s6 = inlined_call_operand.hbm [shape: f32[1,64], index: 6, kind: input, shape index: {}]
  %s7 = inlined_call_operand.hbm [shape: bf16[32,128], index: 7, kind: input, shape index: {}]
  %s8 = inlined_call_operand.hbm [shape: f32[1,128], index: 8, kind: input, shape index: {}]
  %s9 = inlined_call_operand.hbm [shape: bf16[64,32], index: 9, kind: input, shape index: {}]
  %s10 = inlined_call_operand.hbm [shape: f32[1,32], index: 10, kind: input, shape index: {}]
  %s11 = inlined_call_operand.hbm [shape: f32[1,32], index: 11, kind: input, shape index: {}]
  %s12 = inlined_call_operand.hbm [shape: f32[1,32], index: 12, kind: input, shape index: {}]
  %s13 = inlined_call_operand.hbm [shape: bf16[32,64], index: 13, kind: input, shape index: {}]
  %s14 = inlined_call_operand.hbm [shape: f32[1,64], index: 14, kind: input, shape index: {}]
  %s15 = inlined_call_operand.hbm [shape: bf16[32,128], index: 15, kind: input, shape index: {}]
  %s16 = inlined_call_operand.hbm [shape: f32[1,128], index: 16, kind: input, shape index: {}]
  %s17 = inlined_call_operand.hbm [shape: bf16[64,32], index: 17, kind: input, shape index: {}]
  %s18 = inlined_call_operand.hbm [shape: f32[1,32], index: 18, kind: input, shape index: {}]
  %s19 = inlined_call_operand.hbm [shape: f32[1,32], index: 19, kind: input, shape index: {}]
  %s20 = inlined_call_operand.hbm [shape: f32[1,32], index: 20, kind: input, shape index: {}]
  %s21 = inlined_call_operand.hbm [shape: bf16[32,64], index: 21, kind: input, shape index: {}]
  %s22 = inlined_call_operand.hbm [shape: f32[1,64], index: 22, kind: input, shape index: {}]
  %s23 = inlined_call_operand.hbm [shape: bf16[64,32], index: 23, kind: input, shape index: {}]
  %s24 = inlined_call_operand.hbm [shape: f32[1,32], index: 24, kind: input, shape index: {}]
  %s25 = inlined_call_operand.hbm [shape: f32[1,32], index: 25, kind: input, shape index: {}]
  %s26 = inlined_call_operand.hbm [shape: f32[1,32], index: 26, kind: input, shape index: {}]
  %s27 = inlined_call_operand.hbm [shape: f32[2,32,32], index: 27, kind: output, shape index: {}]
  %s28 = sld [smem:[#allocation0]]
  $region226: #{tpu_custom_call.1} parent=0
    _
  %s30 = ssub.s32 1, %s28
  %s31 = scalar_select 0, %s30, %s28
  $region1: #{tpu_custom_call.1} parent=0
    #allocation2 [shape = 'u8[32768]{0}', space=vmem, size = 0x8000, scoped, tag = 'input window, operand 0, single buffered']
    #allocation3 [shape = 's32[1]{0}', space=sflag, size = 0x4, scoped, tag = 'scoped memory for tpu_custom_call.1']
    #allocation4 [shape = 's32[1]{0}', space=sflag, size = 0x4, scoped, tag = 'scoped memory for tpu_custom_call.1']
    #allocation5 [shape = 'u8[32768]{0}', space=vmem, size = 0x8000, scoped, tag = 'input window, operand 1, single buffered']
    #allocation6 [shape = 's32[1]{0}', space=sflag, size = 0x4, scoped, tag = 'scoped memory for tpu_custom_call.1']
    #allocation7 [shape = 'u8[32768]{0}', space=vmem, size = 0x8000, scoped, tag = 'input window, operand 2, single buffered']
    #allocation8 [shape = 'u8[16384]{0}', space=vmem, size = 0x4000, scoped, tag = 'input window, operand 3, single buffered']
    #allocation9 [shape = 's32[1]{0}', space=sflag, size = 0x4, scoped, tag = 'scoped memory for tpu_custom_call.1']
    #allocation10 [shape = 'u8[16384]{0}', space=vmem, size = 0x4000, scoped, tag = 'input window, operand 4, single buffered']
    #allocation11 [shape = 'u8[8192]{0}', space=vmem, size = 0x2000, scoped, tag = 'input window, operand 5, single buffered']
    #allocation12 [shape = 's32[1]{0}', space=sflag, size = 0x4, scoped, tag = 'scoped memory for tpu_custom_call.1']
    #allocation13 [shape = 'u8[512]{0}', space=vmem, size = 0x400, scoped, tag = 'input window, operand 6, single buffered']
    #allocation14 [shape = 'u8[8192]{0}', space=vmem, size = 0x2000, scoped, tag = 'input window, operand 7, single buffered']
    #allocation15 [shape = 's32[1]{0}', space=sflag, size = 0x4, scoped, tag = 'scoped memory for tpu_custom_call.1']
    #allocation16 [shape = 'u8[512]{0}', space=vmem, size = 0x400, scoped, tag = 'input window, operand 8, single buffered']
    #allocation17 [shape = 'u8[16384]{0}', space=vmem, size = 0x4000, scoped, tag = 'input window, operand 9, single buffered']
    #allocation18 [shape = 's32[1]{0}', space=sflag, size = 0x4, scoped, tag = 'scoped memory for tpu_custom_call.1']
    #allocation19 [shape = 'u8[512]{0}', space=vmem, size = 0x400, scoped, tag = 'input window, operand 10, single buffered']
    #allocation20 [shape = 'u8[512]{0}', space=vmem, size = 0x400, scoped, tag = 'input window, operand 11, single buffered']
    #allocation21 [shape = 's32[1]{0}', space=sflag, size = 0x4, scoped, tag = 'scoped memory for tpu_custom_call.1']
    #allocation22 [shape = 'u8[512]{0}', space=vmem, size = 0x400, scoped, tag = 'input window, operand 12, single buffered']
    #allocation23 [shape = 'u8[8192]{0}', space=vmem, size = 0x2000, scoped, tag = 'input window, operand 13, single buffered']
    #allocation24 [shape = 's32[1]{0}', space=sflag, size = 0x4, scoped, tag = 'scoped memory for tpu_custom_call.1']
    #allocation25 [shape = 'u8[512]{0}', space=vmem, size = 0x400, scoped, tag = 'input window, operand 14, single buffered']
    #allocation26 [shape = 'u8[8192]{0}', space=vmem, size = 0x2000, scoped, tag = 'input window, operand 15, single buffered']
    #allocation27 [shape = 's32[1]{0}', space=sflag, size = 0x4, scoped, tag = 'scoped memory for tpu_custom_call.1']
    #allocation28 [shape = 'u8[512]{0}', space=vmem, size = 0x400, scoped, tag = 'input window, operand 16, single buffered']
    #allocation29 [shape = 'u8[16384]{0}', space=vmem, size = 0x4000, scoped, tag = 'input window, operand 17, single buffered']
    #allocation30 [shape = 's32[1]{0}', space=sflag, size = 0x4, scoped, tag = 'scoped memory for tpu_custom_call.1']
    #allocation31 [shape = 'u8[512]{0}', space=vmem, size = 0x400, scoped, tag = 'input window, operand 18, single buffered']
    #allocation32 [shape = 'u8[512]{0}', space=vmem, size = 0x400, scoped, tag = 'input window, operand 19, single buffered']
    #allocation33 [shape = 's32[1]{0}', space=sflag, size = 0x4, scoped, tag = 'scoped memory for tpu_custom_call.1']
    #allocation34 [shape = 'u8[512]{0}', space=vmem, size = 0x400, scoped, tag = 'input window, operand 20, single buffered']
    #allocation35 [shape = 'u8[8192]{0}', space=vmem, size = 0x2000, scoped, tag = 'input window, operand 21, single buffered']
    #allocation36 [shape = 's32[1]{0}', space=sflag, size = 0x4, scoped, tag = 'scoped memory for tpu_custom_call.1']
    #allocation37 [shape = 'u8[512]{0}', space=vmem, size = 0x400, scoped, tag = 'input window, operand 22, single buffered']
    #allocation38 [shape = 'u8[16384]{0}', space=vmem, size = 0x4000, scoped, tag = 'input window, operand 23, single buffered']
    #allocation39 [shape = 's32[1]{0}', space=sflag, size = 0x4, scoped, tag = 'scoped memory for tpu_custom_call.1']
    #allocation40 [shape = 'u8[512]{0}', space=vmem, size = 0x400, scoped, tag = 'input window, operand 24, single buffered']
    #allocation41 [shape = 'u8[512]{0}', space=vmem, size = 0x400, scoped, tag = 'input window, operand 25, single buffered']
    #allocation42 [shape = 's32[1]{0}', space=sflag, size = 0x4, scoped, tag = 'scoped memory for tpu_custom_call.1']
    #allocation43 [shape = 'u8[512]{0}', space=vmem, size = 0x400, scoped, tag = 'input window, operand 26, single buffered']
    #allocation44 [shape = 'u8[32768]{0}', space=vmem, size = 0x8000, scoped, tag = 'output window, operand 0, single buffered']
    %32 = vsyncpa [#allocation3], 0
    %33 = vsyncpa [#allocation6], 0
    %34 = vsyncpa [#allocation9], 0
    %35 = vsyncpa [#allocation12], 0
    %36 = vsyncpa [#allocation15], 0
    %37 = vsyncpa [#allocation18], 0
    %38 = vsyncpa [#allocation21], 0
    %39 = vsyncpa [#allocation24], 0
    %40 = vsyncpa [#allocation27], 0
    %41 = vsyncpa [#allocation30], 0
    %42 = vsyncpa [#allocation33], 0
    %43 = vsyncpa [#allocation36], 0
    %44 = vsyncpa [#allocation39], 0
    %45 = vsyncpa [#allocation42], 0
    %46 = vsyncpa [#allocation4], 0
    // Predicated region
    $region2: #{tpu_custom_call.1} parent=1 // pred_check
      _
    $region3: #{tpu_custom_call.1} parent=1 // pred_check_branch
      %48 = sbr.rel (0) target = $region5
    $region4: #{tpu_custom_call.1} parent=1 // pred_region
      %s50 = ssub.s32 1024, 1024
      %51 = vsyncadd [#allocation3], %s50
      %s52 = sshll.u32 [#allocation2], 4
      %s53 = int_to_ptr.vmem [resolvable:$true] %s52
      %58 = dma.hbm_to_vmem [thread:$0]  %s0, 1024, %s53, [#allocation3], 128, 128, 8
    $region5: #{tpu_custom_call.1} parent=1 // pred_fallthru
      _
    // Predicated region
    $region6: #{tpu_custom_call.1} parent=1 // pred_check
      _
    $region7: #{tpu_custom_call.1} parent=1 // pred_check_branch
      %60 = sbr.rel (0) target = $region9
    $region8: #{tpu_custom_call.1} parent=1 // pred_region
      %s62 = ssub.s32 1024, 1024
      %63 = vsyncadd [#allocation6], %s62
      %s64 = sshll.u32 [#allocation5], 4
      %s65 = int_to_ptr.vmem [resolvable:$true] %s64
      %70 = dma.hbm_to_vmem [thread:$0]  %s1, 1024, %s65, [#allocation6], 128, 128, 8
    $region9: #{tpu_custom_call.1} parent=1 // pred_fallthru
      _
    // Predicated region
    $region10: #{tpu_custom_call.1} parent=1 // pred_check
      _
    $region11: #{tpu_custom_call.1} parent=1 // pred_check_branch
      %72 = sbr.rel (0) target = $region13
    $region12: #{tpu_custom_call.1} parent=1 // pred_region
      %s74 = ssub.s32 1024, 1024
      %75 = vsyncadd [#allocation6], %s74
      %s76 = sshll.u32 [#allocation7], 4
      %s77 = int_to_ptr.vmem [resolvable:$true] %s76
      %82 = dma.hbm_to_vmem [thread:$0]  %s2, 1024, %s77, [#allocation6], 128, 128, 8
    $region13: #{tpu_custom_call.1} parent=1 // pred_fallthru
      _
    // Predicated region
    $region14: #{tpu_custom_call.1} parent=1 // pred_check
      _
    $region15: #{tpu_custom_call.1} parent=1 // pred_check_branch
      %84 = sbr.rel (0) target = $region17
    $region16: #{tpu_custom_call.1} parent=1 // pred_region
      %s86 = ssub.s32 512, 512
      %87 = vsyncadd [#allocation9], %s86
      %s88 = sshll.u32 [#allocation8], 4
      %s89 = int_to_ptr.vmem [resolvable:$true] %s88
      %94 = dma.hbm_to_vmem [thread:$0]  %s3, 512, %s89, [#allocation9], 64, 64, 4
    $region17: #{tpu_custom_call.1} parent=1 // pred_fallthru
      _
    // Predicated region
    $region18: #{tpu_custom_call.1} parent=1 // pred_check
      _
    $region19: #{tpu_custom_call.1} parent=1 // pred_check_branch
      %96 = sbr.rel (0) target = $region21
    $region20: #{tpu_custom_call.1} parent=1 // pred_region
      %s98 = ssub.s32 512, 512
      %99 = vsyncadd [#allocation9], %s98
      %s100 = sshll.u32 [#allocation10], 4
      %s101 = int_to_ptr.vmem [resolvable:$true] %s100
      %106 = dma.hbm_to_vmem [thread:$0]  %s4, 512, %s101, [#allocation9], 64, 64, 4
    $region21: #{tpu_custom_call.1} parent=1 // pred_fallthru
      _
    // Predicated region
    $region22: #{tpu_custom_call.1} parent=1 // pred_check
      _
    $region23: #{tpu_custom_call.1} parent=1 // pred_check_branch
      %108 = sbr.rel (0) target = $region25
    $region24: #{tpu_custom_call.1} parent=1 // pred_region
      %s110 = ssub.s32 256, 256
      %111 = vsyncadd [#allocation12], %s110
      %s112 = sshll.u32 [#allocation11], 4
      %s113 = int_to_ptr.vmem [resolvable:$true] %s112
      %118 = dma.hbm_to_vmem [thread:$0]  %s5, 256, %s113, [#allocation12], 64, 64, 4
    $region25: #{tpu_custom_call.1} parent=1 // pred_fallthru
      _
    // Predicated region
    $region26: #{tpu_custom_call.1} parent=1 // pred_check
      _
    $region27: #{tpu_custom_call.1} parent=1 // pred_check_branch
      %120 = sbr.rel (0) target = $region29
    $region28: #{tpu_custom_call.1} parent=1 // pred_region
      %s122 = ssub.s32 16, 16
      %123 = vsyncadd [#allocation12], %s122
      %s125 = sshll.u32 [#allocation13], 4
      %s126 = int_to_ptr.vmem [resolvable:$true] %s125
      %128 = dma.hbm_to_vmem [thread:$0]  %s6, 16, %s126, [#allocation12]
    $region29: #{tpu_custom_call.1} parent=1 // pred_fallthru
      _
    // Predicated region
    $region30: #{tpu_custom_call.1} parent=1 // pred_check
      _
    $region31: #{tpu_custom_call.1} parent=1 // pred_check_branch
      %130 = sbr.rel (0) target = $region33
    $region32: #{tpu_custom_call.1} parent=1 // pred_region
      %s132 = ssub.s32 256, 256
      %133 = vsyncadd [#allocation15], %s132
      %s134 = sshll.u32 [#allocation14], 4
      %s135 = int_to_ptr.vmem [resolvable:$true] %s134
      %140 = dma.hbm_to_vmem [thread:$0]  %s7, 256, %s135, [#allocation15], 64, 64, 4
    $region33: #{tpu_custom_call.1} parent=1 // pred_fallthru
      _
    // Predicated region
    $region34: #{tpu_custom_call.1} parent=1 // pred_check
      _
    $region35: #{tpu_custom_call.1} parent=1 // pred_check_branch
      %142 = sbr.rel (0) target = $region37
    $region36: #{tpu_custom_call.1} parent=1 // pred_region
      %s144 = ssub.s32 16, 16
      %145 = vsyncadd [#allocation15], %s144
      %s147 = sshll.u32 [#allocation16], 4
      %s148 = int_to_ptr.vmem [resolvable:$true] %s147
      %150 = dma.hbm_to_vmem [thread:$0]  %s8, 16, %s148, [#allocation15]
    $region37: #{tpu_custom_call.1} parent=1 // pred_fallthru
      _
    // Predicated region
    $region38: #{tpu_custom_call.1} parent=1 // pred_check
      _
    $region39: #{tpu_custom_call.1} parent=1 // pred_check_branch
      %152 = sbr.rel (0) target = $region41
    $region40: #{tpu_custom_call.1} parent=1 // pred_region
      %s154 = ssub.s32 512, 512
      %155 = vsyncadd [#allocation18], %s154
      %s156 = sshll.u32 [#allocation17], 4
      %s157 = int_to_ptr.vmem [resolvable:$true] %s156
      %162 = dma.hbm_to_vmem [thread:$0]  %s9, 512, %s157, [#allocation18], 64, 64, 4
    $region41: #{tpu_custom_call.1} parent=1 // pred_fallthru
      _
    // Predicated region
    $region42: #{tpu_custom_call.1} parent=1 // pred_check
      _
    $region43: #{tpu_custom_call.1} parent=1 // pred_check_branch
      %164 = sbr.rel (0) target = $region45
    $region44: #{tpu_custom_call.1} parent=1 // pred_region
      %s166 = ssub.s32 16, 16
      %167 = vsyncadd [#allocation18], %s166
      %s169 = sshll.u32 [#allocation19], 4
      %s170 = int_to_ptr.vmem [resolvable:$true] %s169
      %172 = dma.hbm_to_vmem [thread:$0]  %s10, 16, %s170, [#allocation18]
    $region45: #{tpu_custom_call.1} parent=1 // pred_fallthru
      _
    // Predicated region
    $region46: #{tpu_custom_call.1} parent=1 // pred_check
      _
    $region47: #{tpu_custom_call.1} parent=1 // pred_check_branch
      %174 = sbr.rel (0) target = $region49
    $region48: #{tpu_custom_call.1} parent=1 // pred_region
      %s176 = ssub.s32 16, 16
      %177 = vsyncadd [#allocation21], %s176
      %s179 = sshll.u32 [#allocation20], 4
      %s180 = int_to_ptr.vmem [resolvable:$true] %s179
      %182 = dma.hbm_to_vmem [thread:$0]  %s11, 16, %s180, [#allocation21]
    $region49: #{tpu_custom_call.1} parent=1 // pred_fallthru
      _
    // Predicated region
    $region50: #{tpu_custom_call.1} parent=1 // pred_check
      _
    $region51: #{tpu_custom_call.1} parent=1 // pred_check_branch
      %184 = sbr.rel (0) target = $region53
    $region52: #{tpu_custom_call.1} parent=1 // pred_region
      %s186 = ssub.s32 16, 16
      %187 = vsyncadd [#allocation21], %s186
      %s189 = sshll.u32 [#allocation22], 4
      %s190 = int_to_ptr.vmem [resolvable:$true] %s189
      %192 = dma.hbm_to_vmem [thread:$0]  %s12, 16, %s190, [#allocation21]
    $region53: #{tpu_custom_call.1} parent=1 // pred_fallthru
      _
    // Predicated region
    $region54: #{tpu_custom_call.1} parent=1 // pred_check
      _
    $region55: #{tpu_custom_call.1} parent=1 // pred_check_branch
      %194 = sbr.rel (0) target = $region57
    $region56: #{tpu_custom_call.1} parent=1 // pred_region
      %s196 = ssub.s32 256, 256
      %197 = vsyncadd [#allocation24], %s196
      %s198 = sshll.u32 [#allocation23], 4
      %s199 = int_to_ptr.vmem [resolvable:$true] %s198
      %204 = dma.hbm_to_vmem [thread:$0]  %s13, 256, %s199, [#allocation24], 64, 64, 4
    $region57: #{tpu_custom_call.1} parent=1 // pred_fallthru
      _
    // Predicated region
    $region58: #{tpu_custom_call.1} parent=1 // pred_check
      _
    $region59: #{tpu_custom_call.1} parent=1 // pred_check_branch
      %206 = sbr.rel (0) target = $region61
    $region60: #{tpu_custom_call.1} parent=1 // pred_region
      %s208 = ssub.s32 16, 16
      %209 = vsyncadd [#allocation24], %s208
      %s211 = sshll.u32 [#allocation25], 4
      %s212 = int_to_ptr.vmem [resolvable:$true] %s211
      %214 = dma.hbm_to_vmem [thread:$0]  %s14, 16, %s212, [#allocation24]
    $region61: #{tpu_custom_call.1} parent=1 // pred_fallthru
      _
    // Predicated region
    $region62: #{tpu_custom_call.1} parent=1 // pred_check
      _
    $region63: #{tpu_custom_call.1} parent=1 // pred_check_branch
      %216 = sbr.rel (0) target = $region65
    $region64: #{tpu_custom_call.1} parent=1 // pred_region
      %s218 = ssub.s32 256, 256
      %219 = vsyncadd [#allocation27], %s218
      %s220 = sshll.u32 [#allocation26], 4
      %s221 = int_to_ptr.vmem [resolvable:$true] %s220
      %226 = dma.hbm_to_vmem [thread:$0]  %s15, 256, %s221, [#allocation27], 64, 64, 4
    $region65: #{tpu_custom_call.1} parent=1 // pred_fallthru
      _
    // Predicated region
    $region66: #{tpu_custom_call.1} parent=1 // pred_check
      _
    $region67: #{tpu_custom_call.1} parent=1 // pred_check_branch
      %228 = sbr.rel (0) target = $region69
    $region68: #{tpu_custom_call.1} parent=1 // pred_region
      %s230 = ssub.s32 16, 16
      %231 = vsyncadd [#allocation27], %s230
      %s233 = sshll.u32 [#allocation28], 4
      %s234 = int_to_ptr.vmem [resolvable:$true] %s233
      %236 = dma.hbm_to_vmem [thread:$0]  %s16, 16, %s234, [#allocation27]
    $region69: #{tpu_custom_call.1} parent=1 // pred_fallthru
      _
    // Predicated region
    $region70: #{tpu_custom_call.1} parent=1 // pred_check
      _
    $region71: #{tpu_custom_call.1} parent=1 // pred_check_branch
      %238 = sbr.rel (0) target = $region73
    $region72: #{tpu_custom_call.1} parent=1 // pred_region
      %s240 = ssub.s32 512, 512
      %241 = vsyncadd [#allocation30], %s240
      %s242 = sshll.u32 [#allocation29], 4
      %s243 = int_to_ptr.vmem [resolvable:$true] %s242
      %248 = dma.hbm_to_vmem [thread:$0]  %s17, 512, %s243, [#allocation30], 64, 64, 4
    $region73: #{tpu_custom_call.1} parent=1 // pred_fallthru
      _
    // Predicated region
    $region74: #{tpu_custom_call.1} parent=1 // pred_check
      _
    $region75: #{tpu_custom_call.1} parent=1 // pred_check_branch
      %250 = sbr.rel (0) target = $region77
    $region76: #{tpu_custom_call.1} parent=1 // pred_region
      %s252 = ssub.s32 16, 16
      %253 = vsyncadd [#allocation30], %s252
      %s255 = sshll.u32 [#allocation31], 4
      %s256 = int_to_ptr.vmem [resolvable:$true] %s255
      %258 = dma.hbm_to_vmem [thread:$0]  %s18, 16, %s256, [#allocation30]
    $region77: #{tpu_custom_call.1} parent=1 // pred_fallthru
      _
    // Predicated region
    $region78: #{tpu_custom_call.1} parent=1 // pred_check
      _
    $region79: #{tpu_custom_call.1} parent=1 // pred_check_branch
      %260 = sbr.rel (0) target = $region81
    $region80: #{tpu_custom_call.1} parent=1 // pred_region
      %s262 = ssub.s32 16, 16
      %263 = vsyncadd [#allocation33], %s262
      %s265 = sshll.u32 [#allocation32], 4
      %s266 = int_to_ptr.vmem [resolvable:$true] %s265
      %268 = dma.hbm_to_vmem [thread:$0]  %s19, 16, %s266, [#allocation33]
    $region81: #{tpu_custom_call.1} parent=1 // pred_fallthru
      _
    // Predicated region
    $region82: #{tpu_custom_call.1} parent=1 // pred_check
      _
    $region83: #{tpu_custom_call.1} parent=1 // pred_check_branch
      %270 = sbr.rel (0) target = $region85
    $region84: #{tpu_custom_call.1} parent=1 // pred_region
      %s272 = ssub.s32 16, 16
      %273 = vsyncadd [#allocation33], %s272
      %s275 = sshll.u32 [#allocation34], 4
      %s276 = int_to_ptr.vmem [resolvable:$true] %s275
      %278 = dma.hbm_to_vmem [thread:$0]  %s20, 16, %s276, [#allocation33]
    $region85: #{tpu_custom_call.1} parent=1 // pred_fallthru
      _
    // Predicated region
    $region86: #{tpu_custom_call.1} parent=1 // pred_check
      _
    $region87: #{tpu_custom_call.1} parent=1 // pred_check_branch
      %280 = sbr.rel (0) target = $region89
    $region88: #{tpu_custom_call.1} parent=1 // pred_region
      %s282 = ssub.s32 256, 256
      %283 = vsyncadd [#allocation36], %s282
      %s284 = sshll.u32 [#allocation35], 4
      %s285 = int_to_ptr.vmem [resolvable:$true] %s284
      %290 = dma.hbm_to_vmem [thread:$0]  %s21, 256, %s285, [#allocation36], 64, 64, 4
    $region89: #{tpu_custom_call.1} parent=1 // pred_fallthru
      _
    // Predicated region
    $region90: #{tpu_custom_call.1} parent=1 // pred_check
      _
    $region91: #{tpu_custom_call.1} parent=1 // pred_check_branch
      %292 = sbr.rel (0) target = $region93
    $region92: #{tpu_custom_call.1} parent=1 // pred_region
      %s294 = ssub.s32 16, 16
      %295 = vsyncadd [#allocation36], %s294
      %s297 = sshll.u32 [#allocation37], 4
      %s298 = int_to_ptr.vmem [resolvable:$true] %s297
      %300 = dma.hbm_to_vmem [thread:$0]  %s22, 16, %s298, [#allocation36]
    $region93: #{tpu_custom_call.1} parent=1 // pred_fallthru
      _
    // Predicated region
    $region94: #{tpu_custom_call.1} parent=1 // pred_check
      _
    $region95: #{tpu_custom_call.1} parent=1 // pred_check_branch
      %302 = sbr.rel (0) target = $region97
    $region96: #{tpu_custom_call.1} parent=1 // pred_region
      %s304 = ssub.s32 512, 512
      %305 = vsyncadd [#allocation39], %s304
      %s306 = sshll.u32 [#allocation38], 4
      %s307 = int_to_ptr.vmem [resolvable:$true] %s306
      %312 = dma.hbm_to_vmem [thread:$0]  %s23, 512, %s307, [#allocation39], 64, 64, 4
    $region97: #{tpu_custom_call.1} parent=1 // pred_fallthru
      _
    // Predicated region
    $region98: #{tpu_custom_call.1} parent=1 // pred_check
      _
    $region99: #{tpu_custom_call.1} parent=1 // pred_check_branch
      %314 = sbr.rel (0) target = $region101
    $region100: #{tpu_custom_call.1} parent=1 // pred_region
      %s316 = ssub.s32 16, 16
      %317 = vsyncadd [#allocation39], %s316
      %s319 = sshll.u32 [#allocation40], 4
      %s320 = int_to_ptr.vmem [resolvable:$true] %s319
      %322 = dma.hbm_to_vmem [thread:$0]  %s24, 16, %s320, [#allocation39]
    $region101: #{tpu_custom_call.1} parent=1 // pred_fallthru
      _
    // Predicated region
    $region102: #{tpu_custom_call.1} parent=1 // pred_check
      _
    $region103: #{tpu_custom_call.1} parent=1 // pred_check_branch
      %324 = sbr.rel (0) target = $region105
    $region104: #{tpu_custom_call.1} parent=1 // pred_region
      %s326 = ssub.s32 16, 16
      %327 = vsyncadd [#allocation42], %s326
      %s329 = sshll.u32 [#allocation41], 4
      %s330 = int_to_ptr.vmem [resolvable:$true] %s329
      %332 = dma.hbm_to_vmem [thread:$0]  %s25, 16, %s330, [#allocation42]
    $region105: #{tpu_custom_call.1} parent=1 // pred_fallthru
      _
    // Predicated region
    $region106: #{tpu_custom_call.1} parent=1 // pred_check
      _
    $region107: #{tpu_custom_call.1} parent=1 // pred_check_branch
      %334 = sbr.rel (0) target = $region109
    $region108: #{tpu_custom_call.1} parent=1 // pred_region
      %s336 = ssub.s32 16, 16
      %337 = vsyncadd [#allocation42], %s336
      %s339 = sshll.u32 [#allocation43], 4
      %s340 = int_to_ptr.vmem [resolvable:$true] %s339
      %342 = dma.hbm_to_vmem [thread:$0]  %s26, 16, %s340, [#allocation42]
    $region109: #{tpu_custom_call.1} parent=1 // pred_fallthru
      _
    // Predicated region
    $region110: #{tpu_custom_call.1} parent=1 // pred_check
      _
    $region111: #{tpu_custom_call.1} parent=1 // pred_check_branch
      %344 = sbr.rel (0) target = $region113
    $region112: #{tpu_custom_call.1} parent=1 // pred_region
      %345 = dma.done [#allocation3], 1024
    $region113: #{tpu_custom_call.1} parent=1 // pred_fallthru
      _
    // Predicated region
    $region114: #{tpu_custom_call.1} parent=1 // pred_check
      _
    $region115: #{tpu_custom_call.1} parent=1 // pred_check_branch
      %347 = sbr.rel (0) target = $region117
    $region116: #{tpu_custom_call.1} parent=1 // pred_region
      %348 = dma.done [#allocation6], 1024
    $region117: #{tpu_custom_call.1} parent=1 // pred_fallthru
      _
    // Predicated region
    $region118: #{tpu_custom_call.1} parent=1 // pred_check
      _
    $region119: #{tpu_custom_call.1} parent=1 // pred_check_branch
      %350 = sbr.rel (0) target = $region121
    $region120: #{tpu_custom_call.1} parent=1 // pred_region
      %351 = dma.done [#allocation6], 1024
    $region121: #{tpu_custom_call.1} parent=1 // pred_fallthru
      _
    // Predicated region
    $region122: #{tpu_custom_call.1} parent=1 // pred_check
      _
    $region123: #{tpu_custom_call.1} parent=1 // pred_check_branch
      %353 = sbr.rel (0) target = $region125
    $region124: #{tpu_custom_call.1} parent=1 // pred_region
      %354 = dma.done [#allocation9], 512
    $region125: #{tpu_custom_call.1} parent=1 // pred_fallthru
      _
    // Predicated region
    $region126: #{tpu_custom_call.1} parent=1 // pred_check
      _
    $region127: #{tpu_custom_call.1} parent=1 // pred_check_branch
      %356 = sbr.rel (0) target = $region129
    $region128: #{tpu_custom_call.1} parent=1 // pred_region
      %357 = dma.done [#allocation9], 512
    $region129: #{tpu_custom_call.1} parent=1 // pred_fallthru
      _
    // Predicated region
    $region130: #{tpu_custom_call.1} parent=1 // pred_check
      _
    $region131: #{tpu_custom_call.1} parent=1 // pred_check_branch
      %359 = sbr.rel (0) target = $region133
    $region132: #{tpu_custom_call.1} parent=1 // pred_region
      %360 = dma.done [#allocation12], 256
    $region133: #{tpu_custom_call.1} parent=1 // pred_fallthru
      _
    // Predicated region
    $region134: #{tpu_custom_call.1} parent=1 // pred_check
      _
    $region135: #{tpu_custom_call.1} parent=1 // pred_check_branch
      %362 = sbr.rel (0) target = $region137
    $region136: #{tpu_custom_call.1} parent=1 // pred_region
      %363 = dma.done [#allocation12], 16
    $region137: #{tpu_custom_call.1} parent=1 // pred_fallthru
      _
    // Predicated region
    $region138: #{tpu_custom_call.1} parent=1 // pred_check
      _
    $region139: #{tpu_custom_call.1} parent=1 // pred_check_branch
      %365 = sbr.rel (0) target = $region141
    $region140: #{tpu_custom_call.1} parent=1 // pred_region
      %366 = dma.done [#allocation15], 256
    $region141: #{tpu_custom_call.1} parent=1 // pred_fallthru
      _
    // Predicated region
    $region142: #{tpu_custom_call.1} parent=1 // pred_check
      _
    $region143: #{tpu_custom_call.1} parent=1 // pred_check_branch
      %368 = sbr.rel (0) target = $region145
    $region144: #{tpu_custom_call.1} parent=1 // pred_region
      %369 = dma.done [#allocation15], 16
    $region145: #{tpu_custom_call.1} parent=1 // pred_fallthru
      _
    // Predicated region
    $region146: #{tpu_custom_call.1} parent=1 // pred_check
      _
    $region147: #{tpu_custom_call.1} parent=1 // pred_check_branch
      %371 = sbr.rel (0) target = $region149
    $region148: #{tpu_custom_call.1} parent=1 // pred_region
      %372 = dma.done [#allocation18], 512
    $region149: #{tpu_custom_call.1} parent=1 // pred_fallthru
      _
    // Predicated region
    $region150: #{tpu_custom_call.1} parent=1 // pred_check
      _
    $region151: #{tpu_custom_call.1} parent=1 // pred_check_branch
      %374 = sbr.rel (0) target = $region153
    $region152: #{tpu_custom_call.1} parent=1 // pred_region
      %375 = dma.done [#allocation18], 16
    $region153: #{tpu_custom_call.1} parent=1 // pred_fallthru
      _
    // Predicated region
    $region154: #{tpu_custom_call.1} parent=1 // pred_check
      _
    $region155: #{tpu_custom_call.1} parent=1 // pred_check_branch
      %377 = sbr.rel (0) target = $region157
    $region156: #{tpu_custom_call.1} parent=1 // pred_region
      %378 = dma.done [#allocation21], 16
    $region157: #{tpu_custom_call.1} parent=1 // pred_fallthru
      _
    // Predicated region
    $region158: #{tpu_custom_call.1} parent=1 // pred_check
      _
    $region159: #{tpu_custom_call.1} parent=1 // pred_check_branch
      %380 = sbr.rel (0) target = $region161
    $region160: #{tpu_custom_call.1} parent=1 // pred_region
      %381 = dma.done [#allocation21], 16
    $region161: #{tpu_custom_call.1} parent=1 // pred_fallthru
      _
    // Predicated region
    $region162: #{tpu_custom_call.1} parent=1 // pred_check
      _
    $region163: #{tpu_custom_call.1} parent=1 // pred_check_branch
      %383 = sbr.rel (0) target = $region165
    $region164: #{tpu_custom_call.1} parent=1 // pred_region
      %384 = dma.done [#allocation24], 256
    $region165: #{tpu_custom_call.1} parent=1 // pred_fallthru
      _
    // Predicated region
    $region166: #{tpu_custom_call.1} parent=1 // pred_check
      _
    $region167: #{tpu_custom_call.1} parent=1 // pred_check_branch
      %386 = sbr.rel (0) target = $region169
    $region168: #{tpu_custom_call.1} parent=1 // pred_region
      %387 = dma.done [#allocation24], 16
    $region169: #{tpu_custom_call.1} parent=1 // pred_fallthru
      _
    // Predicated region
    $region170: #{tpu_custom_call.1} parent=1 // pred_check
      _
    $region171: #{tpu_custom_call.1} parent=1 // pred_check_branch
      %389 = sbr.rel (0) target = $region173
    $region172: #{tpu_custom_call.1} parent=1 // pred_region
      %390 = dma.done [#allocation27], 256
    $region173: #{tpu_custom_call.1} parent=1 // pred_fallthru
      _
    // Predicated region
    $region174: #{tpu_custom_call.1} parent=1 // pred_check
      _
    $region175: #{tpu_custom_call.1} parent=1 // pred_check_branch
      %392 = sbr.rel (0) target = $region177
    $region176: #{tpu_custom_call.1} parent=1 // pred_region
      %393 = dma.done [#allocation27], 16
    $region177: #{tpu_custom_call.1} parent=1 // pred_fallthru
      _
    // Predicated region
    $region178: #{tpu_custom_call.1} parent=1 // pred_check
      _
    $region179: #{tpu_custom_call.1} parent=1 // pred_check_branch
      %395 = sbr.rel (0) target = $region181
    $region180: #{tpu_custom_call.1} parent=1 // pred_region
      %396 = dma.done [#allocation30], 512
    $region181: #{tpu_custom_call.1} parent=1 // pred_fallthru
      _
    // Predicated region
    $region182: #{tpu_custom_call.1} parent=1 // pred_check
      _
    $region183: #{tpu_custom_call.1} parent=1 // pred_check_branch
      %398 = sbr.rel (0) target = $region185
    $region184: #{tpu_custom_call.1} parent=1 // pred_region
      %399 = dma.done [#allocation30], 16
    $region185: #{tpu_custom_call.1} parent=1 // pred_fallthru
      _
    // Predicated region
    $region186: #{tpu_custom_call.1} parent=1 // pred_check
      _
    $region187: #{tpu_custom_call.1} parent=1 // pred_check_branch
      %401 = sbr.rel (0) target = $region189
    $region188: #{tpu_custom_call.1} parent=1 // pred_region
      %402 = dma.done [#allocation33], 16
    $region189: #{tpu_custom_call.1} parent=1 // pred_fallthru
      _
    // Predicated region
    $region190: #{tpu_custom_call.1} parent=1 // pred_check
      _
    $region191: #{tpu_custom_call.1} parent=1 // pred_check_branch
      %404 = sbr.rel (0) target = $region193
    $region192: #{tpu_custom_call.1} parent=1 // pred_region
      %405 = dma.done [#allocation33], 16
    $region193: #{tpu_custom_call.1} parent=1 // pred_fallthru
      _
    // Predicated region
    $region194: #{tpu_custom_call.1} parent=1 // pred_check
      _
    $region195: #{tpu_custom_call.1} parent=1 // pred_check_branch
      %407 = sbr.rel (0) target = $region197
    $region196: #{tpu_custom_call.1} parent=1 // pred_region
      %408 = dma.done [#allocation36], 256
    $region197: #{tpu_custom_call.1} parent=1 // pred_fallthru
      _
    // Predicated region
    $region198: #{tpu_custom_call.1} parent=1 // pred_check
      _
    $region199: #{tpu_custom_call.1} parent=1 // pred_check_branch
      %410 = sbr.rel (0) target = $region201
    $region200: #{tpu_custom_call.1} parent=1 // pred_region
      %411 = dma.done [#allocation36], 16
    $region201: #{tpu_custom_call.1} parent=1 // pred_fallthru
      _
    // Predicated region
    $region202: #{tpu_custom_call.1} parent=1 // pred_check
      _
    $region203: #{tpu_custom_call.1} parent=1 // pred_check_branch
      %413 = sbr.rel (0) target = $region205
    $region204: #{tpu_custom_call.1} parent=1 // pred_region
      %414 = dma.done [#allocation39], 512
    $region205: #{tpu_custom_call.1} parent=1 // pred_fallthru
      _
    // Predicated region
    $region206: #{tpu_custom_call.1} parent=1 // pred_check
      _
    $region207: #{tpu_custom_call.1} parent=1 // pred_check_branch
      %416 = sbr.rel (0) target = $region209
    $region208: #{tpu_custom_call.1} parent=1 // pred_region
      %417 = dma.done [#allocation39], 16
    $region209: #{tpu_custom_call.1} parent=1 // pred_fallthru
      _
    // Predicated region
    $region210: #{tpu_custom_call.1} parent=1 // pred_check
      _
    $region211: #{tpu_custom_call.1} parent=1 // pred_check_branch
      %419 = sbr.rel (0) target = $region213
    $region212: #{tpu_custom_call.1} parent=1 // pred_region
      %420 = dma.done [#allocation42], 16
    $region213: #{tpu_custom_call.1} parent=1 // pred_fallthru
      _
    // Predicated region
    $region214: #{tpu_custom_call.1} parent=1 // pred_check
      _
    $region215: #{tpu_custom_call.1} parent=1 // pred_check_branch
      %422 = sbr.rel (0) target = $region217
    $region216: #{tpu_custom_call.1} parent=1 // pred_region
      %423 = dma.done [#allocation42], 16
    $region217: #{tpu_custom_call.1} parent=1 // pred_fallthru
      _
    %v425 = vld [vmem:[#allocation11] sm:$0xf]
    %v426 = vld [vmem:[#allocation11 + $0x4] sm:$0xf]
    %v427 = vld [vmem:[#allocation11 + $0x8] sm:$0xf]
    %v428 = vld [vmem:[#allocation11 + $0xc] sm:$0xf]
    %v429 = vld [vmem:[#allocation13] sm:$0x1]
    %v430 = vld [vmem:[#allocation14] sm:$0xf]
    %v431 = vld [vmem:[#allocation14 + $0x4] sm:$0xf]
    %v432 = vld [vmem:[#allocation14 + $0x8] sm:$0xf]
    %v433 = vld [vmem:[#allocation14 + $0xc] sm:$0xf]
    %v434 = vld [vmem:[#allocation16] sm:$0x1]
    %v435 = vld [vmem:[#allocation17] sm:$0xf]
    %v436 = vld [vmem:[#allocation17 + $0x4] sm:$0xf]
    %v437 = vld [vmem:[#allocation17 + $0x8] sm:$0xf]
    %v438 = vld [vmem:[#allocation17 + $0xc] sm:$0xf]
    %v439 = vld [vmem:[#allocation17 + $0x10] sm:$0xf]
    %v440 = vld [vmem:[#allocation17 + $0x14] sm:$0xf]
    %v441 = vld [vmem:[#allocation17 + $0x18] sm:$0xf]
    %v442 = vld [vmem:[#allocation17 + $0x1c] sm:$0xf]
    %v443 = vld [vmem:[#allocation19] sm:$0x1]
    %v444 = vld [vmem:[#allocation20] sm:$0x1]
    %v445 = vld [vmem:[#allocation22] sm:$0x1]
    %v446 = vld [vmem:[#allocation23] sm:$0xf]
    %v447 = vld [vmem:[#allocation23 + $0x4] sm:$0xf]
    %v448 = vld [vmem:[#allocation23 + $0x8] sm:$0xf]
    %v449 = vld [vmem:[#allocation23 + $0xc] sm:$0xf]
    %v450 = vld [vmem:[#allocation25] sm:$0x1]
    %v451 = vld [vmem:[#allocation26] sm:$0xf]
    %v452 = vld [vmem:[#allocation26 + $0x4] sm:$0xf]
    %v453 = vld [vmem:[#allocation26 + $0x8] sm:$0xf]
    %v454 = vld [vmem:[#allocation26 + $0xc] sm:$0xf]
    %v455 = vld [vmem:[#allocation28] sm:$0x1]
    %v456 = vld [vmem:[#allocation29] sm:$0xf]
    %v457 = vld [vmem:[#allocation29 + $0x4] sm:$0xf]
    %v458 = vld [vmem:[#allocation29 + $0x8] sm:$0xf]
    %v459 = vld [vmem:[#allocation29 + $0xc] sm:$0xf]
    %v460 = vld [vmem:[#allocation29 + $0x10] sm:$0xf]
    %v461 = vld [vmem:[#allocation29 + $0x14] sm:$0xf]
    %v462 = vld [vmem:[#allocation29 + $0x18] sm:$0xf]
    %v463 = vld [vmem:[#allocation29 + $0x1c] sm:$0xf]
    %v464 = vld [vmem:[#allocation31] sm:$0x1]
    %v465 = vld [vmem:[#allocation32] sm:$0x1]
    %v466 = vld [vmem:[#allocation34] sm:$0x1]
    %v467 = vld [vmem:[#allocation35] sm:$0xf]
    %v468 = vld [vmem:[#allocation35 + $0x4] sm:$0xf]
    %v469 = vld [vmem:[#allocation35 + $0x8] sm:$0xf]
    %v470 = vld [vmem:[#allocation35 + $0xc] sm:$0xf]
    %v471 = vld [vmem:[#allocation37] sm:$0x1]
    %v472 = vld [vmem:[#allocation38] sm:$0xf]
    %v473 = vld [vmem:[#allocation38 + $0x4] sm:$0xf]
    %v474 = vld [vmem:[#allocation38 + $0x8] sm:$0xf]
    %v475 = vld [vmem:[#allocation38 + $0xc] sm:$0xf]
    %v476 = vld [vmem:[#allocation38 + $0x10] sm:$0xf]
    %v477 = vld [vmem:[#allocation38 + $0x14] sm:$0xf]
    %v478 = vld [vmem:[#allocation38 + $0x18] sm:$0xf]
    %v479 = vld [vmem:[#allocation38 + $0x1c] sm:$0xf]
    %v480 = vld [vmem:[#allocation40] sm:$0x1]
    %v481 = vld [vmem:[#allocation41] sm:$0x1]
    %v482 = vld [vmem:[#allocation43] sm:$0x1]
    %v483 = vld [vmem:[#allocation2] sm:$0xff]
    %v484 = vld [vmem:[#allocation2 + $0x8] sm:$0xff]
    %v485 = vld [vmem:[#allocation2 + $0x10] sm:$0xff]
    %v486 = vld [vmem:[#allocation2 + $0x18] sm:$0xff]
    %v487 = vld [vmem:[#allocation2 + $0x20] sm:$0xff]
    %v488 = vld [vmem:[#allocation2 + $0x28] sm:$0xff]
    %v489 = vld [vmem:[#allocation2 + $0x30] sm:$0xff]
    %v490 = vld [vmem:[#allocation2 + $0x38] sm:$0xff]
    %v491 = vld [vmem:[#allocation5] sm:$0xff]
    %v492 = vld [vmem:[#allocation5 + $0x8] sm:$0xff]
    %v493 = vld [vmem:[#allocation5 + $0x10] sm:$0xff]
    %v494 = vld [vmem:[#allocation5 + $0x18] sm:$0xff]
    %v495 = vld [vmem:[#allocation5 + $0x20] sm:$0xff]
    %v496 = vld [vmem:[#allocation5 + $0x28] sm:$0xff]
    %v497 = vld [vmem:[#allocation5 + $0x30] sm:$0xff]
    %v498 = vld [vmem:[#allocation5 + $0x38] sm:$0xff]
    %v499 = vld [vmem:[#allocation7] sm:$0xff]
    %v500 = vld [vmem:[#allocation7 + $0x8] sm:$0xff]
    %v501 = vld [vmem:[#allocation7 + $0x10] sm:$0xff]
    %v502 = vld [vmem:[#allocation7 + $0x18] sm:$0xff]
    %v503 = vld [vmem:[#allocation7 + $0x20] sm:$0xff]
    %v504 = vld [vmem:[#allocation7 + $0x28] sm:$0xff]
    %v505 = vld [vmem:[#allocation7 + $0x30] sm:$0xff]
    %v506 = vld [vmem:[#allocation7 + $0x38] sm:$0xff]
    %v507 = vld [vmem:[#allocation8] sm:$0xf]
    %v508 = vld [vmem:[#allocation8 + $0x4] sm:$0xf]
    %v509 = vld [vmem:[#allocation8 + $0x8] sm:$0xf]
    %v510 = vld [vmem:[#allocation8 + $0xc] sm:$0xf]
    %v511 = vld [vmem:[#allocation8 + $0x10] sm:$0xf]
    %v512 = vld [vmem:[#allocation8 + $0x14] sm:$0xf]
    %v513 = vld [vmem:[#allocation8 + $0x18] sm:$0xf]
    %v514 = vld [vmem:[#allocation8 + $0x1c] sm:$0xf]
    %v515 = vunpack.c.l.bf16 %v507
    %v516 = vunpack.c.l.bf16 %v508
    %v517 = vunpack.c.l.bf16 %v509
    %v518 = vunpack.c.l.bf16 %v510
    %v519 = vunpack.c.l.bf16 %v511
    %v520 = vunpack.c.l.bf16 %v512
    %v521 = vunpack.c.l.bf16 %v513
    %v522 = vunpack.c.l.bf16 %v514
    %v523 = vld [vmem:[#allocation10] sm:$0xf]
    %v524 = vld [vmem:[#allocation10 + $0x4] sm:$0xf]
    %v525 = vld [vmem:[#allocation10 + $0x8] sm:$0xf]
    %v526 = vld [vmem:[#allocation10 + $0xc] sm:$0xf]
    %v527 = vld [vmem:[#allocation10 + $0x10] sm:$0xf]
    %v528 = vld [vmem:[#allocation10 + $0x14] sm:$0xf]
    %v529 = vld [vmem:[#allocation10 + $0x18] sm:$0xf]
    %v530 = vld [vmem:[#allocation10 + $0x1c] sm:$0xf]
    %v531 = vunpack.c.l.bf16 %v523
    %v532 = vunpack.c.l.bf16 %v524
    %v533 = vunpack.c.l.bf16 %v525
    %v534 = vunpack.c.l.bf16 %v526
    %v535 = vunpack.c.l.bf16 %v527
    %v536 = vunpack.c.l.bf16 %v528
    %v537 = vunpack.c.l.bf16 %v529
    %v538 = vunpack.c.l.bf16 %v530
    %v539 = vpack.c.bf16 %v484, %v483
    %v540 = vpack.c.bf16 %v486, %v485
    %v541 = vpack.c.bf16 %v488, %v487
    %v542 = vpack.c.bf16 %v490, %v489
    %v544 = vlaneseq
    %v545 = vshrl.u32 %v544, 7
    %v546 = vsub.s32 0, %v545
    %v547 = vrot.slane %v429, %v546
    %v553 = vunpack.c.l.b16 %v425
    %v554 = vunpack.c.l.b16 %v426
    %v555 = vunpack.c.l.b16 %v427
    %v556 = vunpack.c.l.b16 %v428
    %v557 = vpack.c.b16 %v554, %v553
    %v558 = vpack.c.b16 %v556, %v555
    %vm561 = vcmask 261120
    %v563 = vsel %vm561, %v539, 0
    %v566 = vsel %vm561, %v540, 0
    %v569 = vsel %vm561, %v541, 0
    %v572 = vsel %vm561, %v542, 0
    %574 = vmatprep.subr.bf16.mxu0 0
    %575 = vmatpush1.bf16.msra.mxu0 %v557
    %576 = vmatprep.subr.bf16.mxu0 0
    %577 = vmatpush1.bf16.msra.mxu0 %v558
    %578 = vmatprep.subr.bf16.mxu0 0
    %579 = vmatpush1.bf16.msra.mxu0 0
    %580 = vmatprep.subr.bf16.mxu0 0
    %581 = vmatpush1.bf16.msra.mxu0 0
    %582 = vmatprep.subr.bf16.mxu0 0
    %583 = vmatpush1.bf16.msra.mxu0 0
    %584 = vmatprep.subr.bf16.mxu0 0
    %585 = vmatpush1.bf16.msra.mxu0 0
    %586 = vmatprep.subr.bf16.mxu0 0
    %587 = vmatpush1.bf16.msra.mxu0 0
    %588 = vmatprep.subr.bf16.mxu0 0
    %589 = vmatpush1.bf16.msra.mxu0 0
    %590 = vmatprep.subr.bf16.mxu0 0
    %591 = vmatpush1.bf16.msra.mxu0 0
    %592 = vmatprep.subr.bf16.mxu0 0
    %593 = vmatpush1.bf16.msra.mxu0 0
    %594 = vmatprep.subr.bf16.mxu0 0
    %595 = vmatpush1.bf16.msra.mxu0 0
    %596 = vmatprep.subr.bf16.mxu0 0
    %597 = vmatpush1.bf16.msra.mxu0 0
    %598 = vmatprep.subr.bf16.mxu0 0
    %599 = vmatpush1.bf16.msra.mxu0 0
    %600 = vmatprep.subr.bf16.mxu0 0
    %601 = vmatpush1.bf16.msra.mxu0 0
    %602 = vmatprep.subr.bf16.mxu0 0
    %603 = vmatpush1.bf16.msra.mxu0 0
    %604 = vmatprep.subr.bf16.mxu0 0
    %605 = vmatpush1.bf16.msra.mxu0 0
    %606 = vmatprep.mubr.bf16.mxu0 0
    %607 = vmatmul.mubr.bf16.gmra.mrb[0].mxu0 %v563
    %v608 = vpop.f32.mrb[0].mxu0
    %v609 = vadd.f32 %v547, %v608
    %v610 = vpop.f32.mrb[0].mxu0
    %v611 = vpop.f32.mrb[0].mxu0
    %v612 = vadd.f32 %v547, %v611
    %v613 = vpop.f32.mrb[0].mxu0
    %614 = vmatprep.mubr.bf16.mxu0 0
    %615 = vmatmul.mubr.bf16.gmra.mrb[0].mxu0 %v566
    %v616 = vpop.f32.mrb[0].mxu0
    %v617 = vadd.f32 %v547, %v616
    %v618 = vpop.f32.mrb[0].mxu0
    %v619 = vpop.f32.mrb[0].mxu0
    %v620 = vadd.f32 %v547, %v619
    %v621 = vpop.f32.mrb[0].mxu0
    %622 = vmatprep.mubr.bf16.mxu0 0
    %623 = vmatmul.mubr.bf16.gmra.mrb[0].mxu0 %v569
    %v624 = vpop.f32.mrb[0].mxu0
    %v625 = vadd.f32 %v547, %v624
    %v626 = vpop.f32.mrb[0].mxu0
    %v627 = vpop.f32.mrb[0].mxu0
    %v628 = vadd.f32 %v547, %v627
    %v629 = vpop.f32.mrb[0].mxu0
    %630 = vmatprep.mubr.bf16.mxu0 0
    %631 = vmatmul.mubr.bf16.gmra.mrb[0].mxu0 %v572
    %v632 = vpop.f32.mrb[0].mxu0
    %v633 = vadd.f32 %v547, %v632
    %v634 = vpop.f32.mrb[0].mxu0
    %v635 = vpop.f32.mrb[0].mxu0
    %v636 = vadd.f32 %v547, %v635
    %v637 = vpop.f32.mrb[0].mxu0
    %638 = vdwg.mxu0
    %v639 = vpack.c.bf16 %v492, %v491
    %v640 = vpack.c.bf16 %v494, %v493
    %v641 = vpack.c.bf16 %v496, %v495
    %v642 = vpack.c.bf16 %v498, %v497
    %v644 = vlaneseq
    %v645 = vshrl.u32 %v644, 7
    %v646 = vsub.s32 0, %v645
    %v647 = vrot.slane %v434, %v646
    %v653 = vunpack.c.l.b16 %v430
    %v654 = vunpack.c.l.b16 %v431
    %v655 = vunpack.c.l.b16 %v432
    %v656 = vunpack.c.l.b16 %v433
    %v657 = vpack.c.b16 %v654, %v653
    %v658 = vpack.c.b16 %v656, %v655
    %v662 = vsel %vm561, %v639, 0
    %v665 = vsel %vm561, %v640, 0
    %v668 = vsel %vm561, %v641, 0
    %v671 = vsel %vm561, %v642, 0
    %673 = vmatprep.subr.bf16.mxu0 0
    %674 = vmatpush1.bf16.msra.mxu0 %v657
    %675 = vmatprep.subr.bf16.mxu0 0
    %676 = vmatpush1.bf16.msra.mxu0 %v658
    %677 = vmatprep.subr.bf16.mxu0 0
    %678 = vmatpush1.bf16.msra.mxu0 0
    %679 = vmatprep.subr.bf16.mxu0 0
    %680 = vmatpush1.bf16.msra.mxu0 0
    %681 = vmatprep.subr.bf16.mxu0 0
    %682 = vmatpush1.bf16.msra.mxu0 0
    %683 = vmatprep.subr.bf16.mxu0 0
    %684 = vmatpush1.bf16.msra.mxu0 0
    %685 = vmatprep.subr.bf16.mxu0 0
    %686 = vmatpush1.bf16.msra.mxu0 0
    %687 = vmatprep.subr.bf16.mxu0 0
    %688 = vmatpush1.bf16.msra.mxu0 0
    %689 = vmatprep.subr.bf16.mxu0 0
    %690 = vmatpush1.bf16.msra.mxu0 0
    %691 = vmatprep.subr.bf16.mxu0 0
    %692 = vmatpush1.bf16.msra.mxu0 0
    %693 = vmatprep.subr.bf16.mxu0 0
    %694 = vmatpush1.bf16.msra.mxu0 0
    %695 = vmatprep.subr.bf16.mxu0 0
    %696 = vmatpush1.bf16.msra.mxu0 0
    %697 = vmatprep.subr.bf16.mxu0 0
    %698 = vmatpush1.bf16.msra.mxu0 0
    %699 = vmatprep.subr.bf16.mxu0 0
    %700 = vmatpush1.bf16.msra.mxu0 0
    %701 = vmatprep.subr.bf16.mxu0 0
    %702 = vmatpush1.bf16.msra.mxu0 0
    %703 = vmatprep.subr.bf16.mxu0 0
    %704 = vmatpush1.bf16.msra.mxu0 0
    %705 = vmatprep.mubr.bf16.mxu0 0
    %706 = vmatmul.mubr.bf16.gmra.mrb[0].mxu0 %v662
    %v707 = vpop.f32.mrb[0].mxu0
    %v708 = vadd.f32 %v647, %v707
    %v709 = vpop.f32.mrb[0].mxu0
    %v710 = vpop.f32.mrb[0].mxu0
    %v711 = vadd.f32 %v647, %v710
    %v712 = vpop.f32.mrb[0].mxu0
    %713 = vmatprep.mubr.bf16.mxu0 0
    %714 = vmatmul.mubr.bf16.gmra.mrb[0].mxu0 %v665
    %v715 = vpop.f32.mrb[0].mxu0
    %v716 = vadd.f32 %v647, %v715
    %v717 = vpop.f32.mrb[0].mxu0
    %v718 = vpop.f32.mrb[0].mxu0
    %v719 = vadd.f32 %v647, %v718
    %v720 = vpop.f32.mrb[0].mxu0
    %721 = vmatprep.mubr.bf16.mxu0 0
    %722 = vmatmul.mubr.bf16.gmra.mrb[0].mxu0 %v668
    %v723 = vpop.f32.mrb[0].mxu0
    %v724 = vadd.f32 %v647, %v723
    %v725 = vpop.f32.mrb[0].mxu0
    %v726 = vpop.f32.mrb[0].mxu0
    %v727 = vadd.f32 %v647, %v726
    %v728 = vpop.f32.mrb[0].mxu0
    %729 = vmatprep.mubr.bf16.mxu0 0
    %730 = vmatmul.mubr.bf16.gmra.mrb[0].mxu0 %v671
    %v731 = vpop.f32.mrb[0].mxu0
    %v732 = vadd.f32 %v647, %v731
    %v733 = vpop.f32.mrb[0].mxu0
    %v734 = vpop.f32.mrb[0].mxu0
    %v735 = vadd.f32 %v647, %v734
    %v736 = vpop.f32.mrb[0].mxu0
    %737 = vdwg.mxu0
    %v738 = vmul.f32 %v609, 0.25
    %v739 = vmul.f32 %v612, 0.25
    %v740 = vmul.f32 %v617, 0.25
    %v741 = vmul.f32 %v620, 0.25
    %v742 = vmul.f32 %v625, 0.25
    %v743 = vmul.f32 %v628, 0.25
    %v744 = vmul.f32 %v633, 0.25
    %v745 = vmul.f32 %v636, 0.25
    %v746 = vpack.c.bf16 %v739, %v738
    %v747 = vpack.c.bf16 %v741, %v740
    %v748 = vpack.c.bf16 %v743, %v742
    %v749 = vpack.c.bf16 %v745, %v744
    %754 = vrot.lane.b32.xlu0 %v746, 112
    %v755 = vpop.permute.xlu0 %754
    %756 = vrot.lane.b32.xlu0 %v747, 112
    %v757 = vpop.permute.xlu0 %756
    %758 = vrot.lane.b32.xlu0 %v748, 112
    %v759 = vpop.permute.xlu0 %758
    %760 = vrot.lane.b32.xlu0 %v749, 112
    %v761 = vpop.permute.xlu0 %760
    %762 = vrot.lane.b32.xlu0 %v746, 96
    %v763 = vpop.permute.xlu0 %762
    %764 = vrot.lane.b32.xlu0 %v747, 96
    %v765 = vpop.permute.xlu0 %764
    %766 = vrot.lane.b32.xlu0 %v748, 96
    %v767 = vpop.permute.xlu0 %766
    %768 = vrot.lane.b32.xlu0 %v749, 96
    %v769 = vpop.permute.xlu0 %768
    %770 = vrot.lane.b32.xlu0 %v746, 80
    %v771 = vpop.permute.xlu0 %770
    %772 = vrot.lane.b32.xlu0 %v747, 80
    %v773 = vpop.permute.xlu0 %772
    %774 = vrot.lane.b32.xlu0 %v748, 80
    %v775 = vpop.permute.xlu0 %774
    %776 = vrot.lane.b32.xlu0 %v749, 80
    %v777 = vpop.permute.xlu0 %776
    %v778 = vpack.c.bf16 %v711, %v708
    %v779 = vpack.c.bf16 %v719, %v716
    %v780 = vpack.c.bf16 %v727, %v724
    %v781 = vpack.c.bf16 %v735, %v732
    %786 = vrot.lane.b32.xlu0 %v778, 112
    %v787 = vpop.permute.xlu0 %786
    %788 = vrot.lane.b32.xlu0 %v779, 112
    %v789 = vpop.permute.xlu0 %788
    %790 = vrot.lane.b32.xlu0 %v780, 112
    %v791 = vpop.permute.xlu0 %790
    %792 = vrot.lane.b32.xlu0 %v781, 112
    %v793 = vpop.permute.xlu0 %792
    %794 = vrot.lane.b32.xlu0 %v778, 96
    %v795 = vpop.permute.xlu0 %794
    %796 = vrot.lane.b32.xlu0 %v779, 96
    %v797 = vpop.permute.xlu0 %796
    %798 = vrot.lane.b32.xlu0 %v780, 96
    %v799 = vpop.permute.xlu0 %798
    %800 = vrot.lane.b32.xlu0 %v781, 96
    %v801 = vpop.permute.xlu0 %800
    %802 = vrot.lane.b32.xlu0 %v778, 80
    %v803 = vpop.permute.xlu0 %802
    %804 = vrot.lane.b32.xlu0 %v779, 80
    %v805 = vpop.permute.xlu0 %804
    %806 = vrot.lane.b32.xlu0 %v780, 80
    %v807 = vpop.permute.xlu0 %806
    %808 = vrot.lane.b32.xlu0 %v781, 80
    %v809 = vpop.permute.xlu0 %808
    %vm810 = vcmask 130048
    %v812 = vsel %vm810, %v746, 0
    %v815 = vsel %vm810, %v747, 0
    %v818 = vsel %vm810, %v778, 0
    %v821 = vsel %vm810, %v779, 0
    %823 = vmatprep.subr.bf16.mxu0 0
    %824 = vmatpush1.bf16.xpose.msra.mxu0 %v818
    %825 = vmatprep.subr.bf16.mxu0 0
    %826 = vmatpush1.bf16.xpose.msra.mxu0 %v821
    %827 = vmatprep.subr.bf16.mxu0 0
    %828 = vmatpush1.bf16.xpose.msra.mxu0 0
    %829 = vmatprep.subr.bf16.mxu0 0
    %830 = vmatpush1.bf16.xpose.msra.mxu0 0
    %831 = vmatprep.subr.bf16.mxu0 0
    %832 = vmatpush1.bf16.xpose.msra.mxu0 0
    %833 = vmatprep.subr.bf16.mxu0 0
    %834 = vmatpush1.bf16.xpose.msra.mxu0 0
    %835 = vmatprep.subr.bf16.mxu0 0
    %836 = vmatpush1.bf16.xpose.msra.mxu0 0
    %837 = vmatprep.subr.bf16.mxu0 0
    %838 = vmatpush1.bf16.xpose.msra.mxu0 0
    %839 = vmatprep.subr.bf16.mxu0 0
    %840 = vmatpush1.bf16.xpose.msra.mxu0 0
    %841 = vmatprep.subr.bf16.mxu0 0
    %842 = vmatpush1.bf16.xpose.msra.mxu0 0
    %843 = vmatprep.subr.bf16.mxu0 0
    %844 = vmatpush1.bf16.xpose.msra.mxu0 0
    %845 = vmatprep.subr.bf16.mxu0 0
    %846 = vmatpush1.bf16.xpose.msra.mxu0 0
    %847 = vmatprep.subr.bf16.mxu0 0
    %848 = vmatpush1.bf16.xpose.msra.mxu0 0
    %849 = vmatprep.subr.bf16.mxu0 0
    %850 = vmatpush1.bf16.xpose.msra.mxu0 0
    %851 = vmatprep.subr.bf16.mxu0 0
    %852 = vmatpush1.bf16.xpose.msra.mxu0 0
    %853 = vmatprep.subr.bf16.mxu0 0
    %854 = vmatpush1.bf16.xpose.msra.mxu0 0
    %855 = vmatprep.mubr.bf16.mxu0 0
    %856 = vmatmul.mubr.bf16.gmra.mrb[0].mxu0 %v812
    %v857 = vpop.f32.mrb[0].mxu0
    %v858 = vadd.f32 0.0, %v857
    %v859 = vpop.f32.mrb[0].mxu0
    %v860 = vpop.f32.mrb[0].mxu0
    %v861 = vadd.f32 0.0, %v860
    %v862 = vpop.f32.mrb[0].mxu0
    %863 = vmatprep.mubr.bf16.mxu0 0
    %864 = vmatmul.mubr.bf16.gmra.mrb[0].mxu0 %v815
    %v865 = vpop.f32.mrb[0].mxu0
    %v866 = vadd.f32 0.0, %v865
    %v867 = vpop.f32.mrb[0].mxu0
    %v868 = vpop.f32.mrb[0].mxu0
    %v869 = vadd.f32 0.0, %v868
    %v870 = vpop.f32.mrb[0].mxu0
    %871 = vdwg.mxu0
    %v873 = vsel %vm810, %v755, 0
    %v876 = vsel %vm810, %v757, 0
    %v879 = vsel %vm810, %v787, 0
    %v882 = vsel %vm810, %v789, 0
    %884 = vmatprep.subr.bf16.mxu0 0
    %885 = vmatpush1.bf16.xpose.msra.mxu0 %v879
    %886 = vmatprep.subr.bf16.mxu0 0
    %887 = vmatpush1.bf16.xpose.msra.mxu0 %v882
    %888 = vmatprep.subr.bf16.mxu0 0
    %889 = vmatpush1.bf16.xpose.msra.mxu0 0
    %890 = vmatprep.subr.bf16.mxu0 0
    %891 = vmatpush1.bf16.xpose.msra.mxu0 0
    %892 = vmatprep.subr.bf16.mxu0 0
    %893 = vmatpush1.bf16.xpose.msra.mxu0 0
    %894 = vmatprep.subr.bf16.mxu0 0
    %895 = vmatpush1.bf16.xpose.msra.mxu0 0
    %896 = vmatprep.subr.bf16.mxu0 0
    %897 = vmatpush1.bf16.xpose.msra.mxu0 0
    %898 = vmatprep.subr.bf16.mxu0 0
    %899 = vmatpush1.bf16.xpose.msra.mxu0 0
    %900 = vmatprep.subr.bf16.mxu0 0
    %901 = vmatpush1.bf16.xpose.msra.mxu0 0
    %902 = vmatprep.subr.bf16.mxu0 0
    %903 = vmatpush1.bf16.xpose.msra.mxu0 0
    %904 = vmatprep.subr.bf16.mxu0 0
    %905 = vmatpush1.bf16.xpose.msra.mxu0 0
    %906 = vmatprep.subr.bf16.mxu0 0
    %907 = vmatpush1.bf16.xpose.msra.mxu0 0
    %908 = vmatprep.subr.bf16.mxu0 0
    %909 = vmatpush1.bf16.xpose.msra.mxu0 0
    %910 = vmatprep.subr.bf16.mxu0 0
    %911 = vmatpush1.bf16.xpose.msra.mxu0 0
    %912 = vmatprep.subr.bf16.mxu0 0
    %913 = vmatpush1.bf16.xpose.msra.mxu0 0
    %914 = vmatprep.subr.bf16.mxu0 0
    %915 = vmatpush1.bf16.xpose.msra.mxu0 0
    %916 = vmatprep.mubr.bf16.mxu0 0
    %917 = vmatmul.mubr.bf16.gmra.mrb[0].mxu0 %v873
    %v918 = vpop.f32.mrb[0].mxu0
    %v919 = vadd.f32 0.0, %v918
    %v920 = vpop.f32.mrb[0].mxu0
    %v921 = vpop.f32.mrb[0].mxu0
    %v922 = vadd.f32 0.0, %v921
    %v923 = vpop.f32.mrb[0].mxu0
    %924 = vmatprep.mubr.bf16.mxu0 0
    %925 = vmatmul.mubr.bf16.gmra.mrb[0].mxu0 %v876
    %v926 = vpop.f32.mrb[0].mxu0
    %v927 = vadd.f32 0.0, %v926
    %v928 = vpop.f32.mrb[0].mxu0
    %v929 = vpop.f32.mrb[0].mxu0
    %v930 = vadd.f32 0.0, %v929
    %v931 = vpop.f32.mrb[0].mxu0
    %932 = vdwg.mxu0
    %v934 = vsel %vm810, %v763, 0
    %v937 = vsel %vm810, %v765, 0
    %v940 = vsel %vm810, %v795, 0
    %v943 = vsel %vm810, %v797, 0
    %945 = vmatprep.subr.bf16.mxu0 0
    %946 = vmatpush1.bf16.xpose.msra.mxu0 %v940
    %947 = vmatprep.subr.bf16.mxu0 0
    %948 = vmatpush1.bf16.xpose.msra.mxu0 %v943
    %949 = vmatprep.subr.bf16.mxu0 0
    %950 = vmatpush1.bf16.xpose.msra.mxu0 0
    %951 = vmatprep.subr.bf16.mxu0 0
    %952 = vmatpush1.bf16.xpose.msra.mxu0 0
    %953 = vmatprep.subr.bf16.mxu0 0
    %954 = vmatpush1.bf16.xpose.msra.mxu0 0
    %955 = vmatprep.subr.bf16.mxu0 0
    %956 = vmatpush1.bf16.xpose.msra.mxu0 0
    %957 = vmatprep.subr.bf16.mxu0 0
    %958 = vmatpush1.bf16.xpose.msra.mxu0 0
    %959 = vmatprep.subr.bf16.mxu0 0
    %960 = vmatpush1.bf16.xpose.msra.mxu0 0
    %961 = vmatprep.subr.bf16.mxu0 0
    %962 = vmatpush1.bf16.xpose.msra.mxu0 0
    %963 = vmatprep.subr.bf16.mxu0 0
    %964 = vmatpush1.bf16.xpose.msra.mxu0 0
    %965 = vmatprep.subr.bf16.mxu0 0
    %966 = vmatpush1.bf16.xpose.msra.mxu0 0
    %967 = vmatprep.subr.bf16.mxu0 0
    %968 = vmatpush1.bf16.xpose.msra.mxu0 0
    %969 = vmatprep.subr.bf16.mxu0 0
    %970 = vmatpush1.bf16.xpose.msra.mxu0 0
    %971 = vmatprep.subr.bf16.mxu0 0
    %972 = vmatpush1.bf16.xpose.msra.mxu0 0
    %973 = vmatprep.subr.bf16.mxu0 0
    %974 = vmatpush1.bf16.xpose.msra.mxu0 0
    %975 = vmatprep.subr.bf16.mxu0 0
    %976 = vmatpush1.bf16.xpose.msra.mxu0 0
    %977 = vmatprep.mubr.bf16.mxu0 0
    %978 = vmatmul.mubr.bf16.gmra.mrb[0].mxu0 %v934
    %v979 = vpop.f32.mrb[0].mxu0
    %v980 = vadd.f32 0.0, %v979
    %v981 = vpop.f32.mrb[0].mxu0
    %v982 = vpop.f32.mrb[0].mxu0
    %v983 = vadd.f32 0.0, %v982
    %v984 = vpop.f32.mrb[0].mxu0
    %985 = vmatprep.mubr.bf16.mxu0 0
    %986 = vmatmul.mubr.bf16.gmra.mrb[0].mxu0 %v937
    %v987 = vpop.f32.mrb[0].mxu0
    %v988 = vadd.f32 0.0, %v987
    %v989 = vpop.f32.mrb[0].mxu0
    %v990 = vpop.f32.mrb[0].mxu0
    %v991 = vadd.f32 0.0, %v990
    %v992 = vpop.f32.mrb[0].mxu0
    %993 = vdwg.mxu0
    %v995 = vsel %vm810, %v771, 0
    %v998 = vsel %vm810, %v773, 0
    %v1001 = vsel %vm810, %v803, 0
    %v1004 = vsel %vm810, %v805, 0
    %1006 = vmatprep.subr.bf16.mxu0 0
    %1007 = vmatpush1.bf16.xpose.msra.mxu0 %v1001
    %1008 = vmatprep.subr.bf16.mxu0 0
    %1009 = vmatpush1.bf16.xpose.msra.mxu0 %v1004
    %1010 = vmatprep.subr.bf16.mxu0 0
    %1011 = vmatpush1.bf16.xpose.msra.mxu0 0
    %1012 = vmatprep.subr.bf16.mxu0 0
    %1013 = vmatpush1.bf16.xpose.msra.mxu0 0
    %1014 = vmatprep.subr.bf16.mxu0 0
    %1015 = vmatpush1.bf16.xpose.msra.mxu0 0
    %1016 = vmatprep.subr.bf16.mxu0 0
    %1017 = vmatpush1.bf16.xpose.msra.mxu0 0
    %1018 = vmatprep.subr.bf16.mxu0 0
    %1019 = vmatpush1.bf16.xpose.msra.mxu0 0
    %1020 = vmatprep.subr.bf16.mxu0 0
    %1021 = vmatpush1.bf16.xpose.msra.mxu0 0
    %1022 = vmatprep.subr.bf16.mxu0 0
    %1023 = vmatpush1.bf16.xpose.msra.mxu0 0
    %1024 = vmatprep.subr.bf16.mxu0 0
    %1025 = vmatpush1.bf16.xpose.msra.mxu0 0
    %1026 = vmatprep.subr.bf16.mxu0 0
    %1027 = vmatpush1.bf16.xpose.msra.mxu0 0
    %1028 = vmatprep.subr.bf16.mxu0 0
    %1029 = vmatpush1.bf16.xpose.msra.mxu0 0
    %1030 = vmatprep.subr.bf16.mxu0 0
    %1031 = vmatpush1.bf16.xpose.msra.mxu0 0
    %1032 = vmatprep.subr.bf16.mxu0 0
    %1033 = vmatpush1.bf16.xpose.msra.mxu0 0
    %1034 = vmatprep.subr.bf16.mxu0 0
    %1035 = vmatpush1.bf16.xpose.msra.mxu0 0
    %1036 = vmatprep.subr.bf16.mxu0 0
    %1037 = vmatpush1.bf16.xpose.msra.mxu0 0
    %1038 = vmatprep.mubr.bf16.mxu0 0
    %1039 = vmatmul.mubr.bf16.gmra.mrb[0].mxu0 %v995
    %v1040 = vpop.f32.mrb[0].mxu0
    %v1041 = vadd.f32 0.0, %v1040
    %v1042 = vpop.f32.mrb[0].mxu0
    %v1043 = vpop.f32.mrb[0].mxu0
    %v1044 = vadd.f32 0.0, %v1043
    %v1045 = vpop.f32.mrb[0].mxu0
    %1046 = vmatprep.mubr.bf16.mxu0 0
    %1047 = vmatmul.mubr.bf16.gmra.mrb[0].mxu0 %v998
    %v1048 = vpop.f32.mrb[0].mxu0
    %v1049 = vadd.f32 0.0, %v1048
    %v1050 = vpop.f32.mrb[0].mxu0
    %v1051 = vpop.f32.mrb[0].mxu0
    %v1052 = vadd.f32 0.0, %v1051
    %v1053 = vpop.f32.mrb[0].mxu0
    %1054 = vdwg.mxu0
    %v1056 = vsel %vm810, %v748, 0
    %v1059 = vsel %vm810, %v749, 0
    %v1062 = vsel %vm810, %v780, 0
    %v1065 = vsel %vm810, %v781, 0
    %1067 = vmatprep.subr.bf16.mxu0 0
    %1068 = vmatpush1.bf16.xpose.msra.mxu0 %v1062
    %1069 = vmatprep.subr.bf16.mxu0 0
    %1070 = vmatpush1.bf16.xpose.msra.mxu0 %v1065
    %1071 = vmatprep.subr.bf16.mxu0 0
    %1072 = vmatpush1.bf16.xpose.msra.mxu0 0
    %1073 = vmatprep.subr.bf16.mxu0 0
    %1074 = vmatpush1.bf16.xpose.msra.mxu0 0
    %1075 = vmatprep.subr.bf16.mxu0 0
    %1076 = vmatpush1.bf16.xpose.msra.mxu0 0
    %1077 = vmatprep.subr.bf16.mxu0 0
    %1078 = vmatpush1.bf16.xpose.msra.mxu0 0
    %1079 = vmatprep.subr.bf16.mxu0 0
    %1080 = vmatpush1.bf16.xpose.msra.mxu0 0
    %1081 = vmatprep.subr.bf16.mxu0 0
    %1082 = vmatpush1.bf16.xpose.msra.mxu0 0
    %1083 = vmatprep.subr.bf16.mxu0 0
    %1084 = vmatpush1.bf16.xpose.msra.mxu0 0
    %1085 = vmatprep.subr.bf16.mxu0 0
    %1086 = vmatpush1.bf16.xpose.msra.mxu0 0
    %1087 = vmatprep.subr.bf16.mxu0 0
    %1088 = vmatpush1.bf16.xpose.msra.mxu0 0
    %1089 = vmatprep.subr.bf16.mxu0 0
    %1090 = vmatpush1.bf16.xpose.msra.mxu0 0
    %1091 = vmatprep.subr.bf16.mxu0 0
    %1092 = vmatpush1.bf16.xpose.msra.mxu0 0
    %1093 = vmatprep.subr.bf16.mxu0 0
    %1094 = vmatpush1.bf16.xpose.msra.mxu0 0
    %1095 = vmatprep.subr.bf16.mxu0 0
    %1096 = vmatpush1.bf16.xpose.msra.mxu0 0
    %1097 = vmatprep.subr.bf16.mxu0 0
    %1098 = vmatpush1.bf16.xpose.msra.mxu0 0
    %1099 = vmatprep.mubr.bf16.mxu0 0
    %1100 = vmatmul.mubr.bf16.gmra.mrb[0].mxu0 %v1056
    %v1101 = vpop.f32.mrb[0].mxu0
    %v1102 = vadd.f32 0.0, %v1101
    %v1103 = vpop.f32.mrb[0].mxu0
    %v1104 = vpop.f32.mrb[0].mxu0
    %v1105 = vadd.f32 0.0, %v1104
    %v1106 = vpop.f32.mrb[0].mxu0
    %1107 = vmatprep.mubr.bf16.mxu0 0
    %1108 = vmatmul.mubr.bf16.gmra.mrb[0].mxu0 %v1059
    %v1109 = vpop.f32.mrb[0].mxu0
    %v1110 = vadd.f32 0.0, %v1109
    %v1111 = vpop.f32.mrb[0].mxu0
    %v1112 = vpop.f32.mrb[0].mxu0
    %v1113 = vadd.f32 0.0, %v1112
    %v1114 = vpop.f32.mrb[0].mxu0
    %1115 = vdwg.mxu0
    %v1117 = vsel %vm810, %v759, 0
    %v1120 = vsel %vm810, %v761, 0
    %v1123 = vsel %vm810, %v791, 0
    %v1126 = vsel %vm810, %v793, 0
    %1128 = vmatprep.subr.bf16.mxu0 0
    %1129 = vmatpush1.bf16.xpose.msra.mxu0 %v1123
    %1130 = vmatprep.subr.bf16.mxu0 0
    %1131 = vmatpush1.bf16.xpose.msra.mxu0 %v1126
    %1132 = vmatprep.subr.bf16.mxu0 0
    %1133 = vmatpush1.bf16.xpose.msra.mxu0 0
    %1134 = vmatprep.subr.bf16.mxu0 0
    %1135 = vmatpush1.bf16.xpose.msra.mxu0 0
    %1136 = vmatprep.subr.bf16.mxu0 0
    %1137 = vmatpush1.bf16.xpose.msra.mxu0 0
    %1138 = vmatprep.subr.bf16.mxu0 0
    %1139 = vmatpush1.bf16.xpose.msra.mxu0 0
    %1140 = vmatprep.subr.bf16.mxu0 0
    %1141 = vmatpush1.bf16.xpose.msra.mxu0 0
    %1142 = vmatprep.subr.bf16.mxu0 0
    %1143 = vmatpush1.bf16.xpose.msra.mxu0 0
    %1144 = vmatprep.subr.bf16.mxu0 0
    %1145 = vmatpush1.bf16.xpose.msra.mxu0 0
    %1146 = vmatprep.subr.bf16.mxu0 0
    %1147 = vmatpush1.bf16.xpose.msra.mxu0 0
    %1148 = vmatprep.subr.bf16.mxu0 0
    %1149 = vmatpush1.bf16.xpose.msra.mxu0 0
    %1150 = vmatprep.subr.bf16.mxu0 0
    %1151 = vmatpush1.bf16.xpose.msra.mxu0 0
    %1152 = vmatprep.subr.bf16.mxu0 0
    %1153 = vmatpush1.bf16.xpose.msra.mxu0 0
    %1154 = vmatprep.subr.bf16.mxu0 0
    %1155 = vmatpush1.bf16.xpose.msra.mxu0 0
    %1156 = vmatprep.subr.bf16.mxu0 0
    %1157 = vmatpush1.bf16.xpose.msra.mxu0 0
    %1158 = vmatprep.subr.bf16.mxu0 0
    %1159 = vmatpush1.bf16.xpose.msra.mxu0 0
    %1160 = vmatprep.mubr.bf16.mxu0 0
    %1161 = vmatmul.mubr.bf16.gmra.mrb[0].mxu0 %v1117
    %v1162 = vpop.f32.mrb[0].mxu0
    %v1163 = vadd.f32 0.0, %v1162
    %v1164 = vpop.f32.mrb[0].mxu0
    %v1165 = vpop.f32.mrb[0].mxu0
    %v1166 = vadd.f32 0.0, %v1165
    %v1167 = vpop.f32.mrb[0].mxu0
    %1168 = vmatprep.mubr.bf16.mxu0 0
    %1169 = vmatmul.mubr.bf16.gmra.mrb[0].mxu0 %v1120
    %v1170 = vpop.f32.mrb[0].mxu0
    %v1171 = vadd.f32 0.0, %v1170
    %v1172 = vpop.f32.mrb[0].mxu0
    %v1173 = vpop.f32.mrb[0].mxu0
    %v1174 = vadd.f32 0.0, %v1173
    %v1175 = vpop.f32.mrb[0].mxu0
    %1176 = vdwg.mxu0
    %v1178 = vsel %vm810, %v767, 0
    %v1181 = vsel %vm810, %v769, 0
    %v1184 = vsel %vm810, %v799, 0
    %v1187 = vsel %vm810, %v801, 0
    %1189 = vmatprep.subr.bf16.mxu0 0
    %1190 = vmatpush1.bf16.xpose.msra.mxu0 %v1184
    %1191 = vmatprep.subr.bf16.mxu0 0
    %1192 = vmatpush1.bf16.xpose.msra.mxu0 %v1187
    %1193 = vmatprep.subr.bf16.mxu0 0
    %1194 = vmatpush1.bf16.xpose.msra.mxu0 0
    %1195 = vmatprep.subr.bf16.mxu0 0
    %1196 = vmatpush1.bf16.xpose.msra.mxu0 0
    %1197 = vmatprep.subr.bf16.mxu0 0
    %1198 = vmatpush1.bf16.xpose.msra.mxu0 0
    %1199 = vmatprep.subr.bf16.mxu0 0
    %1200 = vmatpush1.bf16.xpose.msra.mxu0 0
    %1201 = vmatprep.subr.bf16.mxu0 0
    %1202 = vmatpush1.bf16.xpose.msra.mxu0 0
    %1203 = vmatprep.subr.bf16.mxu0 0
    %1204 = vmatpush1.bf16.xpose.msra.mxu0 0
    %1205 = vmatprep.subr.bf16.mxu0 0
    %1206 = vmatpush1.bf16.xpose.msra.mxu0 0
    %1207 = vmatprep.subr.bf16.mxu0 0
    %1208 = vmatpush1.bf16.xpose.msra.mxu0 0
    %1209 = vmatprep.subr.bf16.mxu0 0
    %1210 = vmatpush1.bf16.xpose.msra.mxu0 0
    %1211 = vmatprep.subr.bf16.mxu0 0
    %1212 = vmatpush1.bf16.xpose.msra.mxu0 0
    %1213 = vmatprep.subr.bf16.mxu0 0
    %1214 = vmatpush1.bf16.xpose.msra.mxu0 0
    %1215 = vmatprep.subr.bf16.mxu0 0
    %1216 = vmatpush1.bf16.xpose.msra.mxu0 0
    %1217 = vmatprep.subr.bf16.mxu0 0
    %1218 = vmatpush1.bf16.xpose.msra.mxu0 0
    %1219 = vmatprep.subr.bf16.mxu0 0
    %1220 = vmatpush1.bf16.xpose.msra.mxu0 0
    %1221 = vmatprep.mubr.bf16.mxu0 0
    %1222 = vmatmul.mubr.bf16.gmra.mrb[0].mxu0 %v1178
    %v1223 = vpop.f32.mrb[0].mxu0
    %v1224 = vadd.f32 0.0, %v1223
    %v1225 = vpop.f32.mrb[0].mxu0
    %v1226 = vpop.f32.mrb[0].mxu0
    %v1227 = vadd.f32 0.0, %v1226
    %v1228 = vpop.f32.mrb[0].mxu0
    %1229 = vmatprep.mubr.bf16.mxu0 0
    %1230 = vmatmul.mubr.bf16.gmra.mrb[0].mxu0 %v1181
    %v1231 = vpop.f32.mrb[0].mxu0
    %v1232 = vadd.f32 0.0, %v1231
    %v1233 = vpop.f32.mrb[0].mxu0
    %v1234 = vpop.f32.mrb[0].mxu0
    %v1235 = vadd.f32 0.0, %v1234
    %v1236 = vpop.f32.mrb[0].mxu0
    %1237 = vdwg.mxu0
    %v1239 = vsel %vm810, %v775, 0
    %v1242 = vsel %vm810, %v777, 0
    %v1245 = vsel %vm810, %v807, 0
    %v1248 = vsel %vm810, %v809, 0
    %1250 = vmatprep.subr.bf16.mxu0 0
    %1251 = vmatpush1.bf16.xpose.msra.mxu0 %v1245
    %1252 = vmatprep.subr.bf16.mxu0 0
    %1253 = vmatpush1.bf16.xpose.msra.mxu0 %v1248
    %1254 = vmatprep.subr.bf16.mxu0 0
    %1255 = vmatpush1.bf16.xpose.msra.mxu0 0
    %1256 = vmatprep.subr.bf16.mxu0 0
    %1257 = vmatpush1.bf16.xpose.msra.mxu0 0
    %1258 = vmatprep.subr.bf16.mxu0 0
    %1259 = vmatpush1.bf16.xpose.msra.mxu0 0
    %1260 = vmatprep.subr.bf16.mxu0 0
    %1261 = vmatpush1.bf16.xpose.msra.mxu0 0
    %1262 = vmatprep.subr.bf16.mxu0 0
    %1263 = vmatpush1.bf16.xpose.msra.mxu0 0
    %1264 = vmatprep.subr.bf16.mxu0 0
    %1265 = vmatpush1.bf16.xpose.msra.mxu0 0
    %1266 = vmatprep.subr.bf16.mxu0 0
    %1267 = vmatpush1.bf16.xpose.msra.mxu0 0
    %1268 = vmatprep.subr.bf16.mxu0 0
    %1269 = vmatpush1.bf16.xpose.msra.mxu0 0
    %1270 = vmatprep.subr.bf16.mxu0 0
    %1271 = vmatpush1.bf16.xpose.msra.mxu0 0
    %1272 = vmatprep.subr.bf16.mxu0 0
    %1273 = vmatpush1.bf16.xpose.msra.mxu0 0
    %1274 = vmatprep.subr.bf16.mxu0 0
    %1275 = vmatpush1.bf16.xpose.msra.mxu0 0
    %1276 = vmatprep.subr.bf16.mxu0 0
    %1277 = vmatpush1.bf16.xpose.msra.mxu0 0
    %1278 = vmatprep.subr.bf16.mxu0 0
    %1279 = vmatpush1.bf16.xpose.msra.mxu0 0
    %1280 = vmatprep.subr.bf16.mxu0 0
    %1281 = vmatpush1.bf16.xpose.msra.mxu0 0
    %1282 = vmatprep.mubr.bf16.mxu0 0
    %1283 = vmatmul.mubr.bf16.gmra.mrb[0].mxu0 %v1239
    %v1284 = vpop.f32.mrb[0].mxu0
    %v1285 = vadd.f32 0.0, %v1284
    %v1286 = vpop.f32.mrb[0].mxu0
    %v1287 = vpop.f32.mrb[0].mxu0
    %v1288 = vadd.f32 0.0, %v1287
    %v1289 = vpop.f32.mrb[0].mxu0
    %1290 = vmatprep.mubr.bf16.mxu0 0
    %1291 = vmatmul.mubr.bf16.gmra.mrb[0].mxu0 %v1242
    %v1292 = vpop.f32.mrb[0].mxu0
    %v1293 = vadd.f32 0.0, %v1292
    %v1294 = vpop.f32.mrb[0].mxu0
    %v1295 = vpop.f32.mrb[0].mxu0
    %v1296 = vadd.f32 0.0, %v1295
    %v1297 = vpop.f32.mrb[0].mxu0
    %1298 = vdwg.mxu0
    %v1299 = vadd.f32 %v858, %v515
    %v1300 = vadd.f32 %v861, %v516
    %v1301 = vadd.f32 %v866, %v517
    %v1302 = vadd.f32 %v869, %v518
    %v1303 = vadd.f32 %v919, %v515
    %v1304 = vadd.f32 %v922, %v516
    %v1305 = vadd.f32 %v927, %v517
    %v1306 = vadd.f32 %v930, %v518
    %v1307 = vadd.f32 %v980, %v515
    %v1308 = vadd.f32 %v983, %v516
    %v1309 = vadd.f32 %v988, %v517
    %v1310 = vadd.f32 %v991, %v518
    %v1311 = vadd.f32 %v1041, %v515
    %v1312 = vadd.f32 %v1044, %v516
    %v1313 = vadd.f32 %v1049, %v517
    %v1314 = vadd.f32 %v1052, %v518
    %v1315 = vadd.f32 %v1102, %v519
    %v1316 = vadd.f32 %v1105, %v520
    %v1317 = vadd.f32 %v1110, %v521
    %v1318 = vadd.f32 %v1113, %v522
    %v1319 = vadd.f32 %v1163, %v519
    %v1320 = vadd.f32 %v1166, %v520
    %v1321 = vadd.f32 %v1171, %v521
    %v1322 = vadd.f32 %v1174, %v522
    %v1323 = vadd.f32 %v1224, %v519
    %v1324 = vadd.f32 %v1227, %v520
    %v1325 = vadd.f32 %v1232, %v521
    %v1326 = vadd.f32 %v1235, %v522
    %v1327 = vadd.f32 %v1285, %v519
    %v1328 = vadd.f32 %v1288, %v520
    %v1329 = vadd.f32 %v1293, %v521
    %v1330 = vadd.f32 %v1296, %v522
    %v1331 = vsel %vm561, %v1299, -inf
    %1332 = vmax.xlane.f32.xlu0 %v1331
    %v1333 = vpop.xlane.xlu0 %1332
    %v1334 = vsel %vm561, %v1300, -inf
    %1335 = vmax.xlane.f32.xlu0 %v1334
    %v1336 = vpop.xlane.xlu0 %1335
    %v1337 = vsel %vm561, %v1301, -inf
    %1338 = vmax.xlane.f32.xlu0 %v1337
    %v1339 = vpop.xlane.xlu0 %1338
    %v1340 = vsel %vm561, %v1302, -inf
    %1341 = vmax.xlane.f32.xlu0 %v1340
    %v1342 = vpop.xlane.xlu0 %1341
    %v1343 = vsel %vm561, %v1303, -inf
    %1344 = vmax.xlane.f32.xlu0 %v1343
    %v1345 = vpop.xlane.xlu0 %1344
    %v1346 = vsel %vm561, %v1304, -inf
    %1347 = vmax.xlane.f32.xlu0 %v1346
    %v1348 = vpop.xlane.xlu0 %1347
    %v1349 = vsel %vm561, %v1305, -inf
    %1350 = vmax.xlane.f32.xlu0 %v1349
    %v1351 = vpop.xlane.xlu0 %1350
    %v1352 = vsel %vm561, %v1306, -inf
    %1353 = vmax.xlane.f32.xlu0 %v1352
    %v1354 = vpop.xlane.xlu0 %1353
    %v1355 = vsel %vm561, %v1307, -inf
    %1356 = vmax.xlane.f32.xlu0 %v1355
    %v1357 = vpop.xlane.xlu0 %1356
    %v1358 = vsel %vm561, %v1308, -inf
    %1359 = vmax.xlane.f32.xlu0 %v1358
    %v1360 = vpop.xlane.xlu0 %1359
    %v1361 = vsel %vm561, %v1309, -inf
    %1362 = vmax.xlane.f32.xlu0 %v1361
    %v1363 = vpop.xlane.xlu0 %1362
    %v1364 = vsel %vm561, %v1310, -inf
    %1365 = vmax.xlane.f32.xlu0 %v1364
    %v1366 = vpop.xlane.xlu0 %1365
    %v1367 = vsel %vm561, %v1311, -inf
    %1368 = vmax.xlane.f32.xlu0 %v1367
    %v1369 = vpop.xlane.xlu0 %1368
    %v1370 = vsel %vm561, %v1312, -inf
    %1371 = vmax.xlane.f32.xlu0 %v1370
    %v1372 = vpop.xlane.xlu0 %1371
    %v1373 = vsel %vm561, %v1313, -inf
    %1374 = vmax.xlane.f32.xlu0 %v1373
    %v1375 = vpop.xlane.xlu0 %1374
    %v1376 = vsel %vm561, %v1314, -inf
    %1377 = vmax.xlane.f32.xlu0 %v1376
    %v1378 = vpop.xlane.xlu0 %1377
    %v1379 = vsel %vm561, %v1315, -inf
    %1380 = vmax.xlane.f32.xlu0 %v1379
    %v1381 = vpop.xlane.xlu0 %1380
    %v1382 = vsel %vm561, %v1316, -inf
    %1383 = vmax.xlane.f32.xlu0 %v1382
    %v1384 = vpop.xlane.xlu0 %1383
    %v1385 = vsel %vm561, %v1317, -inf
    %1386 = vmax.xlane.f32.xlu0 %v1385
    %v1387 = vpop.xlane.xlu0 %1386
    %v1388 = vsel %vm561, %v1318, -inf
    %1389 = vmax.xlane.f32.xlu0 %v1388
    %v1390 = vpop.xlane.xlu0 %1389
    %v1391 = vsel %vm561, %v1319, -inf
    %1392 = vmax.xlane.f32.xlu0 %v1391
    %v1393 = vpop.xlane.xlu0 %1392
    %v1394 = vsel %vm561, %v1320, -inf
    %1395 = vmax.xlane.f32.xlu0 %v1394
    %v1396 = vpop.xlane.xlu0 %1395
    %v1397 = vsel %vm561, %v1321, -inf
    %1398 = vmax.xlane.f32.xlu0 %v1397
    %v1399 = vpop.xlane.xlu0 %1398
    %v1400 = vsel %vm561, %v1322, -inf
    %1401 = vmax.xlane.f32.xlu0 %v1400
    %v1402 = vpop.xlane.xlu0 %1401
    %v1403 = vsel %vm561, %v1323, -inf
    %1404 = vmax.xlane.f32.xlu0 %v1403
    %v1405 = vpop.xlane.xlu0 %1404
    %v1406 = vsel %vm561, %v1324, -inf
    %1407 = vmax.xlane.f32.xlu0 %v1406
    %v1408 = vpop.xlane.xlu0 %1407
    %v1409 = vsel %vm561, %v1325, -inf
    %1410 = vmax.xlane.f32.xlu0 %v1409
    %v1411 = vpop.xlane.xlu0 %1410
    %v1412 = vsel %vm561, %v1326, -inf
    %1413 = vmax.xlane.f32.xlu0 %v1412
    %v1414 = vpop.xlane.xlu0 %1413
    %v1415 = vsel %vm561, %v1327, -inf
    %1416 = vmax.xlane.f32.xlu0 %v1415
    %v1417 = vpop.xlane.xlu0 %1416
    %v1418 = vsel %vm561, %v1328, -inf
    %1419 = vmax.xlane.f32.xlu0 %v1418
    %v1420 = vpop.xlane.xlu0 %1419
    %v1421 = vsel %vm561, %v1329, -inf
    %1422 = vmax.xlane.f32.xlu0 %v1421
    %v1423 = vpop.xlane.xlu0 %1422
    %v1424 = vsel %vm561, %v1330, -inf
    %1425 = vmax.xlane.f32.xlu0 %v1424
    %v1426 = vpop.xlane.xlu0 %1425
    %v1427 = vsub.f32 %v1299, %v1333
    %v1428 = vsub.f32 %v1300, %v1336
    %v1429 = vsub.f32 %v1301, %v1339
    %v1430 = vsub.f32 %v1302, %v1342
    %v1431 = vsub.f32 %v1303, %v1345
    %v1432 = vsub.f32 %v1304, %v1348
    %v1433 = vsub.f32 %v1305, %v1351
    %v1434 = vsub.f32 %v1306, %v1354
    %v1435 = vsub.f32 %v1307, %v1357
    %v1436 = vsub.f32 %v1308, %v1360
    %v1437 = vsub.f32 %v1309, %v1363
    %v1438 = vsub.f32 %v1310, %v1366
    %v1439 = vsub.f32 %v1311, %v1369
    %v1440 = vsub.f32 %v1312, %v1372
    %v1441 = vsub.f32 %v1313, %v1375
    %v1442 = vsub.f32 %v1314, %v1378
    %v1443 = vsub.f32 %v1315, %v1381
    %v1444 = vsub.f32 %v1316, %v1384
    %v1445 = vsub.f32 %v1317, %v1387
    %v1446 = vsub.f32 %v1318, %v1390
    %v1447 = vsub.f32 %v1319, %v1393
    %v1448 = vsub.f32 %v1320, %v1396
    %v1449 = vsub.f32 %v1321, %v1399
    %v1450 = vsub.f32 %v1322, %v1402
    %v1451 = vsub.f32 %v1323, %v1405
    %v1452 = vsub.f32 %v1324, %v1408
    %v1453 = vsub.f32 %v1325, %v1411
    %v1454 = vsub.f32 %v1326, %v1414
    %v1455 = vsub.f32 %v1327, %v1417
    %v1456 = vsub.f32 %v1328, %v1420
    %v1457 = vsub.f32 %v1329, %v1423
    %v1458 = vsub.f32 %v1330, %v1426
    %v1459 = vmul.f32 %v1427, 1.442695
    %v1460 = vpow.pop %v1459
    %v1461 = vmul.f32 %v1428, 1.442695
    %v1462 = vpow.pop %v1461
    %v1463 = vmul.f32 %v1429, 1.442695
    %v1464 = vpow.pop %v1463
    %v1465 = vmul.f32 %v1430, 1.442695
    %v1466 = vpow.pop %v1465
    %v1467 = vmul.f32 %v1431, 1.442695
    %v1468 = vpow.pop %v1467
    %v1469 = vmul.f32 %v1432, 1.442695
    %v1470 = vpow.pop %v1469
    %v1471 = vmul.f32 %v1433, 1.442695
    %v1472 = vpow.pop %v1471
    %v1473 = vmul.f32 %v1434, 1.442695
    %v1474 = vpow.pop %v1473
    %v1475 = vmul.f32 %v1435, 1.442695
    %v1476 = vpow.pop %v1475
    %v1477 = vmul.f32 %v1436, 1.442695
    %v1478 = vpow.pop %v1477
    %v1479 = vmul.f32 %v1437, 1.442695
    %v1480 = vpow.pop %v1479
    %v1481 = vmul.f32 %v1438, 1.442695
    %v1482 = vpow.pop %v1481
    %v1483 = vmul.f32 %v1439, 1.442695
    %v1484 = vpow.pop %v1483
    %v1485 = vmul.f32 %v1440, 1.442695
    %v1486 = vpow.pop %v1485
    %v1487 = vmul.f32 %v1441, 1.442695
    %v1488 = vpow.pop %v1487
    %v1489 = vmul.f32 %v1442, 1.442695
    %v1490 = vpow.pop %v1489
    %v1491 = vmul.f32 %v1443, 1.442695
    %v1492 = vpow.pop %v1491
    %v1493 = vmul.f32 %v1444, 1.442695
    %v1494 = vpow.pop %v1493
    %v1495 = vmul.f32 %v1445, 1.442695
    %v1496 = vpow.pop %v1495
    %v1497 = vmul.f32 %v1446, 1.442695
    %v1498 = vpow.pop %v1497
    %v1499 = vmul.f32 %v1447, 1.442695
    %v1500 = vpow.pop %v1499
    %v1501 = vmul.f32 %v1448, 1.442695
    %v1502 = vpow.pop %v1501
    %v1503 = vmul.f32 %v1449, 1.442695
    %v1504 = vpow.pop %v1503
    %v1505 = vmul.f32 %v1450, 1.442695
    %v1506 = vpow.pop %v1505
    %v1507 = vmul.f32 %v1451, 1.442695
    %v1508 = vpow.pop %v1507
    %v1509 = vmul.f32 %v1452, 1.442695
    %v1510 = vpow.pop %v1509
    %v1511 = vmul.f32 %v1453, 1.442695
    %v1512 = vpow.pop %v1511
    %v1513 = vmul.f32 %v1454, 1.442695
    %v1514 = vpow.pop %v1513
    %v1515 = vmul.f32 %v1455, 1.442695
    %v1516 = vpow.pop %v1515
    %v1517 = vmul.f32 %v1456, 1.442695
    %v1518 = vpow.pop %v1517
    %v1519 = vmul.f32 %v1457, 1.442695
    %v1520 = vpow.pop %v1519
    %v1521 = vmul.f32 %v1458, 1.442695
    %v1522 = vpow.pop %v1521
    %v1523 = vsel %vm561, %v1460, 0.0
    %1524 = vadd.xlane.f32.xlu0 %v1523
    %v1525 = vpop.xlane.xlu0 %1524
    %v1526 = vsel %vm561, %v1462, 0.0
    %1527 = vadd.xlane.f32.xlu0 %v1526
    %v1528 = vpop.xlane.xlu0 %1527
    %v1529 = vsel %vm561, %v1464, 0.0
    %1530 = vadd.xlane.f32.xlu0 %v1529
    %v1531 = vpop.xlane.xlu0 %1530
    %v1532 = vsel %vm561, %v1466, 0.0
    %1533 = vadd.xlane.f32.xlu0 %v1532
    %v1534 = vpop.xlane.xlu0 %1533
    %v1535 = vsel %vm561, %v1468, 0.0
    %1536 = vadd.xlane.f32.xlu0 %v1535
    %v1537 = vpop.xlane.xlu0 %1536
    %v1538 = vsel %vm561, %v1470, 0.0
    %1539 = vadd.xlane.f32.xlu0 %v1538
    %v1540 = vpop.xlane.xlu0 %1539
    %v1541 = vsel %vm561, %v1472, 0.0
    %1542 = vadd.xlane.f32.xlu0 %v1541
    %v1543 = vpop.xlane.xlu0 %1542
    %v1544 = vsel %vm561, %v1474, 0.0
    %1545 = vadd.xlane.f32.xlu0 %v1544
    %v1546 = vpop.xlane.xlu0 %1545
    %v1547 = vsel %vm561, %v1476, 0.0
    %1548 = vadd.xlane.f32.xlu0 %v1547
    %v1549 = vpop.xlane.xlu0 %1548
    %v1550 = vsel %vm561, %v1478, 0.0
    %1551 = vadd.xlane.f32.xlu0 %v1550
    %v1552 = vpop.xlane.xlu0 %1551
    %v1553 = vsel %vm561, %v1480, 0.0
    %1554 = vadd.xlane.f32.xlu0 %v1553
    %v1555 = vpop.xlane.xlu0 %1554
    %v1556 = vsel %vm561, %v1482, 0.0
    %1557 = vadd.xlane.f32.xlu0 %v1556
    %v1558 = vpop.xlane.xlu0 %1557
    %v1559 = vsel %vm561, %v1484, 0.0
    %1560 = vadd.xlane.f32.xlu0 %v1559
    %v1561 = vpop.xlane.xlu0 %1560
    %v1562 = vsel %vm561, %v1486, 0.0
    %1563 = vadd.xlane.f32.xlu0 %v1562
    %v1564 = vpop.xlane.xlu0 %1563
    %v1565 = vsel %vm561, %v1488, 0.0
    %1566 = vadd.xlane.f32.xlu0 %v1565
    %v1567 = vpop.xlane.xlu0 %1566
    %v1568 = vsel %vm561, %v1490, 0.0
    %1569 = vadd.xlane.f32.xlu0 %v1568
    %v1570 = vpop.xlane.xlu0 %1569
    %v1571 = vsel %vm561, %v1492, 0.0
    %1572 = vadd.xlane.f32.xlu0 %v1571
    %v1573 = vpop.xlane.xlu0 %1572
    %v1574 = vsel %vm561, %v1494, 0.0
    %1575 = vadd.xlane.f32.xlu0 %v1574
    %v1576 = vpop.xlane.xlu0 %1575
    %v1577 = vsel %vm561, %v1496, 0.0
    %1578 = vadd.xlane.f32.xlu0 %v1577
    %v1579 = vpop.xlane.xlu0 %1578
    %v1580 = vsel %vm561, %v1498, 0.0
    %1581 = vadd.xlane.f32.xlu0 %v1580
    %v1582 = vpop.xlane.xlu0 %1581
    %v1583 = vsel %vm561, %v1500, 0.0
    %1584 = vadd.xlane.f32.xlu0 %v1583
    %v1585 = vpop.xlane.xlu0 %1584
    %v1586 = vsel %vm561, %v1502, 0.0
    %1587 = vadd.xlane.f32.xlu0 %v1586
    %v1588 = vpop.xlane.xlu0 %1587
    %v1589 = vsel %vm561, %v1504, 0.0
    %1590 = vadd.xlane.f32.xlu0 %v1589
    %v1591 = vpop.xlane.xlu0 %1590
    %v1592 = vsel %vm561, %v1506, 0.0
    %1593 = vadd.xlane.f32.xlu0 %v1592
    %v1594 = vpop.xlane.xlu0 %1593
    %v1595 = vsel %vm561, %v1508, 0.0
    %1596 = vadd.xlane.f32.xlu0 %v1595
    %v1597 = vpop.xlane.xlu0 %1596
    %v1598 = vsel %vm561, %v1510, 0.0
    %1599 = vadd.xlane.f32.xlu0 %v1598
    %v1600 = vpop.xlane.xlu0 %1599
    %v1601 = vsel %vm561, %v1512, 0.0
    %1602 = vadd.xlane.f32.xlu0 %v1601
    %v1603 = vpop.xlane.xlu0 %1602
    %v1604 = vsel %vm561, %v1514, 0.0
    %1605 = vadd.xlane.f32.xlu0 %v1604
    %v1606 = vpop.xlane.xlu0 %1605
    %v1607 = vsel %vm561, %v1516, 0.0
    %1608 = vadd.xlane.f32.xlu0 %v1607
    %v1609 = vpop.xlane.xlu0 %1608
    %v1610 = vsel %vm561, %v1518, 0.0
    %1611 = vadd.xlane.f32.xlu0 %v1610
    %v1612 = vpop.xlane.xlu0 %1611
    %v1613 = vsel %vm561, %v1520, 0.0
    %1614 = vadd.xlane.f32.xlu0 %v1613
    %v1615 = vpop.xlane.xlu0 %1614
    %v1616 = vsel %vm561, %v1522, 0.0
    %1617 = vadd.xlane.f32.xlu0 %v1616
    %v1618 = vpop.xlane.xlu0 %1617
    %v1619 = vrcp.pop %v1525
    %v1620 = vrcp.pop %v1528
    %v1621 = vrcp.pop %v1531
    %v1622 = vrcp.pop %v1534
    %v1623 = vrcp.pop %v1537
    %v1624 = vrcp.pop %v1540
    %v1625 = vrcp.pop %v1543
    %v1626 = vrcp.pop %v1546
    %v1627 = vrcp.pop %v1549
    %v1628 = vrcp.pop %v1552
    %v1629 = vrcp.pop %v1555
    %v1630 = vrcp.pop %v1558
    %v1631 = vrcp.pop %v1561
    %v1632 = vrcp.pop %v1564
    %v1633 = vrcp.pop %v1567
    %v1634 = vrcp.pop %v1570
    %v1635 = vrcp.pop %v1573
    %v1636 = vrcp.pop %v1576
    %v1637 = vrcp.pop %v1579
    %v1638 = vrcp.pop %v1582
    %v1639 = vrcp.pop %v1585
    %v1640 = vrcp.pop %v1588
    %v1641 = vrcp.pop %v1591
    %v1642 = vrcp.pop %v1594
    %v1643 = vrcp.pop %v1597
    %v1644 = vrcp.pop %v1600
    %v1645 = vrcp.pop %v1603
    %v1646 = vrcp.pop %v1606
    %v1647 = vrcp.pop %v1609
    %v1648 = vrcp.pop %v1612
    %v1649 = vrcp.pop %v1615
    %v1650 = vrcp.pop %v1618
    %v1651 = vmul.f32 %v1460, %v1619
    %v1652 = vmul.f32 %v1462, %v1620
    %v1653 = vmul.f32 %v1464, %v1621
    %v1654 = vmul.f32 %v1466, %v1622
    %v1655 = vmul.f32 %v1468, %v1623
    %v1656 = vmul.f32 %v1470, %v1624
    %v1657 = vmul.f32 %v1472, %v1625
    %v1658 = vmul.f32 %v1474, %v1626
    %v1659 = vmul.f32 %v1476, %v1627
    %v1660 = vmul.f32 %v1478, %v1628
    %v1661 = vmul.f32 %v1480, %v1629
    %v1662 = vmul.f32 %v1482, %v1630
    %v1663 = vmul.f32 %v1484, %v1631
    %v1664 = vmul.f32 %v1486, %v1632
    %v1665 = vmul.f32 %v1488, %v1633
    %v1666 = vmul.f32 %v1490, %v1634
    %v1667 = vmul.f32 %v1492, %v1635
    %v1668 = vmul.f32 %v1494, %v1636
    %v1669 = vmul.f32 %v1496, %v1637
    %v1670 = vmul.f32 %v1498, %v1638
    %v1671 = vmul.f32 %v1500, %v1639
    %v1672 = vmul.f32 %v1502, %v1640
    %v1673 = vmul.f32 %v1504, %v1641
    %v1674 = vmul.f32 %v1506, %v1642
    %v1675 = vmul.f32 %v1508, %v1643
    %v1676 = vmul.f32 %v1510, %v1644
    %v1677 = vmul.f32 %v1512, %v1645
    %v1678 = vmul.f32 %v1514, %v1646
    %v1679 = vmul.f32 %v1516, %v1647
    %v1680 = vmul.f32 %v1518, %v1648
    %v1681 = vmul.f32 %v1520, %v1649
    %v1682 = vmul.f32 %v1522, %v1650
    %v1683 = vpack.c.bf16 %v1652, %v1651
    %v1684 = vpack.c.bf16 %v1654, %v1653
    %v1685 = vpack.c.bf16 %v1656, %v1655
    %v1686 = vpack.c.bf16 %v1658, %v1657
    %v1687 = vpack.c.bf16 %v1660, %v1659
    %v1688 = vpack.c.bf16 %v1662, %v1661
    %v1689 = vpack.c.bf16 %v1664, %v1663
    %v1690 = vpack.c.bf16 %v1666, %v1665
    %v1691 = vpack.c.bf16 %v1668, %v1667
    %v1692 = vpack.c.bf16 %v1670, %v1669
    %v1693 = vpack.c.bf16 %v1672, %v1671
    %v1694 = vpack.c.bf16 %v1674, %v1673
    %v1695 = vpack.c.bf16 %v1676, %v1675
    %v1696 = vpack.c.bf16 %v1678, %v1677
    %v1697 = vpack.c.bf16 %v1680, %v1679
    %v1698 = vpack.c.bf16 %v1682, %v1681
    %1699 = vrot.lane.b32.xlu0 %v778, 64
    %v1700 = vpop.permute.xlu0 %1699
    %1701 = vrot.lane.b32.xlu0 %v779, 64
    %v1702 = vpop.permute.xlu0 %1701
    %v1706 = vsel %vm561, %v1683, 0
    %v1709 = vsel %vm561, %v1684, 0
    %1711 = vmatprep.subr.bf16.mxu0 0
    %1712 = vmatpush1.bf16.msra.mxu0 %v1700
    %1713 = vmatprep.subr.bf16.mxu0 0
    %1714 = vmatpush1.bf16.msra.mxu0 %v1702
    %1715 = vmatprep.subr.bf16.mxu0 0
    %1716 = vmatpush1.bf16.msra.mxu0 0
    %1717 = vmatprep.subr.bf16.mxu0 0
    %1718 = vmatpush1.bf16.msra.mxu0 0
    %1719 = vmatprep.subr.bf16.mxu0 0
    %1720 = vmatpush1.bf16.msra.mxu0 0
    %1721 = vmatprep.subr.bf16.mxu0 0
    %1722 = vmatpush1.bf16.msra.mxu0 0
    %1723 = vmatprep.subr.bf16.mxu0 0
    %1724 = vmatpush1.bf16.msra.mxu0 0
    %1725 = vmatprep.subr.bf16.mxu0 0
    %1726 = vmatpush1.bf16.msra.mxu0 0
    %1727 = vmatprep.subr.bf16.mxu0 0
    %1728 = vmatpush1.bf16.msra.mxu0 0
    %1729 = vmatprep.subr.bf16.mxu0 0
    %1730 = vmatpush1.bf16.msra.mxu0 0
    %1731 = vmatprep.subr.bf16.mxu0 0
    %1732 = vmatpush1.bf16.msra.mxu0 0
    %1733 = vmatprep.subr.bf16.mxu0 0
    %1734 = vmatpush1.bf16.msra.mxu0 0
    %1735 = vmatprep.subr.bf16.mxu0 0
    %1736 = vmatpush1.bf16.msra.mxu0 0
    %1737 = vmatprep.subr.bf16.mxu0 0
    %1738 = vmatpush1.bf16.msra.mxu0 0
    %1739 = vmatprep.subr.bf16.mxu0 0
    %1740 = vmatpush1.bf16.msra.mxu0 0
    %1741 = vmatprep.subr.bf16.mxu0 0
    %1742 = vmatpush1.bf16.msra.mxu0 0
    %1743 = vmatprep.mubr.bf16.mxu0 0
    %1744 = vmatmul.mubr.bf16.gmra.mrb[0].mxu0 %v1706
    %v1745 = vpop.f32.mrb[0].mxu0
    %v1746 = vadd.f32 0.0, %v1745
    %v1747 = vpop.f32.mrb[0].mxu0
    %v1748 = vpop.f32.mrb[0].mxu0
    %v1749 = vadd.f32 0.0, %v1748
    %v1750 = vpop.f32.mrb[0].mxu0
    %1751 = vmatprep.mubr.bf16.mxu0 0
    %1752 = vmatmul.mubr.bf16.gmra.mrb[0].mxu0 %v1709
    %v1753 = vpop.f32.mrb[0].mxu0
    %v1754 = vadd.f32 0.0, %v1753
    %v1755 = vpop.f32.mrb[0].mxu0
    %v1756 = vpop.f32.mrb[0].mxu0
    %v1757 = vadd.f32 0.0, %v1756
    %v1758 = vpop.f32.mrb[0].mxu0
    %1759 = vdwg.mxu0
    %1760 = vrot.lane.b32.xlu0 %v787, 64
    %v1761 = vpop.permute.xlu0 %1760
    %1762 = vrot.lane.b32.xlu0 %v789, 64
    %v1763 = vpop.permute.xlu0 %1762
    %v1767 = vsel %vm561, %v1685, 0
    %v1770 = vsel %vm561, %v1686, 0
    %1772 = vmatprep.subr.bf16.mxu0 0
    %1773 = vmatpush1.bf16.msra.mxu0 %v1761
    %1774 = vmatprep.subr.bf16.mxu0 0
    %1775 = vmatpush1.bf16.msra.mxu0 %v1763
    %1776 = vmatprep.subr.bf16.mxu0 0
    %1777 = vmatpush1.bf16.msra.mxu0 0
    %1778 = vmatprep.subr.bf16.mxu0 0
    %1779 = vmatpush1.bf16.msra.mxu0 0
    %1780 = vmatprep.subr.bf16.mxu0 0
    %1781 = vmatpush1.bf16.msra.mxu0 0
    %1782 = vmatprep.subr.bf16.mxu0 0
    %1783 = vmatpush1.bf16.msra.mxu0 0
    %1784 = vmatprep.subr.bf16.mxu0 0
    %1785 = vmatpush1.bf16.msra.mxu0 0
    %1786 = vmatprep.subr.bf16.mxu0 0
    %1787 = vmatpush1.bf16.msra.mxu0 0
    %1788 = vmatprep.subr.bf16.mxu0 0
    %1789 = vmatpush1.bf16.msra.mxu0 0
    %1790 = vmatprep.subr.bf16.mxu0 0
    %1791 = vmatpush1.bf16.msra.mxu0 0
    %1792 = vmatprep.subr.bf16.mxu0 0
    %1793 = vmatpush1.bf16.msra.mxu0 0
    %1794 = vmatprep.subr.bf16.mxu0 0
    %1795 = vmatpush1.bf16.msra.mxu0 0
    %1796 = vmatprep.subr.bf16.mxu0 0
    %1797 = vmatpush1.bf16.msra.mxu0 0
    %1798 = vmatprep.subr.bf16.mxu0 0
    %1799 = vmatpush1.bf16.msra.mxu0 0
    %1800 = vmatprep.subr.bf16.mxu0 0
    %1801 = vmatpush1.bf16.msra.mxu0 0
    %1802 = vmatprep.subr.bf16.mxu0 0
    %1803 = vmatpush1.bf16.msra.mxu0 0
    %1804 = vmatprep.mubr.bf16.mxu0 0
    %1805 = vmatmul.mubr.bf16.gmra.mrb[0].mxu0 %v1767
    %v1806 = vpop.f32.mrb[0].mxu0
    %v1807 = vadd.f32 0.0, %v1806
    %v1808 = vpop.f32.mrb[0].mxu0
    %v1809 = vpop.f32.mrb[0].mxu0
    %v1810 = vadd.f32 0.0, %v1809
    %v1811 = vpop.f32.mrb[0].mxu0
    %1812 = vmatprep.mubr.bf16.mxu0 0
    %1813 = vmatmul.mubr.bf16.gmra.mrb[0].mxu0 %v1770
    %v1814 = vpop.f32.mrb[0].mxu0
    %v1815 = vadd.f32 0.0, %v1814
    %v1816 = vpop.f32.mrb[0].mxu0
    %v1817 = vpop.f32.mrb[0].mxu0
    %v1818 = vadd.f32 0.0, %v1817
    %v1819 = vpop.f32.mrb[0].mxu0
    %1820 = vdwg.mxu0
    %1821 = vrot.lane.b32.xlu0 %v795, 64
    %v1822 = vpop.permute.xlu0 %1821
    %1823 = vrot.lane.b32.xlu0 %v797, 64
    %v1824 = vpop.permute.xlu0 %1823
    %v1828 = vsel %vm561, %v1687, 0
    %v1831 = vsel %vm561, %v1688, 0
    %1833 = vmatprep.subr.bf16.mxu0 0
    %1834 = vmatpush1.bf16.msra.mxu0 %v1822
    %1835 = vmatprep.subr.bf16.mxu0 0
    %1836 = vmatpush1.bf16.msra.mxu0 %v1824
    %1837 = vmatprep.subr.bf16.mxu0 0
    %1838 = vmatpush1.bf16.msra.mxu0 0
    %1839 = vmatprep.subr.bf16.mxu0 0
    %1840 = vmatpush1.bf16.msra.mxu0 0
    %1841 = vmatprep.subr.bf16.mxu0 0
    %1842 = vmatpush1.bf16.msra.mxu0 0
    %1843 = vmatprep.subr.bf16.mxu0 0
    %1844 = vmatpush1.bf16.msra.mxu0 0
    %1845 = vmatprep.subr.bf16.mxu0 0
    %1846 = vmatpush1.bf16.msra.mxu0 0
    %1847 = vmatprep.subr.bf16.mxu0 0
    %1848 = vmatpush1.bf16.msra.mxu0 0
    %1849 = vmatprep.subr.bf16.mxu0 0
    %1850 = vmatpush1.bf16.msra.mxu0 0
    %1851 = vmatprep.subr.bf16.mxu0 0
    %1852 = vmatpush1.bf16.msra.mxu0 0
    %1853 = vmatprep.subr.bf16.mxu0 0
    %1854 = vmatpush1.bf16.msra.mxu0 0
    %1855 = vmatprep.subr.bf16.mxu0 0
    %1856 = vmatpush1.bf16.msra.mxu0 0
    %1857 = vmatprep.subr.bf16.mxu0 0
    %1858 = vmatpush1.bf16.msra.mxu0 0
    %1859 = vmatprep.subr.bf16.mxu0 0
    %1860 = vmatpush1.bf16.msra.mxu0 0
    %1861 = vmatprep.subr.bf16.mxu0 0
    %1862 = vmatpush1.bf16.msra.mxu0 0
    %1863 = vmatprep.subr.bf16.mxu0 0
    %1864 = vmatpush1.bf16.msra.mxu0 0
    %1865 = vmatprep.mubr.bf16.mxu0 0
    %1866 = vmatmul.mubr.bf16.gmra.mrb[0].mxu0 %v1828
    %v1867 = vpop.f32.mrb[0].mxu0
    %v1868 = vadd.f32 0.0, %v1867
    %v1869 = vpop.f32.mrb[0].mxu0
    %v1870 = vpop.f32.mrb[0].mxu0
    %v1871 = vadd.f32 0.0, %v1870
    %v1872 = vpop.f32.mrb[0].mxu0
    %1873 = vmatprep.mubr.bf16.mxu0 0
    %1874 = vmatmul.mubr.bf16.gmra.mrb[0].mxu0 %v1831
    %v1875 = vpop.f32.mrb[0].mxu0
    %v1876 = vadd.f32 0.0, %v1875
    %v1877 = vpop.f32.mrb[0].mxu0
    %v1878 = vpop.f32.mrb[0].mxu0
    %v1879 = vadd.f32 0.0, %v1878
    %v1880 = vpop.f32.mrb[0].mxu0
    %1881 = vdwg.mxu0
    %1882 = vrot.lane.b32.xlu0 %v803, 64
    %v1883 = vpop.permute.xlu0 %1882
    %1884 = vrot.lane.b32.xlu0 %v805, 64
    %v1885 = vpop.permute.xlu0 %1884
    %v1889 = vsel %vm561, %v1689, 0
    %v1892 = vsel %vm561, %v1690, 0
    %1894 = vmatprep.subr.bf16.mxu0 0
    %1895 = vmatpush1.bf16.msra.mxu0 %v1883
    %1896 = vmatprep.subr.bf16.mxu0 0
    %1897 = vmatpush1.bf16.msra.mxu0 %v1885
    %1898 = vmatprep.subr.bf16.mxu0 0
    %1899 = vmatpush1.bf16.msra.mxu0 0
    %1900 = vmatprep.subr.bf16.mxu0 0
    %1901 = vmatpush1.bf16.msra.mxu0 0
    %1902 = vmatprep.subr.bf16.mxu0 0
    %1903 = vmatpush1.bf16.msra.mxu0 0
    %1904 = vmatprep.subr.bf16.mxu0 0
    %1905 = vmatpush1.bf16.msra.mxu0 0
    %1906 = vmatprep.subr.bf16.mxu0 0
    %1907 = vmatpush1.bf16.msra.mxu0 0
    %1908 = vmatprep.subr.bf16.mxu0 0
    %1909 = vmatpush1.bf16.msra.mxu0 0
    %1910 = vmatprep.subr.bf16.mxu0 0
    %1911 = vmatpush1.bf16.msra.mxu0 0
    %1912 = vmatprep.subr.bf16.mxu0 0
    %1913 = vmatpush1.bf16.msra.mxu0 0
    %1914 = vmatprep.subr.bf16.mxu0 0
    %1915 = vmatpush1.bf16.msra.mxu0 0
    %1916 = vmatprep.subr.bf16.mxu0 0
    %1917 = vmatpush1.bf16.msra.mxu0 0
    %1918 = vmatprep.subr.bf16.mxu0 0
    %1919 = vmatpush1.bf16.msra.mxu0 0
    %1920 = vmatprep.subr.bf16.mxu0 0
    %1921 = vmatpush1.bf16.msra.mxu0 0
    %1922 = vmatprep.subr.bf16.mxu0 0
    %1923 = vmatpush1.bf16.msra.mxu0 0
    %1924 = vmatprep.subr.bf16.mxu0 0
    %1925 = vmatpush1.bf16.msra.mxu0 0
    %1926 = vmatprep.mubr.bf16.mxu0 0
    %1927 = vmatmul.mubr.bf16.gmra.mrb[0].mxu0 %v1889
    %v1928 = vpop.f32.mrb[0].mxu0
    %v1929 = vadd.f32 0.0, %v1928
    %v1930 = vpop.f32.mrb[0].mxu0
    %v1931 = vpop.f32.mrb[0].mxu0
    %v1932 = vadd.f32 0.0, %v1931
    %v1933 = vpop.f32.mrb[0].mxu0
    %1934 = vmatprep.mubr.bf16.mxu0 0
    %1935 = vmatmul.mubr.bf16.gmra.mrb[0].mxu0 %v1892
    %v1936 = vpop.f32.mrb[0].mxu0
    %v1937 = vadd.f32 0.0, %v1936
    %v1938 = vpop.f32.mrb[0].mxu0
    %v1939 = vpop.f32.mrb[0].mxu0
    %v1940 = vadd.f32 0.0, %v1939
    %v1941 = vpop.f32.mrb[0].mxu0
    %1942 = vdwg.mxu0
    %1943 = vrot.lane.b32.xlu0 %v780, 64
    %v1944 = vpop.permute.xlu0 %1943
    %1945 = vrot.lane.b32.xlu0 %v781, 64
    %v1946 = vpop.permute.xlu0 %1945
    %v1950 = vsel %vm561, %v1691, 0
    %v1953 = vsel %vm561, %v1692, 0
    %1955 = vmatprep.subr.bf16.mxu0 0
    %1956 = vmatpush1.bf16.msra.mxu0 %v1944
    %1957 = vmatprep.subr.bf16.mxu0 0
    %1958 = vmatpush1.bf16.msra.mxu0 %v1946
    %1959 = vmatprep.subr.bf16.mxu0 0
    %1960 = vmatpush1.bf16.msra.mxu0 0
    %1961 = vmatprep.subr.bf16.mxu0 0
    %1962 = vmatpush1.bf16.msra.mxu0 0
    %1963 = vmatprep.subr.bf16.mxu0 0
    %1964 = vmatpush1.bf16.msra.mxu0 0
    %1965 = vmatprep.subr.bf16.mxu0 0
    %1966 = vmatpush1.bf16.msra.mxu0 0
    %1967 = vmatprep.subr.bf16.mxu0 0
    %1968 = vmatpush1.bf16.msra.mxu0 0
    %1969 = vmatprep.subr.bf16.mxu0 0
    %1970 = vmatpush1.bf16.msra.mxu0 0
    %1971 = vmatprep.subr.bf16.mxu0 0
    %1972 = vmatpush1.bf16.msra.mxu0 0
    %1973 = vmatprep.subr.bf16.mxu0 0
    %1974 = vmatpush1.bf16.msra.mxu0 0
    %1975 = vmatprep.subr.bf16.mxu0 0
    %1976 = vmatpush1.bf16.msra.mxu0 0
    %1977 = vmatprep.subr.bf16.mxu0 0
    %1978 = vmatpush1.bf16.msra.mxu0 0
    %1979 = vmatprep.subr.bf16.mxu0 0
    %1980 = vmatpush1.bf16.msra.mxu0 0
    %1981 = vmatprep.subr.bf16.mxu0 0
    %1982 = vmatpush1.bf16.msra.mxu0 0
    %1983 = vmatprep.subr.bf16.mxu0 0
    %1984 = vmatpush1.bf16.msra.mxu0 0
    %1985 = vmatprep.subr.bf16.mxu0 0
    %1986 = vmatpush1.bf16.msra.mxu0 0
    %1987 = vmatprep.mubr.bf16.mxu0 0
    %1988 = vmatmul.mubr.bf16.gmra.mrb[0].mxu0 %v1950
    %v1989 = vpop.f32.mrb[0].mxu0
    %v1990 = vadd.f32 0.0, %v1989
    %v1991 = vpop.f32.mrb[0].mxu0
    %v1992 = vpop.f32.mrb[0].mxu0
    %v1993 = vadd.f32 0.0, %v1992
    %v1994 = vpop.f32.mrb[0].mxu0
    %1995 = vmatprep.mubr.bf16.mxu0 0
    %1996 = vmatmul.mubr.bf16.gmra.mrb[0].mxu0 %v1953
    %v1997 = vpop.f32.mrb[0].mxu0
    %v1998 = vadd.f32 0.0, %v1997
    %v1999 = vpop.f32.mrb[0].mxu0
    %v2000 = vpop.f32.mrb[0].mxu0
    %v2001 = vadd.f32 0.0, %v2000
    %v2002 = vpop.f32.mrb[0].mxu0
    %2003 = vdwg.mxu0
    %2004 = vrot.lane.b32.xlu0 %v791, 64
    %v2005 = vpop.permute.xlu0 %2004
    %2006 = vrot.lane.b32.xlu0 %v793, 64
    %v2007 = vpop.permute.xlu0 %2006
    %v2011 = vsel %vm561, %v1693, 0
    %v2014 = vsel %vm561, %v1694, 0
    %2016 = vmatprep.subr.bf16.mxu0 0
    %2017 = vmatpush1.bf16.msra.mxu0 %v2005
    %2018 = vmatprep.subr.bf16.mxu0 0
    %2019 = vmatpush1.bf16.msra.mxu0 %v2007
    %2020 = vmatprep.subr.bf16.mxu0 0
    %2021 = vmatpush1.bf16.msra.mxu0 0
    %2022 = vmatprep.subr.bf16.mxu0 0
    %2023 = vmatpush1.bf16.msra.mxu0 0
    %2024 = vmatprep.subr.bf16.mxu0 0
    %2025 = vmatpush1.bf16.msra.mxu0 0
    %2026 = vmatprep.subr.bf16.mxu0 0
    %2027 = vmatpush1.bf16.msra.mxu0 0
    %2028 = vmatprep.subr.bf16.mxu0 0
    %2029 = vmatpush1.bf16.msra.mxu0 0
    %2030 = vmatprep.subr.bf16.mxu0 0
    %2031 = vmatpush1.bf16.msra.mxu0 0
    %2032 = vmatprep.subr.bf16.mxu0 0
    %2033 = vmatpush1.bf16.msra.mxu0 0
    %2034 = vmatprep.subr.bf16.mxu0 0
    %2035 = vmatpush1.bf16.msra.mxu0 0
    %2036 = vmatprep.subr.bf16.mxu0 0
    %2037 = vmatpush1.bf16.msra.mxu0 0
    %2038 = vmatprep.subr.bf16.mxu0 0
    %2039 = vmatpush1.bf16.msra.mxu0 0
    %2040 = vmatprep.subr.bf16.mxu0 0
    %2041 = vmatpush1.bf16.msra.mxu0 0
    %2042 = vmatprep.subr.bf16.mxu0 0
    %2043 = vmatpush1.bf16.msra.mxu0 0
    %2044 = vmatprep.subr.bf16.mxu0 0
    %2045 = vmatpush1.bf16.msra.mxu0 0
    %2046 = vmatprep.subr.bf16.mxu0 0
    %2047 = vmatpush1.bf16.msra.mxu0 0
    %2048 = vmatprep.mubr.bf16.mxu0 0
    %2049 = vmatmul.mubr.bf16.gmra.mrb[0].mxu0 %v2011
    %v2050 = vpop.f32.mrb[0].mxu0
    %v2051 = vadd.f32 0.0, %v2050
    %v2052 = vpop.f32.mrb[0].mxu0
    %v2053 = vpop.f32.mrb[0].mxu0
    %v2054 = vadd.f32 0.0, %v2053
    %v2055 = vpop.f32.mrb[0].mxu0
    %2056 = vmatprep.mubr.bf16.mxu0 0
    %2057 = vmatmul.mubr.bf16.gmra.mrb[0].mxu0 %v2014
    %v2058 = vpop.f32.mrb[0].mxu0
    %v2059 = vadd.f32 0.0, %v2058
    %v2060 = vpop.f32.mrb[0].mxu0
    %v2061 = vpop.f32.mrb[0].mxu0
    %v2062 = vadd.f32 0.0, %v2061
    %v2063 = vpop.f32.mrb[0].mxu0
    %2064 = vdwg.mxu0
    %2065 = vrot.lane.b32.xlu0 %v799, 64
    %v2066 = vpop.permute.xlu0 %2065
    %2067 = vrot.lane.b32.xlu0 %v801, 64
    %v2068 = vpop.permute.xlu0 %2067
    %v2072 = vsel %vm561, %v1695, 0
    %v2075 = vsel %vm561, %v1696, 0
    %2077 = vmatprep.subr.bf16.mxu0 0
    %2078 = vmatpush1.bf16.msra.mxu0 %v2066
    %2079 = vmatprep.subr.bf16.mxu0 0
    %2080 = vmatpush1.bf16.msra.mxu0 %v2068
    %2081 = vmatprep.subr.bf16.mxu0 0
    %2082 = vmatpush1.bf16.msra.mxu0 0
    %2083 = vmatprep.subr.bf16.mxu0 0
    %2084 = vmatpush1.bf16.msra.mxu0 0
    %2085 = vmatprep.subr.bf16.mxu0 0
    %2086 = vmatpush1.bf16.msra.mxu0 0
    %2087 = vmatprep.subr.bf16.mxu0 0
    %2088 = vmatpush1.bf16.msra.mxu0 0
    %2089 = vmatprep.subr.bf16.mxu0 0
    %2090 = vmatpush1.bf16.msra.mxu0 0
    %2091 = vmatprep.subr.bf16.mxu0 0
    %2092 = vmatpush1.bf16.msra.mxu0 0
    %2093 = vmatprep.subr.bf16.mxu0 0
    %2094 = vmatpush1.bf16.msra.mxu0 0
    %2095 = vmatprep.subr.bf16.mxu0 0
    %2096 = vmatpush1.bf16.msra.mxu0 0
    %2097 = vmatprep.subr.bf16.mxu0 0
    %2098 = vmatpush1.bf16.msra.mxu0 0
    %2099 = vmatprep.subr.bf16.mxu0 0
    %2100 = vmatpush1.bf16.msra.mxu0 0
    %2101 = vmatprep.subr.bf16.mxu0 0
    %2102 = vmatpush1.bf16.msra.mxu0 0
    %2103 = vmatprep.subr.bf16.mxu0 0
    %2104 = vmatpush1.bf16.msra.mxu0 0
    %2105 = vmatprep.subr.bf16.mxu0 0
    %2106 = vmatpush1.bf16.msra.mxu0 0
    %2107 = vmatprep.subr.bf16.mxu0 0
    %2108 = vmatpush1.bf16.msra.mxu0 0
    %2109 = vmatprep.mubr.bf16.mxu0 0
    %2110 = vmatmul.mubr.bf16.gmra.mrb[0].mxu0 %v2072
    %v2111 = vpop.f32.mrb[0].mxu0
    %v2112 = vadd.f32 0.0, %v2111
    %v2113 = vpop.f32.mrb[0].mxu0
    %v2114 = vpop.f32.mrb[0].mxu0
    %v2115 = vadd.f32 0.0, %v2114
    %v2116 = vpop.f32.mrb[0].mxu0
    %2117 = vmatprep.mubr.bf16.mxu0 0
    %2118 = vmatmul.mubr.bf16.gmra.mrb[0].mxu0 %v2075
    %v2119 = vpop.f32.mrb[0].mxu0
    %v2120 = vadd.f32 0.0, %v2119
    %v2121 = vpop.f32.mrb[0].mxu0
    %v2122 = vpop.f32.mrb[0].mxu0
    %v2123 = vadd.f32 0.0, %v2122
    %v2124 = vpop.f32.mrb[0].mxu0
    %2125 = vdwg.mxu0
    %2126 = vrot.lane.b32.xlu0 %v807, 64
    %v2127 = vpop.permute.xlu0 %2126
    %2128 = vrot.lane.b32.xlu0 %v809, 64
    %v2129 = vpop.permute.xlu0 %2128
    %v2133 = vsel %vm561, %v1697, 0
    %v2136 = vsel %vm561, %v1698, 0
    %2138 = vmatprep.subr.bf16.mxu0 0
    %2139 = vmatpush1.bf16.msra.mxu0 %v2127
    %2140 = vmatprep.subr.bf16.mxu0 0
    %2141 = vmatpush1.bf16.msra.mxu0 %v2129
    %2142 = vmatprep.subr.bf16.mxu0 0
    %2143 = vmatpush1.bf16.msra.mxu0 0
    %2144 = vmatprep.subr.bf16.mxu0 0
    %2145 = vmatpush1.bf16.msra.mxu0 0
    %2146 = vmatprep.subr.bf16.mxu0 0
    %2147 = vmatpush1.bf16.msra.mxu0 0
    %2148 = vmatprep.subr.bf16.mxu0 0
    %2149 = vmatpush1.bf16.msra.mxu0 0
    %2150 = vmatprep.subr.bf16.mxu0 0
    %2151 = vmatpush1.bf16.msra.mxu0 0
    %2152 = vmatprep.subr.bf16.mxu0 0
    %2153 = vmatpush1.bf16.msra.mxu0 0
    %2154 = vmatprep.subr.bf16.mxu0 0
    %2155 = vmatpush1.bf16.msra.mxu0 0
    %2156 = vmatprep.subr.bf16.mxu0 0
    %2157 = vmatpush1.bf16.msra.mxu0 0
    %2158 = vmatprep.subr.bf16.mxu0 0
    %2159 = vmatpush1.bf16.msra.mxu0 0
    %2160 = vmatprep.subr.bf16.mxu0 0
    %2161 = vmatpush1.bf16.msra.mxu0 0
    %2162 = vmatprep.subr.bf16.mxu0 0
    %2163 = vmatpush1.bf16.msra.mxu0 0
    %2164 = vmatprep.subr.bf16.mxu0 0
    %2165 = vmatpush1.bf16.msra.mxu0 0
    %2166 = vmatprep.subr.bf16.mxu0 0
    %2167 = vmatpush1.bf16.msra.mxu0 0
    %2168 = vmatprep.subr.bf16.mxu0 0
    %2169 = vmatpush1.bf16.msra.mxu0 0
    %2170 = vmatprep.mubr.bf16.mxu0 0
    %2171 = vmatmul.mubr.bf16.gmra.mrb[0].mxu0 %v2133
    %v2172 = vpop.f32.mrb[0].mxu0
    %v2173 = vadd.f32 0.0, %v2172
    %v2174 = vpop.f32.mrb[0].mxu0
    %v2175 = vpop.f32.mrb[0].mxu0
    %v2176 = vadd.f32 0.0, %v2175
    %v2177 = vpop.f32.mrb[0].mxu0
    %2178 = vmatprep.mubr.bf16.mxu0 0
    %2179 = vmatmul.mubr.bf16.gmra.mrb[0].mxu0 %v2136
    %v2180 = vpop.f32.mrb[0].mxu0
    %v2181 = vadd.f32 0.0, %v2180
    %v2182 = vpop.f32.mrb[0].mxu0
    %v2183 = vpop.f32.mrb[0].mxu0
    %v2184 = vadd.f32 0.0, %v2183
    %v2185 = vpop.f32.mrb[0].mxu0
    %2186 = vdwg.mxu0
    %2195 = vrot.lane.b32.xlu0 %v1807, 16
    %v2196 = vpop.permute.xlu0 %2195
    %2197 = vrot.lane.b32.xlu0 %v1810, 16
    %v2198 = vpop.permute.xlu0 %2197
    %2199 = vrot.lane.b32.xlu0 %v1815, 16
    %v2200 = vpop.permute.xlu0 %2199
    %2201 = vrot.lane.b32.xlu0 %v1818, 16
    %v2202 = vpop.permute.xlu0 %2201
    %2203 = vrot.lane.b32.xlu0 %v2051, 16
    %v2204 = vpop.permute.xlu0 %2203
    %2205 = vrot.lane.b32.xlu0 %v2054, 16
    %v2206 = vpop.permute.xlu0 %2205
    %2207 = vrot.lane.b32.xlu0 %v2059, 16
    %v2208 = vpop.permute.xlu0 %2207
    %2209 = vrot.lane.b32.xlu0 %v2062, 16
    %v2210 = vpop.permute.xlu0 %2209
    %2227 = vrot.lane.b32.xlu0 %v1868, 32
    %v2228 = vpop.permute.xlu0 %2227
    %2229 = vrot.lane.b32.xlu0 %v1871, 32
    %v2230 = vpop.permute.xlu0 %2229
    %2231 = vrot.lane.b32.xlu0 %v1876, 32
    %v2232 = vpop.permute.xlu0 %2231
    %2233 = vrot.lane.b32.xlu0 %v1879, 32
    %v2234 = vpop.permute.xlu0 %2233
    %2235 = vrot.lane.b32.xlu0 %v2112, 32
    %v2236 = vpop.permute.xlu0 %2235
    %2237 = vrot.lane.b32.xlu0 %v2115, 32
    %v2238 = vpop.permute.xlu0 %2237
    %2239 = vrot.lane.b32.xlu0 %v2120, 32
    %v2240 = vpop.permute.xlu0 %2239
    %2241 = vrot.lane.b32.xlu0 %v2123, 32
    %v2242 = vpop.permute.xlu0 %2241
    %2259 = vrot.lane.b32.xlu0 %v1929, 48
    %v2260 = vpop.permute.xlu0 %2259
    %2261 = vrot.lane.b32.xlu0 %v1932, 48
    %v2262 = vpop.permute.xlu0 %2261
    %2263 = vrot.lane.b32.xlu0 %v1937, 48
    %v2264 = vpop.permute.xlu0 %2263
    %2265 = vrot.lane.b32.xlu0 %v1940, 48
    %v2266 = vpop.permute.xlu0 %2265
    %2267 = vrot.lane.b32.xlu0 %v2173, 48
    %v2268 = vpop.permute.xlu0 %2267
    %2269 = vrot.lane.b32.xlu0 %v2176, 48
    %v2270 = vpop.permute.xlu0 %2269
    %2271 = vrot.lane.b32.xlu0 %v2181, 48
    %v2272 = vpop.permute.xlu0 %2271
    %2273 = vrot.lane.b32.xlu0 %v2184, 48
    %v2274 = vpop.permute.xlu0 %2273
    %v2283 = vsel %vm810, %v1746, %v2196
    %v2284 = vsel %vm810, %v1749, %v2198
    %v2285 = vsel %vm810, %v1754, %v2200
    %v2286 = vsel %vm810, %v1757, %v2202
    %v2287 = vsel %vm810, %v1990, %v2204
    %v2288 = vsel %vm810, %v1993, %v2206
    %v2289 = vsel %vm810, %v1998, %v2208
    %v2290 = vsel %vm810, %v2001, %v2210
    %v2291 = vsel %vm561, %v2283, %v2228
    %v2292 = vsel %vm561, %v2284, %v2230
    %v2293 = vsel %vm561, %v2285, %v2232
    %v2294 = vsel %vm561, %v2286, %v2234
    %v2295 = vsel %vm561, %v2287, %v2236
    %v2296 = vsel %vm561, %v2288, %v2238
    %v2297 = vsel %vm561, %v2289, %v2240
    %v2298 = vsel %vm561, %v2290, %v2242
    %vm2299 = vcmask 392192
    %v2300 = vsel %vm2299, %v2291, %v2260
    %v2301 = vsel %vm2299, %v2292, %v2262
    %v2302 = vsel %vm2299, %v2293, %v2264
    %v2303 = vsel %vm2299, %v2294, %v2266
    %v2304 = vsel %vm2299, %v2295, %v2268
    %v2305 = vsel %vm2299, %v2296, %v2270
    %v2306 = vsel %vm2299, %v2297, %v2272
    %v2307 = vsel %vm2299, %v2298, %v2274
    %v2308 = vpack.c.bf16 %v2301, %v2300
    %v2309 = vpack.c.bf16 %v2303, %v2302
    %v2310 = vpack.c.bf16 %v2305, %v2304
    %v2311 = vpack.c.bf16 %v2307, %v2306
    %v2313 = vlaneseq
    %v2314 = vshrl.u32 %v2313, 7
    %v2315 = vsub.s32 0, %v2314
    %v2316 = vrot.slane %v443, %v2315
    %v2326 = vunpack.c.l.b16 %v435
    %v2327 = vunpack.c.l.b16 %v436
    %v2328 = vunpack.c.l.b16 %v437
    %v2329 = vunpack.c.l.b16 %v438
    %v2330 = vunpack.c.l.b16 %v439
    %v2331 = vunpack.c.l.b16 %v440
    %v2332 = vunpack.c.l.b16 %v441
    %v2333 = vunpack.c.l.b16 %v442
    %v2334 = vpack.c.b16 %v2327, %v2326
    %v2335 = vpack.c.b16 %v2329, %v2328
    %v2336 = vpack.c.b16 %v2331, %v2330
    %v2337 = vpack.c.b16 %v2333, %v2332
    %vm2342 = vcmask 523264
    %v2344 = vsel %vm2342, %v2308, 0
    %v2347 = vsel %vm2342, %v2309, 0
    %v2350 = vsel %vm2342, %v2310, 0
    %v2353 = vsel %vm2342, %v2311, 0
    %2355 = vmatprep.subr.bf16.mxu0 0
    %2356 = vmatpush1.bf16.msra.mxu0 %v2334
    %2357 = vmatprep.subr.bf16.mxu0 0
    %2358 = vmatpush1.bf16.msra.mxu0 %v2335
    %2359 = vmatprep.subr.bf16.mxu0 0
    %2360 = vmatpush1.bf16.msra.mxu0 %v2336
    %2361 = vmatprep.subr.bf16.mxu0 0
    %2362 = vmatpush1.bf16.msra.mxu0 %v2337
    %2363 = vmatprep.subr.bf16.mxu0 0
    %2364 = vmatpush1.bf16.msra.mxu0 0
    %2365 = vmatprep.subr.bf16.mxu0 0
    %2366 = vmatpush1.bf16.msra.mxu0 0
    %2367 = vmatprep.subr.bf16.mxu0 0
    %2368 = vmatpush1.bf16.msra.mxu0 0
    %2369 = vmatprep.subr.bf16.mxu0 0
    %2370 = vmatpush1.bf16.msra.mxu0 0
    %2371 = vmatprep.subr.bf16.mxu0 0
    %2372 = vmatpush1.bf16.msra.mxu0 0
    %2373 = vmatprep.subr.bf16.mxu0 0
    %2374 = vmatpush1.bf16.msra.mxu0 0
    %2375 = vmatprep.subr.bf16.mxu0 0
    %2376 = vmatpush1.bf16.msra.mxu0 0
    %2377 = vmatprep.subr.bf16.mxu0 0
    %2378 = vmatpush1.bf16.msra.mxu0 0
    %2379 = vmatprep.subr.bf16.mxu0 0
    %2380 = vmatpush1.bf16.msra.mxu0 0
    %2381 = vmatprep.subr.bf16.mxu0 0
    %2382 = vmatpush1.bf16.msra.mxu0 0
    %2383 = vmatprep.subr.bf16.mxu0 0
    %2384 = vmatpush1.bf16.msra.mxu0 0
    %2385 = vmatprep.subr.bf16.mxu0 0
    %2386 = vmatpush1.bf16.msra.mxu0 0
    %2387 = vmatprep.mubr.bf16.mxu0 0
    %2388 = vmatmul.mubr.bf16.gmra.mrb[0].mxu0 %v2344
    %v2389 = vpop.f32.mrb[0].mxu0
    %v2390 = vadd.f32 %v2316, %v2389
    %v2391 = vpop.f32.mrb[0].mxu0
    %v2392 = vpop.f32.mrb[0].mxu0
    %v2393 = vadd.f32 %v2316, %v2392
    %v2394 = vpop.f32.mrb[0].mxu0
    %2395 = vmatprep.mubr.bf16.mxu0 0
    %2396 = vmatmul.mubr.bf16.gmra.mrb[0].mxu0 %v2347
    %v2397 = vpop.f32.mrb[0].mxu0
    %v2398 = vadd.f32 %v2316, %v2397
    %v2399 = vpop.f32.mrb[0].mxu0
    %v2400 = vpop.f32.mrb[0].mxu0
    %v2401 = vadd.f32 %v2316, %v2400
    %v2402 = vpop.f32.mrb[0].mxu0
    %2403 = vmatprep.mubr.bf16.mxu0 0
    %2404 = vmatmul.mubr.bf16.gmra.mrb[0].mxu0 %v2350
    %v2405 = vpop.f32.mrb[0].mxu0
    %v2406 = vadd.f32 %v2316, %v2405
    %v2407 = vpop.f32.mrb[0].mxu0
    %v2408 = vpop.f32.mrb[0].mxu0
    %v2409 = vadd.f32 %v2316, %v2408
    %v2410 = vpop.f32.mrb[0].mxu0
    %2411 = vmatprep.mubr.bf16.mxu0 0
    %2412 = vmatmul.mubr.bf16.gmra.mrb[0].mxu0 %v2353
    %v2413 = vpop.f32.mrb[0].mxu0
    %v2414 = vadd.f32 %v2316, %v2413
    %v2415 = vpop.f32.mrb[0].mxu0
    %v2416 = vpop.f32.mrb[0].mxu0
    %v2417 = vadd.f32 %v2316, %v2416
    %v2418 = vpop.f32.mrb[0].mxu0
    %2419 = vdwg.mxu0
    %v2420 = vadd.f32 %v2390, %v483
    %v2421 = vadd.f32 %v2393, %v484
    %v2422 = vadd.f32 %v2398, %v485
    %v2423 = vadd.f32 %v2401, %v486
    %v2424 = vadd.f32 %v2406, %v487
    %v2425 = vadd.f32 %v2409, %v488
    %v2426 = vadd.f32 %v2414, %v489
    %v2427 = vadd.f32 %v2417, %v490
    %v2428 = vsel %vm561, %v2420, 0.0
    %2429 = vadd.xlane.f32.xlu0 %v2428
    %v2430 = vpop.xlane.xlu0 %2429
    %v2431 = vsel %vm561, %v2421, 0.0
    %2432 = vadd.xlane.f32.xlu0 %v2431
    %v2433 = vpop.xlane.xlu0 %2432
    %v2434 = vsel %vm561, %v2422, 0.0
    %2435 = vadd.xlane.f32.xlu0 %v2434
    %v2436 = vpop.xlane.xlu0 %2435
    %v2437 = vsel %vm561, %v2423, 0.0
    %2438 = vadd.xlane.f32.xlu0 %v2437
    %v2439 = vpop.xlane.xlu0 %2438
    %v2440 = vsel %vm561, %v2424, 0.0
    %2441 = vadd.xlane.f32.xlu0 %v2440
    %v2442 = vpop.xlane.xlu0 %2441
    %v2443 = vsel %vm561, %v2425, 0.0
    %2444 = vadd.xlane.f32.xlu0 %v2443
    %v2445 = vpop.xlane.xlu0 %2444
    %v2446 = vsel %vm561, %v2426, 0.0
    %2447 = vadd.xlane.f32.xlu0 %v2446
    %v2448 = vpop.xlane.xlu0 %2447
    %v2449 = vsel %vm561, %v2427, 0.0
    %2450 = vadd.xlane.f32.xlu0 %v2449
    %v2451 = vpop.xlane.xlu0 %2450
    %v2452 = vrcp.pop 32.0
    %v2453 = vmul.f32 %v2430, %v2452
    %v2454 = vmul.f32 %v2433, %v2452
    %v2455 = vmul.f32 %v2436, %v2452
    %v2456 = vmul.f32 %v2439, %v2452
    %v2457 = vmul.f32 %v2442, %v2452
    %v2458 = vmul.f32 %v2445, %v2452
    %v2459 = vmul.f32 %v2448, %v2452
    %v2460 = vmul.f32 %v2451, %v2452
    %v2461 = vsub.f32 %v2420, %v2453
    %v2462 = vsub.f32 %v2421, %v2454
    %v2463 = vsub.f32 %v2422, %v2455
    %v2464 = vsub.f32 %v2423, %v2456
    %v2465 = vsub.f32 %v2424, %v2457
    %v2466 = vsub.f32 %v2425, %v2458
    %v2467 = vsub.f32 %v2426, %v2459
    %v2468 = vsub.f32 %v2427, %v2460
    %v2469 = vmul.f32 %v2461, %v2461
    %v2470 = vmul.f32 %v2462, %v2462
    %v2471 = vmul.f32 %v2463, %v2463
    %v2472 = vmul.f32 %v2464, %v2464
    %v2473 = vmul.f32 %v2465, %v2465
    %v2474 = vmul.f32 %v2466, %v2466
    %v2475 = vmul.f32 %v2467, %v2467
    %v2476 = vmul.f32 %v2468, %v2468
    %v2477 = vsel %vm561, %v2469, 0.0
    %2478 = vadd.xlane.f32.xlu0 %v2477
    %v2479 = vpop.xlane.xlu0 %2478
    %v2480 = vsel %vm561, %v2470, 0.0
    %2481 = vadd.xlane.f32.xlu0 %v2480
    %v2482 = vpop.xlane.xlu0 %2481
    %v2483 = vsel %vm561, %v2471, 0.0
    %2484 = vadd.xlane.f32.xlu0 %v2483
    %v2485 = vpop.xlane.xlu0 %2484
    %v2486 = vsel %vm561, %v2472, 0.0
    %2487 = vadd.xlane.f32.xlu0 %v2486
    %v2488 = vpop.xlane.xlu0 %2487
    %v2489 = vsel %vm561, %v2473, 0.0
    %2490 = vadd.xlane.f32.xlu0 %v2489
    %v2491 = vpop.xlane.xlu0 %2490
    %v2492 = vsel %vm561, %v2474, 0.0
    %2493 = vadd.xlane.f32.xlu0 %v2492
    %v2494 = vpop.xlane.xlu0 %2493
    %v2495 = vsel %vm561, %v2475, 0.0
    %2496 = vadd.xlane.f32.xlu0 %v2495
    %v2497 = vpop.xlane.xlu0 %2496
    %v2498 = vsel %vm561, %v2476, 0.0
    %2499 = vadd.xlane.f32.xlu0 %v2498
    %v2500 = vpop.xlane.xlu0 %2499
    %v2501 = vmul.f32 %v2479, %v2452
    %v2502 = vmul.f32 %v2482, %v2452
    %v2503 = vmul.f32 %v2485, %v2452
    %v2504 = vmul.f32 %v2488, %v2452
    %v2505 = vmul.f32 %v2491, %v2452
    %v2506 = vmul.f32 %v2494, %v2452
    %v2507 = vmul.f32 %v2497, %v2452
    %v2508 = vmul.f32 %v2500, %v2452
    %v2509 = vadd.f32 %v2501, 1e-05
    %v2510 = vadd.f32 %v2502, 1e-05
    %v2511 = vadd.f32 %v2503, 1e-05
    %v2512 = vadd.f32 %v2504, 1e-05
    %v2513 = vadd.f32 %v2505, 1e-05
    %v2514 = vadd.f32 %v2506, 1e-05
    %v2515 = vadd.f32 %v2507, 1e-05
    %v2516 = vadd.f32 %v2508, 1e-05
    %v2517 = vrsqrt.pop %v2509
    %v2518 = vrsqrt.pop %v2510
    %v2519 = vrsqrt.pop %v2511
    %v2520 = vrsqrt.pop %v2512
    %v2521 = vrsqrt.pop %v2513
    %v2522 = vrsqrt.pop %v2514
    %v2523 = vrsqrt.pop %v2515
    %v2524 = vrsqrt.pop %v2516
    %v2525 = vmul.f32 %v2461, %v2517
    %v2526 = vmul.f32 %v2462, %v2518
    %v2527 = vmul.f32 %v2463, %v2519
    %v2528 = vmul.f32 %v2464, %v2520
    %v2529 = vmul.f32 %v2465, %v2521
    %v2530 = vmul.f32 %v2466, %v2522
    %v2531 = vmul.f32 %v2467, %v2523
    %v2532 = vmul.f32 %v2468, %v2524
    %v2534 = vlaneseq
    %v2535 = vshrl.u32 %v2534, 7
    %v2536 = vsub.s32 0, %v2535
    %v2537 = vrot.slane %v444, %v2536
    %v2539 = vmul.f32 %v2525, %v2537
    %v2540 = vmul.f32 %v2526, %v2537
    %v2541 = vmul.f32 %v2527, %v2537
    %v2542 = vmul.f32 %v2528, %v2537
    %v2543 = vmul.f32 %v2529, %v2537
    %v2544 = vmul.f32 %v2530, %v2537
    %v2545 = vmul.f32 %v2531, %v2537
    %v2546 = vmul.f32 %v2532, %v2537
    %v2548 = vlaneseq
    %v2549 = vshrl.u32 %v2548, 7
    %v2550 = vsub.s32 0, %v2549
    %v2551 = vrot.slane %v445, %v2550
    %v2553 = vadd.f32 %v2539, %v2551
    %v2554 = vadd.f32 %v2540, %v2551
    %v2555 = vadd.f32 %v2541, %v2551
    %v2556 = vadd.f32 %v2542, %v2551
    %v2557 = vadd.f32 %v2543, %v2551
    %v2558 = vadd.f32 %v2544, %v2551
    %v2559 = vadd.f32 %v2545, %v2551
    %v2560 = vadd.f32 %v2546, %v2551
    %v2561 = vpack.c.bf16 %v2554, %v2553
    %v2562 = vpack.c.bf16 %v2556, %v2555
    %v2563 = vpack.c.bf16 %v2558, %v2557
    %v2564 = vpack.c.bf16 %v2560, %v2559
    %v2566 = vlaneseq
    %v2567 = vshrl.u32 %v2566, 7
    %v2568 = vsub.s32 0, %v2567
    %v2569 = vrot.slane %v450, %v2568
    %v2575 = vunpack.c.l.b16 %v446
    %v2576 = vunpack.c.l.b16 %v447
    %v2577 = vunpack.c.l.b16 %v448
    %v2578 = vunpack.c.l.b16 %v449
    %v2579 = vpack.c.b16 %v2576, %v2575
    %v2580 = vpack.c.b16 %v2578, %v2577
    %v2584 = vsel %vm561, %v2561, 0
    %v2587 = vsel %vm561, %v2562, 0
    %v2590 = vsel %vm561, %v2563, 0
    %v2593 = vsel %vm561, %v2564, 0
    %2595 = vmatprep.subr.bf16.mxu0 0
    %2596 = vmatpush1.bf16.msra.mxu0 %v2579
    %2597 = vmatprep.subr.bf16.mxu0 0
    %2598 = vmatpush1.bf16.msra.mxu0 %v2580
    %2599 = vmatprep.subr.bf16.mxu0 0
    %2600 = vmatpush1.bf16.msra.mxu0 0
    %2601 = vmatprep.subr.bf16.mxu0 0
    %2602 = vmatpush1.bf16.msra.mxu0 0
    %2603 = vmatprep.subr.bf16.mxu0 0
    %2604 = vmatpush1.bf16.msra.mxu0 0
    %2605 = vmatprep.subr.bf16.mxu0 0
    %2606 = vmatpush1.bf16.msra.mxu0 0
    %2607 = vmatprep.subr.bf16.mxu0 0
    %2608 = vmatpush1.bf16.msra.mxu0 0
    %2609 = vmatprep.subr.bf16.mxu0 0
    %2610 = vmatpush1.bf16.msra.mxu0 0
    %2611 = vmatprep.subr.bf16.mxu0 0
    %2612 = vmatpush1.bf16.msra.mxu0 0
    %2613 = vmatprep.subr.bf16.mxu0 0
    %2614 = vmatpush1.bf16.msra.mxu0 0
    %2615 = vmatprep.subr.bf16.mxu0 0
    %2616 = vmatpush1.bf16.msra.mxu0 0
    %2617 = vmatprep.subr.bf16.mxu0 0
    %2618 = vmatpush1.bf16.msra.mxu0 0
    %2619 = vmatprep.subr.bf16.mxu0 0
    %2620 = vmatpush1.bf16.msra.mxu0 0
    %2621 = vmatprep.subr.bf16.mxu0 0
    %2622 = vmatpush1.bf16.msra.mxu0 0
    %2623 = vmatprep.subr.bf16.mxu0 0
    %2624 = vmatpush1.bf16.msra.mxu0 0
    %2625 = vmatprep.subr.bf16.mxu0 0
    %2626 = vmatpush1.bf16.msra.mxu0 0
    %2627 = vmatprep.mubr.bf16.mxu0 0
    %2628 = vmatmul.mubr.bf16.gmra.mrb[0].mxu0 %v2584
    %v2629 = vpop.f32.mrb[0].mxu0
    %v2630 = vadd.f32 %v2569, %v2629
    %v2631 = vpop.f32.mrb[0].mxu0
    %v2632 = vpop.f32.mrb[0].mxu0
    %v2633 = vadd.f32 %v2569, %v2632
    %v2634 = vpop.f32.mrb[0].mxu0
    %2635 = vmatprep.mubr.bf16.mxu0 0
    %2636 = vmatmul.mubr.bf16.gmra.mrb[0].mxu0 %v2587
    %v2637 = vpop.f32.mrb[0].mxu0
    %v2638 = vadd.f32 %v2569, %v2637
    %v2639 = vpop.f32.mrb[0].mxu0
    %v2640 = vpop.f32.mrb[0].mxu0
    %v2641 = vadd.f32 %v2569, %v2640
    %v2642 = vpop.f32.mrb[0].mxu0
    %2643 = vmatprep.mubr.bf16.mxu0 0
    %2644 = vmatmul.mubr.bf16.gmra.mrb[0].mxu0 %v2590
    %v2645 = vpop.f32.mrb[0].mxu0
    %v2646 = vadd.f32 %v2569, %v2645
    %v2647 = vpop.f32.mrb[0].mxu0
    %v2648 = vpop.f32.mrb[0].mxu0
    %v2649 = vadd.f32 %v2569, %v2648
    %v2650 = vpop.f32.mrb[0].mxu0
    %2651 = vmatprep.mubr.bf16.mxu0 0
    %2652 = vmatmul.mubr.bf16.gmra.mrb[0].mxu0 %v2593
    %v2653 = vpop.f32.mrb[0].mxu0
    %v2654 = vadd.f32 %v2569, %v2653
    %v2655 = vpop.f32.mrb[0].mxu0
    %v2656 = vpop.f32.mrb[0].mxu0
    %v2657 = vadd.f32 %v2569, %v2656
    %v2658 = vpop.f32.mrb[0].mxu0
    %2659 = vdwg.mxu0
    %v2660 = vpack.c.bf16 %v500, %v499
    %v2661 = vpack.c.bf16 %v502, %v501
    %v2662 = vpack.c.bf16 %v504, %v503
    %v2663 = vpack.c.bf16 %v506, %v505
    %v2665 = vlaneseq
    %v2666 = vshrl.u32 %v2665, 7
    %v2667 = vsub.s32 0, %v2666
    %v2668 = vrot.slane %v455, %v2667
    %v2674 = vunpack.c.l.b16 %v451
    %v2675 = vunpack.c.l.b16 %v452
    %v2676 = vunpack.c.l.b16 %v453
    %v2677 = vunpack.c.l.b16 %v454
    %v2678 = vpack.c.b16 %v2675, %v2674
    %v2679 = vpack.c.b16 %v2677, %v2676
    %v2683 = vsel %vm561, %v2660, 0
    %v2686 = vsel %vm561, %v2661, 0
    %v2689 = vsel %vm561, %v2662, 0
    %v2692 = vsel %vm561, %v2663, 0
    %2694 = vmatprep.subr.bf16.mxu0 0
    %2695 = vmatpush1.bf16.msra.mxu0 %v2678
    %2696 = vmatprep.subr.bf16.mxu0 0
    %2697 = vmatpush1.bf16.msra.mxu0 %v2679
    %2698 = vmatprep.subr.bf16.mxu0 0
    %2699 = vmatpush1.bf16.msra.mxu0 0
    %2700 = vmatprep.subr.bf16.mxu0 0
    %2701 = vmatpush1.bf16.msra.mxu0 0
    %2702 = vmatprep.subr.bf16.mxu0 0
    %2703 = vmatpush1.bf16.msra.mxu0 0
    %2704 = vmatprep.subr.bf16.mxu0 0
    %2705 = vmatpush1.bf16.msra.mxu0 0
    %2706 = vmatprep.subr.bf16.mxu0 0
    %2707 = vmatpush1.bf16.msra.mxu0 0
    %2708 = vmatprep.subr.bf16.mxu0 0
    %2709 = vmatpush1.bf16.msra.mxu0 0
    %2710 = vmatprep.subr.bf16.mxu0 0
    %2711 = vmatpush1.bf16.msra.mxu0 0
    %2712 = vmatprep.subr.bf16.mxu0 0
    %2713 = vmatpush1.bf16.msra.mxu0 0
    %2714 = vmatprep.subr.bf16.mxu0 0
    %2715 = vmatpush1.bf16.msra.mxu0 0
    %2716 = vmatprep.subr.bf16.mxu0 0
    %2717 = vmatpush1.bf16.msra.mxu0 0
    %2718 = vmatprep.subr.bf16.mxu0 0
    %2719 = vmatpush1.bf16.msra.mxu0 0
    %2720 = vmatprep.subr.bf16.mxu0 0
    %2721 = vmatpush1.bf16.msra.mxu0 0
    %2722 = vmatprep.subr.bf16.mxu0 0
    %2723 = vmatpush1.bf16.msra.mxu0 0
    %2724 = vmatprep.subr.bf16.mxu0 0
    %2725 = vmatpush1.bf16.msra.mxu0 0
    %2726 = vmatprep.mubr.bf16.mxu0 0
    %2727 = vmatmul.mubr.bf16.gmra.mrb[0].mxu0 %v2683
    %v2728 = vpop.f32.mrb[0].mxu0
    %v2729 = vadd.f32 %v2668, %v2728
    %v2730 = vpop.f32.mrb[0].mxu0
    %v2731 = vpop.f32.mrb[0].mxu0
    %v2732 = vadd.f32 %v2668, %v2731
    %v2733 = vpop.f32.mrb[0].mxu0
    %2734 = vmatprep.mubr.bf16.mxu0 0
    %2735 = vmatmul.mubr.bf16.gmra.mrb[0].mxu0 %v2686
    %v2736 = vpop.f32.mrb[0].mxu0
    %v2737 = vadd.f32 %v2668, %v2736
    %v2738 = vpop.f32.mrb[0].mxu0
    %v2739 = vpop.f32.mrb[0].mxu0
    %v2740 = vadd.f32 %v2668, %v2739
    %v2741 = vpop.f32.mrb[0].mxu0
    %2742 = vmatprep.mubr.bf16.mxu0 0
    %2743 = vmatmul.mubr.bf16.gmra.mrb[0].mxu0 %v2689
    %v2744 = vpop.f32.mrb[0].mxu0
    %v2745 = vadd.f32 %v2668, %v2744
    %v2746 = vpop.f32.mrb[0].mxu0
    %v2747 = vpop.f32.mrb[0].mxu0
    %v2748 = vadd.f32 %v2668, %v2747
    %v2749 = vpop.f32.mrb[0].mxu0
    %2750 = vmatprep.mubr.bf16.mxu0 0
    %2751 = vmatmul.mubr.bf16.gmra.mrb[0].mxu0 %v2692
    %v2752 = vpop.f32.mrb[0].mxu0
    %v2753 = vadd.f32 %v2668, %v2752
    %v2754 = vpop.f32.mrb[0].mxu0
    %v2755 = vpop.f32.mrb[0].mxu0
    %v2756 = vadd.f32 %v2668, %v2755
    %v2757 = vpop.f32.mrb[0].mxu0
    %2758 = vdwg.mxu0
    %v2759 = vmul.f32 %v2630, 0.25
    %v2760 = vmul.f32 %v2633, 0.25
    %v2761 = vmul.f32 %v2638, 0.25
    %v2762 = vmul.f32 %v2641, 0.25
    %v2763 = vmul.f32 %v2646, 0.25
    %v2764 = vmul.f32 %v2649, 0.25
    %v2765 = vmul.f32 %v2654, 0.25
    %v2766 = vmul.f32 %v2657, 0.25
    %v2767 = vpack.c.bf16 %v2760, %v2759
    %v2768 = vpack.c.bf16 %v2762, %v2761
    %v2769 = vpack.c.bf16 %v2764, %v2763
    %v2770 = vpack.c.bf16 %v2766, %v2765
    %2775 = vrot.lane.b32.xlu0 %v2767, 112
    %v2776 = vpop.permute.xlu0 %2775
    %2777 = vrot.lane.b32.xlu0 %v2768, 112
    %v2778 = vpop.permute.xlu0 %2777
    %2779 = vrot.lane.b32.xlu0 %v2769, 112
    %v2780 = vpop.permute.xlu0 %2779
    %2781 = vrot.lane.b32.xlu0 %v2770, 112
    %v2782 = vpop.permute.xlu0 %2781
    %2783 = vrot.lane.b32.xlu0 %v2767, 96
    %v2784 = vpop.permute.xlu0 %2783
    %2785 = vrot.lane.b32.xlu0 %v2768, 96
    %v2786 = vpop.permute.xlu0 %2785
    %2787 = vrot.lane.b32.xlu0 %v2769, 96
    %v2788 = vpop.permute.xlu0 %2787
    %2789 = vrot.lane.b32.xlu0 %v2770, 96
    %v2790 = vpop.permute.xlu0 %2789
    %2791 = vrot.lane.b32.xlu0 %v2767, 80
    %v2792 = vpop.permute.xlu0 %2791
    %2793 = vrot.lane.b32.xlu0 %v2768, 80
    %v2794 = vpop.permute.xlu0 %2793
    %2795 = vrot.lane.b32.xlu0 %v2769, 80
    %v2796 = vpop.permute.xlu0 %2795
    %2797 = vrot.lane.b32.xlu0 %v2770, 80
    %v2798 = vpop.permute.xlu0 %2797
    %v2799 = vpack.c.bf16 %v2732, %v2729
    %v2800 = vpack.c.bf16 %v2740, %v2737
    %v2801 = vpack.c.bf16 %v2748, %v2745
    %v2802 = vpack.c.bf16 %v2756, %v2753
    %2807 = vrot.lane.b32.xlu0 %v2799, 112
    %v2808 = vpop.permute.xlu0 %2807
    %2809 = vrot.lane.b32.xlu0 %v2800, 112
    %v2810 = vpop.permute.xlu0 %2809
    %2811 = vrot.lane.b32.xlu0 %v2801, 112
    %v2812 = vpop.permute.xlu0 %2811
    %2813 = vrot.lane.b32.xlu0 %v2802, 112
    %v2814 = vpop.permute.xlu0 %2813
    %2815 = vrot.lane.b32.xlu0 %v2799, 96
    %v2816 = vpop.permute.xlu0 %2815
    %2817 = vrot.lane.b32.xlu0 %v2800, 96
    %v2818 = vpop.permute.xlu0 %2817
    %2819 = vrot.lane.b32.xlu0 %v2801, 96
    %v2820 = vpop.permute.xlu0 %2819
    %2821 = vrot.lane.b32.xlu0 %v2802, 96
    %v2822 = vpop.permute.xlu0 %2821
    %2823 = vrot.lane.b32.xlu0 %v2799, 80
    %v2824 = vpop.permute.xlu0 %2823
    %2825 = vrot.lane.b32.xlu0 %v2800, 80
    %v2826 = vpop.permute.xlu0 %2825
    %2827 = vrot.lane.b32.xlu0 %v2801, 80
    %v2828 = vpop.permute.xlu0 %2827
    %2829 = vrot.lane.b32.xlu0 %v2802, 80
    %v2830 = vpop.permute.xlu0 %2829
    %v2832 = vsel %vm810, %v2767, 0
    %v2835 = vsel %vm810, %v2768, 0
    %v2838 = vsel %vm810, %v2799, 0
    %v2841 = vsel %vm810, %v2800, 0
    %2843 = vmatprep.subr.bf16.mxu0 0
    %2844 = vmatpush1.bf16.xpose.msra.mxu0 %v2838
    %2845 = vmatprep.subr.bf16.mxu0 0
    %2846 = vmatpush1.bf16.xpose.msra.mxu0 %v2841
    %2847 = vmatprep.subr.bf16.mxu0 0
    %2848 = vmatpush1.bf16.xpose.msra.mxu0 0
    %2849 = vmatprep.subr.bf16.mxu0 0
    %2850 = vmatpush1.bf16.xpose.msra.mxu0 0
    %2851 = vmatprep.subr.bf16.mxu0 0
    %2852 = vmatpush1.bf16.xpose.msra.mxu0 0
    %2853 = vmatprep.subr.bf16.mxu0 0
    %2854 = vmatpush1.bf16.xpose.msra.mxu0 0
    %2855 = vmatprep.subr.bf16.mxu0 0
    %2856 = vmatpush1.bf16.xpose.msra.mxu0 0
    %2857 = vmatprep.subr.bf16.mxu0 0
    %2858 = vmatpush1.bf16.xpose.msra.mxu0 0
    %2859 = vmatprep.subr.bf16.mxu0 0
    %2860 = vmatpush1.bf16.xpose.msra.mxu0 0
    %2861 = vmatprep.subr.bf16.mxu0 0
    %2862 = vmatpush1.bf16.xpose.msra.mxu0 0
    %2863 = vmatprep.subr.bf16.mxu0 0
    %2864 = vmatpush1.bf16.xpose.msra.mxu0 0
    %2865 = vmatprep.subr.bf16.mxu0 0
    %2866 = vmatpush1.bf16.xpose.msra.mxu0 0
    %2867 = vmatprep.subr.bf16.mxu0 0
    %2868 = vmatpush1.bf16.xpose.msra.mxu0 0
    %2869 = vmatprep.subr.bf16.mxu0 0
    %2870 = vmatpush1.bf16.xpose.msra.mxu0 0
    %2871 = vmatprep.subr.bf16.mxu0 0
    %2872 = vmatpush1.bf16.xpose.msra.mxu0 0
    %2873 = vmatprep.subr.bf16.mxu0 0
    %2874 = vmatpush1.bf16.xpose.msra.mxu0 0
    %2875 = vmatprep.mubr.bf16.mxu0 0
    %2876 = vmatmul.mubr.bf16.gmra.mrb[0].mxu0 %v2832
    %v2877 = vpop.f32.mrb[0].mxu0
    %v2878 = vadd.f32 0.0, %v2877
    %v2879 = vpop.f32.mrb[0].mxu0
    %v2880 = vpop.f32.mrb[0].mxu0
    %v2881 = vadd.f32 0.0, %v2880
    %v2882 = vpop.f32.mrb[0].mxu0
    %2883 = vmatprep.mubr.bf16.mxu0 0
    %2884 = vmatmul.mubr.bf16.gmra.mrb[0].mxu0 %v2835
    %v2885 = vpop.f32.mrb[0].mxu0
    %v2886 = vadd.f32 0.0, %v2885
    %v2887 = vpop.f32.mrb[0].mxu0
    %v2888 = vpop.f32.mrb[0].mxu0
    %v2889 = vadd.f32 0.0, %v2888
    %v2890 = vpop.f32.mrb[0].mxu0
    %2891 = vdwg.mxu0
    %v2893 = vsel %vm810, %v2776, 0
    %v2896 = vsel %vm810, %v2778, 0
    %v2899 = vsel %vm810, %v2808, 0
    %v2902 = vsel %vm810, %v2810, 0
    %2904 = vmatprep.subr.bf16.mxu0 0
    %2905 = vmatpush1.bf16.xpose.msra.mxu0 %v2899
    %2906 = vmatprep.subr.bf16.mxu0 0
    %2907 = vmatpush1.bf16.xpose.msra.mxu0 %v2902
    %2908 = vmatprep.subr.bf16.mxu0 0
    %2909 = vmatpush1.bf16.xpose.msra.mxu0 0
    %2910 = vmatprep.subr.bf16.mxu0 0
    %2911 = vmatpush1.bf16.xpose.msra.mxu0 0
    %2912 = vmatprep.subr.bf16.mxu0 0
    %2913 = vmatpush1.bf16.xpose.msra.mxu0 0
    %2914 = vmatprep.subr.bf16.mxu0 0
    %2915 = vmatpush1.bf16.xpose.msra.mxu0 0
    %2916 = vmatprep.subr.bf16.mxu0 0
    %2917 = vmatpush1.bf16.xpose.msra.mxu0 0
    %2918 = vmatprep.subr.bf16.mxu0 0
    %2919 = vmatpush1.bf16.xpose.msra.mxu0 0
    %2920 = vmatprep.subr.bf16.mxu0 0
    %2921 = vmatpush1.bf16.xpose.msra.mxu0 0
    %2922 = vmatprep.subr.bf16.mxu0 0
    %2923 = vmatpush1.bf16.xpose.msra.mxu0 0
    %2924 = vmatprep.subr.bf16.mxu0 0
    %2925 = vmatpush1.bf16.xpose.msra.mxu0 0
    %2926 = vmatprep.subr.bf16.mxu0 0
    %2927 = vmatpush1.bf16.xpose.msra.mxu0 0
    %2928 = vmatprep.subr.bf16.mxu0 0
    %2929 = vmatpush1.bf16.xpose.msra.mxu0 0
    %2930 = vmatprep.subr.bf16.mxu0 0
    %2931 = vmatpush1.bf16.xpose.msra.mxu0 0
    %2932 = vmatprep.subr.bf16.mxu0 0
    %2933 = vmatpush1.bf16.xpose.msra.mxu0 0
    %2934 = vmatprep.subr.bf16.mxu0 0
    %2935 = vmatpush1.bf16.xpose.msra.mxu0 0
    %2936 = vmatprep.mubr.bf16.mxu0 0
    %2937 = vmatmul.mubr.bf16.gmra.mrb[0].mxu0 %v2893
    %v2938 = vpop.f32.mrb[0].mxu0
    %v2939 = vadd.f32 0.0, %v2938
    %v2940 = vpop.f32.mrb[0].mxu0
    %v2941 = vpop.f32.mrb[0].mxu0
    %v2942 = vadd.f32 0.0, %v2941
    %v2943 = vpop.f32.mrb[0].mxu0
    %2944 = vmatprep.mubr.bf16.mxu0 0
    %2945 = vmatmul.mubr.bf16.gmra.mrb[0].mxu0 %v2896
    %v2946 = vpop.f32.mrb[0].mxu0
    %v2947 = vadd.f32 0.0, %v2946
    %v2948 = vpop.f32.mrb[0].mxu0
    %v2949 = vpop.f32.mrb[0].mxu0
    %v2950 = vadd.f32 0.0, %v2949
    %v2951 = vpop.f32.mrb[0].mxu0
    %2952 = vdwg.mxu0
    %v2954 = vsel %vm810, %v2784, 0
    %v2957 = vsel %vm810, %v2786, 0
    %v2960 = vsel %vm810, %v2816, 0
    %v2963 = vsel %vm810, %v2818, 0
    %2965 = vmatprep.subr.bf16.mxu0 0
    %2966 = vmatpush1.bf16.xpose.msra.mxu0 %v2960
    %2967 = vmatprep.subr.bf16.mxu0 0
    %2968 = vmatpush1.bf16.xpose.msra.mxu0 %v2963
    %2969 = vmatprep.subr.bf16.mxu0 0
    %2970 = vmatpush1.bf16.xpose.msra.mxu0 0
    %2971 = vmatprep.subr.bf16.mxu0 0
    %2972 = vmatpush1.bf16.xpose.msra.mxu0 0
    %2973 = vmatprep.subr.bf16.mxu0 0
    %2974 = vmatpush1.bf16.xpose.msra.mxu0 0
    %2975 = vmatprep.subr.bf16.mxu0 0
    %2976 = vmatpush1.bf16.xpose.msra.mxu0 0
    %2977 = vmatprep.subr.bf16.mxu0 0
    %2978 = vmatpush1.bf16.xpose.msra.mxu0 0
    %2979 = vmatprep.subr.bf16.mxu0 0
    %2980 = vmatpush1.bf16.xpose.msra.mxu0 0
    %2981 = vmatprep.subr.bf16.mxu0 0
    %2982 = vmatpush1.bf16.xpose.msra.mxu0 0
    %2983 = vmatprep.subr.bf16.mxu0 0
    %2984 = vmatpush1.bf16.xpose.msra.mxu0 0
    %2985 = vmatprep.subr.bf16.mxu0 0
    %2986 = vmatpush1.bf16.xpose.msra.mxu0 0
    %2987 = vmatprep.subr.bf16.mxu0 0
    %2988 = vmatpush1.bf16.xpose.msra.mxu0 0
    %2989 = vmatprep.subr.bf16.mxu0 0
    %2990 = vmatpush1.bf16.xpose.msra.mxu0 0
    %2991 = vmatprep.subr.bf16.mxu0 0
    %2992 = vmatpush1.bf16.xpose.msra.mxu0 0
    %2993 = vmatprep.subr.bf16.mxu0 0
    %2994 = vmatpush1.bf16.xpose.msra.mxu0 0
    %2995 = vmatprep.subr.bf16.mxu0 0
    %2996 = vmatpush1.bf16.xpose.msra.mxu0 0
    %2997 = vmatprep.mubr.bf16.mxu0 0
    %2998 = vmatmul.mubr.bf16.gmra.mrb[0].mxu0 %v2954
    %v2999 = vpop.f32.mrb[0].mxu0
    %v3000 = vadd.f32 0.0, %v2999
    %v3001 = vpop.f32.mrb[0].mxu0
    %v3002 = vpop.f32.mrb[0].mxu0
    %v3003 = vadd.f32 0.0, %v3002
    %v3004 = vpop.f32.mrb[0].mxu0
    %3005 = vmatprep.mubr.bf16.mxu0 0
    %3006 = vmatmul.mubr.bf16.gmra.mrb[0].mxu0 %v2957
    %v3007 = vpop.f32.mrb[0].mxu0
    %v3008 = vadd.f32 0.0, %v3007
    %v3009 = vpop.f32.mrb[0].mxu0
    %v3010 = vpop.f32.mrb[0].mxu0
    %v3011 = vadd.f32 0.0, %v3010
    %v3012 = vpop.f32.mrb[0].mxu0
    %3013 = vdwg.mxu0
    %v3015 = vsel %vm810, %v2792, 0
    %v3018 = vsel %vm810, %v2794, 0
    %v3021 = vsel %vm810, %v2824, 0
    %v3024 = vsel %vm810, %v2826, 0
    %3026 = vmatprep.subr.bf16.mxu0 0
    %3027 = vmatpush1.bf16.xpose.msra.mxu0 %v3021
    %3028 = vmatprep.subr.bf16.mxu0 0
    %3029 = vmatpush1.bf16.xpose.msra.mxu0 %v3024
    %3030 = vmatprep.subr.bf16.mxu0 0
    %3031 = vmatpush1.bf16.xpose.msra.mxu0 0
    %3032 = vmatprep.subr.bf16.mxu0 0
    %3033 = vmatpush1.bf16.xpose.msra.mxu0 0
    %3034 = vmatprep.subr.bf16.mxu0 0
    %3035 = vmatpush1.bf16.xpose.msra.mxu0 0
    %3036 = vmatprep.subr.bf16.mxu0 0
    %3037 = vmatpush1.bf16.xpose.msra.mxu0 0
    %3038 = vmatprep.subr.bf16.mxu0 0
    %3039 = vmatpush1.bf16.xpose.msra.mxu0 0
    %3040 = vmatprep.subr.bf16.mxu0 0
    %3041 = vmatpush1.bf16.xpose.msra.mxu0 0
    %3042 = vmatprep.subr.bf16.mxu0 0
    %3043 = vmatpush1.bf16.xpose.msra.mxu0 0
    %3044 = vmatprep.subr.bf16.mxu0 0
    %3045 = vmatpush1.bf16.xpose.msra.mxu0 0
    %3046 = vmatprep.subr.bf16.mxu0 0
    %3047 = vmatpush1.bf16.xpose.msra.mxu0 0
    %3048 = vmatprep.subr.bf16.mxu0 0
    %3049 = vmatpush1.bf16.xpose.msra.mxu0 0
    %3050 = vmatprep.subr.bf16.mxu0 0
    %3051 = vmatpush1.bf16.xpose.msra.mxu0 0
    %3052 = vmatprep.subr.bf16.mxu0 0
    %3053 = vmatpush1.bf16.xpose.msra.mxu0 0
    %3054 = vmatprep.subr.bf16.mxu0 0
    %3055 = vmatpush1.bf16.xpose.msra.mxu0 0
    %3056 = vmatprep.subr.bf16.mxu0 0
    %3057 = vmatpush1.bf16.xpose.msra.mxu0 0
    %3058 = vmatprep.mubr.bf16.mxu0 0
    %3059 = vmatmul.mubr.bf16.gmra.mrb[0].mxu0 %v3015
    %v3060 = vpop.f32.mrb[0].mxu0
    %v3061 = vadd.f32 0.0, %v3060
    %v3062 = vpop.f32.mrb[0].mxu0
    %v3063 = vpop.f32.mrb[0].mxu0
    %v3064 = vadd.f32 0.0, %v3063
    %v3065 = vpop.f32.mrb[0].mxu0
    %3066 = vmatprep.mubr.bf16.mxu0 0
    %3067 = vmatmul.mubr.bf16.gmra.mrb[0].mxu0 %v3018
    %v3068 = vpop.f32.mrb[0].mxu0
    %v3069 = vadd.f32 0.0, %v3068
    %v3070 = vpop.f32.mrb[0].mxu0
    %v3071 = vpop.f32.mrb[0].mxu0
    %v3072 = vadd.f32 0.0, %v3071
    %v3073 = vpop.f32.mrb[0].mxu0
    %3074 = vdwg.mxu0
    %v3076 = vsel %vm810, %v2769, 0
    %v3079 = vsel %vm810, %v2770, 0
    %v3082 = vsel %vm810, %v2801, 0
    %v3085 = vsel %vm810, %v2802, 0
    %3087 = vmatprep.subr.bf16.mxu0 0
    %3088 = vmatpush1.bf16.xpose.msra.mxu0 %v3082
    %3089 = vmatprep.subr.bf16.mxu0 0
    %3090 = vmatpush1.bf16.xpose.msra.mxu0 %v3085
    %3091 = vmatprep.subr.bf16.mxu0 0
    %3092 = vmatpush1.bf16.xpose.msra.mxu0 0
    %3093 = vmatprep.subr.bf16.mxu0 0
    %3094 = vmatpush1.bf16.xpose.msra.mxu0 0
    %3095 = vmatprep.subr.bf16.mxu0 0
    %3096 = vmatpush1.bf16.xpose.msra.mxu0 0
    %3097 = vmatprep.subr.bf16.mxu0 0
    %3098 = vmatpush1.bf16.xpose.msra.mxu0 0
    %3099 = vmatprep.subr.bf16.mxu0 0
    %3100 = vmatpush1.bf16.xpose.msra.mxu0 0
    %3101 = vmatprep.subr.bf16.mxu0 0
    %3102 = vmatpush1.bf16.xpose.msra.mxu0 0
    %3103 = vmatprep.subr.bf16.mxu0 0
    %3104 = vmatpush1.bf16.xpose.msra.mxu0 0
    %3105 = vmatprep.subr.bf16.mxu0 0
    %3106 = vmatpush1.bf16.xpose.msra.mxu0 0
    %3107 = vmatprep.subr.bf16.mxu0 0
    %3108 = vmatpush1.bf16.xpose.msra.mxu0 0
    %3109 = vmatprep.subr.bf16.mxu0 0
    %3110 = vmatpush1.bf16.xpose.msra.mxu0 0
    %3111 = vmatprep.subr.bf16.mxu0 0
    %3112 = vmatpush1.bf16.xpose.msra.mxu0 0
    %3113 = vmatprep.subr.bf16.mxu0 0
    %3114 = vmatpush1.bf16.xpose.msra.mxu0 0
    %3115 = vmatprep.subr.bf16.mxu0 0
    %3116 = vmatpush1.bf16.xpose.msra.mxu0 0
    %3117 = vmatprep.subr.bf16.mxu0 0
    %3118 = vmatpush1.bf16.xpose.msra.mxu0 0
    %3119 = vmatprep.mubr.bf16.mxu0 0
    %3120 = vmatmul.mubr.bf16.gmra.mrb[0].mxu0 %v3076
    %v3121 = vpop.f32.mrb[0].mxu0
    %v3122 = vadd.f32 0.0, %v3121
    %v3123 = vpop.f32.mrb[0].mxu0
    %v3124 = vpop.f32.mrb[0].mxu0
    %v3125 = vadd.f32 0.0, %v3124
    %v3126 = vpop.f32.mrb[0].mxu0
    %3127 = vmatprep.mubr.bf16.mxu0 0
    %3128 = vmatmul.mubr.bf16.gmra.mrb[0].mxu0 %v3079
    %v3129 = vpop.f32.mrb[0].mxu0
    %v3130 = vadd.f32 0.0, %v3129
    %v3131 = vpop.f32.mrb[0].mxu0
    %v3132 = vpop.f32.mrb[0].mxu0
    %v3133 = vadd.f32 0.0, %v3132
    %v3134 = vpop.f32.mrb[0].mxu0
    %3135 = vdwg.mxu0
    %v3137 = vsel %vm810, %v2780, 0
    %v3140 = vsel %vm810, %v2782, 0
    %v3143 = vsel %vm810, %v2812, 0
    %v3146 = vsel %vm810, %v2814, 0
    %3148 = vmatprep.subr.bf16.mxu0 0
    %3149 = vmatpush1.bf16.xpose.msra.mxu0 %v3143
    %3150 = vmatprep.subr.bf16.mxu0 0
    %3151 = vmatpush1.bf16.xpose.msra.mxu0 %v3146
    %3152 = vmatprep.subr.bf16.mxu0 0
    %3153 = vmatpush1.bf16.xpose.msra.mxu0 0
    %3154 = vmatprep.subr.bf16.mxu0 0
    %3155 = vmatpush1.bf16.xpose.msra.mxu0 0
    %3156 = vmatprep.subr.bf16.mxu0 0
    %3157 = vmatpush1.bf16.xpose.msra.mxu0 0
    %3158 = vmatprep.subr.bf16.mxu0 0
    %3159 = vmatpush1.bf16.xpose.msra.mxu0 0
    %3160 = vmatprep.subr.bf16.mxu0 0
    %3161 = vmatpush1.bf16.xpose.msra.mxu0 0
    %3162 = vmatprep.subr.bf16.mxu0 0
    %3163 = vmatpush1.bf16.xpose.msra.mxu0 0
    %3164 = vmatprep.subr.bf16.mxu0 0
    %3165 = vmatpush1.bf16.xpose.msra.mxu0 0
    %3166 = vmatprep.subr.bf16.mxu0 0
    %3167 = vmatpush1.bf16.xpose.msra.mxu0 0
    %3168 = vmatprep.subr.bf16.mxu0 0
    %3169 = vmatpush1.bf16.xpose.msra.mxu0 0
    %3170 = vmatprep.subr.bf16.mxu0 0
    %3171 = vmatpush1.bf16.xpose.msra.mxu0 0
    %3172 = vmatprep.subr.bf16.mxu0 0
    %3173 = vmatpush1.bf16.xpose.msra.mxu0 0
    %3174 = vmatprep.subr.bf16.mxu0 0
    %3175 = vmatpush1.bf16.xpose.msra.mxu0 0
    %3176 = vmatprep.subr.bf16.mxu0 0
    %3177 = vmatpush1.bf16.xpose.msra.mxu0 0
    %3178 = vmatprep.subr.bf16.mxu0 0
    %3179 = vmatpush1.bf16.xpose.msra.mxu0 0
    %3180 = vmatprep.mubr.bf16.mxu0 0
    %3181 = vmatmul.mubr.bf16.gmra.mrb[0].mxu0 %v3137
    %v3182 = vpop.f32.mrb[0].mxu0
    %v3183 = vadd.f32 0.0, %v3182
    %v3184 = vpop.f32.mrb[0].mxu0
    %v3185 = vpop.f32.mrb[0].mxu0
    %v3186 = vadd.f32 0.0, %v3185
    %v3187 = vpop.f32.mrb[0].mxu0
    %3188 = vmatprep.mubr.bf16.mxu0 0
    %3189 = vmatmul.mubr.bf16.gmra.mrb[0].mxu0 %v3140
    %v3190 = vpop.f32.mrb[0].mxu0
    %v3191 = vadd.f32 0.0, %v3190
    %v3192 = vpop.f32.mrb[0].mxu0
    %v3193 = vpop.f32.mrb[0].mxu0
    %v3194 = vadd.f32 0.0, %v3193
    %v3195 = vpop.f32.mrb[0].mxu0
    %3196 = vdwg.mxu0
    %v3198 = vsel %vm810, %v2788, 0
    %v3201 = vsel %vm810, %v2790, 0
    %v3204 = vsel %vm810, %v2820, 0
    %v3207 = vsel %vm810, %v2822, 0
    %3209 = vmatprep.subr.bf16.mxu0 0
    %3210 = vmatpush1.bf16.xpose.msra.mxu0 %v3204
    %3211 = vmatprep.subr.bf16.mxu0 0
    %3212 = vmatpush1.bf16.xpose.msra.mxu0 %v3207
    %3213 = vmatprep.subr.bf16.mxu0 0
    %3214 = vmatpush1.bf16.xpose.msra.mxu0 0
    %3215 = vmatprep.subr.bf16.mxu0 0
    %3216 = vmatpush1.bf16.xpose.msra.mxu0 0
    %3217 = vmatprep.subr.bf16.mxu0 0
    %3218 = vmatpush1.bf16.xpose.msra.mxu0 0
    %3219 = vmatprep.subr.bf16.mxu0 0
    %3220 = vmatpush1.bf16.xpose.msra.mxu0 0
    %3221 = vmatprep.subr.bf16.mxu0 0
    %3222 = vmatpush1.bf16.xpose.msra.mxu0 0
    %3223 = vmatprep.subr.bf16.mxu0 0
    %3224 = vmatpush1.bf16.xpose.msra.mxu0 0
    %3225 = vmatprep.subr.bf16.mxu0 0
    %3226 = vmatpush1.bf16.xpose.msra.mxu0 0
    %3227 = vmatprep.subr.bf16.mxu0 0
    %3228 = vmatpush1.bf16.xpose.msra.mxu0 0
    %3229 = vmatprep.subr.bf16.mxu0 0
    %3230 = vmatpush1.bf16.xpose.msra.mxu0 0
    %3231 = vmatprep.subr.bf16.mxu0 0
    %3232 = vmatpush1.bf16.xpose.msra.mxu0 0
    %3233 = vmatprep.subr.bf16.mxu0 0
    %3234 = vmatpush1.bf16.xpose.msra.mxu0 0
    %3235 = vmatprep.subr.bf16.mxu0 0
    %3236 = vmatpush1.bf16.xpose.msra.mxu0 0
    %3237 = vmatprep.subr.bf16.mxu0 0
    %3238 = vmatpush1.bf16.xpose.msra.mxu0 0
    %3239 = vmatprep.subr.bf16.mxu0 0
    %3240 = vmatpush1.bf16.xpose.msra.mxu0 0
    %3241 = vmatprep.mubr.bf16.mxu0 0
    %3242 = vmatmul.mubr.bf16.gmra.mrb[0].mxu0 %v3198
    %v3243 = vpop.f32.mrb[0].mxu0
    %v3244 = vadd.f32 0.0, %v3243
    %v3245 = vpop.f32.mrb[0].mxu0
    %v3246 = vpop.f32.mrb[0].mxu0
    %v3247 = vadd.f32 0.0, %v3246
    %v3248 = vpop.f32.mrb[0].mxu0
    %3249 = vmatprep.mubr.bf16.mxu0 0
    %3250 = vmatmul.mubr.bf16.gmra.mrb[0].mxu0 %v3201
    %v3251 = vpop.f32.mrb[0].mxu0
    %v3252 = vadd.f32 0.0, %v3251
    %v3253 = vpop.f32.mrb[0].mxu0
    %v3254 = vpop.f32.mrb[0].mxu0
    %v3255 = vadd.f32 0.0, %v3254
    %v3256 = vpop.f32.mrb[0].mxu0
    %3257 = vdwg.mxu0
    %v3259 = vsel %vm810, %v2796, 0
    %v3262 = vsel %vm810, %v2798, 0
    %v3265 = vsel %vm810, %v2828, 0
    %v3268 = vsel %vm810, %v2830, 0
    %3270 = vmatprep.subr.bf16.mxu0 0
    %3271 = vmatpush1.bf16.xpose.msra.mxu0 %v3265
    %3272 = vmatprep.subr.bf16.mxu0 0
    %3273 = vmatpush1.bf16.xpose.msra.mxu0 %v3268
    %3274 = vmatprep.subr.bf16.mxu0 0
    %3275 = vmatpush1.bf16.xpose.msra.mxu0 0
    %3276 = vmatprep.subr.bf16.mxu0 0
    %3277 = vmatpush1.bf16.xpose.msra.mxu0 0
    %3278 = vmatprep.subr.bf16.mxu0 0
    %3279 = vmatpush1.bf16.xpose.msra.mxu0 0
    %3280 = vmatprep.subr.bf16.mxu0 0
    %3281 = vmatpush1.bf16.xpose.msra.mxu0 0
    %3282 = vmatprep.subr.bf16.mxu0 0
    %3283 = vmatpush1.bf16.xpose.msra.mxu0 0
    %3284 = vmatprep.subr.bf16.mxu0 0
    %3285 = vmatpush1.bf16.xpose.msra.mxu0 0
    %3286 = vmatprep.subr.bf16.mxu0 0
    %3287 = vmatpush1.bf16.xpose.msra.mxu0 0
    %3288 = vmatprep.subr.bf16.mxu0 0
    %3289 = vmatpush1.bf16.xpose.msra.mxu0 0
    %3290 = vmatprep.subr.bf16.mxu0 0
    %3291 = vmatpush1.bf16.xpose.msra.mxu0 0
    %3292 = vmatprep.subr.bf16.mxu0 0
    %3293 = vmatpush1.bf16.xpose.msra.mxu0 0
    %3294 = vmatprep.subr.bf16.mxu0 0
    %3295 = vmatpush1.bf16.xpose.msra.mxu0 0
    %3296 = vmatprep.subr.bf16.mxu0 0
    %3297 = vmatpush1.bf16.xpose.msra.mxu0 0
    %3298 = vmatprep.subr.bf16.mxu0 0
    %3299 = vmatpush1.bf16.xpose.msra.mxu0 0
    %3300 = vmatprep.subr.bf16.mxu0 0
    %3301 = vmatpush1.bf16.xpose.msra.mxu0 0
    %3302 = vmatprep.mubr.bf16.mxu0 0
    %3303 = vmatmul.mubr.bf16.gmra.mrb[0].mxu0 %v3259
    %v3304 = vpop.f32.mrb[0].mxu0
    %v3305 = vadd.f32 0.0, %v3304
    %v3306 = vpop.f32.mrb[0].mxu0
    %v3307 = vpop.f32.mrb[0].mxu0
    %v3308 = vadd.f32 0.0, %v3307
    %v3309 = vpop.f32.mrb[0].mxu0
    %3310 = vmatprep.mubr.bf16.mxu0 0
    %3311 = vmatmul.mubr.bf16.gmra.mrb[0].mxu0 %v3262
    %v3312 = vpop.f32.mrb[0].mxu0
    %v3313 = vadd.f32 0.0, %v3312
    %v3314 = vpop.f32.mrb[0].mxu0
    %v3315 = vpop.f32.mrb[0].mxu0
    %v3316 = vadd.f32 0.0, %v3315
    %v3317 = vpop.f32.mrb[0].mxu0
    %3318 = vdwg.mxu0
    %v3319 = vadd.f32 %v2878, %v531
    %v3320 = vadd.f32 %v2881, %v532
    %v3321 = vadd.f32 %v2886, %v533
    %v3322 = vadd.f32 %v2889, %v534
    %v3323 = vadd.f32 %v2939, %v531
    %v3324 = vadd.f32 %v2942, %v532
    %v3325 = vadd.f32 %v2947, %v533
    %v3326 = vadd.f32 %v2950, %v534
    %v3327 = vadd.f32 %v3000, %v531
    %v3328 = vadd.f32 %v3003, %v532
    %v3329 = vadd.f32 %v3008, %v533
    %v3330 = vadd.f32 %v3011, %v534
    %v3331 = vadd.f32 %v3061, %v531
    %v3332 = vadd.f32 %v3064, %v532
    %v3333 = vadd.f32 %v3069, %v533
    %v3334 = vadd.f32 %v3072, %v534
    %v3335 = vadd.f32 %v3122, %v535
    %v3336 = vadd.f32 %v3125, %v536
    %v3337 = vadd.f32 %v3130, %v537
    %v3338 = vadd.f32 %v3133, %v538
    %v3339 = vadd.f32 %v3183, %v535
    %v3340 = vadd.f32 %v3186, %v536
    %v3341 = vadd.f32 %v3191, %v537
    %v3342 = vadd.f32 %v3194, %v538
    %v3343 = vadd.f32 %v3244, %v535
    %v3344 = vadd.f32 %v3247, %v536
    %v3345 = vadd.f32 %v3252, %v537
    %v3346 = vadd.f32 %v3255, %v538
    %v3347 = vadd.f32 %v3305, %v535
    %v3348 = vadd.f32 %v3308, %v536
    %v3349 = vadd.f32 %v3313, %v537
    %v3350 = vadd.f32 %v3316, %v538
    %v3351 = vsel %vm561, %v3319, -inf
    %3352 = vmax.xlane.f32.xlu0 %v3351
    %v3353 = vpop.xlane.xlu0 %3352
    %v3354 = vsel %vm561, %v3320, -inf
    %3355 = vmax.xlane.f32.xlu0 %v3354
    %v3356 = vpop.xlane.xlu0 %3355
    %v3357 = vsel %vm561, %v3321, -inf
    %3358 = vmax.xlane.f32.xlu0 %v3357
    %v3359 = vpop.xlane.xlu0 %3358
    %v3360 = vsel %vm561, %v3322, -inf
    %3361 = vmax.xlane.f32.xlu0 %v3360
    %v3362 = vpop.xlane.xlu0 %3361
    %v3363 = vsel %vm561, %v3323, -inf
    %3364 = vmax.xlane.f32.xlu0 %v3363
    %v3365 = vpop.xlane.xlu0 %3364
    %v3366 = vsel %vm561, %v3324, -inf
    %3367 = vmax.xlane.f32.xlu0 %v3366
    %v3368 = vpop.xlane.xlu0 %3367
    %v3369 = vsel %vm561, %v3325, -inf
    %3370 = vmax.xlane.f32.xlu0 %v3369
    %v3371 = vpop.xlane.xlu0 %3370
    %v3372 = vsel %vm561, %v3326, -inf
    %3373 = vmax.xlane.f32.xlu0 %v3372
    %v3374 = vpop.xlane.xlu0 %3373
    %v3375 = vsel %vm561, %v3327, -inf
    %3376 = vmax.xlane.f32.xlu0 %v3375
    %v3377 = vpop.xlane.xlu0 %3376
    %v3378 = vsel %vm561, %v3328, -inf
    %3379 = vmax.xlane.f32.xlu0 %v3378
    %v3380 = vpop.xlane.xlu0 %3379
    %v3381 = vsel %vm561, %v3329, -inf
    %3382 = vmax.xlane.f32.xlu0 %v3381
    %v3383 = vpop.xlane.xlu0 %3382
    %v3384 = vsel %vm561, %v3330, -inf
    %3385 = vmax.xlane.f32.xlu0 %v3384
    %v3386 = vpop.xlane.xlu0 %3385
    %v3387 = vsel %vm561, %v3331, -inf
    %3388 = vmax.xlane.f32.xlu0 %v3387
    %v3389 = vpop.xlane.xlu0 %3388
    %v3390 = vsel %vm561, %v3332, -inf
    %3391 = vmax.xlane.f32.xlu0 %v3390
    %v3392 = vpop.xlane.xlu0 %3391
    %v3393 = vsel %vm561, %v3333, -inf
    %3394 = vmax.xlane.f32.xlu0 %v3393
    %v3395 = vpop.xlane.xlu0 %3394
    %v3396 = vsel %vm561, %v3334, -inf
    %3397 = vmax.xlane.f32.xlu0 %v3396
    %v3398 = vpop.xlane.xlu0 %3397
    %v3399 = vsel %vm561, %v3335, -inf
    %3400 = vmax.xlane.f32.xlu0 %v3399
    %v3401 = vpop.xlane.xlu0 %3400
    %v3402 = vsel %vm561, %v3336, -inf
    %3403 = vmax.xlane.f32.xlu0 %v3402
    %v3404 = vpop.xlane.xlu0 %3403
    %v3405 = vsel %vm561, %v3337, -inf
    %3406 = vmax.xlane.f32.xlu0 %v3405
    %v3407 = vpop.xlane.xlu0 %3406
    %v3408 = vsel %vm561, %v3338, -inf
    %3409 = vmax.xlane.f32.xlu0 %v3408
    %v3410 = vpop.xlane.xlu0 %3409
    %v3411 = vsel %vm561, %v3339, -inf
    %3412 = vmax.xlane.f32.xlu0 %v3411
    %v3413 = vpop.xlane.xlu0 %3412
    %v3414 = vsel %vm561, %v3340, -inf
    %3415 = vmax.xlane.f32.xlu0 %v3414
    %v3416 = vpop.xlane.xlu0 %3415
    %v3417 = vsel %vm561, %v3341, -inf
    %3418 = vmax.xlane.f32.xlu0 %v3417
    %v3419 = vpop.xlane.xlu0 %3418
    %v3420 = vsel %vm561, %v3342, -inf
    %3421 = vmax.xlane.f32.xlu0 %v3420
    %v3422 = vpop.xlane.xlu0 %3421
    %v3423 = vsel %vm561, %v3343, -inf
    %3424 = vmax.xlane.f32.xlu0 %v3423
    %v3425 = vpop.xlane.xlu0 %3424
    %v3426 = vsel %vm561, %v3344, -inf
    %3427 = vmax.xlane.f32.xlu0 %v3426
    %v3428 = vpop.xlane.xlu0 %3427
    %v3429 = vsel %vm561, %v3345, -inf
    %3430 = vmax.xlane.f32.xlu0 %v3429
    %v3431 = vpop.xlane.xlu0 %3430
    %v3432 = vsel %vm561, %v3346, -inf
    %3433 = vmax.xlane.f32.xlu0 %v3432
    %v3434 = vpop.xlane.xlu0 %3433
    %v3435 = vsel %vm561, %v3347, -inf
    %3436 = vmax.xlane.f32.xlu0 %v3435
    %v3437 = vpop.xlane.xlu0 %3436
    %v3438 = vsel %vm561, %v3348, -inf
    %3439 = vmax.xlane.f32.xlu0 %v3438
    %v3440 = vpop.xlane.xlu0 %3439
    %v3441 = vsel %vm561, %v3349, -inf
    %3442 = vmax.xlane.f32.xlu0 %v3441
    %v3443 = vpop.xlane.xlu0 %3442
    %v3444 = vsel %vm561, %v3350, -inf
    %3445 = vmax.xlane.f32.xlu0 %v3444
    %v3446 = vpop.xlane.xlu0 %3445
    %v3447 = vsub.f32 %v3319, %v3353
    %v3448 = vsub.f32 %v3320, %v3356
    %v3449 = vsub.f32 %v3321, %v3359
    %v3450 = vsub.f32 %v3322, %v3362
    %v3451 = vsub.f32 %v3323, %v3365
    %v3452 = vsub.f32 %v3324, %v3368
    %v3453 = vsub.f32 %v3325, %v3371
    %v3454 = vsub.f32 %v3326, %v3374
    %v3455 = vsub.f32 %v3327, %v3377
    %v3456 = vsub.f32 %v3328, %v3380
    %v3457 = vsub.f32 %v3329, %v3383
    %v3458 = vsub.f32 %v3330, %v3386
    %v3459 = vsub.f32 %v3331, %v3389
    %v3460 = vsub.f32 %v3332, %v3392
    %v3461 = vsub.f32 %v3333, %v3395
    %v3462 = vsub.f32 %v3334, %v3398
    %v3463 = vsub.f32 %v3335, %v3401
    %v3464 = vsub.f32 %v3336, %v3404
    %v3465 = vsub.f32 %v3337, %v3407
    %v3466 = vsub.f32 %v3338, %v3410
    %v3467 = vsub.f32 %v3339, %v3413
    %v3468 = vsub.f32 %v3340, %v3416
    %v3469 = vsub.f32 %v3341, %v3419
    %v3470 = vsub.f32 %v3342, %v3422
    %v3471 = vsub.f32 %v3343, %v3425
    %v3472 = vsub.f32 %v3344, %v3428
    %v3473 = vsub.f32 %v3345, %v3431
    %v3474 = vsub.f32 %v3346, %v3434
    %v3475 = vsub.f32 %v3347, %v3437
    %v3476 = vsub.f32 %v3348, %v3440
    %v3477 = vsub.f32 %v3349, %v3443
    %v3478 = vsub.f32 %v3350, %v3446
    %v3479 = vmul.f32 %v3447, 1.442695
    %v3480 = vpow.pop %v3479
    %v3481 = vmul.f32 %v3448, 1.442695
    %v3482 = vpow.pop %v3481
    %v3483 = vmul.f32 %v3449, 1.442695
    %v3484 = vpow.pop %v3483
    %v3485 = vmul.f32 %v3450, 1.442695
    %v3486 = vpow.pop %v3485
    %v3487 = vmul.f32 %v3451, 1.442695
    %v3488 = vpow.pop %v3487
    %v3489 = vmul.f32 %v3452, 1.442695
    %v3490 = vpow.pop %v3489
    %v3491 = vmul.f32 %v3453, 1.442695
    %v3492 = vpow.pop %v3491
    %v3493 = vmul.f32 %v3454, 1.442695
    %v3494 = vpow.pop %v3493
    %v3495 = vmul.f32 %v3455, 1.442695
    %v3496 = vpow.pop %v3495
    %v3497 = vmul.f32 %v3456, 1.442695
    %v3498 = vpow.pop %v3497
    %v3499 = vmul.f32 %v3457, 1.442695
    %v3500 = vpow.pop %v3499
    %v3501 = vmul.f32 %v3458, 1.442695
    %v3502 = vpow.pop %v3501
    %v3503 = vmul.f32 %v3459, 1.442695
    %v3504 = vpow.pop %v3503
    %v3505 = vmul.f32 %v3460, 1.442695
    %v3506 = vpow.pop %v3505
    %v3507 = vmul.f32 %v3461, 1.442695
    %v3508 = vpow.pop %v3507
    %v3509 = vmul.f32 %v3462, 1.442695
    %v3510 = vpow.pop %v3509
    %v3511 = vmul.f32 %v3463, 1.442695
    %v3512 = vpow.pop %v3511
    %v3513 = vmul.f32 %v3464, 1.442695
    %v3514 = vpow.pop %v3513
    %v3515 = vmul.f32 %v3465, 1.442695
    %v3516 = vpow.pop %v3515
    %v3517 = vmul.f32 %v3466, 1.442695
    %v3518 = vpow.pop %v3517
    %v3519 = vmul.f32 %v3467, 1.442695
    %v3520 = vpow.pop %v3519
    %v3521 = vmul.f32 %v3468, 1.442695
    %v3522 = vpow.pop %v3521
    %v3523 = vmul.f32 %v3469, 1.442695
    %v3524 = vpow.pop %v3523
    %v3525 = vmul.f32 %v3470, 1.442695
    %v3526 = vpow.pop %v3525
    %v3527 = vmul.f32 %v3471, 1.442695
    %v3528 = vpow.pop %v3527
    %v3529 = vmul.f32 %v3472, 1.442695
    %v3530 = vpow.pop %v3529
    %v3531 = vmul.f32 %v3473, 1.442695
    %v3532 = vpow.pop %v3531
    %v3533 = vmul.f32 %v3474, 1.442695
    %v3534 = vpow.pop %v3533
    %v3535 = vmul.f32 %v3475, 1.442695
    %v3536 = vpow.pop %v3535
    %v3537 = vmul.f32 %v3476, 1.442695
    %v3538 = vpow.pop %v3537
    %v3539 = vmul.f32 %v3477, 1.442695
    %v3540 = vpow.pop %v3539
    %v3541 = vmul.f32 %v3478, 1.442695
    %v3542 = vpow.pop %v3541
    %v3543 = vsel %vm561, %v3480, 0.0
    %3544 = vadd.xlane.f32.xlu0 %v3543
    %v3545 = vpop.xlane.xlu0 %3544
    %v3546 = vsel %vm561, %v3482, 0.0
    %3547 = vadd.xlane.f32.xlu0 %v3546
    %v3548 = vpop.xlane.xlu0 %3547
    %v3549 = vsel %vm561, %v3484, 0.0
    %3550 = vadd.xlane.f32.xlu0 %v3549
    %v3551 = vpop.xlane.xlu0 %3550
    %v3552 = vsel %vm561, %v3486, 0.0
    %3553 = vadd.xlane.f32.xlu0 %v3552
    %v3554 = vpop.xlane.xlu0 %3553
    %v3555 = vsel %vm561, %v3488, 0.0
    %3556 = vadd.xlane.f32.xlu0 %v3555
    %v3557 = vpop.xlane.xlu0 %3556
    %v3558 = vsel %vm561, %v3490, 0.0
    %3559 = vadd.xlane.f32.xlu0 %v3558
    %v3560 = vpop.xlane.xlu0 %3559
    %v3561 = vsel %vm561, %v3492, 0.0
    %3562 = vadd.xlane.f32.xlu0 %v3561
    %v3563 = vpop.xlane.xlu0 %3562
    %v3564 = vsel %vm561, %v3494, 0.0
    %3565 = vadd.xlane.f32.xlu0 %v3564
    %v3566 = vpop.xlane.xlu0 %3565
    %v3567 = vsel %vm561, %v3496, 0.0
    %3568 = vadd.xlane.f32.xlu0 %v3567
    %v3569 = vpop.xlane.xlu0 %3568
    %v3570 = vsel %vm561, %v3498, 0.0
    %3571 = vadd.xlane.f32.xlu0 %v3570
    %v3572 = vpop.xlane.xlu0 %3571
    %v3573 = vsel %vm561, %v3500, 0.0
    %3574 = vadd.xlane.f32.xlu0 %v3573
    %v3575 = vpop.xlane.xlu0 %3574
    %v3576 = vsel %vm561, %v3502, 0.0
    %3577 = vadd.xlane.f32.xlu0 %v3576
    %v3578 = vpop.xlane.xlu0 %3577
    %v3579 = vsel %vm561, %v3504, 0.0
    %3580 = vadd.xlane.f32.xlu0 %v3579
    %v3581 = vpop.xlane.xlu0 %3580
    %v3582 = vsel %vm561, %v3506, 0.0
    %3583 = vadd.xlane.f32.xlu0 %v3582
    %v3584 = vpop.xlane.xlu0 %3583
    %v3585 = vsel %vm561, %v3508, 0.0
    %3586 = vadd.xlane.f32.xlu0 %v3585
    %v3587 = vpop.xlane.xlu0 %3586
    %v3588 = vsel %vm561, %v3510, 0.0
    %3589 = vadd.xlane.f32.xlu0 %v3588
    %v3590 = vpop.xlane.xlu0 %3589
    %v3591 = vsel %vm561, %v3512, 0.0
    %3592 = vadd.xlane.f32.xlu0 %v3591
    %v3593 = vpop.xlane.xlu0 %3592
    %v3594 = vsel %vm561, %v3514, 0.0
    %3595 = vadd.xlane.f32.xlu0 %v3594
    %v3596 = vpop.xlane.xlu0 %3595
    %v3597 = vsel %vm561, %v3516, 0.0
    %3598 = vadd.xlane.f32.xlu0 %v3597
    %v3599 = vpop.xlane.xlu0 %3598
    %v3600 = vsel %vm561, %v3518, 0.0
    %3601 = vadd.xlane.f32.xlu0 %v3600
    %v3602 = vpop.xlane.xlu0 %3601
    %v3603 = vsel %vm561, %v3520, 0.0
    %3604 = vadd.xlane.f32.xlu0 %v3603
    %v3605 = vpop.xlane.xlu0 %3604
    %v3606 = vsel %vm561, %v3522, 0.0
    %3607 = vadd.xlane.f32.xlu0 %v3606
    %v3608 = vpop.xlane.xlu0 %3607
    %v3609 = vsel %vm561, %v3524, 0.0
    %3610 = vadd.xlane.f32.xlu0 %v3609
    %v3611 = vpop.xlane.xlu0 %3610
    %v3612 = vsel %vm561, %v3526, 0.0
    %3613 = vadd.xlane.f32.xlu0 %v3612
    %v3614 = vpop.xlane.xlu0 %3613
    %v3615 = vsel %vm561, %v3528, 0.0
    %3616 = vadd.xlane.f32.xlu0 %v3615
    %v3617 = vpop.xlane.xlu0 %3616
    %v3618 = vsel %vm561, %v3530, 0.0
    %3619 = vadd.xlane.f32.xlu0 %v3618
    %v3620 = vpop.xlane.xlu0 %3619
    %v3621 = vsel %vm561, %v3532, 0.0
    %3622 = vadd.xlane.f32.xlu0 %v3621
    %v3623 = vpop.xlane.xlu0 %3622
    %v3624 = vsel %vm561, %v3534, 0.0
    %3625 = vadd.xlane.f32.xlu0 %v3624
    %v3626 = vpop.xlane.xlu0 %3625
    %v3627 = vsel %vm561, %v3536, 0.0
    %3628 = vadd.xlane.f32.xlu0 %v3627
    %v3629 = vpop.xlane.xlu0 %3628
    %v3630 = vsel %vm561, %v3538, 0.0
    %3631 = vadd.xlane.f32.xlu0 %v3630
    %v3632 = vpop.xlane.xlu0 %3631
    %v3633 = vsel %vm561, %v3540, 0.0
    %3634 = vadd.xlane.f32.xlu0 %v3633
    %v3635 = vpop.xlane.xlu0 %3634
    %v3636 = vsel %vm561, %v3542, 0.0
    %3637 = vadd.xlane.f32.xlu0 %v3636
    %v3638 = vpop.xlane.xlu0 %3637
    %v3639 = vrcp.pop %v3545
    %v3640 = vrcp.pop %v3548
    %v3641 = vrcp.pop %v3551
    %v3642 = vrcp.pop %v3554
    %v3643 = vrcp.pop %v3557
    %v3644 = vrcp.pop %v3560
    %v3645 = vrcp.pop %v3563
    %v3646 = vrcp.pop %v3566
    %v3647 = vrcp.pop %v3569
    %v3648 = vrcp.pop %v3572
    %v3649 = vrcp.pop %v3575
    %v3650 = vrcp.pop %v3578
    %v3651 = vrcp.pop %v3581
    %v3652 = vrcp.pop %v3584
    %v3653 = vrcp.pop %v3587
    %v3654 = vrcp.pop %v3590
    %v3655 = vrcp.pop %v3593
    %v3656 = vrcp.pop %v3596
    %v3657 = vrcp.pop %v3599
    %v3658 = vrcp.pop %v3602
    %v3659 = vrcp.pop %v3605
    %v3660 = vrcp.pop %v3608
    %v3661 = vrcp.pop %v3611
    %v3662 = vrcp.pop %v3614
    %v3663 = vrcp.pop %v3617
    %v3664 = vrcp.pop %v3620
    %v3665 = vrcp.pop %v3623
    %v3666 = vrcp.pop %v3626
    %v3667 = vrcp.pop %v3629
    %v3668 = vrcp.pop %v3632
    %v3669 = vrcp.pop %v3635
    %v3670 = vrcp.pop %v3638
    %v3671 = vmul.f32 %v3480, %v3639
    %v3672 = vmul.f32 %v3482, %v3640
    %v3673 = vmul.f32 %v3484, %v3641
    %v3674 = vmul.f32 %v3486, %v3642
    %v3675 = vmul.f32 %v3488, %v3643
    %v3676 = vmul.f32 %v3490, %v3644
    %v3677 = vmul.f32 %v3492, %v3645
    %v3678 = vmul.f32 %v3494, %v3646
    %v3679 = vmul.f32 %v3496, %v3647
    %v3680 = vmul.f32 %v3498, %v3648
    %v3681 = vmul.f32 %v3500, %v3649
    %v3682 = vmul.f32 %v3502, %v3650
    %v3683 = vmul.f32 %v3504, %v3651
    %v3684 = vmul.f32 %v3506, %v3652
    %v3685 = vmul.f32 %v3508, %v3653
    %v3686 = vmul.f32 %v3510, %v3654
    %v3687 = vmul.f32 %v3512, %v3655
    %v3688 = vmul.f32 %v3514, %v3656
    %v3689 = vmul.f32 %v3516, %v3657
    %v3690 = vmul.f32 %v3518, %v3658
    %v3691 = vmul.f32 %v3520, %v3659
    %v3692 = vmul.f32 %v3522, %v3660
    %v3693 = vmul.f32 %v3524, %v3661
    %v3694 = vmul.f32 %v3526, %v3662
    %v3695 = vmul.f32 %v3528, %v3663
    %v3696 = vmul.f32 %v3530, %v3664
    %v3697 = vmul.f32 %v3532, %v3665
    %v3698 = vmul.f32 %v3534, %v3666
    %v3699 = vmul.f32 %v3536, %v3667
    %v3700 = vmul.f32 %v3538, %v3668
    %v3701 = vmul.f32 %v3540, %v3669
    %v3702 = vmul.f32 %v3542, %v3670
    %v3703 = vpack.c.bf16 %v3672, %v3671
    %v3704 = vpack.c.bf16 %v3674, %v3673
    %v3705 = vpack.c.bf16 %v3676, %v3675
    %v3706 = vpack.c.bf16 %v3678, %v3677
    %v3707 = vpack.c.bf16 %v3680, %v3679
    %v3708 = vpack.c.bf16 %v3682, %v3681
    %v3709 = vpack.c.bf16 %v3684, %v3683
    %v3710 = vpack.c.bf16 %v3686, %v3685
    %v3711 = vpack.c.bf16 %v3688, %v3687
    %v3712 = vpack.c.bf16 %v3690, %v3689
    %v3713 = vpack.c.bf16 %v3692, %v3691
    %v3714 = vpack.c.bf16 %v3694, %v3693
    %v3715 = vpack.c.bf16 %v3696, %v3695
    %v3716 = vpack.c.bf16 %v3698, %v3697
    %v3717 = vpack.c.bf16 %v3700, %v3699
    %v3718 = vpack.c.bf16 %v3702, %v3701
    %3719 = vrot.lane.b32.xlu0 %v2799, 64
    %v3720 = vpop.permute.xlu0 %3719
    %3721 = vrot.lane.b32.xlu0 %v2800, 64
    %v3722 = vpop.permute.xlu0 %3721
    %v3726 = vsel %vm561, %v3703, 0
    %v3729 = vsel %vm561, %v3704, 0
    %3731 = vmatprep.subr.bf16.mxu0 0
    %3732 = vmatpush1.bf16.msra.mxu0 %v3720
    %3733 = vmatprep.subr.bf16.mxu0 0
    %3734 = vmatpush1.bf16.msra.mxu0 %v3722
    %3735 = vmatprep.subr.bf16.mxu0 0
    %3736 = vmatpush1.bf16.msra.mxu0 0
    %3737 = vmatprep.subr.bf16.mxu0 0
    %3738 = vmatpush1.bf16.msra.mxu0 0
    %3739 = vmatprep.subr.bf16.mxu0 0
    %3740 = vmatpush1.bf16.msra.mxu0 0
    %3741 = vmatprep.subr.bf16.mxu0 0
    %3742 = vmatpush1.bf16.msra.mxu0 0
    %3743 = vmatprep.subr.bf16.mxu0 0
    %3744 = vmatpush1.bf16.msra.mxu0 0
    %3745 = vmatprep.subr.bf16.mxu0 0
    %3746 = vmatpush1.bf16.msra.mxu0 0
    %3747 = vmatprep.subr.bf16.mxu0 0
    %3748 = vmatpush1.bf16.msra.mxu0 0
    %3749 = vmatprep.subr.bf16.mxu0 0
    %3750 = vmatpush1.bf16.msra.mxu0 0
    %3751 = vmatprep.subr.bf16.mxu0 0
    %3752 = vmatpush1.bf16.msra.mxu0 0
    %3753 = vmatprep.subr.bf16.mxu0 0
    %3754 = vmatpush1.bf16.msra.mxu0 0
    %3755 = vmatprep.subr.bf16.mxu0 0
    %3756 = vmatpush1.bf16.msra.mxu0 0
    %3757 = vmatprep.subr.bf16.mxu0 0
    %3758 = vmatpush1.bf16.msra.mxu0 0
    %3759 = vmatprep.subr.bf16.mxu0 0
    %3760 = vmatpush1.bf16.msra.mxu0 0
    %3761 = vmatprep.subr.bf16.mxu0 0
    %3762 = vmatpush1.bf16.msra.mxu0 0
    %3763 = vmatprep.mubr.bf16.mxu0 0
    %3764 = vmatmul.mubr.bf16.gmra.mrb[0].mxu0 %v3726
    %v3765 = vpop.f32.mrb[0].mxu0
    %v3766 = vadd.f32 0.0, %v3765
    %v3767 = vpop.f32.mrb[0].mxu0
    %v3768 = vpop.f32.mrb[0].mxu0
    %v3769 = vadd.f32 0.0, %v3768
    %v3770 = vpop.f32.mrb[0].mxu0
    %3771 = vmatprep.mubr.bf16.mxu0 0
    %3772 = vmatmul.mubr.bf16.gmra.mrb[0].mxu0 %v3729
    %v3773 = vpop.f32.mrb[0].mxu0
    %v3774 = vadd.f32 0.0, %v3773
    %v3775 = vpop.f32.mrb[0].mxu0
    %v3776 = vpop.f32.mrb[0].mxu0
    %v3777 = vadd.f32 0.0, %v3776
    %v3778 = vpop.f32.mrb[0].mxu0
    %3779 = vdwg.mxu0
    %3780 = vrot.lane.b32.xlu0 %v2808, 64
    %v3781 = vpop.permute.xlu0 %3780
    %3782 = vrot.lane.b32.xlu0 %v2810, 64
    %v3783 = vpop.permute.xlu0 %3782
    %v3787 = vsel %vm561, %v3705, 0
    %v3790 = vsel %vm561, %v3706, 0
    %3792 = vmatprep.subr.bf16.mxu0 0
    %3793 = vmatpush1.bf16.msra.mxu0 %v3781
    %3794 = vmatprep.subr.bf16.mxu0 0
    %3795 = vmatpush1.bf16.msra.mxu0 %v3783
    %3796 = vmatprep.subr.bf16.mxu0 0
    %3797 = vmatpush1.bf16.msra.mxu0 0
    %3798 = vmatprep.subr.bf16.mxu0 0
    %3799 = vmatpush1.bf16.msra.mxu0 0
    %3800 = vmatprep.subr.bf16.mxu0 0
    %3801 = vmatpush1.bf16.msra.mxu0 0
    %3802 = vmatprep.subr.bf16.mxu0 0
    %3803 = vmatpush1.bf16.msra.mxu0 0
    %3804 = vmatprep.subr.bf16.mxu0 0
    %3805 = vmatpush1.bf16.msra.mxu0 0
    %3806 = vmatprep.subr.bf16.mxu0 0
    %3807 = vmatpush1.bf16.msra.mxu0 0
    %3808 = vmatprep.subr.bf16.mxu0 0
    %3809 = vmatpush1.bf16.msra.mxu0 0
    %3810 = vmatprep.subr.bf16.mxu0 0
    %3811 = vmatpush1.bf16.msra.mxu0 0
    %3812 = vmatprep.subr.bf16.mxu0 0
    %3813 = vmatpush1.bf16.msra.mxu0 0
    %3814 = vmatprep.subr.bf16.mxu0 0
    %3815 = vmatpush1.bf16.msra.mxu0 0
    %3816 = vmatprep.subr.bf16.mxu0 0
    %3817 = vmatpush1.bf16.msra.mxu0 0
    %3818 = vmatprep.subr.bf16.mxu0 0
    %3819 = vmatpush1.bf16.msra.mxu0 0
    %3820 = vmatprep.subr.bf16.mxu0 0
    %3821 = vmatpush1.bf16.msra.mxu0 0
    %3822 = vmatprep.subr.bf16.mxu0 0
    %3823 = vmatpush1.bf16.msra.mxu0 0
    %3824 = vmatprep.mubr.bf16.mxu0 0
    %3825 = vmatmul.mubr.bf16.gmra.mrb[0].mxu0 %v3787
    %v3826 = vpop.f32.mrb[0].mxu0
    %v3827 = vadd.f32 0.0, %v3826
    %v3828 = vpop.f32.mrb[0].mxu0
    %v3829 = vpop.f32.mrb[0].mxu0
    %v3830 = vadd.f32 0.0, %v3829
    %v3831 = vpop.f32.mrb[0].mxu0
    %3832 = vmatprep.mubr.bf16.mxu0 0
    %3833 = vmatmul.mubr.bf16.gmra.mrb[0].mxu0 %v3790
    %v3834 = vpop.f32.mrb[0].mxu0
    %v3835 = vadd.f32 0.0, %v3834
    %v3836 = vpop.f32.mrb[0].mxu0
    %v3837 = vpop.f32.mrb[0].mxu0
    %v3838 = vadd.f32 0.0, %v3837
    %v3839 = vpop.f32.mrb[0].mxu0
    %3840 = vdwg.mxu0
    %3841 = vrot.lane.b32.xlu0 %v2816, 64
    %v3842 = vpop.permute.xlu0 %3841
    %3843 = vrot.lane.b32.xlu0 %v2818, 64
    %v3844 = vpop.permute.xlu0 %3843
    %v3848 = vsel %vm561, %v3707, 0
    %v3851 = vsel %vm561, %v3708, 0
    %3853 = vmatprep.subr.bf16.mxu0 0
    %3854 = vmatpush1.bf16.msra.mxu0 %v3842
    %3855 = vmatprep.subr.bf16.mxu0 0
    %3856 = vmatpush1.bf16.msra.mxu0 %v3844
    %3857 = vmatprep.subr.bf16.mxu0 0
    %3858 = vmatpush1.bf16.msra.mxu0 0
    %3859 = vmatprep.subr.bf16.mxu0 0
    %3860 = vmatpush1.bf16.msra.mxu0 0
    %3861 = vmatprep.subr.bf16.mxu0 0
    %3862 = vmatpush1.bf16.msra.mxu0 0
    %3863 = vmatprep.subr.bf16.mxu0 0
    %3864 = vmatpush1.bf16.msra.mxu0 0
    %3865 = vmatprep.subr.bf16.mxu0 0
    %3866 = vmatpush1.bf16.msra.mxu0 0
    %3867 = vmatprep.subr.bf16.mxu0 0
    %3868 = vmatpush1.bf16.msra.mxu0 0
    %3869 = vmatprep.subr.bf16.mxu0 0
    %3870 = vmatpush1.bf16.msra.mxu0 0
    %3871 = vmatprep.subr.bf16.mxu0 0
    %3872 = vmatpush1.bf16.msra.mxu0 0
    %3873 = vmatprep.subr.bf16.mxu0 0
    %3874 = vmatpush1.bf16.msra.mxu0 0
    %3875 = vmatprep.subr.bf16.mxu0 0
    %3876 = vmatpush1.bf16.msra.mxu0 0
    %3877 = vmatprep.subr.bf16.mxu0 0
    %3878 = vmatpush1.bf16.msra.mxu0 0
    %3879 = vmatprep.subr.bf16.mxu0 0
    %3880 = vmatpush1.bf16.msra.mxu0 0
    %3881 = vmatprep.subr.bf16.mxu0 0
    %3882 = vmatpush1.bf16.msra.mxu0 0
    %3883 = vmatprep.subr.bf16.mxu0 0
    %3884 = vmatpush1.bf16.msra.mxu0 0
    %3885 = vmatprep.mubr.bf16.mxu0 0
    %3886 = vmatmul.mubr.bf16.gmra.mrb[0].mxu0 %v3848
    %v3887 = vpop.f32.mrb[0].mxu0
    %v3888 = vadd.f32 0.0, %v3887
    %v3889 = vpop.f32.mrb[0].mxu0
    %v3890 = vpop.f32.mrb[0].mxu0
    %v3891 = vadd.f32 0.0, %v3890
    %v3892 = vpop.f32.mrb[0].mxu0
    %3893 = vmatprep.mubr.bf16.mxu0 0
    %3894 = vmatmul.mubr.bf16.gmra.mrb[0].mxu0 %v3851
    %v3895 = vpop.f32.mrb[0].mxu0
    %v3896 = vadd.f32 0.0, %v3895
    %v3897 = vpop.f32.mrb[0].mxu0
    %v3898 = vpop.f32.mrb[0].mxu0
    %v3899 = vadd.f32 0.0, %v3898
    %v3900 = vpop.f32.mrb[0].mxu0
    %3901 = vdwg.mxu0
    %3902 = vrot.lane.b32.xlu0 %v2824, 64
    %v3903 = vpop.permute.xlu0 %3902
    %3904 = vrot.lane.b32.xlu0 %v2826, 64
    %v3905 = vpop.permute.xlu0 %3904
    %v3909 = vsel %vm561, %v3709, 0
    %v3912 = vsel %vm561, %v3710, 0
    %3914 = vmatprep.subr.bf16.mxu0 0
    %3915 = vmatpush1.bf16.msra.mxu0 %v3903
    %3916 = vmatprep.subr.bf16.mxu0 0
    %3917 = vmatpush1.bf16.msra.mxu0 %v3905
    %3918 = vmatprep.subr.bf16.mxu0 0
    %3919 = vmatpush1.bf16.msra.mxu0 0
    %3920 = vmatprep.subr.bf16.mxu0 0
    %3921 = vmatpush1.bf16.msra.mxu0 0
    %3922 = vmatprep.subr.bf16.mxu0 0
    %3923 = vmatpush1.bf16.msra.mxu0 0
    %3924 = vmatprep.subr.bf16.mxu0 0
    %3925 = vmatpush1.bf16.msra.mxu0 0
    %3926 = vmatprep.subr.bf16.mxu0 0
    %3927 = vmatpush1.bf16.msra.mxu0 0
    %3928 = vmatprep.subr.bf16.mxu0 0
    %3929 = vmatpush1.bf16.msra.mxu0 0
    %3930 = vmatprep.subr.bf16.mxu0 0
    %3931 = vmatpush1.bf16.msra.mxu0 0
    %3932 = vmatprep.subr.bf16.mxu0 0
    %3933 = vmatpush1.bf16.msra.mxu0 0
    %3934 = vmatprep.subr.bf16.mxu0 0
    %3935 = vmatpush1.bf16.msra.mxu0 0
    %3936 = vmatprep.subr.bf16.mxu0 0
    %3937 = vmatpush1.bf16.msra.mxu0 0
    %3938 = vmatprep.subr.bf16.mxu0 0
    %3939 = vmatpush1.bf16.msra.mxu0 0
    %3940 = vmatprep.subr.bf16.mxu0 0
    %3941 = vmatpush1.bf16.msra.mxu0 0
    %3942 = vmatprep.subr.bf16.mxu0 0
    %3943 = vmatpush1.bf16.msra.mxu0 0
    %3944 = vmatprep.subr.bf16.mxu0 0
    %3945 = vmatpush1.bf16.msra.mxu0 0
    %3946 = vmatprep.mubr.bf16.mxu0 0
    %3947 = vmatmul.mubr.bf16.gmra.mrb[0].mxu0 %v3909
    %v3948 = vpop.f32.mrb[0].mxu0
    %v3949 = vadd.f32 0.0, %v3948
    %v3950 = vpop.f32.mrb[0].mxu0
    %v3951 = vpop.f32.mrb[0].mxu0
    %v3952 = vadd.f32 0.0, %v3951
    %v3953 = vpop.f32.mrb[0].mxu0
    %3954 = vmatprep.mubr.bf16.mxu0 0
    %3955 = vmatmul.mubr.bf16.gmra.mrb[0].mxu0 %v3912
    %v3956 = vpop.f32.mrb[0].mxu0
    %v3957 = vadd.f32 0.0, %v3956
    %v3958 = vpop.f32.mrb[0].mxu0
    %v3959 = vpop.f32.mrb[0].mxu0
    %v3960 = vadd.f32 0.0, %v3959
    %v3961 = vpop.f32.mrb[0].mxu0
    %3962 = vdwg.mxu0
    %3963 = vrot.lane.b32.xlu0 %v2801, 64
    %v3964 = vpop.permute.xlu0 %3963
    %3965 = vrot.lane.b32.xlu0 %v2802, 64
    %v3966 = vpop.permute.xlu0 %3965
    %v3970 = vsel %vm561, %v3711, 0
    %v3973 = vsel %vm561, %v3712, 0
    %3975 = vmatprep.subr.bf16.mxu0 0
    %3976 = vmatpush1.bf16.msra.mxu0 %v3964
    %3977 = vmatprep.subr.bf16.mxu0 0
    %3978 = vmatpush1.bf16.msra.mxu0 %v3966
    %3979 = vmatprep.subr.bf16.mxu0 0
    %3980 = vmatpush1.bf16.msra.mxu0 0
    %3981 = vmatprep.subr.bf16.mxu0 0
    %3982 = vmatpush1.bf16.msra.mxu0 0
    %3983 = vmatprep.subr.bf16.mxu0 0
    %3984 = vmatpush1.bf16.msra.mxu0 0
    %3985 = vmatprep.subr.bf16.mxu0 0
    %3986 = vmatpush1.bf16.msra.mxu0 0
    %3987 = vmatprep.subr.bf16.mxu0 0
    %3988 = vmatpush1.bf16.msra.mxu0 0
    %3989 = vmatprep.subr.bf16.mxu0 0
    %3990 = vmatpush1.bf16.msra.mxu0 0
    %3991 = vmatprep.subr.bf16.mxu0 0
    %3992 = vmatpush1.bf16.msra.mxu0 0
    %3993 = vmatprep.subr.bf16.mxu0 0
    %3994 = vmatpush1.bf16.msra.mxu0 0
    %3995 = vmatprep.subr.bf16.mxu0 0
    %3996 = vmatpush1.bf16.msra.mxu0 0
    %3997 = vmatprep.subr.bf16.mxu0 0
    %3998 = vmatpush1.bf16.msra.mxu0 0
    %3999 = vmatprep.subr.bf16.mxu0 0
    %4000 = vmatpush1.bf16.msra.mxu0 0
    %4001 = vmatprep.subr.bf16.mxu0 0
    %4002 = vmatpush1.bf16.msra.mxu0 0
    %4003 = vmatprep.subr.bf16.mxu0 0
    %4004 = vmatpush1.bf16.msra.mxu0 0
    %4005 = vmatprep.subr.bf16.mxu0 0
    %4006 = vmatpush1.bf16.msra.mxu0 0
    %4007 = vmatprep.mubr.bf16.mxu0 0
    %4008 = vmatmul.mubr.bf16.gmra.mrb[0].mxu0 %v3970
    %v4009 = vpop.f32.mrb[0].mxu0
    %v4010 = vadd.f32 0.0, %v4009
    %v4011 = vpop.f32.mrb[0].mxu0
    %v4012 = vpop.f32.mrb[0].mxu0
    %v4013 = vadd.f32 0.0, %v4012
    %v4014 = vpop.f32.mrb[0].mxu0
    %4015 = vmatprep.mubr.bf16.mxu0 0
    %4016 = vmatmul.mubr.bf16.gmra.mrb[0].mxu0 %v3973
    %v4017 = vpop.f32.mrb[0].mxu0
    %v4018 = vadd.f32 0.0, %v4017
    %v4019 = vpop.f32.mrb[0].mxu0
    %v4020 = vpop.f32.mrb[0].mxu0
    %v4021 = vadd.f32 0.0, %v4020
    %v4022 = vpop.f32.mrb[0].mxu0
    %4023 = vdwg.mxu0
    %4024 = vrot.lane.b32.xlu0 %v2812, 64
    %v4025 = vpop.permute.xlu0 %4024
    %4026 = vrot.lane.b32.xlu0 %v2814, 64
    %v4027 = vpop.permute.xlu0 %4026
    %v4031 = vsel %vm561, %v3713, 0
    %v4034 = vsel %vm561, %v3714, 0
    %4036 = vmatprep.subr.bf16.mxu0 0
    %4037 = vmatpush1.bf16.msra.mxu0 %v4025
    %4038 = vmatprep.subr.bf16.mxu0 0
    %4039 = vmatpush1.bf16.msra.mxu0 %v4027
    %4040 = vmatprep.subr.bf16.mxu0 0
    %4041 = vmatpush1.bf16.msra.mxu0 0
    %4042 = vmatprep.subr.bf16.mxu0 0
    %4043 = vmatpush1.bf16.msra.mxu0 0
    %4044 = vmatprep.subr.bf16.mxu0 0
    %4045 = vmatpush1.bf16.msra.mxu0 0
    %4046 = vmatprep.subr.bf16.mxu0 0
    %4047 = vmatpush1.bf16.msra.mxu0 0
    %4048 = vmatprep.subr.bf16.mxu0 0
    %4049 = vmatpush1.bf16.msra.mxu0 0
    %4050 = vmatprep.subr.bf16.mxu0 0
    %4051 = vmatpush1.bf16.msra.mxu0 0
    %4052 = vmatprep.subr.bf16.mxu0 0
    %4053 = vmatpush1.bf16.msra.mxu0 0
    %4054 = vmatprep.subr.bf16.mxu0 0
    %4055 = vmatpush1.bf16.msra.mxu0 0
    %4056 = vmatprep.subr.bf16.mxu0 0
    %4057 = vmatpush1.bf16.msra.mxu0 0
    %4058 = vmatprep.subr.bf16.mxu0 0
    %4059 = vmatpush1.bf16.msra.mxu0 0
    %4060 = vmatprep.subr.bf16.mxu0 0
    %4061 = vmatpush1.bf16.msra.mxu0 0
    %4062 = vmatprep.subr.bf16.mxu0 0
    %4063 = vmatpush1.bf16.msra.mxu0 0
    %4064 = vmatprep.subr.bf16.mxu0 0
    %4065 = vmatpush1.bf16.msra.mxu0 0
    %4066 = vmatprep.subr.bf16.mxu0 0
    %4067 = vmatpush1.bf16.msra.mxu0 0
    %4068 = vmatprep.mubr.bf16.mxu0 0
    %4069 = vmatmul.mubr.bf16.gmra.mrb[0].mxu0 %v4031
    %v4070 = vpop.f32.mrb[0].mxu0
    %v4071 = vadd.f32 0.0, %v4070
    %v4072 = vpop.f32.mrb[0].mxu0
    %v4073 = vpop.f32.mrb[0].mxu0
    %v4074 = vadd.f32 0.0, %v4073
    %v4075 = vpop.f32.mrb[0].mxu0
    %4076 = vmatprep.mubr.bf16.mxu0 0
    %4077 = vmatmul.mubr.bf16.gmra.mrb[0].mxu0 %v4034
    %v4078 = vpop.f32.mrb[0].mxu0
    %v4079 = vadd.f32 0.0, %v4078
    %v4080 = vpop.f32.mrb[0].mxu0
    %v4081 = vpop.f32.mrb[0].mxu0
    %v4082 = vadd.f32 0.0, %v4081
    %v4083 = vpop.f32.mrb[0].mxu0
    %4084 = vdwg.mxu0
    %4085 = vrot.lane.b32.xlu0 %v2820, 64
    %v4086 = vpop.permute.xlu0 %4085
    %4087 = vrot.lane.b32.xlu0 %v2822, 64
    %v4088 = vpop.permute.xlu0 %4087
    %v4092 = vsel %vm561, %v3715, 0
    %v4095 = vsel %vm561, %v3716, 0
    %4097 = vmatprep.subr.bf16.mxu0 0
    %4098 = vmatpush1.bf16.msra.mxu0 %v4086
    %4099 = vmatprep.subr.bf16.mxu0 0
    %4100 = vmatpush1.bf16.msra.mxu0 %v4088
    %4101 = vmatprep.subr.bf16.mxu0 0
    %4102 = vmatpush1.bf16.msra.mxu0 0
    %4103 = vmatprep.subr.bf16.mxu0 0
    %4104 = vmatpush1.bf16.msra.mxu0 0
    %4105 = vmatprep.subr.bf16.mxu0 0
    %4106 = vmatpush1.bf16.msra.mxu0 0
    %4107 = vmatprep.subr.bf16.mxu0 0
    %4108 = vmatpush1.bf16.msra.mxu0 0
    %4109 = vmatprep.subr.bf16.mxu0 0
    %4110 = vmatpush1.bf16.msra.mxu0 0
    %4111 = vmatprep.subr.bf16.mxu0 0
    %4112 = vmatpush1.bf16.msra.mxu0 0
    %4113 = vmatprep.subr.bf16.mxu0 0
    %4114 = vmatpush1.bf16.msra.mxu0 0
    %4115 = vmatprep.subr.bf16.mxu0 0
    %4116 = vmatpush1.bf16.msra.mxu0 0
    %4117 = vmatprep.subr.bf16.mxu0 0
    %4118 = vmatpush1.bf16.msra.mxu0 0
    %4119 = vmatprep.subr.bf16.mxu0 0
    %4120 = vmatpush1.bf16.msra.mxu0 0
    %4121 = vmatprep.subr.bf16.mxu0 0
    %4122 = vmatpush1.bf16.msra.mxu0 0
    %4123 = vmatprep.subr.bf16.mxu0 0
    %4124 = vmatpush1.bf16.msra.mxu0 0
    %4125 = vmatprep.subr.bf16.mxu0 0
    %4126 = vmatpush1.bf16.msra.mxu0 0
    %4127 = vmatprep.subr.bf16.mxu0 0
    %4128 = vmatpush1.bf16.msra.mxu0 0
    %4129 = vmatprep.mubr.bf16.mxu0 0
    %4130 = vmatmul.mubr.bf16.gmra.mrb[0].mxu0 %v4092
    %v4131 = vpop.f32.mrb[0].mxu0
    %v4132 = vadd.f32 0.0, %v4131
    %v4133 = vpop.f32.mrb[0].mxu0
    %v4134 = vpop.f32.mrb[0].mxu0
    %v4135 = vadd.f32 0.0, %v4134
    %v4136 = vpop.f32.mrb[0].mxu0
    %4137 = vmatprep.mubr.bf16.mxu0 0
    %4138 = vmatmul.mubr.bf16.gmra.mrb[0].mxu0 %v4095
    %v4139 = vpop.f32.mrb[0].mxu0
    %v4140 = vadd.f32 0.0, %v4139
    %v4141 = vpop.f32.mrb[0].mxu0
    %v4142 = vpop.f32.mrb[0].mxu0
    %v4143 = vadd.f32 0.0, %v4142
    %v4144 = vpop.f32.mrb[0].mxu0
    %4145 = vdwg.mxu0
    %4146 = vrot.lane.b32.xlu0 %v2828, 64
    %v4147 = vpop.permute.xlu0 %4146
    %4148 = vrot.lane.b32.xlu0 %v2830, 64
    %v4149 = vpop.permute.xlu0 %4148
    %v4153 = vsel %vm561, %v3717, 0
    %v4156 = vsel %vm561, %v3718, 0
    %4158 = vmatprep.subr.bf16.mxu0 0
    %4159 = vmatpush1.bf16.msra.mxu0 %v4147
    %4160 = vmatprep.subr.bf16.mxu0 0
    %4161 = vmatpush1.bf16.msra.mxu0 %v4149
    %4162 = vmatprep.subr.bf16.mxu0 0
    %4163 = vmatpush1.bf16.msra.mxu0 0
    %4164 = vmatprep.subr.bf16.mxu0 0
    %4165 = vmatpush1.bf16.msra.mxu0 0
    %4166 = vmatprep.subr.bf16.mxu0 0
    %4167 = vmatpush1.bf16.msra.mxu0 0
    %4168 = vmatprep.subr.bf16.mxu0 0
    %4169 = vmatpush1.bf16.msra.mxu0 0
    %4170 = vmatprep.subr.bf16.mxu0 0
    %4171 = vmatpush1.bf16.msra.mxu0 0
    %4172 = vmatprep.subr.bf16.mxu0 0
    %4173 = vmatpush1.bf16.msra.mxu0 0
    %4174 = vmatprep.subr.bf16.mxu0 0
    %4175 = vmatpush1.bf16.msra.mxu0 0
    %4176 = vmatprep.subr.bf16.mxu0 0
    %4177 = vmatpush1.bf16.msra.mxu0 0
    %4178 = vmatprep.subr.bf16.mxu0 0
    %4179 = vmatpush1.bf16.msra.mxu0 0
    %4180 = vmatprep.subr.bf16.mxu0 0
    %4181 = vmatpush1.bf16.msra.mxu0 0
    %4182 = vmatprep.subr.bf16.mxu0 0
    %4183 = vmatpush1.bf16.msra.mxu0 0
    %4184 = vmatprep.subr.bf16.mxu0 0
    %4185 = vmatpush1.bf16.msra.mxu0 0
    %4186 = vmatprep.subr.bf16.mxu0 0
    %4187 = vmatpush1.bf16.msra.mxu0 0
    %4188 = vmatprep.subr.bf16.mxu0 0
    %4189 = vmatpush1.bf16.msra.mxu0 0
    %4190 = vmatprep.mubr.bf16.mxu0 0
    %4191 = vmatmul.mubr.bf16.gmra.mrb[0].mxu0 %v4153
    %v4192 = vpop.f32.mrb[0].mxu0
    %v4193 = vadd.f32 0.0, %v4192
    %v4194 = vpop.f32.mrb[0].mxu0
    %v4195 = vpop.f32.mrb[0].mxu0
    %v4196 = vadd.f32 0.0, %v4195
    %v4197 = vpop.f32.mrb[0].mxu0
    %4198 = vmatprep.mubr.bf16.mxu0 0
    %4199 = vmatmul.mubr.bf16.gmra.mrb[0].mxu0 %v4156
    %v4200 = vpop.f32.mrb[0].mxu0
    %v4201 = vadd.f32 0.0, %v4200
    %v4202 = vpop.f32.mrb[0].mxu0
    %v4203 = vpop.f32.mrb[0].mxu0
    %v4204 = vadd.f32 0.0, %v4203
    %v4205 = vpop.f32.mrb[0].mxu0
    %4206 = vdwg.mxu0
    %4215 = vrot.lane.b32.xlu0 %v3827, 16
    %v4216 = vpop.permute.xlu0 %4215
    %4217 = vrot.lane.b32.xlu0 %v3830, 16
    %v4218 = vpop.permute.xlu0 %4217
    %4219 = vrot.lane.b32.xlu0 %v3835, 16
    %v4220 = vpop.permute.xlu0 %4219
    %4221 = vrot.lane.b32.xlu0 %v3838, 16
    %v4222 = vpop.permute.xlu0 %4221
    %4223 = vrot.lane.b32.xlu0 %v4071, 16
    %v4224 = vpop.permute.xlu0 %4223
    %4225 = vrot.lane.b32.xlu0 %v4074, 16
    %v4226 = vpop.permute.xlu0 %4225
    %4227 = vrot.lane.b32.xlu0 %v4079, 16
    %v4228 = vpop.permute.xlu0 %4227
    %4229 = vrot.lane.b32.xlu0 %v4082, 16
    %v4230 = vpop.permute.xlu0 %4229
    %4247 = vrot.lane.b32.xlu0 %v3888, 32
    %v4248 = vpop.permute.xlu0 %4247
    %4249 = vrot.lane.b32.xlu0 %v3891, 32
    %v4250 = vpop.permute.xlu0 %4249
    %4251 = vrot.lane.b32.xlu0 %v3896, 32
    %v4252 = vpop.permute.xlu0 %4251
    %4253 = vrot.lane.b32.xlu0 %v3899, 32
    %v4254 = vpop.permute.xlu0 %4253
    %4255 = vrot.lane.b32.xlu0 %v4132, 32
    %v4256 = vpop.permute.xlu0 %4255
    %4257 = vrot.lane.b32.xlu0 %v4135, 32
    %v4258 = vpop.permute.xlu0 %4257
    %4259 = vrot.lane.b32.xlu0 %v4140, 32
    %v4260 = vpop.permute.xlu0 %4259
    %4261 = vrot.lane.b32.xlu0 %v4143, 32
    %v4262 = vpop.permute.xlu0 %4261
    %4279 = vrot.lane.b32.xlu0 %v3949, 48
    %v4280 = vpop.permute.xlu0 %4279
    %4281 = vrot.lane.b32.xlu0 %v3952, 48
    %v4282 = vpop.permute.xlu0 %4281
    %4283 = vrot.lane.b32.xlu0 %v3957, 48
    %v4284 = vpop.permute.xlu0 %4283
    %4285 = vrot.lane.b32.xlu0 %v3960, 48
    %v4286 = vpop.permute.xlu0 %4285
    %4287 = vrot.lane.b32.xlu0 %v4193, 48
    %v4288 = vpop.permute.xlu0 %4287
    %4289 = vrot.lane.b32.xlu0 %v4196, 48
    %v4290 = vpop.permute.xlu0 %4289
    %4291 = vrot.lane.b32.xlu0 %v4201, 48
    %v4292 = vpop.permute.xlu0 %4291
    %4293 = vrot.lane.b32.xlu0 %v4204, 48
    %v4294 = vpop.permute.xlu0 %4293
    %v4303 = vsel %vm810, %v3766, %v4216
    %v4304 = vsel %vm810, %v3769, %v4218
    %v4305 = vsel %vm810, %v3774, %v4220
    %v4306 = vsel %vm810, %v3777, %v4222
    %v4307 = vsel %vm810, %v4010, %v4224
    %v4308 = vsel %vm810, %v4013, %v4226
    %v4309 = vsel %vm810, %v4018, %v4228
    %v4310 = vsel %vm810, %v4021, %v4230
    %v4311 = vsel %vm561, %v4303, %v4248
    %v4312 = vsel %vm561, %v4304, %v4250
    %v4313 = vsel %vm561, %v4305, %v4252
    %v4314 = vsel %vm561, %v4306, %v4254
    %v4315 = vsel %vm561, %v4307, %v4256
    %v4316 = vsel %vm561, %v4308, %v4258
    %v4317 = vsel %vm561, %v4309, %v4260
    %v4318 = vsel %vm561, %v4310, %v4262
    %v4319 = vsel %vm2299, %v4311, %v4280
    %v4320 = vsel %vm2299, %v4312, %v4282
    %v4321 = vsel %vm2299, %v4313, %v4284
    %v4322 = vsel %vm2299, %v4314, %v4286
    %v4323 = vsel %vm2299, %v4315, %v4288
    %v4324 = vsel %vm2299, %v4316, %v4290
    %v4325 = vsel %vm2299, %v4317, %v4292
    %v4326 = vsel %vm2299, %v4318, %v4294
    %v4327 = vpack.c.bf16 %v4320, %v4319
    %v4328 = vpack.c.bf16 %v4322, %v4321
    %v4329 = vpack.c.bf16 %v4324, %v4323
    %v4330 = vpack.c.bf16 %v4326, %v4325
    %v4332 = vlaneseq
    %v4333 = vshrl.u32 %v4332, 7
    %v4334 = vsub.s32 0, %v4333
    %v4335 = vrot.slane %v464, %v4334
    %v4345 = vunpack.c.l.b16 %v456
    %v4346 = vunpack.c.l.b16 %v457
    %v4347 = vunpack.c.l.b16 %v458
    %v4348 = vunpack.c.l.b16 %v459
    %v4349 = vunpack.c.l.b16 %v460
    %v4350 = vunpack.c.l.b16 %v461
    %v4351 = vunpack.c.l.b16 %v462
    %v4352 = vunpack.c.l.b16 %v463
    %v4353 = vpack.c.b16 %v4346, %v4345
    %v4354 = vpack.c.b16 %v4348, %v4347
    %v4355 = vpack.c.b16 %v4350, %v4349
    %v4356 = vpack.c.b16 %v4352, %v4351
    %v4362 = vsel %vm2342, %v4327, 0
    %v4365 = vsel %vm2342, %v4328, 0
    %v4368 = vsel %vm2342, %v4329, 0
    %v4371 = vsel %vm2342, %v4330, 0
    %4373 = vmatprep.subr.bf16.mxu0 0
    %4374 = vmatpush1.bf16.msra.mxu0 %v4353
    %4375 = vmatprep.subr.bf16.mxu0 0
    %4376 = vmatpush1.bf16.msra.mxu0 %v4354
    %4377 = vmatprep.subr.bf16.mxu0 0
    %4378 = vmatpush1.bf16.msra.mxu0 %v4355
    %4379 = vmatprep.subr.bf16.mxu0 0
    %4380 = vmatpush1.bf16.msra.mxu0 %v4356
    %4381 = vmatprep.subr.bf16.mxu0 0
    %4382 = vmatpush1.bf16.msra.mxu0 0
    %4383 = vmatprep.subr.bf16.mxu0 0
    %4384 = vmatpush1.bf16.msra.mxu0 0
    %4385 = vmatprep.subr.bf16.mxu0 0
    %4386 = vmatpush1.bf16.msra.mxu0 0
    %4387 = vmatprep.subr.bf16.mxu0 0
    %4388 = vmatpush1.bf16.msra.mxu0 0
    %4389 = vmatprep.subr.bf16.mxu0 0
    %4390 = vmatpush1.bf16.msra.mxu0 0
    %4391 = vmatprep.subr.bf16.mxu0 0
    %4392 = vmatpush1.bf16.msra.mxu0 0
    %4393 = vmatprep.subr.bf16.mxu0 0
    %4394 = vmatpush1.bf16.msra.mxu0 0
    %4395 = vmatprep.subr.bf16.mxu0 0
    %4396 = vmatpush1.bf16.msra.mxu0 0
    %4397 = vmatprep.subr.bf16.mxu0 0
    %4398 = vmatpush1.bf16.msra.mxu0 0
    %4399 = vmatprep.subr.bf16.mxu0 0
    %4400 = vmatpush1.bf16.msra.mxu0 0
    %4401 = vmatprep.subr.bf16.mxu0 0
    %4402 = vmatpush1.bf16.msra.mxu0 0
    %4403 = vmatprep.subr.bf16.mxu0 0
    %4404 = vmatpush1.bf16.msra.mxu0 0
    %4405 = vmatprep.mubr.bf16.mxu0 0
    %4406 = vmatmul.mubr.bf16.gmra.mrb[0].mxu0 %v4362
    %v4407 = vpop.f32.mrb[0].mxu0
    %v4408 = vadd.f32 %v4335, %v4407
    %v4409 = vpop.f32.mrb[0].mxu0
    %v4410 = vpop.f32.mrb[0].mxu0
    %v4411 = vadd.f32 %v4335, %v4410
    %v4412 = vpop.f32.mrb[0].mxu0
    %4413 = vmatprep.mubr.bf16.mxu0 0
    %4414 = vmatmul.mubr.bf16.gmra.mrb[0].mxu0 %v4365
    %v4415 = vpop.f32.mrb[0].mxu0
    %v4416 = vadd.f32 %v4335, %v4415
    %v4417 = vpop.f32.mrb[0].mxu0
    %v4418 = vpop.f32.mrb[0].mxu0
    %v4419 = vadd.f32 %v4335, %v4418
    %v4420 = vpop.f32.mrb[0].mxu0
    %4421 = vmatprep.mubr.bf16.mxu0 0
    %4422 = vmatmul.mubr.bf16.gmra.mrb[0].mxu0 %v4368
    %v4423 = vpop.f32.mrb[0].mxu0
    %v4424 = vadd.f32 %v4335, %v4423
    %v4425 = vpop.f32.mrb[0].mxu0
    %v4426 = vpop.f32.mrb[0].mxu0
    %v4427 = vadd.f32 %v4335, %v4426
    %v4428 = vpop.f32.mrb[0].mxu0
    %4429 = vmatprep.mubr.bf16.mxu0 0
    %4430 = vmatmul.mubr.bf16.gmra.mrb[0].mxu0 %v4371
    %v4431 = vpop.f32.mrb[0].mxu0
    %v4432 = vadd.f32 %v4335, %v4431
    %v4433 = vpop.f32.mrb[0].mxu0
    %v4434 = vpop.f32.mrb[0].mxu0
    %v4435 = vadd.f32 %v4335, %v4434
    %v4436 = vpop.f32.mrb[0].mxu0
    %4437 = vdwg.mxu0
    %v4438 = vadd.f32 %v4408, %v2553
    %v4439 = vadd.f32 %v4411, %v2554
    %v4440 = vadd.f32 %v4416, %v2555
    %v4441 = vadd.f32 %v4419, %v2556
    %v4442 = vadd.f32 %v4424, %v2557
    %v4443 = vadd.f32 %v4427, %v2558
    %v4444 = vadd.f32 %v4432, %v2559
    %v4445 = vadd.f32 %v4435, %v2560
    %v4446 = vsel %vm561, %v4438, 0.0
    %4447 = vadd.xlane.f32.xlu0 %v4446
    %v4448 = vpop.xlane.xlu0 %4447
    %v4449 = vsel %vm561, %v4439, 0.0
    %4450 = vadd.xlane.f32.xlu0 %v4449
    %v4451 = vpop.xlane.xlu0 %4450
    %v4452 = vsel %vm561, %v4440, 0.0
    %4453 = vadd.xlane.f32.xlu0 %v4452
    %v4454 = vpop.xlane.xlu0 %4453
    %v4455 = vsel %vm561, %v4441, 0.0
    %4456 = vadd.xlane.f32.xlu0 %v4455
    %v4457 = vpop.xlane.xlu0 %4456
    %v4458 = vsel %vm561, %v4442, 0.0
    %4459 = vadd.xlane.f32.xlu0 %v4458
    %v4460 = vpop.xlane.xlu0 %4459
    %v4461 = vsel %vm561, %v4443, 0.0
    %4462 = vadd.xlane.f32.xlu0 %v4461
    %v4463 = vpop.xlane.xlu0 %4462
    %v4464 = vsel %vm561, %v4444, 0.0
    %4465 = vadd.xlane.f32.xlu0 %v4464
    %v4466 = vpop.xlane.xlu0 %4465
    %v4467 = vsel %vm561, %v4445, 0.0
    %4468 = vadd.xlane.f32.xlu0 %v4467
    %v4469 = vpop.xlane.xlu0 %4468
    %v4470 = vmul.f32 %v4448, %v2452
    %v4471 = vmul.f32 %v4451, %v2452
    %v4472 = vmul.f32 %v4454, %v2452
    %v4473 = vmul.f32 %v4457, %v2452
    %v4474 = vmul.f32 %v4460, %v2452
    %v4475 = vmul.f32 %v4463, %v2452
    %v4476 = vmul.f32 %v4466, %v2452
    %v4477 = vmul.f32 %v4469, %v2452
    %v4478 = vsub.f32 %v4438, %v4470
    %v4479 = vsub.f32 %v4439, %v4471
    %v4480 = vsub.f32 %v4440, %v4472
    %v4481 = vsub.f32 %v4441, %v4473
    %v4482 = vsub.f32 %v4442, %v4474
    %v4483 = vsub.f32 %v4443, %v4475
    %v4484 = vsub.f32 %v4444, %v4476
    %v4485 = vsub.f32 %v4445, %v4477
    %v4486 = vmul.f32 %v4478, %v4478
    %v4487 = vmul.f32 %v4479, %v4479
    %v4488 = vmul.f32 %v4480, %v4480
    %v4489 = vmul.f32 %v4481, %v4481
    %v4490 = vmul.f32 %v4482, %v4482
    %v4491 = vmul.f32 %v4483, %v4483
    %v4492 = vmul.f32 %v4484, %v4484
    %v4493 = vmul.f32 %v4485, %v4485
    %v4494 = vsel %vm561, %v4486, 0.0
    %4495 = vadd.xlane.f32.xlu0 %v4494
    %v4496 = vpop.xlane.xlu0 %4495
    %v4497 = vsel %vm561, %v4487, 0.0
    %4498 = vadd.xlane.f32.xlu0 %v4497
    %v4499 = vpop.xlane.xlu0 %4498
    %v4500 = vsel %vm561, %v4488, 0.0
    %4501 = vadd.xlane.f32.xlu0 %v4500
    %v4502 = vpop.xlane.xlu0 %4501
    %v4503 = vsel %vm561, %v4489, 0.0
    %4504 = vadd.xlane.f32.xlu0 %v4503
    %v4505 = vpop.xlane.xlu0 %4504
    %v4506 = vsel %vm561, %v4490, 0.0
    %4507 = vadd.xlane.f32.xlu0 %v4506
    %v4508 = vpop.xlane.xlu0 %4507
    %v4509 = vsel %vm561, %v4491, 0.0
    %4510 = vadd.xlane.f32.xlu0 %v4509
    %v4511 = vpop.xlane.xlu0 %4510
    %v4512 = vsel %vm561, %v4492, 0.0
    %4513 = vadd.xlane.f32.xlu0 %v4512
    %v4514 = vpop.xlane.xlu0 %4513
    %v4515 = vsel %vm561, %v4493, 0.0
    %4516 = vadd.xlane.f32.xlu0 %v4515
    %v4517 = vpop.xlane.xlu0 %4516
    %v4518 = vmul.f32 %v4496, %v2452
    %v4519 = vmul.f32 %v4499, %v2452
    %v4520 = vmul.f32 %v4502, %v2452
    %v4521 = vmul.f32 %v4505, %v2452
    %v4522 = vmul.f32 %v4508, %v2452
    %v4523 = vmul.f32 %v4511, %v2452
    %v4524 = vmul.f32 %v4514, %v2452
    %v4525 = vmul.f32 %v4517, %v2452
    %v4526 = vadd.f32 %v4518, 1e-05
    %v4527 = vadd.f32 %v4519, 1e-05
    %v4528 = vadd.f32 %v4520, 1e-05
    %v4529 = vadd.f32 %v4521, 1e-05
    %v4530 = vadd.f32 %v4522, 1e-05
    %v4531 = vadd.f32 %v4523, 1e-05
    %v4532 = vadd.f32 %v4524, 1e-05
    %v4533 = vadd.f32 %v4525, 1e-05
    %v4534 = vrsqrt.pop %v4526
    %v4535 = vrsqrt.pop %v4527
    %v4536 = vrsqrt.pop %v4528
    %v4537 = vrsqrt.pop %v4529
    %v4538 = vrsqrt.pop %v4530
    %v4539 = vrsqrt.pop %v4531
    %v4540 = vrsqrt.pop %v4532
    %v4541 = vrsqrt.pop %v4533
    %v4542 = vmul.f32 %v4478, %v4534
    %v4543 = vmul.f32 %v4479, %v4535
    %v4544 = vmul.f32 %v4480, %v4536
    %v4545 = vmul.f32 %v4481, %v4537
    %v4546 = vmul.f32 %v4482, %v4538
    %v4547 = vmul.f32 %v4483, %v4539
    %v4548 = vmul.f32 %v4484, %v4540
    %v4549 = vmul.f32 %v4485, %v4541
    %v4551 = vlaneseq
    %v4552 = vshrl.u32 %v4551, 7
    %v4553 = vsub.s32 0, %v4552
    %v4554 = vrot.slane %v465, %v4553
    %v4556 = vmul.f32 %v4542, %v4554
    %v4557 = vmul.f32 %v4543, %v4554
    %v4558 = vmul.f32 %v4544, %v4554
    %v4559 = vmul.f32 %v4545, %v4554
    %v4560 = vmul.f32 %v4546, %v4554
    %v4561 = vmul.f32 %v4547, %v4554
    %v4562 = vmul.f32 %v4548, %v4554
    %v4563 = vmul.f32 %v4549, %v4554
    %v4565 = vlaneseq
    %v4566 = vshrl.u32 %v4565, 7
    %v4567 = vsub.s32 0, %v4566
    %v4568 = vrot.slane %v466, %v4567
    %v4570 = vadd.f32 %v4556, %v4568
    %v4571 = vadd.f32 %v4557, %v4568
    %v4572 = vadd.f32 %v4558, %v4568
    %v4573 = vadd.f32 %v4559, %v4568
    %v4574 = vadd.f32 %v4560, %v4568
    %v4575 = vadd.f32 %v4561, %v4568
    %v4576 = vadd.f32 %v4562, %v4568
    %v4577 = vadd.f32 %v4563, %v4568
    %v4578 = vpack.c.bf16 %v4571, %v4570
    %v4579 = vpack.c.bf16 %v4573, %v4572
    %v4580 = vpack.c.bf16 %v4575, %v4574
    %v4581 = vpack.c.bf16 %v4577, %v4576
    %v4583 = vlaneseq
    %v4584 = vshrl.u32 %v4583, 7
    %v4585 = vsub.s32 0, %v4584
    %v4586 = vrot.slane %v471, %v4585
    %v4592 = vunpack.c.l.b16 %v467
    %v4593 = vunpack.c.l.b16 %v468
    %v4594 = vunpack.c.l.b16 %v469
    %v4595 = vunpack.c.l.b16 %v470
    %v4596 = vpack.c.b16 %v4593, %v4592
    %v4597 = vpack.c.b16 %v4595, %v4594
    %v4601 = vsel %vm561, %v4578, 0
    %v4604 = vsel %vm561, %v4579, 0
    %v4607 = vsel %vm561, %v4580, 0
    %v4610 = vsel %vm561, %v4581, 0
    %4612 = vmatprep.subr.bf16.mxu0 0
    %4613 = vmatpush1.bf16.msra.mxu0 %v4596
    %4614 = vmatprep.subr.bf16.mxu0 0
    %4615 = vmatpush1.bf16.msra.mxu0 %v4597
    %4616 = vmatprep.subr.bf16.mxu0 0
    %4617 = vmatpush1.bf16.msra.mxu0 0
    %4618 = vmatprep.subr.bf16.mxu0 0
    %4619 = vmatpush1.bf16.msra.mxu0 0
    %4620 = vmatprep.subr.bf16.mxu0 0
    %4621 = vmatpush1.bf16.msra.mxu0 0
    %4622 = vmatprep.subr.bf16.mxu0 0
    %4623 = vmatpush1.bf16.msra.mxu0 0
    %4624 = vmatprep.subr.bf16.mxu0 0
    %4625 = vmatpush1.bf16.msra.mxu0 0
    %4626 = vmatprep.subr.bf16.mxu0 0
    %4627 = vmatpush1.bf16.msra.mxu0 0
    %4628 = vmatprep.subr.bf16.mxu0 0
    %4629 = vmatpush1.bf16.msra.mxu0 0
    %4630 = vmatprep.subr.bf16.mxu0 0
    %4631 = vmatpush1.bf16.msra.mxu0 0
    %4632 = vmatprep.subr.bf16.mxu0 0
    %4633 = vmatpush1.bf16.msra.mxu0 0
    %4634 = vmatprep.subr.bf16.mxu0 0
    %4635 = vmatpush1.bf16.msra.mxu0 0
    %4636 = vmatprep.subr.bf16.mxu0 0
    %4637 = vmatpush1.bf16.msra.mxu0 0
    %4638 = vmatprep.subr.bf16.mxu0 0
    %4639 = vmatpush1.bf16.msra.mxu0 0
    %4640 = vmatprep.subr.bf16.mxu0 0
    %4641 = vmatpush1.bf16.msra.mxu0 0
    %4642 = vmatprep.subr.bf16.mxu0 0
    %4643 = vmatpush1.bf16.msra.mxu0 0
    %4644 = vmatprep.mubr.bf16.mxu0 0
    %4645 = vmatmul.mubr.bf16.gmra.mrb[0].mxu0 %v4601
    %v4646 = vpop.f32.mrb[0].mxu0
    %v4647 = vadd.f32 %v4586, %v4646
    %v4648 = vpop.f32.mrb[0].mxu0
    %v4649 = vpop.f32.mrb[0].mxu0
    %v4650 = vadd.f32 %v4586, %v4649
    %v4651 = vpop.f32.mrb[0].mxu0
    %4652 = vmatprep.mubr.bf16.mxu0 0
    %4653 = vmatmul.mubr.bf16.gmra.mrb[0].mxu0 %v4604
    %v4654 = vpop.f32.mrb[0].mxu0
    %v4655 = vadd.f32 %v4586, %v4654
    %v4656 = vpop.f32.mrb[0].mxu0
    %v4657 = vpop.f32.mrb[0].mxu0
    %v4658 = vadd.f32 %v4586, %v4657
    %v4659 = vpop.f32.mrb[0].mxu0
    %4660 = vmatprep.mubr.bf16.mxu0 0
    %4661 = vmatmul.mubr.bf16.gmra.mrb[0].mxu0 %v4607
    %v4662 = vpop.f32.mrb[0].mxu0
    %v4663 = vadd.f32 %v4586, %v4662
    %v4664 = vpop.f32.mrb[0].mxu0
    %v4665 = vpop.f32.mrb[0].mxu0
    %v4666 = vadd.f32 %v4586, %v4665
    %v4667 = vpop.f32.mrb[0].mxu0
    %4668 = vmatprep.mubr.bf16.mxu0 0
    %4669 = vmatmul.mubr.bf16.gmra.mrb[0].mxu0 %v4610
    %v4670 = vpop.f32.mrb[0].mxu0
    %v4671 = vadd.f32 %v4586, %v4670
    %v4672 = vpop.f32.mrb[0].mxu0
    %v4673 = vpop.f32.mrb[0].mxu0
    %v4674 = vadd.f32 %v4586, %v4673
    %v4675 = vpop.f32.mrb[0].mxu0
    %4676 = vdwg.mxu0
    %v4677 = vmax.f32 %v4647, 0.0
    %v4678 = vmax.f32 %v4650, 0.0
    %v4679 = vmax.f32 %v4655, 0.0
    %v4680 = vmax.f32 %v4658, 0.0
    %v4681 = vmax.f32 %v4663, 0.0
    %v4682 = vmax.f32 %v4666, 0.0
    %v4683 = vmax.f32 %v4671, 0.0
    %v4684 = vmax.f32 %v4674, 0.0
    %v4685 = vpack.c.bf16 %v4678, %v4677
    %v4686 = vpack.c.bf16 %v4680, %v4679
    %v4687 = vpack.c.bf16 %v4682, %v4681
    %v4688 = vpack.c.bf16 %v4684, %v4683
    %v4690 = vlaneseq
    %v4691 = vshrl.u32 %v4690, 7
    %v4692 = vsub.s32 0, %v4691
    %v4693 = vrot.slane %v480, %v4692
    %v4703 = vunpack.c.l.b16 %v472
    %v4704 = vunpack.c.l.b16 %v473
    %v4705 = vunpack.c.l.b16 %v474
    %v4706 = vunpack.c.l.b16 %v475
    %v4707 = vunpack.c.l.b16 %v476
    %v4708 = vunpack.c.l.b16 %v477
    %v4709 = vunpack.c.l.b16 %v478
    %v4710 = vunpack.c.l.b16 %v479
    %v4711 = vpack.c.b16 %v4704, %v4703
    %v4712 = vpack.c.b16 %v4706, %v4705
    %v4713 = vpack.c.b16 %v4708, %v4707
    %v4714 = vpack.c.b16 %v4710, %v4709
    %v4720 = vsel %vm2342, %v4685, 0
    %v4723 = vsel %vm2342, %v4686, 0
    %v4726 = vsel %vm2342, %v4687, 0
    %v4729 = vsel %vm2342, %v4688, 0
    %4731 = vmatprep.subr.bf16.mxu0 0
    %4732 = vmatpush1.bf16.msra.mxu0 %v4711
    %4733 = vmatprep.subr.bf16.mxu0 0
    %4734 = vmatpush1.bf16.msra.mxu0 %v4712
    %4735 = vmatprep.subr.bf16.mxu0 0
    %4736 = vmatpush1.bf16.msra.mxu0 %v4713
    %4737 = vmatprep.subr.bf16.mxu0 0
    %4738 = vmatpush1.bf16.msra.mxu0 %v4714
    %4739 = vmatprep.subr.bf16.mxu0 0
    %4740 = vmatpush1.bf16.msra.mxu0 0
    %4741 = vmatprep.subr.bf16.mxu0 0
    %4742 = vmatpush1.bf16.msra.mxu0 0
    %4743 = vmatprep.subr.bf16.mxu0 0
    %4744 = vmatpush1.bf16.msra.mxu0 0
    %4745 = vmatprep.subr.bf16.mxu0 0
    %4746 = vmatpush1.bf16.msra.mxu0 0
    %4747 = vmatprep.subr.bf16.mxu0 0
    %4748 = vmatpush1.bf16.msra.mxu0 0
    %4749 = vmatprep.subr.bf16.mxu0 0
    %4750 = vmatpush1.bf16.msra.mxu0 0
    %4751 = vmatprep.subr.bf16.mxu0 0
    %4752 = vmatpush1.bf16.msra.mxu0 0
    %4753 = vmatprep.subr.bf16.mxu0 0
    %4754 = vmatpush1.bf16.msra.mxu0 0
    %4755 = vmatprep.subr.bf16.mxu0 0
    %4756 = vmatpush1.bf16.msra.mxu0 0
    %4757 = vmatprep.subr.bf16.mxu0 0
    %4758 = vmatpush1.bf16.msra.mxu0 0
    %4759 = vmatprep.subr.bf16.mxu0 0
    %4760 = vmatpush1.bf16.msra.mxu0 0
    %4761 = vmatprep.subr.bf16.mxu0 0
    %4762 = vmatpush1.bf16.msra.mxu0 0
    %4763 = vmatprep.mubr.bf16.mxu0 0
    %4764 = vmatmul.mubr.bf16.gmra.mrb[0].mxu0 %v4720
    %v4765 = vpop.f32.mrb[0].mxu0
    %v4766 = vadd.f32 %v4693, %v4765
    %v4767 = vpop.f32.mrb[0].mxu0
    %v4768 = vpop.f32.mrb[0].mxu0
    %v4769 = vadd.f32 %v4693, %v4768
    %v4770 = vpop.f32.mrb[0].mxu0
    %4771 = vmatprep.mubr.bf16.mxu0 0
    %4772 = vmatmul.mubr.bf16.gmra.mrb[0].mxu0 %v4723
    %v4773 = vpop.f32.mrb[0].mxu0
    %v4774 = vadd.f32 %v4693, %v4773
    %v4775 = vpop.f32.mrb[0].mxu0
    %v4776 = vpop.f32.mrb[0].mxu0
    %v4777 = vadd.f32 %v4693, %v4776
    %v4778 = vpop.f32.mrb[0].mxu0
    %4779 = vmatprep.mubr.bf16.mxu0 0
    %4780 = vmatmul.mubr.bf16.gmra.mrb[0].mxu0 %v4726
    %v4781 = vpop.f32.mrb[0].mxu0
    %v4782 = vadd.f32 %v4693, %v4781
    %v4783 = vpop.f32.mrb[0].mxu0
    %v4784 = vpop.f32.mrb[0].mxu0
    %v4785 = vadd.f32 %v4693, %v4784
    %v4786 = vpop.f32.mrb[0].mxu0
    %4787 = vmatprep.mubr.bf16.mxu0 0
    %4788 = vmatmul.mubr.bf16.gmra.mrb[0].mxu0 %v4729
    %v4789 = vpop.f32.mrb[0].mxu0
    %v4790 = vadd.f32 %v4693, %v4789
    %v4791 = vpop.f32.mrb[0].mxu0
    %v4792 = vpop.f32.mrb[0].mxu0
    %v4793 = vadd.f32 %v4693, %v4792
    %v4794 = vpop.f32.mrb[0].mxu0
    %4795 = vdwg.mxu0
    %v4796 = vadd.f32 %v4766, %v4570
    %v4797 = vadd.f32 %v4769, %v4571
    %v4798 = vadd.f32 %v4774, %v4572
    %v4799 = vadd.f32 %v4777, %v4573
    %v4800 = vadd.f32 %v4782, %v4574
    %v4801 = vadd.f32 %v4785, %v4575
    %v4802 = vadd.f32 %v4790, %v4576
    %v4803 = vadd.f32 %v4793, %v4577
    %v4804 = vsel %vm561, %v4796, 0.0
    %4805 = vadd.xlane.f32.xlu0 %v4804
    %v4806 = vpop.xlane.xlu0 %4805
    %v4807 = vsel %vm561, %v4797, 0.0
    %4808 = vadd.xlane.f32.xlu0 %v4807
    %v4809 = vpop.xlane.xlu0 %4808
    %v4810 = vsel %vm561, %v4798, 0.0
    %4811 = vadd.xlane.f32.xlu0 %v4810
    %v4812 = vpop.xlane.xlu0 %4811
    %v4813 = vsel %vm561, %v4799, 0.0
    %4814 = vadd.xlane.f32.xlu0 %v4813
    %v4815 = vpop.xlane.xlu0 %4814
    %v4816 = vsel %vm561, %v4800, 0.0
    %4817 = vadd.xlane.f32.xlu0 %v4816
    %v4818 = vpop.xlane.xlu0 %4817
    %v4819 = vsel %vm561, %v4801, 0.0
    %4820 = vadd.xlane.f32.xlu0 %v4819
    %v4821 = vpop.xlane.xlu0 %4820
    %v4822 = vsel %vm561, %v4802, 0.0
    %4823 = vadd.xlane.f32.xlu0 %v4822
    %v4824 = vpop.xlane.xlu0 %4823
    %v4825 = vsel %vm561, %v4803, 0.0
    %4826 = vadd.xlane.f32.xlu0 %v4825
    %v4827 = vpop.xlane.xlu0 %4826
    %v4828 = vmul.f32 %v4806, %v2452
    %v4829 = vmul.f32 %v4809, %v2452
    %v4830 = vmul.f32 %v4812, %v2452
    %v4831 = vmul.f32 %v4815, %v2452
    %v4832 = vmul.f32 %v4818, %v2452
    %v4833 = vmul.f32 %v4821, %v2452
    %v4834 = vmul.f32 %v4824, %v2452
    %v4835 = vmul.f32 %v4827, %v2452
    %v4836 = vsub.f32 %v4796, %v4828
    %v4837 = vsub.f32 %v4797, %v4829
    %v4838 = vsub.f32 %v4798, %v4830
    %v4839 = vsub.f32 %v4799, %v4831
    %v4840 = vsub.f32 %v4800, %v4832
    %v4841 = vsub.f32 %v4801, %v4833
    %v4842 = vsub.f32 %v4802, %v4834
    %v4843 = vsub.f32 %v4803, %v4835
    %v4844 = vmul.f32 %v4836, %v4836
    %v4845 = vmul.f32 %v4837, %v4837
    %v4846 = vmul.f32 %v4838, %v4838
    %v4847 = vmul.f32 %v4839, %v4839
    %v4848 = vmul.f32 %v4840, %v4840
    %v4849 = vmul.f32 %v4841, %v4841
    %v4850 = vmul.f32 %v4842, %v4842
    %v4851 = vmul.f32 %v4843, %v4843
    %v4852 = vsel %vm561, %v4844, 0.0
    %4853 = vadd.xlane.f32.xlu0 %v4852
    %v4854 = vpop.xlane.xlu0 %4853
    %v4855 = vsel %vm561, %v4845, 0.0
    %4856 = vadd.xlane.f32.xlu0 %v4855
    %v4857 = vpop.xlane.xlu0 %4856
    %v4858 = vsel %vm561, %v4846, 0.0
    %4859 = vadd.xlane.f32.xlu0 %v4858
    %v4860 = vpop.xlane.xlu0 %4859
    %v4861 = vsel %vm561, %v4847, 0.0
    %4862 = vadd.xlane.f32.xlu0 %v4861
    %v4863 = vpop.xlane.xlu0 %4862
    %v4864 = vsel %vm561, %v4848, 0.0
    %4865 = vadd.xlane.f32.xlu0 %v4864
    %v4866 = vpop.xlane.xlu0 %4865
    %v4867 = vsel %vm561, %v4849, 0.0
    %4868 = vadd.xlane.f32.xlu0 %v4867
    %v4869 = vpop.xlane.xlu0 %4868
    %v4870 = vsel %vm561, %v4850, 0.0
    %4871 = vadd.xlane.f32.xlu0 %v4870
    %v4872 = vpop.xlane.xlu0 %4871
    %v4873 = vsel %vm561, %v4851, 0.0
    %4874 = vadd.xlane.f32.xlu0 %v4873
    %v4875 = vpop.xlane.xlu0 %4874
    %v4876 = vmul.f32 %v4854, %v2452
    %v4877 = vmul.f32 %v4857, %v2452
    %v4878 = vmul.f32 %v4860, %v2452
    %v4879 = vmul.f32 %v4863, %v2452
    %v4880 = vmul.f32 %v4866, %v2452
    %v4881 = vmul.f32 %v4869, %v2452
    %v4882 = vmul.f32 %v4872, %v2452
    %v4883 = vmul.f32 %v4875, %v2452
    %v4884 = vadd.f32 %v4876, 1e-05
    %v4885 = vadd.f32 %v4877, 1e-05
    %v4886 = vadd.f32 %v4878, 1e-05
    %v4887 = vadd.f32 %v4879, 1e-05
    %v4888 = vadd.f32 %v4880, 1e-05
    %v4889 = vadd.f32 %v4881, 1e-05
    %v4890 = vadd.f32 %v4882, 1e-05
    %v4891 = vadd.f32 %v4883, 1e-05
    %v4892 = vrsqrt.pop %v4884
    %v4893 = vrsqrt.pop %v4885
    %v4894 = vrsqrt.pop %v4886
    %v4895 = vrsqrt.pop %v4887
    %v4896 = vrsqrt.pop %v4888
    %v4897 = vrsqrt.pop %v4889
    %v4898 = vrsqrt.pop %v4890
    %v4899 = vrsqrt.pop %v4891
    %v4900 = vmul.f32 %v4836, %v4892
    %v4901 = vmul.f32 %v4837, %v4893
    %v4902 = vmul.f32 %v4838, %v4894
    %v4903 = vmul.f32 %v4839, %v4895
    %v4904 = vmul.f32 %v4840, %v4896
    %v4905 = vmul.f32 %v4841, %v4897
    %v4906 = vmul.f32 %v4842, %v4898
    %v4907 = vmul.f32 %v4843, %v4899
    %v4909 = vlaneseq
    %v4910 = vshrl.u32 %v4909, 7
    %v4911 = vsub.s32 0, %v4910
    %v4912 = vrot.slane %v481, %v4911
    %v4914 = vmul.f32 %v4900, %v4912
    %v4915 = vmul.f32 %v4901, %v4912
    %v4916 = vmul.f32 %v4902, %v4912
    %v4917 = vmul.f32 %v4903, %v4912
    %v4918 = vmul.f32 %v4904, %v4912
    %v4919 = vmul.f32 %v4905, %v4912
    %v4920 = vmul.f32 %v4906, %v4912
    %v4921 = vmul.f32 %v4907, %v4912
    %v4923 = vlaneseq
    %v4924 = vshrl.u32 %v4923, 7
    %v4925 = vsub.s32 0, %v4924
    %v4926 = vrot.slane %v482, %v4925
    %v4928 = vadd.f32 %v4914, %v4926
    %v4929 = vadd.f32 %v4915, %v4926
    %v4930 = vadd.f32 %v4916, %v4926
    %v4931 = vadd.f32 %v4917, %v4926
    %v4932 = vadd.f32 %v4918, %v4926
    %v4933 = vadd.f32 %v4919, %v4926
    %v4934 = vadd.f32 %v4920, %v4926
    %v4935 = vadd.f32 %v4921, %v4926
    %4936 = vst.msk [vmem:[#allocation44] sm:$0xff] %vm561, %v4928
    %4937 = vst.msk [vmem:[#allocation44 + $0x8] sm:$0xff] %vm561, %v4929
    %4938 = vst.msk [vmem:[#allocation44 + $0x10] sm:$0xff] %vm561, %v4930
    %4939 = vst.msk [vmem:[#allocation44 + $0x18] sm:$0xff] %vm561, %v4931
    %4940 = vst.msk [vmem:[#allocation44 + $0x20] sm:$0xff] %vm561, %v4932
    %4941 = vst.msk [vmem:[#allocation44 + $0x28] sm:$0xff] %vm561, %v4933
    %4942 = vst.msk [vmem:[#allocation44 + $0x30] sm:$0xff] %vm561, %v4934
    %4943 = vst.msk [vmem:[#allocation44 + $0x38] sm:$0xff] %vm561, %v4935
    // Predicated region
    $region218: #{tpu_custom_call.1} parent=1 // pred_check
      _
    $region219: #{tpu_custom_call.1} parent=1 // pred_check_branch
      %4945 = sbr.rel (0) target = $region221
    $region220: #{tpu_custom_call.1} parent=1 // pred_region
      %s4947 = ssub.s32 1024, 1024
      %4948 = vsyncadd [#allocation4], %s4947
      %s4949 = sshll.u32 [#allocation44], 4
      %s4950 = int_to_ptr.vmem [resolvable:$true] %s4949
      %4955 = dma.vmem_to_hbm [thread:$0]  %s4950, 1024, %s27, [#allocation4], 128, 128, 8
    $region221: #{tpu_custom_call.1} parent=1 // pred_fallthru
      _
    // Predicated region
    $region222: #{tpu_custom_call.1} parent=1 // pred_check
      _
    $region223: #{tpu_custom_call.1} parent=1 // pred_check_branch
      %4957 = sbr.rel (0) target = $region225
    $region224: #{tpu_custom_call.1} parent=1 // pred_region
      %4958 = dma.done [#allocation4], 1024
    $region225: #{tpu_custom_call.1} parent=1 // pred_fallthru
      _
    %4959 = vsyncpa [#allocation3], 1
    %4960 = vsyncpa [#allocation6], 1
    %4961 = vsyncpa [#allocation9], 1
    %4962 = vsyncpa [#allocation12], 1
    %4963 = vsyncpa [#allocation15], 1
    %4964 = vsyncpa [#allocation18], 1
    %4965 = vsyncpa [#allocation21], 1
    %4966 = vsyncpa [#allocation24], 1
    %4967 = vsyncpa [#allocation27], 1
    %4968 = vsyncpa [#allocation30], 1
    %4969 = vsyncpa [#allocation33], 1
    %4970 = vsyncpa [#allocation36], 1
    %4971 = vsyncpa [#allocation39], 1
    %4972 = vsyncpa [#allocation42], 1
    %4973 = vsyncpa [#allocation4], 1

// kernel: tpu_custom_call.1
$region0: #{tpu_custom_call.1}
  #allocation0 [shape = 'u32[]', space=smem, size = 0x4, offset = 0x4, fixed_abs, tag = 'smem constant byte address 0x4 - core index']
  #allocation1 [shape = 'u32[144,128]{1,0:T(1,128)}', space=vmem, size = 0x12000, scoped, tag = 'internal scratch']
  %s0 = inlined_call_operand.hbm [shape: f32[2,32,32], index: 0, kind: input, shape index: {}]
  %s1 = inlined_call_operand.hbm [shape: f32[2,32,32], index: 1, kind: input, shape index: {}]
  %s2 = inlined_call_operand.hbm [shape: f32[2,32,32], index: 2, kind: input, shape index: {}]
  %s3 = inlined_call_operand.hbm [shape: bf16[2,32,32], index: 3, kind: input, shape index: {}]
  %s4 = inlined_call_operand.hbm [shape: bf16[2,32,32], index: 4, kind: input, shape index: {}]
  %s5 = inlined_call_operand.hbm [shape: bf16[32,64], index: 5, kind: input, shape index: {}]
  %s6 = inlined_call_operand.hbm [shape: f32[1,64], index: 6, kind: input, shape index: {}]
  %s7 = inlined_call_operand.hbm [shape: bf16[32,128], index: 7, kind: input, shape index: {}]
  %s8 = inlined_call_operand.hbm [shape: f32[1,128], index: 8, kind: input, shape index: {}]
  %s9 = inlined_call_operand.hbm [shape: bf16[64,32], index: 9, kind: input, shape index: {}]
  %s10 = inlined_call_operand.hbm [shape: f32[1,32], index: 10, kind: input, shape index: {}]
  %s11 = inlined_call_operand.hbm [shape: f32[1,32], index: 11, kind: input, shape index: {}]
  %s12 = inlined_call_operand.hbm [shape: f32[1,32], index: 12, kind: input, shape index: {}]
  %s13 = inlined_call_operand.hbm [shape: bf16[32,64], index: 13, kind: input, shape index: {}]
  %s14 = inlined_call_operand.hbm [shape: f32[1,64], index: 14, kind: input, shape index: {}]
  %s15 = inlined_call_operand.hbm [shape: bf16[32,128], index: 15, kind: input, shape index: {}]
  %s16 = inlined_call_operand.hbm [shape: f32[1,128], index: 16, kind: input, shape index: {}]
  %s17 = inlined_call_operand.hbm [shape: bf16[64,32], index: 17, kind: input, shape index: {}]
  %s18 = inlined_call_operand.hbm [shape: f32[1,32], index: 18, kind: input, shape index: {}]
  %s19 = inlined_call_operand.hbm [shape: f32[1,32], index: 19, kind: input, shape index: {}]
  %s20 = inlined_call_operand.hbm [shape: f32[1,32], index: 20, kind: input, shape index: {}]
  %s21 = inlined_call_operand.hbm [shape: bf16[32,64], index: 21, kind: input, shape index: {}]
  %s22 = inlined_call_operand.hbm [shape: f32[1,64], index: 22, kind: input, shape index: {}]
  %s23 = inlined_call_operand.hbm [shape: bf16[64,32], index: 23, kind: input, shape index: {}]
  %s24 = inlined_call_operand.hbm [shape: f32[1,32], index: 24, kind: input, shape index: {}]
  %s25 = inlined_call_operand.hbm [shape: f32[1,32], index: 25, kind: input, shape index: {}]
  %s26 = inlined_call_operand.hbm [shape: f32[1,32], index: 26, kind: input, shape index: {}]
  %s27 = inlined_call_operand.hbm [shape: f32[2,32,32], index: 27, kind: output, shape index: {}]
  %s28 = sld [smem:[#allocation0]]
  $region226: #{tpu_custom_call.1} parent=0
    _
  %s30 = ssub.s32 1, %s28
  %s31 = scalar_select 0, %s30, %s28
  $region1: #{tpu_custom_call.1} parent=0
    #allocation2 [shape = 'u8[32768]{0}', space=vmem, size = 0x8000, scoped, tag = 'input window, operand 0, single buffered']
    #allocation3 [shape = 's32[1]{0}', space=sflag, size = 0x4, scoped, tag = 'scoped memory for tpu_custom_call.1']
    #allocation4 [shape = 's32[1]{0}', space=sflag, size = 0x4, scoped, tag = 'scoped memory for tpu_custom_call.1']
    #allocation5 [shape = 'u8[32768]{0}', space=vmem, size = 0x8000, scoped, tag = 'input window, operand 1, single buffered']
    #allocation6 [shape = 's32[1]{0}', space=sflag, size = 0x4, scoped, tag = 'scoped memory for tpu_custom_call.1']
    #allocation7 [shape = 'u8[32768]{0}', space=vmem, size = 0x8000, scoped, tag = 'input window, operand 2, single buffered']
    #allocation8 [shape = 'u8[16384]{0}', space=vmem, size = 0x4000, scoped, tag = 'input window, operand 3, single buffered']
    #allocation9 [shape = 's32[1]{0}', space=sflag, size = 0x4, scoped, tag = 'scoped memory for tpu_custom_call.1']
    #allocation10 [shape = 'u8[16384]{0}', space=vmem, size = 0x4000, scoped, tag = 'input window, operand 4, single buffered']
    #allocation11 [shape = 'u8[8192]{0}', space=vmem, size = 0x2000, scoped, tag = 'input window, operand 5, single buffered']
    #allocation12 [shape = 's32[1]{0}', space=sflag, size = 0x4, scoped, tag = 'scoped memory for tpu_custom_call.1']
    #allocation13 [shape = 'u8[512]{0}', space=vmem, size = 0x400, scoped, tag = 'input window, operand 6, single buffered']
    #allocation14 [shape = 'u8[8192]{0}', space=vmem, size = 0x2000, scoped, tag = 'input window, operand 7, single buffered']
    #allocation15 [shape = 's32[1]{0}', space=sflag, size = 0x4, scoped, tag = 'scoped memory for tpu_custom_call.1']
    #allocation16 [shape = 'u8[512]{0}', space=vmem, size = 0x400, scoped, tag = 'input window, operand 8, single buffered']
    #allocation17 [shape = 'u8[16384]{0}', space=vmem, size = 0x4000, scoped, tag = 'input window, operand 9, single buffered']
    #allocation18 [shape = 's32[1]{0}', space=sflag, size = 0x4, scoped, tag = 'scoped memory for tpu_custom_call.1']
    #allocation19 [shape = 'u8[512]{0}', space=vmem, size = 0x400, scoped, tag = 'input window, operand 10, single buffered']
    #allocation20 [shape = 'u8[512]{0}', space=vmem, size = 0x400, scoped, tag = 'input window, operand 11, single buffered']
    #allocation21 [shape = 's32[1]{0}', space=sflag, size = 0x4, scoped, tag = 'scoped memory for tpu_custom_call.1']
    #allocation22 [shape = 'u8[512]{0}', space=vmem, size = 0x400, scoped, tag = 'input window, operand 12, single buffered']
    #allocation23 [shape = 'u8[8192]{0}', space=vmem, size = 0x2000, scoped, tag = 'input window, operand 13, single buffered']
    #allocation24 [shape = 's32[1]{0}', space=sflag, size = 0x4, scoped, tag = 'scoped memory for tpu_custom_call.1']
    #allocation25 [shape = 'u8[512]{0}', space=vmem, size = 0x400, scoped, tag = 'input window, operand 14, single buffered']
    #allocation26 [shape = 'u8[8192]{0}', space=vmem, size = 0x2000, scoped, tag = 'input window, operand 15, single buffered']
    #allocation27 [shape = 's32[1]{0}', space=sflag, size = 0x4, scoped, tag = 'scoped memory for tpu_custom_call.1']
    #allocation28 [shape = 'u8[512]{0}', space=vmem, size = 0x400, scoped, tag = 'input window, operand 16, single buffered']
    #allocation29 [shape = 'u8[16384]{0}', space=vmem, size = 0x4000, scoped, tag = 'input window, operand 17, single buffered']
    #allocation30 [shape = 's32[1]{0}', space=sflag, size = 0x4, scoped, tag = 'scoped memory for tpu_custom_call.1']
    #allocation31 [shape = 'u8[512]{0}', space=vmem, size = 0x400, scoped, tag = 'input window, operand 18, single buffered']
    #allocation32 [shape = 'u8[512]{0}', space=vmem, size = 0x400, scoped, tag = 'input window, operand 19, single buffered']
    #allocation33 [shape = 's32[1]{0}', space=sflag, size = 0x4, scoped, tag = 'scoped memory for tpu_custom_call.1']
    #allocation34 [shape = 'u8[512]{0}', space=vmem, size = 0x400, scoped, tag = 'input window, operand 20, single buffered']
    #allocation35 [shape = 'u8[8192]{0}', space=vmem, size = 0x2000, scoped, tag = 'input window, operand 21, single buffered']
    #allocation36 [shape = 's32[1]{0}', space=sflag, size = 0x4, scoped, tag = 'scoped memory for tpu_custom_call.1']
    #allocation37 [shape = 'u8[512]{0}', space=vmem, size = 0x400, scoped, tag = 'input window, operand 22, single buffered']
    #allocation38 [shape = 'u8[16384]{0}', space=vmem, size = 0x4000, scoped, tag = 'input window, operand 23, single buffered']
    #allocation39 [shape = 's32[1]{0}', space=sflag, size = 0x4, scoped, tag = 'scoped memory for tpu_custom_call.1']
    #allocation40 [shape = 'u8[512]{0}', space=vmem, size = 0x400, scoped, tag = 'input window, operand 24, single buffered']
    #allocation41 [shape = 'u8[512]{0}', space=vmem, size = 0x400, scoped, tag = 'input window, operand 25, single buffered']
    #allocation42 [shape = 's32[1]{0}', space=sflag, size = 0x4, scoped, tag = 'scoped memory for tpu_custom_call.1']
    #allocation43 [shape = 'u8[512]{0}', space=vmem, size = 0x400, scoped, tag = 'input window, operand 26, single buffered']
    #allocation44 [shape = 'u8[32768]{0}', space=vmem, size = 0x8000, scoped, tag = 'output window, operand 0, single buffered']
    %32 = vsyncpa [#allocation3], 0
    %33 = vsyncpa [#allocation6], 0
    %34 = vsyncpa [#allocation9], 0
    %35 = vsyncpa [#allocation12], 0
    %36 = vsyncpa [#allocation15], 0
    %37 = vsyncpa [#allocation18], 0
    %38 = vsyncpa [#allocation21], 0
    %39 = vsyncpa [#allocation24], 0
    %40 = vsyncpa [#allocation27], 0
    %41 = vsyncpa [#allocation30], 0
    %42 = vsyncpa [#allocation33], 0
    %43 = vsyncpa [#allocation36], 0
    %44 = vsyncpa [#allocation39], 0
    %45 = vsyncpa [#allocation42], 0
    %46 = vsyncpa [#allocation4], 0
    // Predicated region
    $region2: #{tpu_custom_call.1} parent=1 // pred_check
      _
    $region3: #{tpu_custom_call.1} parent=1 // pred_check_branch
      %48 = sbr.rel (0) target = $region5
    $region4: #{tpu_custom_call.1} parent=1 // pred_region
      %s50 = ssub.s32 1024, 1024
      %51 = vsyncadd [#allocation3], %s50
      %s52 = sshll.u32 [#allocation2], 4
      %s53 = int_to_ptr.vmem [resolvable:$true] %s52
      %58 = dma.hbm_to_vmem [thread:$0]  %s0, 1024, %s53, [#allocation3], 128, 128, 8
    $region5: #{tpu_custom_call.1} parent=1 // pred_fallthru
      _
    // Predicated region
    $region6: #{tpu_custom_call.1} parent=1 // pred_check
      _
    $region7: #{tpu_custom_call.1} parent=1 // pred_check_branch
      %60 = sbr.rel (0) target = $region9
    $region8: #{tpu_custom_call.1} parent=1 // pred_region
      %s62 = ssub.s32 1024, 1024
      %63 = vsyncadd [#allocation6], %s62
      %s64 = sshll.u32 [#allocation5], 4
      %s65 = int_to_ptr.vmem [resolvable:$true] %s64
      %70 = dma.hbm_to_vmem [thread:$0]  %s1, 1024, %s65, [#allocation6], 128, 128, 8
    $region9: #{tpu_custom_call.1} parent=1 // pred_fallthru
      _
    // Predicated region
    $region10: #{tpu_custom_call.1} parent=1 // pred_check
      _
    $region11: #{tpu_custom_call.1} parent=1 // pred_check_branch
      %72 = sbr.rel (0) target = $region13
    $region12: #{tpu_custom_call.1} parent=1 // pred_region
      %s74 = ssub.s32 1024, 1024
      %75 = vsyncadd [#allocation6], %s74
      %s76 = sshll.u32 [#allocation7], 4
      %s77 = int_to_ptr.vmem [resolvable:$true] %s76
      %82 = dma.hbm_to_vmem [thread:$0]  %s2, 1024, %s77, [#allocation6], 128, 128, 8
    $region13: #{tpu_custom_call.1} parent=1 // pred_fallthru
      _
    // Predicated region
    $region14: #{tpu_custom_call.1} parent=1 // pred_check
      _
    $region15: #{tpu_custom_call.1} parent=1 // pred_check_branch
      %84 = sbr.rel (0) target = $region17
    $region16: #{tpu_custom_call.1} parent=1 // pred_region
      %s86 = ssub.s32 512, 512
      %87 = vsyncadd [#allocation9], %s86
      %s88 = sshll.u32 [#allocation8], 4
      %s89 = int_to_ptr.vmem [resolvable:$true] %s88
      %94 = dma.hbm_to_vmem [thread:$0]  %s3, 512, %s89, [#allocation9], 64, 64, 4
    $region17: #{tpu_custom_call.1} parent=1 // pred_fallthru
      _
    // Predicated region
    $region18: #{tpu_custom_call.1} parent=1 // pred_check
      _
    $region19: #{tpu_custom_call.1} parent=1 // pred_check_branch
      %96 = sbr.rel (0) target = $region21
    $region20: #{tpu_custom_call.1} parent=1 // pred_region
      %s98 = ssub.s32 512, 512
      %99 = vsyncadd [#allocation9], %s98
      %s100 = sshll.u32 [#allocation10], 4
      %s101 = int_to_ptr.vmem [resolvable:$true] %s100
      %106 = dma.hbm_to_vmem [thread:$0]  %s4, 512, %s101, [#allocation9], 64, 64, 4
    $region21: #{tpu_custom_call.1} parent=1 // pred_fallthru
      _
    // Predicated region
    $region22: #{tpu_custom_call.1} parent=1 // pred_check
      _
    $region23: #{tpu_custom_call.1} parent=1 // pred_check_branch
      %108 = sbr.rel (0) target = $region25
    $region24: #{tpu_custom_call.1} parent=1 // pred_region
      %s110 = ssub.s32 256, 256
      %111 = vsyncadd [#allocation12], %s110
      %s112 = sshll.u32 [#allocation11], 4
      %s113 = int_to_ptr.vmem [resolvable:$true] %s112
      %118 = dma.hbm_to_vmem [thread:$0]  %s5, 256, %s113, [#allocation12], 64, 64, 4
    $region25: #{tpu_custom_call.1} parent=1 // pred_fallthru
      _
    // Predicated region
    $region26: #{tpu_custom_call.1} parent=1 // pred_check
      _
    $region27: #{tpu_custom_call.1} parent=1 // pred_check_branch
      %120 = sbr.rel (0) target = $region29
    $region28: #{tpu_custom_call.1} parent=1 // pred_region
      %s122 = ssub.s32 16, 16
      %123 = vsyncadd [#allocation12], %s122
      %s125 = sshll.u32 [#allocation13], 4
      %s126 = int_to_ptr.vmem [resolvable:$true] %s125
      %128 = dma.hbm_to_vmem [thread:$0]  %s6, 16, %s126, [#allocation12]
    $region29: #{tpu_custom_call.1} parent=1 // pred_fallthru
      _
    // Predicated region
    $region30: #{tpu_custom_call.1} parent=1 // pred_check
      _
    $region31: #{tpu_custom_call.1} parent=1 // pred_check_branch
      %130 = sbr.rel (0) target = $region33
    $region32: #{tpu_custom_call.1} parent=1 // pred_region
      %s132 = ssub.s32 256, 256
      %133 = vsyncadd [#allocation15], %s132
      %s134 = sshll.u32 [#allocation14], 4
      %s135 = int_to_ptr.vmem [resolvable:$true] %s134
      %140 = dma.hbm_to_vmem [thread:$0]  %s7, 256, %s135, [#allocation15], 64, 64, 4
    $region33: #{tpu_custom_call.1} parent=1 // pred_fallthru
      _
    // Predicated region
    $region34: #{tpu_custom_call.1} parent=1 // pred_check
      _
    $region35: #{tpu_custom_call.1} parent=1 // pred_check_branch
      %142 = sbr.rel (0) target = $region37
    $region36: #{tpu_custom_call.1} parent=1 // pred_region
      %s144 = ssub.s32 16, 16
      %145 = vsyncadd [#allocation15], %s144
      %s147 = sshll.u32 [#allocation16], 4
      %s148 = int_to_ptr.vmem [resolvable:$true] %s147
      %150 = dma.hbm_to_vmem [thread:$0]  %s8, 16, %s148, [#allocation15]
    $region37: #{tpu_custom_call.1} parent=1 // pred_fallthru
      _
    // Predicated region
    $region38: #{tpu_custom_call.1} parent=1 // pred_check
      _
    $region39: #{tpu_custom_call.1} parent=1 // pred_check_branch
      %152 = sbr.rel (0) target = $region41
    $region40: #{tpu_custom_call.1} parent=1 // pred_region
      %s154 = ssub.s32 512, 512
      %155 = vsyncadd [#allocation18], %s154
      %s156 = sshll.u32 [#allocation17], 4
      %s157 = int_to_ptr.vmem [resolvable:$true] %s156
      %162 = dma.hbm_to_vmem [thread:$0]  %s9, 512, %s157, [#allocation18], 64, 64, 4
    $region41: #{tpu_custom_call.1} parent=1 // pred_fallthru
      _
    // Predicated region
    $region42: #{tpu_custom_call.1} parent=1 // pred_check
      _
    $region43: #{tpu_custom_call.1} parent=1 // pred_check_branch
      %164 = sbr.rel (0) target = $region45
    $region44: #{tpu_custom_call.1} parent=1 // pred_region
      %s166 = ssub.s32 16, 16
      %167 = vsyncadd [#allocation18], %s166
      %s169 = sshll.u32 [#allocation19], 4
      %s170 = int_to_ptr.vmem [resolvable:$true] %s169
      %172 = dma.hbm_to_vmem [thread:$0]  %s10, 16, %s170, [#allocation18]
    $region45: #{tpu_custom_call.1} parent=1 // pred_fallthru
      _
    // Predicated region
    $region46: #{tpu_custom_call.1} parent=1 // pred_check
      _
    $region47: #{tpu_custom_call.1} parent=1 // pred_check_branch
      %174 = sbr.rel (0) target = $region49
    $region48: #{tpu_custom_call.1} parent=1 // pred_region
      %s176 = ssub.s32 16, 16
      %177 = vsyncadd [#allocation21], %s176
      %s179 = sshll.u32 [#allocation20], 4
      %s180 = int_to_ptr.vmem [resolvable:$true] %s179
      %182 = dma.hbm_to_vmem [thread:$0]  %s11, 16, %s180, [#allocation21]
    $region49: #{tpu_custom_call.1} parent=1 // pred_fallthru
      _
    // Predicated region
    $region50: #{tpu_custom_call.1} parent=1 // pred_check
      _
    $region51: #{tpu_custom_call.1} parent=1 // pred_check_branch
      %184 = sbr.rel (0) target = $region53
    $region52: #{tpu_custom_call.1} parent=1 // pred_region
      %s186 = ssub.s32 16, 16
      %187 = vsyncadd [#allocation21], %s186
      %s189 = sshll.u32 [#allocation22], 4
      %s190 = int_to_ptr.vmem [resolvable:$true] %s189
      %192 = dma.hbm_to_vmem [thread:$0]  %s12, 16, %s190, [#allocation21]
    $region53: #{tpu_custom_call.1} parent=1 // pred_fallthru
      _
    // Predicated region
    $region54: #{tpu_custom_call.1} parent=1 // pred_check
      _
    $region55: #{tpu_custom_call.1} parent=1 // pred_check_branch
      %194 = sbr.rel (0) target = $region57
    $region56: #{tpu_custom_call.1} parent=1 // pred_region
      %s196 = ssub.s32 256, 256
      %197 = vsyncadd [#allocation24], %s196
      %s198 = sshll.u32 [#allocation23], 4
      %s199 = int_to_ptr.vmem [resolvable:$true] %s198
      %204 = dma.hbm_to_vmem [thread:$0]  %s13, 256, %s199, [#allocation24], 64, 64, 4
    $region57: #{tpu_custom_call.1} parent=1 // pred_fallthru
      _
    // Predicated region
    $region58: #{tpu_custom_call.1} parent=1 // pred_check
      _
    $region59: #{tpu_custom_call.1} parent=1 // pred_check_branch
      %206 = sbr.rel (0) target = $region61
    $region60: #{tpu_custom_call.1} parent=1 // pred_region
      %s208 = ssub.s32 16, 16
      %209 = vsyncadd [#allocation24], %s208
      %s211 = sshll.u32 [#allocation25], 4
      %s212 = int_to_ptr.vmem [resolvable:$true] %s211
      %214 = dma.hbm_to_vmem [thread:$0]  %s14, 16, %s212, [#allocation24]
    $region61: #{tpu_custom_call.1} parent=1 // pred_fallthru
      _
    // Predicated region
    $region62: #{tpu_custom_call.1} parent=1 // pred_check
      _
    $region63: #{tpu_custom_call.1} parent=1 // pred_check_branch
      %216 = sbr.rel (0) target = $region65
    $region64: #{tpu_custom_call.1} parent=1 // pred_region
      %s218 = ssub.s32 256, 256
      %219 = vsyncadd [#allocation27], %s218
      %s220 = sshll.u32 [#allocation26], 4
      %s221 = int_to_ptr.vmem [resolvable:$true] %s220
      %226 = dma.hbm_to_vmem [thread:$0]  %s15, 256, %s221, [#allocation27], 64, 64, 4
    $region65: #{tpu_custom_call.1} parent=1 // pred_fallthru
      _
    // Predicated region
    $region66: #{tpu_custom_call.1} parent=1 // pred_check
      _
    $region67: #{tpu_custom_call.1} parent=1 // pred_check_branch
      %228 = sbr.rel (0) target = $region69
    $region68: #{tpu_custom_call.1} parent=1 // pred_region
      %s230 = ssub.s32 16, 16
      %231 = vsyncadd [#allocation27], %s230
      %s233 = sshll.u32 [#allocation28], 4
      %s234 = int_to_ptr.vmem [resolvable:$true] %s233
      %236 = dma.hbm_to_vmem [thread:$0]  %s16, 16, %s234, [#allocation27]
    $region69: #{tpu_custom_call.1} parent=1 // pred_fallthru
      _
    // Predicated region
    $region70: #{tpu_custom_call.1} parent=1 // pred_check
      _
    $region71: #{tpu_custom_call.1} parent=1 // pred_check_branch
      %238 = sbr.rel (0) target = $region73
    $region72: #{tpu_custom_call.1} parent=1 // pred_region
      %s240 = ssub.s32 512, 512
      %241 = vsyncadd [#allocation30], %s240
      %s242 = sshll.u32 [#allocation29], 4
      %s243 = int_to_ptr.vmem [resolvable:$true] %s242
      %248 = dma.hbm_to_vmem [thread:$0]  %s17, 512, %s243, [#allocation30], 64, 64, 4
    $region73: #{tpu_custom_call.1} parent=1 // pred_fallthru
      _
    // Predicated region
    $region74: #{tpu_custom_call.1} parent=1 // pred_check
      _
    $region75: #{tpu_custom_call.1} parent=1 // pred_check_branch
      %250 = sbr.rel (0) target = $region77
    $region76: #{tpu_custom_call.1} parent=1 // pred_region
      %s252 = ssub.s32 16, 16
      %253 = vsyncadd [#allocation30], %s252
      %s255 = sshll.u32 [#allocation31], 4
      %s256 = int_to_ptr.vmem [resolvable:$true] %s255
      %258 = dma.hbm_to_vmem [thread:$0]  %s18, 16, %s256, [#allocation30]
    $region77: #{tpu_custom_call.1} parent=1 // pred_fallthru
      _
    // Predicated region
    $region78: #{tpu_custom_call.1} parent=1 // pred_check
      _
    $region79: #{tpu_custom_call.1} parent=1 // pred_check_branch
      %260 = sbr.rel (0) target = $region81
    $region80: #{tpu_custom_call.1} parent=1 // pred_region
      %s262 = ssub.s32 16, 16
      %263 = vsyncadd [#allocation33], %s262
      %s265 = sshll.u32 [#allocation32], 4
      %s266 = int_to_ptr.vmem [resolvable:$true] %s265
      %268 = dma.hbm_to_vmem [thread:$0]  %s19, 16, %s266, [#allocation33]
    $region81: #{tpu_custom_call.1} parent=1 // pred_fallthru
      _
    // Predicated region
    $region82: #{tpu_custom_call.1} parent=1 // pred_check
      _
    $region83: #{tpu_custom_call.1} parent=1 // pred_check_branch
      %270 = sbr.rel (0) target = $region85
    $region84: #{tpu_custom_call.1} parent=1 // pred_region
      %s272 = ssub.s32 16, 16
      %273 = vsyncadd [#allocation33], %s272
      %s275 = sshll.u32 [#allocation34], 4
      %s276 = int_to_ptr.vmem [resolvable:$true] %s275
      %278 = dma.hbm_to_vmem [thread:$0]  %s20, 16, %s276, [#allocation33]
    $region85: #{tpu_custom_call.1} parent=1 // pred_fallthru
      _
    // Predicated region
    $region86: #{tpu_custom_call.1} parent=1 // pred_check
      _
    $region87: #{tpu_custom_call.1} parent=1 // pred_check_branch
      %280 = sbr.rel (0) target = $region89
    $region88: #{tpu_custom_call.1} parent=1 // pred_region
      %s282 = ssub.s32 256, 256
      %283 = vsyncadd [#allocation36], %s282
      %s284 = sshll.u32 [#allocation35], 4
      %s285 = int_to_ptr.vmem [resolvable:$true] %s284
      %290 = dma.hbm_to_vmem [thread:$0]  %s21, 256, %s285, [#allocation36], 64, 64, 4
    $region89: #{tpu_custom_call.1} parent=1 // pred_fallthru
      _
    // Predicated region
    $region90: #{tpu_custom_call.1} parent=1 // pred_check
      _
    $region91: #{tpu_custom_call.1} parent=1 // pred_check_branch
      %292 = sbr.rel (0) target = $region93
    $region92: #{tpu_custom_call.1} parent=1 // pred_region
      %s294 = ssub.s32 16, 16
      %295 = vsyncadd [#allocation36], %s294
      %s297 = sshll.u32 [#allocation37], 4
      %s298 = int_to_ptr.vmem [resolvable:$true] %s297
      %300 = dma.hbm_to_vmem [thread:$0]  %s22, 16, %s298, [#allocation36]
    $region93: #{tpu_custom_call.1} parent=1 // pred_fallthru
      _
    // Predicated region
    $region94: #{tpu_custom_call.1} parent=1 // pred_check
      _
    $region95: #{tpu_custom_call.1} parent=1 // pred_check_branch
      %302 = sbr.rel (0) target = $region97
    $region96: #{tpu_custom_call.1} parent=1 // pred_region
      %s304 = ssub.s32 512, 512
      %305 = vsyncadd [#allocation39], %s304
      %s306 = sshll.u32 [#allocation38], 4
      %s307 = int_to_ptr.vmem [resolvable:$true] %s306
      %312 = dma.hbm_to_vmem [thread:$0]  %s23, 512, %s307, [#allocation39], 64, 64, 4
    $region97: #{tpu_custom_call.1} parent=1 // pred_fallthru
      _
    // Predicated region
    $region98: #{tpu_custom_call.1} parent=1 // pred_check
      _
    $region99: #{tpu_custom_call.1} parent=1 // pred_check_branch
      %314 = sbr.rel (0) target = $region101
    $region100: #{tpu_custom_call.1} parent=1 // pred_region
      %s316 = ssub.s32 16, 16
      %317 = vsyncadd [#allocation39], %s316
      %s319 = sshll.u32 [#allocation40], 4
      %s320 = int_to_ptr.vmem [resolvable:$true] %s319
      %322 = dma.hbm_to_vmem [thread:$0]  %s24, 16, %s320, [#allocation39]
    $region101: #{tpu_custom_call.1} parent=1 // pred_fallthru
      _
    // Predicated region
    $region102: #{tpu_custom_call.1} parent=1 // pred_check
      _
    $region103: #{tpu_custom_call.1} parent=1 // pred_check_branch
      %324 = sbr.rel (0) target = $region105
    $region104: #{tpu_custom_call.1} parent=1 // pred_region
      %s326 = ssub.s32 16, 16
      %327 = vsyncadd [#allocation42], %s326
      %s329 = sshll.u32 [#allocation41], 4
      %s330 = int_to_ptr.vmem [resolvable:$true] %s329
      %332 = dma.hbm_to_vmem [thread:$0]  %s25, 16, %s330, [#allocation42]
    $region105: #{tpu_custom_call.1} parent=1 // pred_fallthru
      _
    // Predicated region
    $region106: #{tpu_custom_call.1} parent=1 // pred_check
      _
    $region107: #{tpu_custom_call.1} parent=1 // pred_check_branch
      %334 = sbr.rel (0) target = $region109
    $region108: #{tpu_custom_call.1} parent=1 // pred_region
      %s336 = ssub.s32 16, 16
      %337 = vsyncadd [#allocation42], %s336
      %s339 = sshll.u32 [#allocation43], 4
      %s340 = int_to_ptr.vmem [resolvable:$true] %s339
      %342 = dma.hbm_to_vmem [thread:$0]  %s26, 16, %s340, [#allocation42]
    $region109: #{tpu_custom_call.1} parent=1 // pred_fallthru
      _
    // Predicated region
    $region110: #{tpu_custom_call.1} parent=1 // pred_check
      _
    $region111: #{tpu_custom_call.1} parent=1 // pred_check_branch
      %344 = sbr.rel (0) target = $region113
    $region112: #{tpu_custom_call.1} parent=1 // pred_region
      %345 = dma.done [#allocation3], 1024
    $region113: #{tpu_custom_call.1} parent=1 // pred_fallthru
      _
    // Predicated region
    $region114: #{tpu_custom_call.1} parent=1 // pred_check
      _
    $region115: #{tpu_custom_call.1} parent=1 // pred_check_branch
      %347 = sbr.rel (0) target = $region117
    $region116: #{tpu_custom_call.1} parent=1 // pred_region
      %348 = dma.done [#allocation6], 1024
    $region117: #{tpu_custom_call.1} parent=1 // pred_fallthru
      _
    // Predicated region
    $region118: #{tpu_custom_call.1} parent=1 // pred_check
      _
    $region119: #{tpu_custom_call.1} parent=1 // pred_check_branch
      %350 = sbr.rel (0) target = $region121
    $region120: #{tpu_custom_call.1} parent=1 // pred_region
      %351 = dma.done [#allocation6], 1024
    $region121: #{tpu_custom_call.1} parent=1 // pred_fallthru
      _
    // Predicated region
    $region122: #{tpu_custom_call.1} parent=1 // pred_check
      _
    $region123: #{tpu_custom_call.1} parent=1 // pred_check_branch
      %353 = sbr.rel (0) target = $region125
    $region124: #{tpu_custom_call.1} parent=1 // pred_region
      %354 = dma.done [#allocation9], 512
    $region125: #{tpu_custom_call.1} parent=1 // pred_fallthru
      _
    // Predicated region
    $region126: #{tpu_custom_call.1} parent=1 // pred_check
      _
    $region127: #{tpu_custom_call.1} parent=1 // pred_check_branch
      %356 = sbr.rel (0) target = $region129
    $region128: #{tpu_custom_call.1} parent=1 // pred_region
      %357 = dma.done [#allocation9], 512
    $region129: #{tpu_custom_call.1} parent=1 // pred_fallthru
      _
    // Predicated region
    $region130: #{tpu_custom_call.1} parent=1 // pred_check
      _
    $region131: #{tpu_custom_call.1} parent=1 // pred_check_branch
      %359 = sbr.rel (0) target = $region133
    $region132: #{tpu_custom_call.1} parent=1 // pred_region
      %360 = dma.done [#allocation12], 256
    $region133: #{tpu_custom_call.1} parent=1 // pred_fallthru
      _
    // Predicated region
    $region134: #{tpu_custom_call.1} parent=1 // pred_check
      _
    $region135: #{tpu_custom_call.1} parent=1 // pred_check_branch
      %362 = sbr.rel (0) target = $region137
    $region136: #{tpu_custom_call.1} parent=1 // pred_region
      %363 = dma.done [#allocation12], 16
    $region137: #{tpu_custom_call.1} parent=1 // pred_fallthru
      _
    // Predicated region
    $region138: #{tpu_custom_call.1} parent=1 // pred_check
      _
    $region139: #{tpu_custom_call.1} parent=1 // pred_check_branch
      %365 = sbr.rel (0) target = $region141
    $region140: #{tpu_custom_call.1} parent=1 // pred_region
      %366 = dma.done [#allocation15], 256
    $region141: #{tpu_custom_call.1} parent=1 // pred_fallthru
      _
    // Predicated region
    $region142: #{tpu_custom_call.1} parent=1 // pred_check
      _
    $region143: #{tpu_custom_call.1} parent=1 // pred_check_branch
      %368 = sbr.rel (0) target = $region145
    $region144: #{tpu_custom_call.1} parent=1 // pred_region
      %369 = dma.done [#allocation15], 16
    $region145: #{tpu_custom_call.1} parent=1 // pred_fallthru
      _
    // Predicated region
    $region146: #{tpu_custom_call.1} parent=1 // pred_check
      _
    $region147: #{tpu_custom_call.1} parent=1 // pred_check_branch
      %371 = sbr.rel (0) target = $region149
    $region148: #{tpu_custom_call.1} parent=1 // pred_region
      %372 = dma.done [#allocation18], 512
    $region149: #{tpu_custom_call.1} parent=1 // pred_fallthru
      _
    // Predicated region
    $region150: #{tpu_custom_call.1} parent=1 // pred_check
      _
    $region151: #{tpu_custom_call.1} parent=1 // pred_check_branch
      %374 = sbr.rel (0) target = $region153
    $region152: #{tpu_custom_call.1} parent=1 // pred_region
      %375 = dma.done [#allocation18], 16
    $region153: #{tpu_custom_call.1} parent=1 // pred_fallthru
      _
    // Predicated region
    $region154: #{tpu_custom_call.1} parent=1 // pred_check
      _
    $region155: #{tpu_custom_call.1} parent=1 // pred_check_branch
      %377 = sbr.rel (0) target = $region157
    $region156: #{tpu_custom_call.1} parent=1 // pred_region
      %378 = dma.done [#allocation21], 16
    $region157: #{tpu_custom_call.1} parent=1 // pred_fallthru
      _
    // Predicated region
    $region158: #{tpu_custom_call.1} parent=1 // pred_check
      _
    $region159: #{tpu_custom_call.1} parent=1 // pred_check_branch
      %380 = sbr.rel (0) target = $region161
    $region160: #{tpu_custom_call.1} parent=1 // pred_region
      %381 = dma.done [#allocation21], 16
    $region161: #{tpu_custom_call.1} parent=1 // pred_fallthru
      _
    // Predicated region
    $region162: #{tpu_custom_call.1} parent=1 // pred_check
      _
    $region163: #{tpu_custom_call.1} parent=1 // pred_check_branch
      %383 = sbr.rel (0) target = $region165
    $region164: #{tpu_custom_call.1} parent=1 // pred_region
      %384 = dma.done [#allocation24], 256
    $region165: #{tpu_custom_call.1} parent=1 // pred_fallthru
      _
    // Predicated region
    $region166: #{tpu_custom_call.1} parent=1 // pred_check
      _
    $region167: #{tpu_custom_call.1} parent=1 // pred_check_branch
      %386 = sbr.rel (0) target = $region169
    $region168: #{tpu_custom_call.1} parent=1 // pred_region
      %387 = dma.done [#allocation24], 16
    $region169: #{tpu_custom_call.1} parent=1 // pred_fallthru
      _
    // Predicated region
    $region170: #{tpu_custom_call.1} parent=1 // pred_check
      _
    $region171: #{tpu_custom_call.1} parent=1 // pred_check_branch
      %389 = sbr.rel (0) target = $region173
    $region172: #{tpu_custom_call.1} parent=1 // pred_region
      %390 = dma.done [#allocation27], 256
    $region173: #{tpu_custom_call.1} parent=1 // pred_fallthru
      _
    // Predicated region
    $region174: #{tpu_custom_call.1} parent=1 // pred_check
      _
    $region175: #{tpu_custom_call.1} parent=1 // pred_check_branch
      %392 = sbr.rel (0) target = $region177
    $region176: #{tpu_custom_call.1} parent=1 // pred_region
      %393 = dma.done [#allocation27], 16
    $region177: #{tpu_custom_call.1} parent=1 // pred_fallthru
      _
    // Predicated region
    $region178: #{tpu_custom_call.1} parent=1 // pred_check
      _
    $region179: #{tpu_custom_call.1} parent=1 // pred_check_branch
      %395 = sbr.rel (0) target = $region181
    $region180: #{tpu_custom_call.1} parent=1 // pred_region
      %396 = dma.done [#allocation30], 512
    $region181: #{tpu_custom_call.1} parent=1 // pred_fallthru
      _
    // Predicated region
    $region182: #{tpu_custom_call.1} parent=1 // pred_check
      _
    $region183: #{tpu_custom_call.1} parent=1 // pred_check_branch
      %398 = sbr.rel (0) target = $region185
    $region184: #{tpu_custom_call.1} parent=1 // pred_region
      %399 = dma.done [#allocation30], 16
    $region185: #{tpu_custom_call.1} parent=1 // pred_fallthru
      _
    // Predicated region
    $region186: #{tpu_custom_call.1} parent=1 // pred_check
      _
    $region187: #{tpu_custom_call.1} parent=1 // pred_check_branch
      %401 = sbr.rel (0) target = $region189
    $region188: #{tpu_custom_call.1} parent=1 // pred_region
      %402 = dma.done [#allocation33], 16
    $region189: #{tpu_custom_call.1} parent=1 // pred_fallthru
      _
    // Predicated region
    $region190: #{tpu_custom_call.1} parent=1 // pred_check
      _
    $region191: #{tpu_custom_call.1} parent=1 // pred_check_branch
      %404 = sbr.rel (0) target = $region193
    $region192: #{tpu_custom_call.1} parent=1 // pred_region
      %405 = dma.done [#allocation33], 16
    $region193: #{tpu_custom_call.1} parent=1 // pred_fallthru
      _
    // Predicated region
    $region194: #{tpu_custom_call.1} parent=1 // pred_check
      _
    $region195: #{tpu_custom_call.1} parent=1 // pred_check_branch
      %407 = sbr.rel (0) target = $region197
    $region196: #{tpu_custom_call.1} parent=1 // pred_region
      %408 = dma.done [#allocation36], 256
    $region197: #{tpu_custom_call.1} parent=1 // pred_fallthru
      _
    // Predicated region
    $region198: #{tpu_custom_call.1} parent=1 // pred_check
      _
    $region199: #{tpu_custom_call.1} parent=1 // pred_check_branch
      %410 = sbr.rel (0) target = $region201
    $region200: #{tpu_custom_call.1} parent=1 // pred_region
      %411 = dma.done [#allocation36], 16
    $region201: #{tpu_custom_call.1} parent=1 // pred_fallthru
      _
    // Predicated region
    $region202: #{tpu_custom_call.1} parent=1 // pred_check
      _
    $region203: #{tpu_custom_call.1} parent=1 // pred_check_branch
      %413 = sbr.rel (0) target = $region205
    $region204: #{tpu_custom_call.1} parent=1 // pred_region
      %414 = dma.done [#allocation39], 512
    $region205: #{tpu_custom_call.1} parent=1 // pred_fallthru
      _
    // Predicated region
    $region206: #{tpu_custom_call.1} parent=1 // pred_check
      _
    $region207: #{tpu_custom_call.1} parent=1 // pred_check_branch
      %416 = sbr.rel (0) target = $region209
    $region208: #{tpu_custom_call.1} parent=1 // pred_region
      %417 = dma.done [#allocation39], 16
    $region209: #{tpu_custom_call.1} parent=1 // pred_fallthru
      _
    // Predicated region
    $region210: #{tpu_custom_call.1} parent=1 // pred_check
      _
    $region211: #{tpu_custom_call.1} parent=1 // pred_check_branch
      %419 = sbr.rel (0) target = $region213
    $region212: #{tpu_custom_call.1} parent=1 // pred_region
      %420 = dma.done [#allocation42], 16
    $region213: #{tpu_custom_call.1} parent=1 // pred_fallthru
      _
    // Predicated region
    $region214: #{tpu_custom_call.1} parent=1 // pred_check
      _
    $region215: #{tpu_custom_call.1} parent=1 // pred_check_branch
      %422 = sbr.rel (0) target = $region217
    $region216: #{tpu_custom_call.1} parent=1 // pred_region
      %423 = dma.done [#allocation42], 16
    $region217: #{tpu_custom_call.1} parent=1 // pred_fallthru
      _
    %v425 = vld [vmem:[#allocation11] sm:$0xf]
    %v426 = vld [vmem:[#allocation11 + $0x4] sm:$0xf]
    %v427 = vld [vmem:[#allocation11 + $0x8] sm:$0xf]
    %v428 = vld [vmem:[#allocation11 + $0xc] sm:$0xf]
    %v429 = vld [vmem:[#allocation13] sm:$0x1]
    %v430 = vld [vmem:[#allocation14] sm:$0xf]
    %v431 = vld [vmem:[#allocation14 + $0x4] sm:$0xf]
    %v432 = vld [vmem:[#allocation14 + $0x8] sm:$0xf]
    %v433 = vld [vmem:[#allocation14 + $0xc] sm:$0xf]
    %v434 = vld [vmem:[#allocation16] sm:$0x1]
    %v435 = vld [vmem:[#allocation17] sm:$0xf]
    %v436 = vld [vmem:[#allocation17 + $0x4] sm:$0xf]
    %v437 = vld [vmem:[#allocation17 + $0x8] sm:$0xf]
    %v438 = vld [vmem:[#allocation17 + $0xc] sm:$0xf]
    %v439 = vld [vmem:[#allocation17 + $0x10] sm:$0xf]
    %v440 = vld [vmem:[#allocation17 + $0x14] sm:$0xf]
    %v441 = vld [vmem:[#allocation17 + $0x18] sm:$0xf]
    %v442 = vld [vmem:[#allocation17 + $0x1c] sm:$0xf]
    %v443 = vld [vmem:[#allocation19] sm:$0x1]
    %v444 = vld [vmem:[#allocation20] sm:$0x1]
    %v445 = vld [vmem:[#allocation22] sm:$0x1]
    %v446 = vld [vmem:[#allocation23] sm:$0xf]
    %v447 = vld [vmem:[#allocation23 + $0x4] sm:$0xf]
    %v448 = vld [vmem:[#allocation23 + $0x8] sm:$0xf]
    %v449 = vld [vmem:[#allocation23 + $0xc] sm:$0xf]
    %v450 = vld [vmem:[#allocation25] sm:$0x1]
    %v451 = vld [vmem:[#allocation26] sm:$0xf]
    %v452 = vld [vmem:[#allocation26 + $0x4] sm:$0xf]
    %v453 = vld [vmem:[#allocation26 + $0x8] sm:$0xf]
    %v454 = vld [vmem:[#allocation26 + $0xc] sm:$0xf]
    %v455 = vld [vmem:[#allocation28] sm:$0x1]
    %v456 = vld [vmem:[#allocation29] sm:$0xf]
    %v457 = vld [vmem:[#allocation29 + $0x4] sm:$0xf]
    %v458 = vld [vmem:[#allocation29 + $0x8] sm:$0xf]
    %v459 = vld [vmem:[#allocation29 + $0xc] sm:$0xf]
    %v460 = vld [vmem:[#allocation29 + $0x10] sm:$0xf]
    %v461 = vld [vmem:[#allocation29 + $0x14] sm:$0xf]
    %v462 = vld [vmem:[#allocation29 + $0x18] sm:$0xf]
    %v463 = vld [vmem:[#allocation29 + $0x1c] sm:$0xf]
    %v464 = vld [vmem:[#allocation31] sm:$0x1]
    %v465 = vld [vmem:[#allocation32] sm:$0x1]
    %v466 = vld [vmem:[#allocation34] sm:$0x1]
    %v467 = vld [vmem:[#allocation35] sm:$0xf]
    %v468 = vld [vmem:[#allocation35 + $0x4] sm:$0xf]
    %v469 = vld [vmem:[#allocation35 + $0x8] sm:$0xf]
    %v470 = vld [vmem:[#allocation35 + $0xc] sm:$0xf]
    %v471 = vld [vmem:[#allocation37] sm:$0x1]
    %v472 = vld [vmem:[#allocation38] sm:$0xf]
    %v473 = vld [vmem:[#allocation38 + $0x4] sm:$0xf]
    %v474 = vld [vmem:[#allocation38 + $0x8] sm:$0xf]
    %v475 = vld [vmem:[#allocation38 + $0xc] sm:$0xf]
    %v476 = vld [vmem:[#allocation38 + $0x10] sm:$0xf]
    %v477 = vld [vmem:[#allocation38 + $0x14] sm:$0xf]
    %v478 = vld [vmem:[#allocation38 + $0x18] sm:$0xf]
    %v479 = vld [vmem:[#allocation38 + $0x1c] sm:$0xf]
    %v480 = vld [vmem:[#allocation40] sm:$0x1]
    %v481 = vld [vmem:[#allocation41] sm:$0x1]
    %v482 = vld [vmem:[#allocation43] sm:$0x1]
    %v483 = vld [vmem:[#allocation2] sm:$0xff]
    %v484 = vld [vmem:[#allocation2 + $0x8] sm:$0xff]
    %v485 = vld [vmem:[#allocation2 + $0x10] sm:$0xff]
    %v486 = vld [vmem:[#allocation2 + $0x18] sm:$0xff]
    %v487 = vld [vmem:[#allocation2 + $0x20] sm:$0xff]
    %v488 = vld [vmem:[#allocation2 + $0x28] sm:$0xff]
    %v489 = vld [vmem:[#allocation2 + $0x30] sm:$0xff]
    %v490 = vld [vmem:[#allocation2 + $0x38] sm:$0xff]
    %v491 = vld [vmem:[#allocation5] sm:$0xff]
    %v492 = vld [vmem:[#allocation5 + $0x8] sm:$0xff]
    %v493 = vld [vmem:[#allocation5 + $0x10] sm:$0xff]
    %v494 = vld [vmem:[#allocation5 + $0x18] sm:$0xff]
    %v495 = vld [vmem:[#allocation5 + $0x20] sm:$0xff]
    %v496 = vld [vmem:[#allocation5 + $0x28] sm:$0xff]
    %v497 = vld [vmem:[#allocation5 + $0x30] sm:$0xff]
    %v498 = vld [vmem:[#allocation5 + $0x38] sm:$0xff]
    %v499 = vld [vmem:[#allocation7] sm:$0xff]
    %v500 = vld [vmem:[#allocation7 + $0x8] sm:$0xff]
    %v501 = vld [vmem:[#allocation7 + $0x10] sm:$0xff]
    %v502 = vld [vmem:[#allocation7 + $0x18] sm:$0xff]
    %v503 = vld [vmem:[#allocation7 + $0x20] sm:$0xff]
    %v504 = vld [vmem:[#allocation7 + $0x28] sm:$0xff]
    %v505 = vld [vmem:[#allocation7 + $0x30] sm:$0xff]
    %v506 = vld [vmem:[#allocation7 + $0x38] sm:$0xff]
    %v507 = vld [vmem:[#allocation8] sm:$0xf]
    %v508 = vld [vmem:[#allocation8 + $0x4] sm:$0xf]
    %v509 = vld [vmem:[#allocation8 + $0x8] sm:$0xf]
    %v510 = vld [vmem:[#allocation8 + $0xc] sm:$0xf]
    %v511 = vld [vmem:[#allocation8 + $0x10] sm:$0xf]
    %v512 = vld [vmem:[#allocation8 + $0x14] sm:$0xf]
    %v513 = vld [vmem:[#allocation8 + $0x18] sm:$0xf]
    %v514 = vld [vmem:[#allocation8 + $0x1c] sm:$0xf]
    %v515 = vunpack.c.l.bf16 %v507
    %v516 = vunpack.c.l.bf16 %v508
    %v517 = vunpack.c.l.bf16 %v509
    %v518 = vunpack.c.l.bf16 %v510
    %v519 = vunpack.c.l.bf16 %v511
    %v520 = vunpack.c.l.bf16 %v512
    %v521 = vunpack.c.l.bf16 %v513
    %v522 = vunpack.c.l.bf16 %v514
    %v523 = vld [vmem:[#allocation10] sm:$0xf]
    %v524 = vld [vmem:[#allocation10 + $0x4] sm:$0xf]
    %v525 = vld [vmem:[#allocation10 + $0x8] sm:$0xf]
    %v526 = vld [vmem:[#allocation10 + $0xc] sm:$0xf]
    %v527 = vld [vmem:[#allocation10 + $0x10] sm:$0xf]
    %v528 = vld [vmem:[#allocation10 + $0x14] sm:$0xf]
    %v529 = vld [vmem:[#allocation10 + $0x18] sm:$0xf]
    %v530 = vld [vmem:[#allocation10 + $0x1c] sm:$0xf]
    %v531 = vunpack.c.l.bf16 %v523
    %v532 = vunpack.c.l.bf16 %v524
    %v533 = vunpack.c.l.bf16 %v525
    %v534 = vunpack.c.l.bf16 %v526
    %v535 = vunpack.c.l.bf16 %v527
    %v536 = vunpack.c.l.bf16 %v528
    %v537 = vunpack.c.l.bf16 %v529
    %v538 = vunpack.c.l.bf16 %v530
    %v539 = vpack.c.bf16 %v484, %v483
    %v540 = vpack.c.bf16 %v486, %v485
    %v541 = vpack.c.bf16 %v488, %v487
    %v542 = vpack.c.bf16 %v490, %v489
    %v544 = vlaneseq
    %v545 = vshrl.u32 %v544, 7
    %v546 = vsub.s32 0, %v545
    %v547 = vrot.slane %v429, %v546
    %v553 = vunpack.c.l.b16 %v425
    %v554 = vunpack.c.l.b16 %v426
    %v555 = vunpack.c.l.b16 %v427
    %v556 = vunpack.c.l.b16 %v428
    %v557 = vpack.c.b16 %v554, %v553
    %v558 = vpack.c.b16 %v556, %v555
    %vm561 = vcmask 261120
    %v563 = vsel %vm561, %v539, 0
    %v566 = vsel %vm561, %v540, 0
    %v569 = vsel %vm561, %v541, 0
    %v572 = vsel %vm561, %v542, 0
    %574 = vmatprep.subr.bf16.mxu0 0
    %575 = vmatpush1.bf16.msra.mxu0 %v557
    %576 = vmatprep.subr.bf16.mxu0 0
    %577 = vmatpush1.bf16.msra.mxu0 %v558
    %578 = vmatprep.subr.bf16.mxu0 0
    %579 = vmatpush1.bf16.msra.mxu0 0
    %580 = vmatprep.subr.bf16.mxu0 0
    %581 = vmatpush1.bf16.msra.mxu0 0
    %582 = vmatprep.subr.bf16.mxu0 0
    %583 = vmatpush1.bf16.msra.mxu0 0
    %584 = vmatprep.subr.bf16.mxu0 0
    %585 = vmatpush1.bf16.msra.mxu0 0
    %586 = vmatprep.subr.bf16.mxu0 0
    %587 = vmatpush1.bf16.msra.mxu0 0
    %588 = vmatprep.subr.bf16.mxu0 0
    %589 = vmatpush1.bf16.msra.mxu0 0
    %590 = vmatprep.subr.bf16.mxu0 0
    %591 = vmatpush1.bf16.msra.mxu0 0
    %592 = vmatprep.subr.bf16.mxu0 0
    %593 = vmatpush1.bf16.msra.mxu0 0
    %594 = vmatprep.subr.bf16.mxu0 0
    %595 = vmatpush1.bf16.msra.mxu0 0
    %596 = vmatprep.subr.bf16.mxu0 0
    %597 = vmatpush1.bf16.msra.mxu0 0
    %598 = vmatprep.subr.bf16.mxu0 0
    %599 = vmatpush1.bf16.msra.mxu0 0
    %600 = vmatprep.subr.bf16.mxu0 0
    %601 = vmatpush1.bf16.msra.mxu0 0
    %602 = vmatprep.subr.bf16.mxu0 0
    %603 = vmatpush1.bf16.msra.mxu0 0
    %604 = vmatprep.subr.bf16.mxu0 0
    %605 = vmatpush1.bf16.msra.mxu0 0
    %606 = vmatprep.mubr.bf16.mxu0 0
    %607 = vmatmul.mubr.bf16.gmra.mrb[0].mxu0 %v563
    %v608 = vpop.f32.mrb[0].mxu0
    %v609 = vadd.f32 %v547, %v608
    %v610 = vpop.f32.mrb[0].mxu0
    %v611 = vpop.f32.mrb[0].mxu0
    %v612 = vadd.f32 %v547, %v611
    %v613 = vpop.f32.mrb[0].mxu0
    %614 = vmatprep.mubr.bf16.mxu0 0
    %615 = vmatmul.mubr.bf16.gmra.mrb[0].mxu0 %v566
    %v616 = vpop.f32.mrb[0].mxu0
    %v617 = vadd.f32 %v547, %v616
    %v618 = vpop.f32.mrb[0].mxu0
    %v619 = vpop.f32.mrb[0].mxu0
    %v620 = vadd.f32 %v547, %v619
    %v621 = vpop.f32.mrb[0].mxu0
    %622 = vmatprep.mubr.bf16.mxu0 0
    %623 = vmatmul.mubr.bf16.gmra.mrb[0].mxu0 %v569
    %v624 = vpop.f32.mrb[0].mxu0
    %v625 = vadd.f32 %v547, %v624
    %v626 = vpop.f32.mrb[0].mxu0
    %v627 = vpop.f32.mrb[0].mxu0
    %v628 = vadd.f32 %v547, %v627
    %v629 = vpop.f32.mrb[0].mxu0
    %630 = vmatprep.mubr.bf16.mxu0 0
    %631 = vmatmul.mubr.bf16.gmra.mrb[0].mxu0 %v572
    %v632 = vpop.f32.mrb[0].mxu0
    %v633 = vadd.f32 %v547, %v632
    %v634 = vpop.f32.mrb[0].mxu0
    %v635 = vpop.f32.mrb[0].mxu0
    %v636 = vadd.f32 %v547, %v635
    %v637 = vpop.f32.mrb[0].mxu0
    %638 = vdwg.mxu0
    %v639 = vpack.c.bf16 %v492, %v491
    %v640 = vpack.c.bf16 %v494, %v493
    %v641 = vpack.c.bf16 %v496, %v495
    %v642 = vpack.c.bf16 %v498, %v497
    %v644 = vlaneseq
    %v645 = vshrl.u32 %v644, 7
    %v646 = vsub.s32 0, %v645
    %v647 = vrot.slane %v434, %v646
    %v653 = vunpack.c.l.b16 %v430
    %v654 = vunpack.c.l.b16 %v431
    %v655 = vunpack.c.l.b16 %v432
    %v656 = vunpack.c.l.b16 %v433
    %v657 = vpack.c.b16 %v654, %v653
    %v658 = vpack.c.b16 %v656, %v655
    %v662 = vsel %vm561, %v639, 0
    %v665 = vsel %vm561, %v640, 0
    %v668 = vsel %vm561, %v641, 0
    %v671 = vsel %vm561, %v642, 0
    %673 = vmatprep.subr.bf16.mxu0 0
    %674 = vmatpush1.bf16.msra.mxu0 %v657
    %675 = vmatprep.subr.bf16.mxu0 0
    %676 = vmatpush1.bf16.msra.mxu0 %v658
    %677 = vmatprep.subr.bf16.mxu0 0
    %678 = vmatpush1.bf16.msra.mxu0 0
    %679 = vmatprep.subr.bf16.mxu0 0
    %680 = vmatpush1.bf16.msra.mxu0 0
    %681 = vmatprep.subr.bf16.mxu0 0
    %682 = vmatpush1.bf16.msra.mxu0 0
    %683 = vmatprep.subr.bf16.mxu0 0
    %684 = vmatpush1.bf16.msra.mxu0 0
    %685 = vmatprep.subr.bf16.mxu0 0
    %686 = vmatpush1.bf16.msra.mxu0 0
    %687 = vmatprep.subr.bf16.mxu0 0
    %688 = vmatpush1.bf16.msra.mxu0 0
    %689 = vmatprep.subr.bf16.mxu0 0
    %690 = vmatpush1.bf16.msra.mxu0 0
    %691 = vmatprep.subr.bf16.mxu0 0
    %692 = vmatpush1.bf16.msra.mxu0 0
    %693 = vmatprep.subr.bf16.mxu0 0
    %694 = vmatpush1.bf16.msra.mxu0 0
    %695 = vmatprep.subr.bf16.mxu0 0
    %696 = vmatpush1.bf16.msra.mxu0 0
    %697 = vmatprep.subr.bf16.mxu0 0
    %698 = vmatpush1.bf16.msra.mxu0 0
    %699 = vmatprep.subr.bf16.mxu0 0
    %700 = vmatpush1.bf16.msra.mxu0 0
    %701 = vmatprep.subr.bf16.mxu0 0
    %702 = vmatpush1.bf16.msra.mxu0 0
    %703 = vmatprep.subr.bf16.mxu0 0
    %704 = vmatpush1.bf16.msra.mxu0 0
    %705 = vmatprep.mubr.bf16.mxu0 0
    %706 = vmatmul.mubr.bf16.gmra.mrb[0].mxu0 %v662
    %v707 = vpop.f32.mrb[0].mxu0
    %v708 = vadd.f32 %v647, %v707
    %v709 = vpop.f32.mrb[0].mxu0
    %v710 = vpop.f32.mrb[0].mxu0
    %v711 = vadd.f32 %v647, %v710
    %v712 = vpop.f32.mrb[0].mxu0
    %713 = vmatprep.mubr.bf16.mxu0 0
    %714 = vmatmul.mubr.bf16.gmra.mrb[0].mxu0 %v665
    %v715 = vpop.f32.mrb[0].mxu0
    %v716 = vadd.f32 %v647, %v715
    %v717 = vpop.f32.mrb[0].mxu0
    %v718 = vpop.f32.mrb[0].mxu0
    %v719 = vadd.f32 %v647, %v718
    %v720 = vpop.f32.mrb[0].mxu0
    %721 = vmatprep.mubr.bf16.mxu0 0
    %722 = vmatmul.mubr.bf16.gmra.mrb[0].mxu0 %v668
    %v723 = vpop.f32.mrb[0].mxu0
    %v724 = vadd.f32 %v647, %v723
    %v725 = vpop.f32.mrb[0].mxu0
    %v726 = vpop.f32.mrb[0].mxu0
    %v727 = vadd.f32 %v647, %v726
    %v728 = vpop.f32.mrb[0].mxu0
    %729 = vmatprep.mubr.bf16.mxu0 0
    %730 = vmatmul.mubr.bf16.gmra.mrb[0].mxu0 %v671
    %v731 = vpop.f32.mrb[0].mxu0
    %v732 = vadd.f32 %v647, %v731
    %v733 = vpop.f32.mrb[0].mxu0
    %v734 = vpop.f32.mrb[0].mxu0
    %v735 = vadd.f32 %v647, %v734
    %v736 = vpop.f32.mrb[0].mxu0
    %737 = vdwg.mxu0
    %v738 = vmul.f32 %v609, 0.25
    %v739 = vmul.f32 %v612, 0.25
    %v740 = vmul.f32 %v617, 0.25
    %v741 = vmul.f32 %v620, 0.25
    %v742 = vmul.f32 %v625, 0.25
    %v743 = vmul.f32 %v628, 0.25
    %v744 = vmul.f32 %v633, 0.25
    %v745 = vmul.f32 %v636, 0.25
    %v746 = vpack.c.bf16 %v739, %v738
    %v747 = vpack.c.bf16 %v741, %v740
    %v748 = vpack.c.bf16 %v743, %v742
    %v749 = vpack.c.bf16 %v745, %v744
    %754 = vrot.lane.b32.xlu0 %v746, 112
    %v755 = vpop.permute.xlu0 %754
    %756 = vrot.lane.b32.xlu0 %v747, 112
    %v757 = vpop.permute.xlu0 %756
    %758 = vrot.lane.b32.xlu0 %v748, 112
    %v759 = vpop.permute.xlu0 %758
    %760 = vrot.lane.b32.xlu0 %v749, 112
    %v761 = vpop.permute.xlu0 %760
    %762 = vrot.lane.b32.xlu0 %v746, 96
    %v763 = vpop.permute.xlu0 %762
    %764 = vrot.lane.b32.xlu0 %v747, 96
    %v765 = vpop.permute.xlu0 %764
    %766 = vrot.lane.b32.xlu0 %v748, 96
    %v767 = vpop.permute.xlu0 %766
    %768 = vrot.lane.b32.xlu0 %v749, 96
    %v769 = vpop.permute.xlu0 %768
    %770 = vrot.lane.b32.xlu0 %v746, 80
    %v771 = vpop.permute.xlu0 %770
    %772 = vrot.lane.b32.xlu0 %v747, 80
    %v773 = vpop.permute.xlu0 %772
    %774 = vrot.lane.b32.xlu0 %v748, 80
    %v775 = vpop.permute.xlu0 %774
    %776 = vrot.lane.b32.xlu0 %v749, 80
    %v777 = vpop.permute.xlu0 %776
    %v778 = vpack.c.bf16 %v711, %v708
    %v779 = vpack.c.bf16 %v719, %v716
    %v780 = vpack.c.bf16 %v727, %v724
    %v781 = vpack.c.bf16 %v735, %v732
    %786 = vrot.lane.b32.xlu0 %v778, 112
    %v787 = vpop.permute.xlu0 %786
    %788 = vrot.lane.b32.xlu0 %v779, 112
    %v789 = vpop.permute.xlu0 %788
    %790 = vrot.lane.b32.xlu0 %v780, 112
    %v791 = vpop.permute.xlu0 %790
    %792 = vrot.lane.b32.xlu0 %v781, 112
    %v793 = vpop.permute.xlu0 %792
    %794 = vrot.lane.b32.xlu0 %v778, 96
    %v795 = vpop.permute.xlu0 %794
    %796 = vrot.lane.b32.xlu0 %v779, 96
    %v797 = vpop.permute.xlu0 %796
    %798 = vrot.lane.b32.xlu0 %v780, 96
    %v799 = vpop.permute.xlu0 %798
    %800 = vrot.lane.b32.xlu0 %v781, 96
    %v801 = vpop.permute.xlu0 %800
    %802 = vrot.lane.b32.xlu0 %v778, 80
    %v803 = vpop.permute.xlu0 %802
    %804 = vrot.lane.b32.xlu0 %v779, 80
    %v805 = vpop.permute.xlu0 %804
    %806 = vrot.lane.b32.xlu0 %v780, 80
    %v807 = vpop.permute.xlu0 %806
    %808 = vrot.lane.b32.xlu0 %v781, 80
    %v809 = vpop.permute.xlu0 %808
    %vm810 = vcmask 130048
    %v812 = vsel %vm810, %v746, 0
    %v815 = vsel %vm810, %v747, 0
    %v818 = vsel %vm810, %v778, 0
    %v821 = vsel %vm810, %v779, 0
    %823 = vmatprep.subr.bf16.mxu0 0
    %824 = vmatpush1.bf16.xpose.msra.mxu0 %v818
    %825 = vmatprep.subr.bf16.mxu0 0
    %826 = vmatpush1.bf16.xpose.msra.mxu0 %v821
    %827 = vmatprep.subr.bf16.mxu0 0
    %828 = vmatpush1.bf16.xpose.msra.mxu0 0
    %829 = vmatprep.subr.bf16.mxu0 0
    %830 = vmatpush1.bf16.xpose.msra.mxu0 0
    %831 = vmatprep.subr.bf16.mxu0 0
    %832 = vmatpush1.bf16.xpose.msra.mxu0 0
    %833 = vmatprep.subr.bf16.mxu0 0
    %834 = vmatpush1.bf16.xpose.msra.mxu0 0
    %835 = vmatprep.subr.bf16.mxu0 0
    %836 = vmatpush1.bf16.xpose.msra.mxu0 0
    %837 = vmatprep.subr.bf16.mxu0 0
    %838 = vmatpush1.bf16.xpose.msra.mxu0 0
    %839 = vmatprep.subr.bf16.mxu0 0
    %840 = vmatpush1.bf16.xpose.msra.mxu0 0
    %841 = vmatprep.subr.bf16.mxu0 0
    %842 = vmatpush1.bf16.xpose.msra.mxu0 0
    %843 = vmatprep.subr.bf16.mxu0 0
    %844 = vmatpush1.bf16.xpose.msra.mxu0 0
    %845 = vmatprep.subr.bf16.mxu0 0
    %846 = vmatpush1.bf16.xpose.msra.mxu0 0
    %847 = vmatprep.subr.bf16.mxu0 0
    %848 = vmatpush1.bf16.xpose.msra.mxu0 0
    %849 = vmatprep.subr.bf16.mxu0 0
    %850 = vmatpush1.bf16.xpose.msra.mxu0 0
    %851 = vmatprep.subr.bf16.mxu0 0
    %852 = vmatpush1.bf16.xpose.msra.mxu0 0
    %853 = vmatprep.subr.bf16.mxu0 0
    %854 = vmatpush1.bf16.xpose.msra.mxu0 0
    %855 = vmatprep.mubr.bf16.mxu0 0
    %856 = vmatmul.mubr.bf16.gmra.mrb[0].mxu0 %v812
    %v857 = vpop.f32.mrb[0].mxu0
    %v858 = vadd.f32 0.0, %v857
    %v859 = vpop.f32.mrb[0].mxu0
    %v860 = vpop.f32.mrb[0].mxu0
    %v861 = vadd.f32 0.0, %v860
    %v862 = vpop.f32.mrb[0].mxu0
    %863 = vmatprep.mubr.bf16.mxu0 0
    %864 = vmatmul.mubr.bf16.gmra.mrb[0].mxu0 %v815
    %v865 = vpop.f32.mrb[0].mxu0
    %v866 = vadd.f32 0.0, %v865
    %v867 = vpop.f32.mrb[0].mxu0
    %v868 = vpop.f32.mrb[0].mxu0
    %v869 = vadd.f32 0.0, %v868
    %v870 = vpop.f32.mrb[0].mxu0
    %871 = vdwg.mxu0
    %v873 = vsel %vm810, %v755, 0
    %v876 = vsel %vm810, %v757, 0
    %v879 = vsel %vm810, %v787, 0
    %v882 = vsel %vm810, %v789, 0
    %884 = vmatprep.subr.bf16.mxu0 0
    %885 = vmatpush1.bf16.xpose.msra.mxu0 %v879
    %886 = vmatprep.subr.bf16.mxu0 0
    %887 = vmatpush1.bf16.xpose.msra.mxu0 %v882
    %888 = vmatprep.subr.bf16.mxu0 0
    %889 = vmatpush1.bf16.xpose.msra.mxu0 0
    %890 = vmatprep.subr.bf16.mxu0 0
    %891 = vmatpush1.bf16.xpose.msra.mxu0 0
    %892 = vmatprep.subr.bf16.mxu0 0
    %893 = vmatpush1.bf16.xpose.msra.mxu0 0
    %894 = vmatprep.subr.bf16.mxu0 0
    %895 = vmatpush1.bf16.xpose.msra.mxu0 0
    %896 = vmatprep.subr.bf16.mxu0 0
    %897 = vmatpush1.bf16.xpose.msra.mxu0 0
    %898 = vmatprep.subr.bf16.mxu0 0
    %899 = vmatpush1.bf16.xpose.msra.mxu0 0
    %900 = vmatprep.subr.bf16.mxu0 0
    %901 = vmatpush1.bf16.xpose.msra.mxu0 0
    %902 = vmatprep.subr.bf16.mxu0 0
    %903 = vmatpush1.bf16.xpose.msra.mxu0 0
    %904 = vmatprep.subr.bf16.mxu0 0
    %905 = vmatpush1.bf16.xpose.msra.mxu0 0
    %906 = vmatprep.subr.bf16.mxu0 0
    %907 = vmatpush1.bf16.xpose.msra.mxu0 0
    %908 = vmatprep.subr.bf16.mxu0 0
    %909 = vmatpush1.bf16.xpose.msra.mxu0 0
    %910 = vmatprep.subr.bf16.mxu0 0
    %911 = vmatpush1.bf16.xpose.msra.mxu0 0
    %912 = vmatprep.subr.bf16.mxu0 0
    %913 = vmatpush1.bf16.xpose.msra.mxu0 0
    %914 = vmatprep.subr.bf16.mxu0 0
    %915 = vmatpush1.bf16.xpose.msra.mxu0 0
    %916 = vmatprep.mubr.bf16.mxu0 0
    %917 = vmatmul.mubr.bf16.gmra.mrb[0].mxu0 %v873
    %v918 = vpop.f32.mrb[0].mxu0
    %v919 = vadd.f32 0.0, %v918
    %v920 = vpop.f32.mrb[0].mxu0
    %v921 = vpop.f32.mrb[0].mxu0
    %v922 = vadd.f32 0.0, %v921
    %v923 = vpop.f32.mrb[0].mxu0
    %924 = vmatprep.mubr.bf16.mxu0 0
    %925 = vmatmul.mubr.bf16.gmra.mrb[0].mxu0 %v876
    %v926 = vpop.f32.mrb[0].mxu0
    %v927 = vadd.f32 0.0, %v926
    %v928 = vpop.f32.mrb[0].mxu0
    %v929 = vpop.f32.mrb[0].mxu0
    %v930 = vadd.f32 0.0, %v929
    %v931 = vpop.f32.mrb[0].mxu0
    %932 = vdwg.mxu0
    %v934 = vsel %vm810, %v763, 0
    %v937 = vsel %vm810, %v765, 0
    %v940 = vsel %vm810, %v795, 0
    %v943 = vsel %vm810, %v797, 0
    %945 = vmatprep.subr.bf16.mxu0 0
    %946 = vmatpush1.bf16.xpose.msra.mxu0 %v940
    %947 = vmatprep.subr.bf16.mxu0 0
    %948 = vmatpush1.bf16.xpose.msra.mxu0 %v943
    %949 = vmatprep.subr.bf16.mxu0 0
    %950 = vmatpush1.bf16.xpose.msra.mxu0 0
    %951 = vmatprep.subr.bf16.mxu0 0
    %952 = vmatpush1.bf16.xpose.msra.mxu0 0
    %953 = vmatprep.subr.bf16.mxu0 0
    %954 = vmatpush1.bf16.xpose.msra.mxu0 0
    %955 = vmatprep.subr.bf16.mxu0 0
    %956 = vmatpush1.bf16.xpose.msra.mxu0 0
    %957 = vmatprep.subr.bf16.mxu0 0
    %958 = vmatpush1.bf16.xpose.msra.mxu0 0
    %959 = vmatprep.subr.bf16.mxu0 0
    %960 = vmatpush1.bf16.xpose.msra.mxu0 0
    %961 = vmatprep.subr.bf16.mxu0 0
    %962 = vmatpush1.bf16.xpose.msra.mxu0 0
    %963 = vmatprep.subr.bf16.mxu0 0
    %964 = vmatpush1.bf16.xpose.msra.mxu0 0
    %965 = vmatprep.subr.bf16.mxu0 0
    %966 = vmatpush1.bf16.xpose.msra.mxu0 0
    %967 = vmatprep.subr.bf16.mxu0 0
    %968 = vmatpush1.bf16.xpose.msra.mxu0 0
    %969 = vmatprep.subr.bf16.mxu0 0
    %970 = vmatpush1.bf16.xpose.msra.mxu0 0
    %971 = vmatprep.subr.bf16.mxu0 0
    %972 = vmatpush1.bf16.xpose.msra.mxu0 0
    %973 = vmatprep.subr.bf16.mxu0 0
    %974 = vmatpush1.bf16.xpose.msra.mxu0 0
    %975 = vmatprep.subr.bf16.mxu0 0
    %976 = vmatpush1.bf16.xpose.msra.mxu0 0
    %977 = vmatprep.mubr.bf16.mxu0 0
    %978 = vmatmul.mubr.bf16.gmra.mrb[0].mxu0 %v934
    %v979 = vpop.f32.mrb[0].mxu0
    %v980 = vadd.f32 0.0, %v979
    %v981 = vpop.f32.mrb[0].mxu0
    %v982 = vpop.f32.mrb[0].mxu0
    %v983 = vadd.f32 0.0, %v982
    %v984 = vpop.f32.mrb[0].mxu0
    %985 = vmatprep.mubr.bf16.mxu0 0
    %986 = vmatmul.mubr.bf16.gmra.mrb[0].mxu0 %v937
    %v987 = vpop.f32.mrb[0].mxu0
    %v988 = vadd.f32 0.0, %v987
    %v989 = vpop.f32.mrb[0].mxu0
    %v990 = vpop.f32.mrb[0].mxu0
    %v991 = vadd.f32 0.0, %v990
    %v992 = vpop.f32.mrb[0].mxu0
    %993 = vdwg.mxu0
    %v995 = vsel %vm810, %v771, 0
    %v998 = vsel %vm810, %v773, 0
    %v1001 = vsel %vm810, %v803, 0
    %v1004 = vsel %vm810, %v805, 0
    %1006 = vmatprep.subr.bf16.mxu0 0
    %1007 = vmatpush1.bf16.xpose.msra.mxu0 %v1001
    %1008 = vmatprep.subr.bf16.mxu0 0
    %1009 = vmatpush1.bf16.xpose.msra.mxu0 %v1004
    %1010 = vmatprep.subr.bf16.mxu0 0
    %1011 = vmatpush1.bf16.xpose.msra.mxu0 0
    %1012 = vmatprep.subr.bf16.mxu0 0
    %1013 = vmatpush1.bf16.xpose.msra.mxu0 0
    %1014 = vmatprep.subr.bf16.mxu0 0
    %1015 = vmatpush1.bf16.xpose.msra.mxu0 0
    %1016 = vmatprep.subr.bf16.mxu0 0
    %1017 = vmatpush1.bf16.xpose.msra.mxu0 0
    %1018 = vmatprep.subr.bf16.mxu0 0
    %1019 = vmatpush1.bf16.xpose.msra.mxu0 0
    %1020 = vmatprep.subr.bf16.mxu0 0
    %1021 = vmatpush1.bf16.xpose.msra.mxu0 0
    %1022 = vmatprep.subr.bf16.mxu0 0
    %1023 = vmatpush1.bf16.xpose.msra.mxu0 0
    %1024 = vmatprep.subr.bf16.mxu0 0
    %1025 = vmatpush1.bf16.xpose.msra.mxu0 0
    %1026 = vmatprep.subr.bf16.mxu0 0
    %1027 = vmatpush1.bf16.xpose.msra.mxu0 0
    %1028 = vmatprep.subr.bf16.mxu0 0
    %1029 = vmatpush1.bf16.xpose.msra.mxu0 0
    %1030 = vmatprep.subr.bf16.mxu0 0
    %1031 = vmatpush1.bf16.xpose.msra.mxu0 0
    %1032 = vmatprep.subr.bf16.mxu0 0
    %1033 = vmatpush1.bf16.xpose.msra.mxu0 0
    %1034 = vmatprep.subr.bf16.mxu0 0
    %1035 = vmatpush1.bf16.xpose.msra.mxu0 0
    %1036 = vmatprep.subr.bf16.mxu0 0
    %1037 = vmatpush1.bf16.xpose.msra.mxu0 0
    %1038 = vmatprep.mubr.bf16.mxu0 0
    %1039 = vmatmul.mubr.bf16.gmra.mrb[0].mxu0 %v995
    %v1040 = vpop.f32.mrb[0].mxu0
    %v1041 = vadd.f32 0.0, %v1040
    %v1042 = vpop.f32.mrb[0].mxu0
    %v1043 = vpop.f32.mrb[0].mxu0
    %v1044 = vadd.f32 0.0, %v1043
    %v1045 = vpop.f32.mrb[0].mxu0
    %1046 = vmatprep.mubr.bf16.mxu0 0
    %1047 = vmatmul.mubr.bf16.gmra.mrb[0].mxu0 %v998
    %v1048 = vpop.f32.mrb[0].mxu0
    %v1049 = vadd.f32 0.0, %v1048
    %v1050 = vpop.f32.mrb[0].mxu0
    %v1051 = vpop.f32.mrb[0].mxu0
    %v1052 = vadd.f32 0.0, %v1051
    %v1053 = vpop.f32.mrb[0].mxu0
    %1054 = vdwg.mxu0
    %v1056 = vsel %vm810, %v748, 0
    %v1059 = vsel %vm810, %v749, 0
    %v1062 = vsel %vm810, %v780, 0
    %v1065 = vsel %vm810, %v781, 0
    %1067 = vmatprep.subr.bf16.mxu0 0
    %1068 = vmatpush1.bf16.xpose.msra.mxu0 %v1062
    %1069 = vmatprep.subr.bf16.mxu0 0
    %1070 = vmatpush1.bf16.xpose.msra.mxu0 %v1065
    %1071 = vmatprep.subr.bf16.mxu0 0
    %1072 = vmatpush1.bf16.xpose.msra.mxu0 0
    %1073 = vmatprep.subr.bf16.mxu0 0
    %1074 = vmatpush1.bf16.xpose.msra.mxu0 0
    %1075 = vmatprep.subr.bf16.mxu0 0
    %1076 = vmatpush1.bf16.xpose.msra.mxu0 0
    %1077 = vmatprep.subr.bf16.mxu0 0
    %1078 = vmatpush1.bf16.xpose.msra.mxu0 0
    %1079 = vmatprep.subr.bf16.mxu0 0
    %1080 = vmatpush1.bf16.xpose.msra.mxu0 0
    %1081 = vmatprep.subr.bf16.mxu0 0
    %1082 = vmatpush1.bf16.xpose.msra.mxu0 0
    %1083 = vmatprep.subr.bf16.mxu0 0
    %1084 = vmatpush1.bf16.xpose.msra.mxu0 0
    %1085 = vmatprep.subr.bf16.mxu0 0
    %1086 = vmatpush1.bf16.xpose.msra.mxu0 0
    %1087 = vmatprep.subr.bf16.mxu0 0
    %1088 = vmatpush1.bf16.xpose.msra.mxu0 0
    %1089 = vmatprep.subr.bf16.mxu0 0
    %1090 = vmatpush1.bf16.xpose.msra.mxu0 0
    %1091 = vmatprep.subr.bf16.mxu0 0
    %1092 = vmatpush1.bf16.xpose.msra.mxu0 0
    %1093 = vmatprep.subr.bf16.mxu0 0
    %1094 = vmatpush1.bf16.xpose.msra.mxu0 0
    %1095 = vmatprep.subr.bf16.mxu0 0
    %1096 = vmatpush1.bf16.xpose.msra.mxu0 0
    %1097 = vmatprep.subr.bf16.mxu0 0
    %1098 = vmatpush1.bf16.xpose.msra.mxu0 0
    %1099 = vmatprep.mubr.bf16.mxu0 0
    %1100 = vmatmul.mubr.bf16.gmra.mrb[0].mxu0 %v1056
    %v1101 = vpop.f32.mrb[0].mxu0
    %v1102 = vadd.f32 0.0, %v1101
    %v1103 = vpop.f32.mrb[0].mxu0
    %v1104 = vpop.f32.mrb[0].mxu0
    %v1105 = vadd.f32 0.0, %v1104
    %v1106 = vpop.f32.mrb[0].mxu0
    %1107 = vmatprep.mubr.bf16.mxu0 0
    %1108 = vmatmul.mubr.bf16.gmra.mrb[0].mxu0 %v1059
    %v1109 = vpop.f32.mrb[0].mxu0
    %v1110 = vadd.f32 0.0, %v1109
    %v1111 = vpop.f32.mrb[0].mxu0
    %v1112 = vpop.f32.mrb[0].mxu0
    %v1113 = vadd.f32 0.0, %v1112
    %v1114 = vpop.f32.mrb[0].mxu0
    %1115 = vdwg.mxu0
    %v1117 = vsel %vm810, %v759, 0
    %v1120 = vsel %vm810, %v761, 0
    %v1123 = vsel %vm810, %v791, 0
    %v1126 = vsel %vm810, %v793, 0
    %1128 = vmatprep.subr.bf16.mxu0 0
    %1129 = vmatpush1.bf16.xpose.msra.mxu0 %v1123
    %1130 = vmatprep.subr.bf16.mxu0 0
    %1131 = vmatpush1.bf16.xpose.msra.mxu0 %v1126
    %1132 = vmatprep.subr.bf16.mxu0 0
    %1133 = vmatpush1.bf16.xpose.msra.mxu0 0
    %1134 = vmatprep.subr.bf16.mxu0 0
    %1135 = vmatpush1.bf16.xpose.msra.mxu0 0
    %1136 = vmatprep.subr.bf16.mxu0 0
    %1137 = vmatpush1.bf16.xpose.msra.mxu0 0
    %1138 = vmatprep.subr.bf16.mxu0 0
    %1139 = vmatpush1.bf16.xpose.msra.mxu0 0
    %1140 = vmatprep.subr.bf16.mxu0 0
    %1141 = vmatpush1.bf16.xpose.msra.mxu0 0
    %1142 = vmatprep.subr.bf16.mxu0 0
    %1143 = vmatpush1.bf16.xpose.msra.mxu0 0
    %1144 = vmatprep.subr.bf16.mxu0 0
    %1145 = vmatpush1.bf16.xpose.msra.mxu0 0
    %1146 = vmatprep.subr.bf16.mxu0 0
    %1147 = vmatpush1.bf16.xpose.msra.mxu0 0
    %1148 = vmatprep.subr.bf16.mxu0 0
    %1149 = vmatpush1.bf16.xpose.msra.mxu0 0
    %1150 = vmatprep.subr.bf16.mxu0 0
    %1151 = vmatpush1.bf16.xpose.msra.mxu0 0
    %1152 = vmatprep.subr.bf16.mxu0 0
    %1153 = vmatpush1.bf16.xpose.msra.mxu0 0
    %1154 = vmatprep.subr.bf16.mxu0 0
    %1155 = vmatpush1.bf16.xpose.msra.mxu0 0
    %1156 = vmatprep.subr.bf16.mxu0 0
    %1157 = vmatpush1.bf16.xpose.msra.mxu0 0
    %1158 = vmatprep.subr.bf16.mxu0 0
    %1159 = vmatpush1.bf16.xpose.msra.mxu0 0
    %1160 = vmatprep.mubr.bf16.mxu0 0
    %1161 = vmatmul.mubr.bf16.gmra.mrb[0].mxu0 %v1117
    %v1162 = vpop.f32.mrb[0].mxu0
    %v1163 = vadd.f32 0.0, %v1162
    %v1164 = vpop.f32.mrb[0].mxu0
    %v1165 = vpop.f32.mrb[0].mxu0
    %v1166 = vadd.f32 0.0, %v1165
    %v1167 = vpop.f32.mrb[0].mxu0
    %1168 = vmatprep.mubr.bf16.mxu0 0
    %1169 = vmatmul.mubr.bf16.gmra.mrb[0].mxu0 %v1120
    %v1170 = vpop.f32.mrb[0].mxu0
    %v1171 = vadd.f32 0.0, %v1170
    %v1172 = vpop.f32.mrb[0].mxu0
    %v1173 = vpop.f32.mrb[0].mxu0
    %v1174 = vadd.f32 0.0, %v1173
    %v1175 = vpop.f32.mrb[0].mxu0
    %1176 = vdwg.mxu0
    %v1178 = vsel %vm810, %v767, 0
    %v1181 = vsel %vm810, %v769, 0
    %v1184 = vsel %vm810, %v799, 0
    %v1187 = vsel %vm810, %v801, 0
    %1189 = vmatprep.subr.bf16.mxu0 0
    %1190 = vmatpush1.bf16.xpose.msra.mxu0 %v1184
    %1191 = vmatprep.subr.bf16.mxu0 0
    %1192 = vmatpush1.bf16.xpose.msra.mxu0 %v1187
    %1193 = vmatprep.subr.bf16.mxu0 0
    %1194 = vmatpush1.bf16.xpose.msra.mxu0 0
    %1195 = vmatprep.subr.bf16.mxu0 0
    %1196 = vmatpush1.bf16.xpose.msra.mxu0 0
    %1197 = vmatprep.subr.bf16.mxu0 0
    %1198 = vmatpush1.bf16.xpose.msra.mxu0 0
    %1199 = vmatprep.subr.bf16.mxu0 0
    %1200 = vmatpush1.bf16.xpose.msra.mxu0 0
    %1201 = vmatprep.subr.bf16.mxu0 0
    %1202 = vmatpush1.bf16.xpose.msra.mxu0 0
    %1203 = vmatprep.subr.bf16.mxu0 0
    %1204 = vmatpush1.bf16.xpose.msra.mxu0 0
    %1205 = vmatprep.subr.bf16.mxu0 0
    %1206 = vmatpush1.bf16.xpose.msra.mxu0 0
    %1207 = vmatprep.subr.bf16.mxu0 0
    %1208 = vmatpush1.bf16.xpose.msra.mxu0 0
    %1209 = vmatprep.subr.bf16.mxu0 0
    %1210 = vmatpush1.bf16.xpose.msra.mxu0 0
    %1211 = vmatprep.subr.bf16.mxu0 0
    %1212 = vmatpush1.bf16.xpose.msra.mxu0 0
    %1213 = vmatprep.subr.bf16.mxu0 0
    %1214 = vmatpush1.bf16.xpose.msra.mxu0 0
    %1215 = vmatprep.subr.bf16.mxu0 0
    %1216 = vmatpush1.bf16.xpose.msra.mxu0 0
    %1217 = vmatprep.subr.bf16.mxu0 0
    %1218 = vmatpush1.bf16.xpose.msra.mxu0 0
    %1219 = vmatprep.subr.bf16.mxu0 0
    %1220 = vmatpush1.bf16.xpose.msra.mxu0 0
    %1221 = vmatprep.mubr.bf16.mxu0 0
    %1222 = vmatmul.mubr.bf16.gmra.mrb[0].mxu0 %v1178
    %v1223 = vpop.f32.mrb[0].mxu0
    %v1224 = vadd.f32 0.0, %v1223
    %v1225 = vpop.f32.mrb[0].mxu0
    %v1226 = vpop.f32.mrb[0].mxu0
    %v1227 = vadd.f32 0.0, %v1226
    %v1228 = vpop.f32.mrb[0].mxu0
    %1229 = vmatprep.mubr.bf16.mxu0 0
    %1230 = vmatmul.mubr.bf16.gmra.mrb[0].mxu0 %v1181
    %v1231 = vpop.f32.mrb[0].mxu0
    %v1232 = vadd.f32 0.0, %v1231
    %v1233 = vpop.f32.mrb[0].mxu0
    %v1234 = vpop.f32.mrb[0].mxu0
    %v1235 = vadd.f32 0.0, %v1234
    %v1236 = vpop.f32.mrb[0].mxu0
    %1237 = vdwg.mxu0
    %v1239 = vsel %vm810, %v775, 0
    %v1242 = vsel %vm810, %v777, 0
    %v1245 = vsel %vm810, %v807, 0
    %v1248 = vsel %vm810, %v809, 0
    %1250 = vmatprep.subr.bf16.mxu0 0
    %1251 = vmatpush1.bf16.xpose.msra.mxu0 %v1245
    %1252 = vmatprep.subr.bf16.mxu0 0
    %1253 = vmatpush1.bf16.xpose.msra.mxu0 %v1248
    %1254 = vmatprep.subr.bf16.mxu0 0
    %1255 = vmatpush1.bf16.xpose.msra.mxu0 0
    %1256 = vmatprep.subr.bf16.mxu0 0
    %1257 = vmatpush1.bf16.xpose.msra.mxu0 0
    %1258 = vmatprep.subr.bf16.mxu0 0
    %1259 = vmatpush1.bf16.xpose.msra.mxu0 0
    %1260 = vmatprep.subr.bf16.mxu0 0
    %1261 = vmatpush1.bf16.xpose.msra.mxu0 0
    %1262 = vmatprep.subr.bf16.mxu0 0
    %1263 = vmatpush1.bf16.xpose.msra.mxu0 0
    %1264 = vmatprep.subr.bf16.mxu0 0
    %1265 = vmatpush1.bf16.xpose.msra.mxu0 0
    %1266 = vmatprep.subr.bf16.mxu0 0
    %1267 = vmatpush1.bf16.xpose.msra.mxu0 0
    %1268 = vmatprep.subr.bf16.mxu0 0
    %1269 = vmatpush1.bf16.xpose.msra.mxu0 0
    %1270 = vmatprep.subr.bf16.mxu0 0
    %1271 = vmatpush1.bf16.xpose.msra.mxu0 0
    %1272 = vmatprep.subr.bf16.mxu0 0
    %1273 = vmatpush1.bf16.xpose.msra.mxu0 0
    %1274 = vmatprep.subr.bf16.mxu0 0
    %1275 = vmatpush1.bf16.xpose.msra.mxu0 0
    %1276 = vmatprep.subr.bf16.mxu0 0
    %1277 = vmatpush1.bf16.xpose.msra.mxu0 0
    %1278 = vmatprep.subr.bf16.mxu0 0
    %1279 = vmatpush1.bf16.xpose.msra.mxu0 0
    %1280 = vmatprep.subr.bf16.mxu0 0
    %1281 = vmatpush1.bf16.xpose.msra.mxu0 0
    %1282 = vmatprep.mubr.bf16.mxu0 0
    %1283 = vmatmul.mubr.bf16.gmra.mrb[0].mxu0 %v1239
    %v1284 = vpop.f32.mrb[0].mxu0
    %v1285 = vadd.f32 0.0, %v1284
    %v1286 = vpop.f32.mrb[0].mxu0
    %v1287 = vpop.f32.mrb[0].mxu0
    %v1288 = vadd.f32 0.0, %v1287
    %v1289 = vpop.f32.mrb[0].mxu0
    %1290 = vmatprep.mubr.bf16.mxu0 0
    %1291 = vmatmul.mubr.bf16.gmra.mrb[0].mxu0 %v1242
    %v1292 = vpop.f32.mrb[0].mxu0
    %v1293 = vadd.f32 0.0, %v1292
    %v1294 = vpop.f32.mrb[0].mxu0
    %v1295 = vpop.f32.mrb[0].mxu0
    %v1296 = vadd.f32 0.0, %v1295
    %v1297 = vpop.f32.mrb[0].mxu0
    %1298 = vdwg.mxu0
    %v1299 = vadd.f32 %v858, %v515
    %v1300 = vadd.f32 %v861, %v516
    %v1301 = vadd.f32 %v866, %v517
    %v1302 = vadd.f32 %v869, %v518
    %v1303 = vadd.f32 %v919, %v515
    %v1304 = vadd.f32 %v922, %v516
    %v1305 = vadd.f32 %v927, %v517
    %v1306 = vadd.f32 %v930, %v518
    %v1307 = vadd.f32 %v980, %v515
    %v1308 = vadd.f32 %v983, %v516
    %v1309 = vadd.f32 %v988, %v517
    %v1310 = vadd.f32 %v991, %v518
    %v1311 = vadd.f32 %v1041, %v515
    %v1312 = vadd.f32 %v1044, %v516
    %v1313 = vadd.f32 %v1049, %v517
    %v1314 = vadd.f32 %v1052, %v518
    %v1315 = vadd.f32 %v1102, %v519
    %v1316 = vadd.f32 %v1105, %v520
    %v1317 = vadd.f32 %v1110, %v521
    %v1318 = vadd.f32 %v1113, %v522
    %v1319 = vadd.f32 %v1163, %v519
    %v1320 = vadd.f32 %v1166, %v520
    %v1321 = vadd.f32 %v1171, %v521
    %v1322 = vadd.f32 %v1174, %v522
    %v1323 = vadd.f32 %v1224, %v519
    %v1324 = vadd.f32 %v1227, %v520
    %v1325 = vadd.f32 %v1232, %v521
    %v1326 = vadd.f32 %v1235, %v522
    %v1327 = vadd.f32 %v1285, %v519
    %v1328 = vadd.f32 %v1288, %v520
    %v1329 = vadd.f32 %v1293, %v521
    %v1330 = vadd.f32 %v1296, %v522
    %v1331 = vsel %vm561, %v1299, -inf
    %1332 = vmax.xlane.f32.xlu0 %v1331
    %v1333 = vpop.xlane.xlu0 %1332
    %v1334 = vsel %vm561, %v1300, -inf
    %1335 = vmax.xlane.f32.xlu0 %v1334
    %v1336 = vpop.xlane.xlu0 %1335
    %v1337 = vsel %vm561, %v1301, -inf
    %1338 = vmax.xlane.f32.xlu0 %v1337
    %v1339 = vpop.xlane.xlu0 %1338
    %v1340 = vsel %vm561, %v1302, -inf
    %1341 = vmax.xlane.f32.xlu0 %v1340
    %v1342 = vpop.xlane.xlu0 %1341
    %v1343 = vsel %vm561, %v1303, -inf
    %1344 = vmax.xlane.f32.xlu0 %v1343
    %v1345 = vpop.xlane.xlu0 %1344
    %v1346 = vsel %vm561, %v1304, -inf
    %1347 = vmax.xlane.f32.xlu0 %v1346
    %v1348 = vpop.xlane.xlu0 %1347
    %v1349 = vsel %vm561, %v1305, -inf
    %1350 = vmax.xlane.f32.xlu0 %v1349
    %v1351 = vpop.xlane.xlu0 %1350
    %v1352 = vsel %vm561, %v1306, -inf
    %1353 = vmax.xlane.f32.xlu0 %v1352
    %v1354 = vpop.xlane.xlu0 %1353
    %v1355 = vsel %vm561, %v1307, -inf
    %1356 = vmax.xlane.f32.xlu0 %v1355
    %v1357 = vpop.xlane.xlu0 %1356
    %v1358 = vsel %vm561, %v1308, -inf
    %1359 = vmax.xlane.f32.xlu0 %v1358
    %v1360 = vpop.xlane.xlu0 %1359
    %v1361 = vsel %vm561, %v1309, -inf
    %1362 = vmax.xlane.f32.xlu0 %v1361
    %v1363 = vpop.xlane.xlu0 %1362
    %v1364 = vsel %vm561, %v1310, -inf
    %1365 = vmax.xlane.f32.xlu0 %v1364
    %v1366 = vpop.xlane.xlu0 %1365
    %v1367 = vsel %vm561, %v1311, -inf
    %1368 = vmax.xlane.f32.xlu0 %v1367
    %v1369 = vpop.xlane.xlu0 %1368
    %v1370 = vsel %vm561, %v1312, -inf
    %1371 = vmax.xlane.f32.xlu0 %v1370
    %v1372 = vpop.xlane.xlu0 %1371
    %v1373 = vsel %vm561, %v1313, -inf
    %1374 = vmax.xlane.f32.xlu0 %v1373
    %v1375 = vpop.xlane.xlu0 %1374
    %v1376 = vsel %vm561, %v1314, -inf
    %1377 = vmax.xlane.f32.xlu0 %v1376
    %v1378 = vpop.xlane.xlu0 %1377
    %v1379 = vsel %vm561, %v1315, -inf
    %1380 = vmax.xlane.f32.xlu0 %v1379
    %v1381 = vpop.xlane.xlu0 %1380
    %v1382 = vsel %vm561, %v1316, -inf
    %1383 = vmax.xlane.f32.xlu0 %v1382
    %v1384 = vpop.xlane.xlu0 %1383
    %v1385 = vsel %vm561, %v1317, -inf
    %1386 = vmax.xlane.f32.xlu0 %v1385
    %v1387 = vpop.xlane.xlu0 %1386
    %v1388 = vsel %vm561, %v1318, -inf
    %1389 = vmax.xlane.f32.xlu0 %v1388
    %v1390 = vpop.xlane.xlu0 %1389
    %v1391 = vsel %vm561, %v1319, -inf
    %1392 = vmax.xlane.f32.xlu0 %v1391
    %v1393 = vpop.xlane.xlu0 %1392
    %v1394 = vsel %vm561, %v1320, -inf
    %1395 = vmax.xlane.f32.xlu0 %v1394
    %v1396 = vpop.xlane.xlu0 %1395
    %v1397 = vsel %vm561, %v1321, -inf
    %1398 = vmax.xlane.f32.xlu0 %v1397
    %v1399 = vpop.xlane.xlu0 %1398
    %v1400 = vsel %vm561, %v1322, -inf
    %1401 = vmax.xlane.f32.xlu0 %v1400
    %v1402 = vpop.xlane.xlu0 %1401
    %v1403 = vsel %vm561, %v1323, -inf
    %1404 = vmax.xlane.f32.xlu0 %v1403
    %v1405 = vpop.xlane.xlu0 %1404
    %v1406 = vsel %vm561, %v1324, -inf
    %1407 = vmax.xlane.f32.xlu0 %v1406
    %v1408 = vpop.xlane.xlu0 %1407
    %v1409 = vsel %vm561, %v1325, -inf
    %1410 = vmax.xlane.f32.xlu0 %v1409
    %v1411 = vpop.xlane.xlu0 %1410
    %v1412 = vsel %vm561, %v1326, -inf
    %1413 = vmax.xlane.f32.xlu0 %v1412
    %v1414 = vpop.xlane.xlu0 %1413
    %v1415 = vsel %vm561, %v1327, -inf
    %1416 = vmax.xlane.f32.xlu0 %v1415
    %v1417 = vpop.xlane.xlu0 %1416
    %v1418 = vsel %vm561, %v1328, -inf
    %1419 = vmax.xlane.f32.xlu0 %v1418
    %v1420 = vpop.xlane.xlu0 %1419
    %v1421 = vsel %vm561, %v1329, -inf
    %1422 = vmax.xlane.f32.xlu0 %v1421
    %v1423 = vpop.xlane.xlu0 %1422
    %v1424 = vsel %vm561, %v1330, -inf
    %1425 = vmax.xlane.f32.xlu0 %v1424
    %v1426 = vpop.xlane.xlu0 %1425
    %v1427 = vsub.f32 %v1299, %v1333
    %v1428 = vsub.f32 %v1300, %v1336
    %v1429 = vsub.f32 %v1301, %v1339
    %v1430 = vsub.f32 %v1302, %v1342
    %v1431 = vsub.f32 %v1303, %v1345
    %v1432 = vsub.f32 %v1304, %v1348
    %v1433 = vsub.f32 %v1305, %v1351
    %v1434 = vsub.f32 %v1306, %v1354
    %v1435 = vsub.f32 %v1307, %v1357
    %v1436 = vsub.f32 %v1308, %v1360
    %v1437 = vsub.f32 %v1309, %v1363
    %v1438 = vsub.f32 %v1310, %v1366
    %v1439 = vsub.f32 %v1311, %v1369
    %v1440 = vsub.f32 %v1312, %v1372
    %v1441 = vsub.f32 %v1313, %v1375
    %v1442 = vsub.f32 %v1314, %v1378
    %v1443 = vsub.f32 %v1315, %v1381
    %v1444 = vsub.f32 %v1316, %v1384
    %v1445 = vsub.f32 %v1317, %v1387
    %v1446 = vsub.f32 %v1318, %v1390
    %v1447 = vsub.f32 %v1319, %v1393
    %v1448 = vsub.f32 %v1320, %v1396
    %v1449 = vsub.f32 %v1321, %v1399
    %v1450 = vsub.f32 %v1322, %v1402
    %v1451 = vsub.f32 %v1323, %v1405
    %v1452 = vsub.f32 %v1324, %v1408
    %v1453 = vsub.f32 %v1325, %v1411
    %v1454 = vsub.f32 %v1326, %v1414
    %v1455 = vsub.f32 %v1327, %v1417
    %v1456 = vsub.f32 %v1328, %v1420
    %v1457 = vsub.f32 %v1329, %v1423
    %v1458 = vsub.f32 %v1330, %v1426
    %v1459 = vmul.f32 %v1427, 1.442695
    %v1460 = vpow.pop %v1459
    %v1461 = vmul.f32 %v1428, 1.442695
    %v1462 = vpow.pop %v1461
    %v1463 = vmul.f32 %v1429, 1.442695
    %v1464 = vpow.pop %v1463
    %v1465 = vmul.f32 %v1430, 1.442695
    %v1466 = vpow.pop %v1465
    %v1467 = vmul.f32 %v1431, 1.442695
    %v1468 = vpow.pop %v1467
    %v1469 = vmul.f32 %v1432, 1.442695
    %v1470 = vpow.pop %v1469
    %v1471 = vmul.f32 %v1433, 1.442695
    %v1472 = vpow.pop %v1471
    %v1473 = vmul.f32 %v1434, 1.442695
    %v1474 = vpow.pop %v1473
    %v1475 = vmul.f32 %v1435, 1.442695
    %v1476 = vpow.pop %v1475
    %v1477 = vmul.f32 %v1436, 1.442695
    %v1478 = vpow.pop %v1477
    %v1479 = vmul.f32 %v1437, 1.442695
    %v1480 = vpow.pop %v1479
    %v1481 = vmul.f32 %v1438, 1.442695
    %v1482 = vpow.pop %v1481
    %v1483 = vmul.f32 %v1439, 1.442695
    %v1484 = vpow.pop %v1483
    %v1485 = vmul.f32 %v1440, 1.442695
    %v1486 = vpow.pop %v1485
    %v1487 = vmul.f32 %v1441, 1.442695
    %v1488 = vpow.pop %v1487
    %v1489 = vmul.f32 %v1442, 1.442695
    %v1490 = vpow.pop %v1489
    %v1491 = vmul.f32 %v1443, 1.442695
    %v1492 = vpow.pop %v1491
    %v1493 = vmul.f32 %v1444, 1.442695
    %v1494 = vpow.pop %v1493
    %v1495 = vmul.f32 %v1445, 1.442695
    %v1496 = vpow.pop %v1495
    %v1497 = vmul.f32 %v1446, 1.442695
    %v1498 = vpow.pop %v1497
    %v1499 = vmul.f32 %v1447, 1.442695
    %v1500 = vpow.pop %v1499
    %v1501 = vmul.f32 %v1448, 1.442695
    %v1502 = vpow.pop %v1501
    %v1503 = vmul.f32 %v1449, 1.442695
    %v1504 = vpow.pop %v1503
    %v1505 = vmul.f32 %v1450, 1.442695
    %v1506 = vpow.pop %v1505
    %v1507 = vmul.f32 %v1451, 1.442695
    %v1508 = vpow.pop %v1507
    %v1509 = vmul.f32 %v1452, 1.442695
    %v1510 = vpow.pop %v1509
    %v1511 = vmul.f32 %v1453, 1.442695
    %v1512 = vpow.pop %v1511
    %v1513 = vmul.f32 %v1454, 1.442695
    %v1514 = vpow.pop %v1513
    %v1515 = vmul.f32 %v1455, 1.442695
    %v1516 = vpow.pop %v1515
    %v1517 = vmul.f32 %v1456, 1.442695
    %v1518 = vpow.pop %v1517
    %v1519 = vmul.f32 %v1457, 1.442695
    %v1520 = vpow.pop %v1519
    %v1521 = vmul.f32 %v1458, 1.442695
    %v1522 = vpow.pop %v1521
    %v1523 = vsel %vm561, %v1460, 0.0
    %1524 = vadd.xlane.f32.xlu0 %v1523
    %v1525 = vpop.xlane.xlu0 %1524
    %v1526 = vsel %vm561, %v1462, 0.0
    %1527 = vadd.xlane.f32.xlu0 %v1526
    %v1528 = vpop.xlane.xlu0 %1527
    %v1529 = vsel %vm561, %v1464, 0.0
    %1530 = vadd.xlane.f32.xlu0 %v1529
    %v1531 = vpop.xlane.xlu0 %1530
    %v1532 = vsel %vm561, %v1466, 0.0
    %1533 = vadd.xlane.f32.xlu0 %v1532
    %v1534 = vpop.xlane.xlu0 %1533
    %v1535 = vsel %vm561, %v1468, 0.0
    %1536 = vadd.xlane.f32.xlu0 %v1535
    %v1537 = vpop.xlane.xlu0 %1536
    %v1538 = vsel %vm561, %v1470, 0.0
    %1539 = vadd.xlane.f32.xlu0 %v1538
    %v1540 = vpop.xlane.xlu0 %1539
    %v1541 = vsel %vm561, %v1472, 0.0
    %1542 = vadd.xlane.f32.xlu0 %v1541
    %v1543 = vpop.xlane.xlu0 %1542
    %v1544 = vsel %vm561, %v1474, 0.0
    %1545 = vadd.xlane.f32.xlu0 %v1544
    %v1546 = vpop.xlane.xlu0 %1545
    %v1547 = vsel %vm561, %v1476, 0.0
    %1548 = vadd.xlane.f32.xlu0 %v1547
    %v1549 = vpop.xlane.xlu0 %1548
    %v1550 = vsel %vm561, %v1478, 0.0
    %1551 = vadd.xlane.f32.xlu0 %v1550
    %v1552 = vpop.xlane.xlu0 %1551
    %v1553 = vsel %vm561, %v1480, 0.0
    %1554 = vadd.xlane.f32.xlu0 %v1553
    %v1555 = vpop.xlane.xlu0 %1554
    %v1556 = vsel %vm561, %v1482, 0.0
    %1557 = vadd.xlane.f32.xlu0 %v1556
    %v1558 = vpop.xlane.xlu0 %1557
    %v1559 = vsel %vm561, %v1484, 0.0
    %1560 = vadd.xlane.f32.xlu0 %v1559
    %v1561 = vpop.xlane.xlu0 %1560
    %v1562 = vsel %vm561, %v1486, 0.0
    %1563 = vadd.xlane.f32.xlu0 %v1562
    %v1564 = vpop.xlane.xlu0 %1563
    %v1565 = vsel %vm561, %v1488, 0.0
    %1566 = vadd.xlane.f32.xlu0 %v1565
    %v1567 = vpop.xlane.xlu0 %1566
    %v1568 = vsel %vm561, %v1490, 0.0
    %1569 = vadd.xlane.f32.xlu0 %v1568
    %v1570 = vpop.xlane.xlu0 %1569
    %v1571 = vsel %vm561, %v1492, 0.0
    %1572 = vadd.xlane.f32.xlu0 %v1571
    %v1573 = vpop.xlane.xlu0 %1572
    %v1574 = vsel %vm561, %v1494, 0.0
    %1575 = vadd.xlane.f32.xlu0 %v1574
    %v1576 = vpop.xlane.xlu0 %1575
    %v1577 = vsel %vm561, %v1496, 0.0
    %1578 = vadd.xlane.f32.xlu0 %v1577
    %v1579 = vpop.xlane.xlu0 %1578
    %v1580 = vsel %vm561, %v1498, 0.0
    %1581 = vadd.xlane.f32.xlu0 %v1580
    %v1582 = vpop.xlane.xlu0 %1581
    %v1583 = vsel %vm561, %v1500, 0.0
    %1584 = vadd.xlane.f32.xlu0 %v1583
    %v1585 = vpop.xlane.xlu0 %1584
    %v1586 = vsel %vm561, %v1502, 0.0
    %1587 = vadd.xlane.f32.xlu0 %v1586
    %v1588 = vpop.xlane.xlu0 %1587
    %v1589 = vsel %vm561, %v1504, 0.0
    %1590 = vadd.xlane.f32.xlu0 %v1589
    %v1591 = vpop.xlane.xlu0 %1590
    %v1592 = vsel %vm561, %v1506, 0.0
    %1593 = vadd.xlane.f32.xlu0 %v1592
    %v1594 = vpop.xlane.xlu0 %1593
    %v1595 = vsel %vm561, %v1508, 0.0
    %1596 = vadd.xlane.f32.xlu0 %v1595
    %v1597 = vpop.xlane.xlu0 %1596
    %v1598 = vsel %vm561, %v1510, 0.0
    %1599 = vadd.xlane.f32.xlu0 %v1598
    %v1600 = vpop.xlane.xlu0 %1599
    %v1601 = vsel %vm561, %v1512, 0.0
    %1602 = vadd.xlane.f32.xlu0 %v1601
    %v1603 = vpop.xlane.xlu0 %1602
    %v1604 = vsel %vm561, %v1514, 0.0
    %1605 = vadd.xlane.f32.xlu0 %v1604
    %v1606 = vpop.xlane.xlu0 %1605
    %v1607 = vsel %vm561, %v1516, 0.0
    %1608 = vadd.xlane.f32.xlu0 %v1607
    %v1609 = vpop.xlane.xlu0 %1608
    %v1610 = vsel %vm561, %v1518, 0.0
    %1611 = vadd.xlane.f32.xlu0 %v1610
    %v1612 = vpop.xlane.xlu0 %1611
    %v1613 = vsel %vm561, %v1520, 0.0
    %1614 = vadd.xlane.f32.xlu0 %v1613
    %v1615 = vpop.xlane.xlu0 %1614
    %v1616 = vsel %vm561, %v1522, 0.0
    %1617 = vadd.xlane.f32.xlu0 %v1616
    %v1618 = vpop.xlane.xlu0 %1617
    %v1619 = vrcp.pop %v1525
    %v1620 = vrcp.pop %v1528
    %v1621 = vrcp.pop %v1531
    %v1622 = vrcp.pop %v1534
    %v1623 = vrcp.pop %v1537
    %v1624 = vrcp.pop %v1540
    %v1625 = vrcp.pop %v1543
    %v1626 = vrcp.pop %v1546
    %v1627 = vrcp.pop %v1549
    %v1628 = vrcp.pop %v1552
    %v1629 = vrcp.pop %v1555
    %v1630 = vrcp.pop %v1558
    %v1631 = vrcp.pop %v1561
    %v1632 = vrcp.pop %v1564
    %v1633 = vrcp.pop %v1567
    %v1634 = vrcp.pop %v1570
    %v1635 = vrcp.pop %v1573
    %v1636 = vrcp.pop %v1576
    %v1637 = vrcp.pop %v1579
    %v1638 = vrcp.pop %v1582
    %v1639 = vrcp.pop %v1585
    %v1640 = vrcp.pop %v1588
    %v1641 = vrcp.pop %v1591
    %v1642 = vrcp.pop %v1594
    %v1643 = vrcp.pop %v1597
    %v1644 = vrcp.pop %v1600
    %v1645 = vrcp.pop %v1603
    %v1646 = vrcp.pop %v1606
    %v1647 = vrcp.pop %v1609
    %v1648 = vrcp.pop %v1612
    %v1649 = vrcp.pop %v1615
    %v1650 = vrcp.pop %v1618
    %v1651 = vmul.f32 %v1460, %v1619
    %v1652 = vmul.f32 %v1462, %v1620
    %v1653 = vmul.f32 %v1464, %v1621
    %v1654 = vmul.f32 %v1466, %v1622
    %v1655 = vmul.f32 %v1468, %v1623
    %v1656 = vmul.f32 %v1470, %v1624
    %v1657 = vmul.f32 %v1472, %v1625
    %v1658 = vmul.f32 %v1474, %v1626
    %v1659 = vmul.f32 %v1476, %v1627
    %v1660 = vmul.f32 %v1478, %v1628
    %v1661 = vmul.f32 %v1480, %v1629
    %v1662 = vmul.f32 %v1482, %v1630
    %v1663 = vmul.f32 %v1484, %v1631
    %v1664 = vmul.f32 %v1486, %v1632
    %v1665 = vmul.f32 %v1488, %v1633
    %v1666 = vmul.f32 %v1490, %v1634
    %v1667 = vmul.f32 %v1492, %v1635
    %v1668 = vmul.f32 %v1494, %v1636
    %v1669 = vmul.f32 %v1496, %v1637
    %v1670 = vmul.f32 %v1498, %v1638
    %v1671 = vmul.f32 %v1500, %v1639
    %v1672 = vmul.f32 %v1502, %v1640
    %v1673 = vmul.f32 %v1504, %v1641
    %v1674 = vmul.f32 %v1506, %v1642
    %v1675 = vmul.f32 %v1508, %v1643
    %v1676 = vmul.f32 %v1510, %v1644
    %v1677 = vmul.f32 %v1512, %v1645
    %v1678 = vmul.f32 %v1514, %v1646
    %v1679 = vmul.f32 %v1516, %v1647
    %v1680 = vmul.f32 %v1518, %v1648
    %v1681 = vmul.f32 %v1520, %v1649
    %v1682 = vmul.f32 %v1522, %v1650
    %v1683 = vpack.c.bf16 %v1652, %v1651
    %v1684 = vpack.c.bf16 %v1654, %v1653
    %v1685 = vpack.c.bf16 %v1656, %v1655
    %v1686 = vpack.c.bf16 %v1658, %v1657
    %v1687 = vpack.c.bf16 %v1660, %v1659
    %v1688 = vpack.c.bf16 %v1662, %v1661
    %v1689 = vpack.c.bf16 %v1664, %v1663
    %v1690 = vpack.c.bf16 %v1666, %v1665
    %v1691 = vpack.c.bf16 %v1668, %v1667
    %v1692 = vpack.c.bf16 %v1670, %v1669
    %v1693 = vpack.c.bf16 %v1672, %v1671
    %v1694 = vpack.c.bf16 %v1674, %v1673
    %v1695 = vpack.c.bf16 %v1676, %v1675
    %v1696 = vpack.c.bf16 %v1678, %v1677
    %v1697 = vpack.c.bf16 %v1680, %v1679
    %v1698 = vpack.c.bf16 %v1682, %v1681
    %1699 = vrot.lane.b32.xlu0 %v778, 64
    %v1700 = vpop.permute.xlu0 %1699
    %1701 = vrot.lane.b32.xlu0 %v779, 64
    %v1702 = vpop.permute.xlu0 %1701
    %v1706 = vsel %vm561, %v1683, 0
    %v1709 = vsel %vm561, %v1684, 0
    %1711 = vmatprep.subr.bf16.mxu0 0
    %1712 = vmatpush1.bf16.msra.mxu0 %v1700
    %1713 = vmatprep.subr.bf16.mxu0 0
    %1714 = vmatpush1.bf16.msra.mxu0 %v1702
    %1715 = vmatprep.subr.bf16.mxu0 0
    %1716 = vmatpush1.bf16.msra.mxu0 0
    %1717 = vmatprep.subr.bf16.mxu0 0
    %1718 = vmatpush1.bf16.msra.mxu0 0
    %1719 = vmatprep.subr.bf16.mxu0 0
    %1720 = vmatpush1.bf16.msra.mxu0 0
    %1721 = vmatprep.subr.bf16.mxu0 0
    %1722 = vmatpush1.bf16.msra.mxu0 0
    %1723 = vmatprep.subr.bf16.mxu0 0
    %1724 = vmatpush1.bf16.msra.mxu0 0
    %1725 = vmatprep.subr.bf16.mxu0 0
    %1726 = vmatpush1.bf16.msra.mxu0 0
    %1727 = vmatprep.subr.bf16.mxu0 0
    %1728 = vmatpush1.bf16.msra.mxu0 0
    %1729 = vmatprep.subr.bf16.mxu0 0
    %1730 = vmatpush1.bf16.msra.mxu0 0
    %1731 = vmatprep.subr.bf16.mxu0 0
    %1732 = vmatpush1.bf16.msra.mxu0 0
    %1733 = vmatprep.subr.bf16.mxu0 0
    %1734 = vmatpush1.bf16.msra.mxu0 0
    %1735 = vmatprep.subr.bf16.mxu0 0
    %1736 = vmatpush1.bf16.msra.mxu0 0
    %1737 = vmatprep.subr.bf16.mxu0 0
    %1738 = vmatpush1.bf16.msra.mxu0 0
    %1739 = vmatprep.subr.bf16.mxu0 0
    %1740 = vmatpush1.bf16.msra.mxu0 0
    %1741 = vmatprep.subr.bf16.mxu0 0
    %1742 = vmatpush1.bf16.msra.mxu0 0
    %1743 = vmatprep.mubr.bf16.mxu0 0
    %1744 = vmatmul.mubr.bf16.gmra.mrb[0].mxu0 %v1706
    %v1745 = vpop.f32.mrb[0].mxu0
    %v1746 = vadd.f32 0.0, %v1745
    %v1747 = vpop.f32.mrb[0].mxu0
    %v1748 = vpop.f32.mrb[0].mxu0
    %v1749 = vadd.f32 0.0, %v1748
    %v1750 = vpop.f32.mrb[0].mxu0
    %1751 = vmatprep.mubr.bf16.mxu0 0
    %1752 = vmatmul.mubr.bf16.gmra.mrb[0].mxu0 %v1709
    %v1753 = vpop.f32.mrb[0].mxu0
    %v1754 = vadd.f32 0.0, %v1753
    %v1755 = vpop.f32.mrb[0].mxu0
    %v1756 = vpop.f32.mrb[0].mxu0
    %v1757 = vadd.f32 0.0, %v1756
    %v1758 = vpop.f32.mrb[0].mxu0
    %1759 = vdwg.mxu0
    %1760 = vrot.lane.b32.xlu0 %v787, 64
    %v1761 = vpop.permute.xlu0 %1760
    %1762 = vrot.lane.b32.xlu0 %v789, 64
    %v1763 = vpop.permute.xlu0 %1762
    %v1767 = vsel %vm561, %v1685, 0
    %v1770 = vsel %vm561, %v1686, 0
    %1772 = vmatprep.subr.bf16.mxu0 0
    %1773 = vmatpush1.bf16.msra.mxu0 %v1761
    %1774 = vmatprep.subr.bf16.mxu0 0
    %1775 = vmatpush1.bf16.msra.mxu0 %v1763
    %1776 = vmatprep.subr.bf16.mxu0 0
    %1777 = vmatpush1.bf16.msra.mxu0 0
    %1778 = vmatprep.subr.bf16.mxu0 0
    %1779 = vmatpush1.bf16.msra.mxu0 0
    %1780 = vmatprep.subr.bf16.mxu0 0
    %1781 = vmatpush1.bf16.msra.mxu0 0
    %1782 = vmatprep.subr.bf16.mxu0 0
    %1783 = vmatpush1.bf16.msra.mxu0 0
    %1784 = vmatprep.subr.bf16.mxu0 0
    %1785 = vmatpush1.bf16.msra.mxu0 0
    %1786 = vmatprep.subr.bf16.mxu0 0
    %1787 = vmatpush1.bf16.msra.mxu0 0
    %1788 = vmatprep.subr.bf16.mxu0 0
    %1789 = vmatpush1.bf16.msra.mxu0 0
    %1790 = vmatprep.subr.bf16.mxu0 0
    %1791 = vmatpush1.bf16.msra.mxu0 0
    %1792 = vmatprep.subr.bf16.mxu0 0
    %1793 = vmatpush1.bf16.msra.mxu0 0
    %1794 = vmatprep.subr.bf16.mxu0 0
    %1795 = vmatpush1.bf16.msra.mxu0 0
    %1796 = vmatprep.subr.bf16.mxu0 0
    %1797 = vmatpush1.bf16.msra.mxu0 0
    %1798 = vmatprep.subr.bf16.mxu0 0
    %1799 = vmatpush1.bf16.msra.mxu0 0
    %1800 = vmatprep.subr.bf16.mxu0 0
    %1801 = vmatpush1.bf16.msra.mxu0 0
    %1802 = vmatprep.subr.bf16.mxu0 0
    %1803 = vmatpush1.bf16.msra.mxu0 0
    %1804 = vmatprep.mubr.bf16.mxu0 0
    %1805 = vmatmul.mubr.bf16.gmra.mrb[0].mxu0 %v1767
    %v1806 = vpop.f32.mrb[0].mxu0
    %v1807 = vadd.f32 0.0, %v1806
    %v1808 = vpop.f32.mrb[0].mxu0
    %v1809 = vpop.f32.mrb[0].mxu0
    %v1810 = vadd.f32 0.0, %v1809
    %v1811 = vpop.f32.mrb[0].mxu0
    %1812 = vmatprep.mubr.bf16.mxu0 0
    %1813 = vmatmul.mubr.bf16.gmra.mrb[0].mxu0 %v1770
    %v1814 = vpop.f32.mrb[0].mxu0
    %v1815 = vadd.f32 0.0, %v1814
    %v1816 = vpop.f32.mrb[0].mxu0
    %v1817 = vpop.f32.mrb[0].mxu0
    %v1818 = vadd.f32 0.0, %v1817
    %v1819 = vpop.f32.mrb[0].mxu0
    %1820 = vdwg.mxu0
    %1821 = vrot.lane.b32.xlu0 %v795, 64
    %v1822 = vpop.permute.xlu0 %1821
    %1823 = vrot.lane.b32.xlu0 %v797, 64
    %v1824 = vpop.permute.xlu0 %1823
    %v1828 = vsel %vm561, %v1687, 0
    %v1831 = vsel %vm561, %v1688, 0
    %1833 = vmatprep.subr.bf16.mxu0 0
    %1834 = vmatpush1.bf16.msra.mxu0 %v1822
    %1835 = vmatprep.subr.bf16.mxu0 0
    %1836 = vmatpush1.bf16.msra.mxu0 %v1824
    %1837 = vmatprep.subr.bf16.mxu0 0
    %1838 = vmatpush1.bf16.msra.mxu0 0
    %1839 = vmatprep.subr.bf16.mxu0 0
    %1840 = vmatpush1.bf16.msra.mxu0 0
    %1841 = vmatprep.subr.bf16.mxu0 0
    %1842 = vmatpush1.bf16.msra.mxu0 0
    %1843 = vmatprep.subr.bf16.mxu0 0
    %1844 = vmatpush1.bf16.msra.mxu0 0
    %1845 = vmatprep.subr.bf16.mxu0 0
    %1846 = vmatpush1.bf16.msra.mxu0 0
    %1847 = vmatprep.subr.bf16.mxu0 0
    %1848 = vmatpush1.bf16.msra.mxu0 0
    %1849 = vmatprep.subr.bf16.mxu0 0
    %1850 = vmatpush1.bf16.msra.mxu0 0
    %1851 = vmatprep.subr.bf16.mxu0 0
    %1852 = vmatpush1.bf16.msra.mxu0 0
    %1853 = vmatprep.subr.bf16.mxu0 0
    %1854 = vmatpush1.bf16.msra.mxu0 0
    %1855 = vmatprep.subr.bf16.mxu0 0
    %1856 = vmatpush1.bf16.msra.mxu0 0
    %1857 = vmatprep.subr.bf16.mxu0 0
    %1858 = vmatpush1.bf16.msra.mxu0 0
    %1859 = vmatprep.subr.bf16.mxu0 0
    %1860 = vmatpush1.bf16.msra.mxu0 0
    %1861 = vmatprep.subr.bf16.mxu0 0
    %1862 = vmatpush1.bf16.msra.mxu0 0
    %1863 = vmatprep.subr.bf16.mxu0 0
    %1864 = vmatpush1.bf16.msra.mxu0 0
    %1865 = vmatprep.mubr.bf16.mxu0 0
    %1866 = vmatmul.mubr.bf16.gmra.mrb[0].mxu0 %v1828
    %v1867 = vpop.f32.mrb[0].mxu0
    %v1868 = vadd.f32 0.0, %v1867
    %v1869 = vpop.f32.mrb[0].mxu0
    %v1870 = vpop.f32.mrb[0].mxu0
    %v1871 = vadd.f32 0.0, %v1870
    %v1872 = vpop.f32.mrb[0].mxu0
    %1873 = vmatprep.mubr.bf16.mxu0 0
    %1874 = vmatmul.mubr.bf16.gmra.mrb[0].mxu0 %v1831
    %v1875 = vpop.f32.mrb[0].mxu0
    %v1876 = vadd.f32 0.0, %v1875
    %v1877 = vpop.f32.mrb[0].mxu0
    %v1878 = vpop.f32.mrb[0].mxu0
    %v1879 = vadd.f32 0.0, %v1878
    %v1880 = vpop.f32.mrb[0].mxu0
    %1881 = vdwg.mxu0
    %1882 = vrot.lane.b32.xlu0 %v803, 64
    %v1883 = vpop.permute.xlu0 %1882
    %1884 = vrot.lane.b32.xlu0 %v805, 64
    %v1885 = vpop.permute.xlu0 %1884
    %v1889 = vsel %vm561, %v1689, 0
    %v1892 = vsel %vm561, %v1690, 0
    %1894 = vmatprep.subr.bf16.mxu0 0
    %1895 = vmatpush1.bf16.msra.mxu0 %v1883
    %1896 = vmatprep.subr.bf16.mxu0 0
    %1897 = vmatpush1.bf16.msra.mxu0 %v1885
    %1898 = vmatprep.subr.bf16.mxu0 0
    %1899 = vmatpush1.bf16.msra.mxu0 0
    %1900 = vmatprep.subr.bf16.mxu0 0
    %1901 = vmatpush1.bf16.msra.mxu0 0
    %1902 = vmatprep.subr.bf16.mxu0 0
    %1903 = vmatpush1.bf16.msra.mxu0 0
    %1904 = vmatprep.subr.bf16.mxu0 0
    %1905 = vmatpush1.bf16.msra.mxu0 0
    %1906 = vmatprep.subr.bf16.mxu0 0
    %1907 = vmatpush1.bf16.msra.mxu0 0
    %1908 = vmatprep.subr.bf16.mxu0 0
    %1909 = vmatpush1.bf16.msra.mxu0 0
    %1910 = vmatprep.subr.bf16.mxu0 0
    %1911 = vmatpush1.bf16.msra.mxu0 0
    %1912 = vmatprep.subr.bf16.mxu0 0
    %1913 = vmatpush1.bf16.msra.mxu0 0
    %1914 = vmatprep.subr.bf16.mxu0 0
    %1915 = vmatpush1.bf16.msra.mxu0 0
    %1916 = vmatprep.subr.bf16.mxu0 0
    %1917 = vmatpush1.bf16.msra.mxu0 0
    %1918 = vmatprep.subr.bf16.mxu0 0
    %1919 = vmatpush1.bf16.msra.mxu0 0
    %1920 = vmatprep.subr.bf16.mxu0 0
    %1921 = vmatpush1.bf16.msra.mxu0 0
    %1922 = vmatprep.subr.bf16.mxu0 0
    %1923 = vmatpush1.bf16.msra.mxu0 0
    %1924 = vmatprep.subr.bf16.mxu0 0
    %1925 = vmatpush1.bf16.msra.mxu0 0
    %1926 = vmatprep.mubr.bf16.mxu0 0
    %1927 = vmatmul.mubr.bf16.gmra.mrb[0].mxu0 %v1889
    %v1928 = vpop.f32.mrb[0].mxu0
    %v1929 = vadd.f32 0.0, %v1928
    %v1930 = vpop.f32.mrb[0].mxu0
    %v1931 = vpop.f32.mrb[0].mxu0
    %v1932 = vadd.f32 0.0, %v1931
    %v1933 = vpop.f32.mrb[0].mxu0
    %1934 = vmatprep.mubr.bf16.mxu0 0
    %1935 = vmatmul.mubr.bf16.gmra.mrb[0].mxu0 %v1892
    %v1936 = vpop.f32.mrb[0].mxu0
    %v1937 = vadd.f32 0.0, %v1936
    %v1938 = vpop.f32.mrb[0].mxu0
    %v1939 = vpop.f32.mrb[0].mxu0
    %v1940 = vadd.f32 0.0, %v1939
    %v1941 = vpop.f32.mrb[0].mxu0
    %1942 = vdwg.mxu0
    %1943 = vrot.lane.b32.xlu0 %v780, 64
    %v1944 = vpop.permute.xlu0 %1943
    %1945 = vrot.lane.b32.xlu0 %v781, 64
    %v1946 = vpop.permute.xlu0 %1945
    %v1950 = vsel %vm561, %v1691, 0
    %v1953 = vsel %vm561, %v1692, 0
    %1955 = vmatprep.subr.bf16.mxu0 0
    %1956 = vmatpush1.bf16.msra.mxu0 %v1944
    %1957 = vmatprep.subr.bf16.mxu0 0
    %1958 = vmatpush1.bf16.msra.mxu0 %v1946
    %1959 = vmatprep.subr.bf16.mxu0 0
    %1960 = vmatpush1.bf16.msra.mxu0 0
    %1961 = vmatprep.subr.bf16.mxu0 0
    %1962 = vmatpush1.bf16.msra.mxu0 0
    %1963 = vmatprep.subr.bf16.mxu0 0
    %1964 = vmatpush1.bf16.msra.mxu0 0
    %1965 = vmatprep.subr.bf16.mxu0 0
    %1966 = vmatpush1.bf16.msra.mxu0 0
    %1967 = vmatprep.subr.bf16.mxu0 0
    %1968 = vmatpush1.bf16.msra.mxu0 0
    %1969 = vmatprep.subr.bf16.mxu0 0
    %1970 = vmatpush1.bf16.msra.mxu0 0
    %1971 = vmatprep.subr.bf16.mxu0 0
    %1972 = vmatpush1.bf16.msra.mxu0 0
    %1973 = vmatprep.subr.bf16.mxu0 0
    %1974 = vmatpush1.bf16.msra.mxu0 0
    %1975 = vmatprep.subr.bf16.mxu0 0
    %1976 = vmatpush1.bf16.msra.mxu0 0
    %1977 = vmatprep.subr.bf16.mxu0 0
    %1978 = vmatpush1.bf16.msra.mxu0 0
    %1979 = vmatprep.subr.bf16.mxu0 0
    %1980 = vmatpush1.bf16.msra.mxu0 0
    %1981 = vmatprep.subr.bf16.mxu0 0
    %1982 = vmatpush1.bf16.msra.mxu0 0
    %1983 = vmatprep.subr.bf16.mxu0 0
    %1984 = vmatpush1.bf16.msra.mxu0 0
    %1985 = vmatprep.subr.bf16.mxu0 0
    %1986 = vmatpush1.bf16.msra.mxu0 0
    %1987 = vmatprep.mubr.bf16.mxu0 0
    %1988 = vmatmul.mubr.bf16.gmra.mrb[0].mxu0 %v1950
    %v1989 = vpop.f32.mrb[0].mxu0
    %v1990 = vadd.f32 0.0, %v1989
    %v1991 = vpop.f32.mrb[0].mxu0
    %v1992 = vpop.f32.mrb[0].mxu0
    %v1993 = vadd.f32 0.0, %v1992
    %v1994 = vpop.f32.mrb[0].mxu0
    %1995 = vmatprep.mubr.bf16.mxu0 0
    %1996 = vmatmul.mubr.bf16.gmra.mrb[0].mxu0 %v1953
    %v1997 = vpop.f32.mrb[0].mxu0
    %v1998 = vadd.f32 0.0, %v1997
    %v1999 = vpop.f32.mrb[0].mxu0
    %v2000 = vpop.f32.mrb[0].mxu0
    %v2001 = vadd.f32 0.0, %v2000
    %v2002 = vpop.f32.mrb[0].mxu0
    %2003 = vdwg.mxu0
    %2004 = vrot.lane.b32.xlu0 %v791, 64
    %v2005 = vpop.permute.xlu0 %2004
    %2006 = vrot.lane.b32.xlu0 %v793, 64
    %v2007 = vpop.permute.xlu0 %2006
    %v2011 = vsel %vm561, %v1693, 0
    %v2014 = vsel %vm561, %v1694, 0
    %2016 = vmatprep.subr.bf16.mxu0 0
    %2017 = vmatpush1.bf16.msra.mxu0 %v2005
    %2018 = vmatprep.subr.bf16.mxu0 0
    %2019 = vmatpush1.bf16.msra.mxu0 %v2007
    %2020 = vmatprep.subr.bf16.mxu0 0
    %2021 = vmatpush1.bf16.msra.mxu0 0
    %2022 = vmatprep.subr.bf16.mxu0 0
    %2023 = vmatpush1.bf16.msra.mxu0 0
    %2024 = vmatprep.subr.bf16.mxu0 0
    %2025 = vmatpush1.bf16.msra.mxu0 0
    %2026 = vmatprep.subr.bf16.mxu0 0
    %2027 = vmatpush1.bf16.msra.mxu0 0
    %2028 = vmatprep.subr.bf16.mxu0 0
    %2029 = vmatpush1.bf16.msra.mxu0 0
    %2030 = vmatprep.subr.bf16.mxu0 0
    %2031 = vmatpush1.bf16.msra.mxu0 0
    %2032 = vmatprep.subr.bf16.mxu0 0
    %2033 = vmatpush1.bf16.msra.mxu0 0
    %2034 = vmatprep.subr.bf16.mxu0 0
    %2035 = vmatpush1.bf16.msra.mxu0 0
    %2036 = vmatprep.subr.bf16.mxu0 0
    %2037 = vmatpush1.bf16.msra.mxu0 0
    %2038 = vmatprep.subr.bf16.mxu0 0
    %2039 = vmatpush1.bf16.msra.mxu0 0
    %2040 = vmatprep.subr.bf16.mxu0 0
    %2041 = vmatpush1.bf16.msra.mxu0 0
    %2042 = vmatprep.subr.bf16.mxu0 0
    %2043 = vmatpush1.bf16.msra.mxu0 0
    %2044 = vmatprep.subr.bf16.mxu0 0
    %2045 = vmatpush1.bf16.msra.mxu0 0
    %2046 = vmatprep.subr.bf16.mxu0 0
    %2047 = vmatpush1.bf16.msra.mxu0 0
    %2048 = vmatprep.mubr.bf16.mxu0 0
    %2049 = vmatmul.mubr.bf16.gmra.mrb[0].mxu0 %v2011
    %v2050 = vpop.f32.mrb[0].mxu0
    %v2051 = vadd.f32 0.0, %v2050
    %v2052 = vpop.f32.mrb[0].mxu0
    %v2053 = vpop.f32.mrb[0].mxu0
    %v2054 = vadd.f32 0.0, %v2053
    %v2055 = vpop.f32.mrb[0].mxu0
    %2056 = vmatprep.mubr.bf16.mxu0 0
    %2057 = vmatmul.mubr.bf16.gmra.mrb[0].mxu0 %v2014
    %v2058 = vpop.f32.mrb[0].mxu0
    %v2059 = vadd.f32 0.0, %v2058
    %v2060 = vpop.f32.mrb[0].mxu0
    %v2061 = vpop.f32.mrb[0].mxu0
    %v2062 = vadd.f32 0.0, %v2061
    %v2063 = vpop.f32.mrb[0].mxu0
    %2064 = vdwg.mxu0
    %2065 = vrot.lane.b32.xlu0 %v799, 64
    %v2066 = vpop.permute.xlu0 %2065
    %2067 = vrot.lane.b32.xlu0 %v801, 64
    %v2068 = vpop.permute.xlu0 %2067
    %v2072 = vsel %vm561, %v1695, 0
    %v2075 = vsel %vm561, %v1696, 0
    %2077 = vmatprep.subr.bf16.mxu0 0
    %2078 = vmatpush1.bf16.msra.mxu0 %v2066
    %2079 = vmatprep.subr.bf16.mxu0 0
    %2080 = vmatpush1.bf16.msra.mxu0 %v2068
    %2081 = vmatprep.subr.bf16.mxu0 0
    %2082 = vmatpush1.bf16.msra.mxu0 0
    %2083 = vmatprep.subr.bf16.mxu0 0
    %2084 = vmatpush1.bf16.msra.mxu0 0
    %2085 = vmatprep.subr.bf16.mxu0 0
    %2086 = vmatpush1.bf16.msra.mxu0 0
    %2087 = vmatprep.subr.bf16.mxu0 0
    %2088 = vmatpush1.bf16.msra.mxu0 0
    %2089 = vmatprep.subr.bf16.mxu0 0
    %2090 = vmatpush1.bf16.msra.mxu0 0
    %2091 = vmatprep.subr.bf16.mxu0 0
    %2092 = vmatpush1.bf16.msra.mxu0 0
    %2093 = vmatprep.subr.bf16.mxu0 0
    %2094 = vmatpush1.bf16.msra.mxu0 0
    %2095 = vmatprep.subr.bf16.mxu0 0
    %2096 = vmatpush1.bf16.msra.mxu0 0
    %2097 = vmatprep.subr.bf16.mxu0 0
    %2098 = vmatpush1.bf16.msra.mxu0 0
    %2099 = vmatprep.subr.bf16.mxu0 0
    %2100 = vmatpush1.bf16.msra.mxu0 0
    %2101 = vmatprep.subr.bf16.mxu0 0
    %2102 = vmatpush1.bf16.msra.mxu0 0
    %2103 = vmatprep.subr.bf16.mxu0 0
    %2104 = vmatpush1.bf16.msra.mxu0 0
    %2105 = vmatprep.subr.bf16.mxu0 0
    %2106 = vmatpush1.bf16.msra.mxu0 0
    %2107 = vmatprep.subr.bf16.mxu0 0
    %2108 = vmatpush1.bf16.msra.mxu0 0
    %2109 = vmatprep.mubr.bf16.mxu0 0
    %2110 = vmatmul.mubr.bf16.gmra.mrb[0].mxu0 %v2072
    %v2111 = vpop.f32.mrb[0].mxu0
    %v2112 = vadd.f32 0.0, %v2111
    %v2113 = vpop.f32.mrb[0].mxu0
    %v2114 = vpop.f32.mrb[0].mxu0
    %v2115 = vadd.f32 0.0, %v2114
    %v2116 = vpop.f32.mrb[0].mxu0
    %2117 = vmatprep.mubr.bf16.mxu0 0
    %2118 = vmatmul.mubr.bf16.gmra.mrb[0].mxu0 %v2075
    %v2119 = vpop.f32.mrb[0].mxu0
    %v2120 = vadd.f32 0.0, %v2119
    %v2121 = vpop.f32.mrb[0].mxu0
    %v2122 = vpop.f32.mrb[0].mxu0
    %v2123 = vadd.f32 0.0, %v2122
    %v2124 = vpop.f32.mrb[0].mxu0
    %2125 = vdwg.mxu0
    %2126 = vrot.lane.b32.xlu0 %v807, 64
    %v2127 = vpop.permute.xlu0 %2126
    %2128 = vrot.lane.b32.xlu0 %v809, 64
    %v2129 = vpop.permute.xlu0 %2128
    %v2133 = vsel %vm561, %v1697, 0
    %v2136 = vsel %vm561, %v1698, 0
    %2138 = vmatprep.subr.bf16.mxu0 0
    %2139 = vmatpush1.bf16.msra.mxu0 %v2127
    %2140 = vmatprep.subr.bf16.mxu0 0
    %2141 = vmatpush1.bf16.msra.mxu0 %v2129
    %2142 = vmatprep.subr.bf16.mxu0 0
    %2143 = vmatpush1.bf16.msra.mxu0 0
    %2144 = vmatprep.subr.bf16.mxu0 0
    %2145 = vmatpush1.bf16.msra.mxu0 0
    %2146 = vmatprep.subr.bf16.mxu0 0
    %2147 = vmatpush1.bf16.msra.mxu0 0
    %2148 = vmatprep.subr.bf16.mxu0 0
    %2149 = vmatpush1.bf16.msra.mxu0 0
    %2150 = vmatprep.subr.bf16.mxu0 0
    %2151 = vmatpush1.bf16.msra.mxu0 0
    %2152 = vmatprep.subr.bf16.mxu0 0
    %2153 = vmatpush1.bf16.msra.mxu0 0
    %2154 = vmatprep.subr.bf16.mxu0 0
    %2155 = vmatpush1.bf16.msra.mxu0 0
    %2156 = vmatprep.subr.bf16.mxu0 0
    %2157 = vmatpush1.bf16.msra.mxu0 0
    %2158 = vmatprep.subr.bf16.mxu0 0
    %2159 = vmatpush1.bf16.msra.mxu0 0
    %2160 = vmatprep.subr.bf16.mxu0 0
    %2161 = vmatpush1.bf16.msra.mxu0 0
    %2162 = vmatprep.subr.bf16.mxu0 0
    %2163 = vmatpush1.bf16.msra.mxu0 0
    %2164 = vmatprep.subr.bf16.mxu0 0
    %2165 = vmatpush1.bf16.msra.mxu0 0
    %2166 = vmatprep.subr.bf16.mxu0 0
    %2167 = vmatpush1.bf16.msra.mxu0 0
    %2168 = vmatprep.subr.bf16.mxu0 0
    %2169 = vmatpush1.bf16.msra.mxu0 0
    %2170 = vmatprep.mubr.bf16.mxu0 0
    %2171 = vmatmul.mubr.bf16.gmra.mrb[0].mxu0 %v2133
    %v2172 = vpop.f32.mrb[0].mxu0
    %v2173 = vadd.f32 0.0, %v2172
    %v2174 = vpop.f32.mrb[0].mxu0
    %v2175 = vpop.f32.mrb[0].mxu0
    %v2176 = vadd.f32 0.0, %v2175
    %v2177 = vpop.f32.mrb[0].mxu0
    %2178 = vmatprep.mubr.bf16.mxu0 0
    %2179 = vmatmul.mubr.bf16.gmra.mrb[0].mxu0 %v2136
    %v2180 = vpop.f32.mrb[0].mxu0
    %v2181 = vadd.f32 0.0, %v2180
    %v2182 = vpop.f32.mrb[0].mxu0
    %v2183 = vpop.f32.mrb[0].mxu0
    %v2184 = vadd.f32 0.0, %v2183
    %v2185 = vpop.f32.mrb[0].mxu0
    %2186 = vdwg.mxu0
    %2195 = vrot.lane.b32.xlu0 %v1807, 16
    %v2196 = vpop.permute.xlu0 %2195
    %2197 = vrot.lane.b32.xlu0 %v1810, 16
    %v2198 = vpop.permute.xlu0 %2197
    %2199 = vrot.lane.b32.xlu0 %v1815, 16
    %v2200 = vpop.permute.xlu0 %2199
    %2201 = vrot.lane.b32.xlu0 %v1818, 16
    %v2202 = vpop.permute.xlu0 %2201
    %2203 = vrot.lane.b32.xlu0 %v2051, 16
    %v2204 = vpop.permute.xlu0 %2203
    %2205 = vrot.lane.b32.xlu0 %v2054, 16
    %v2206 = vpop.permute.xlu0 %2205
    %2207 = vrot.lane.b32.xlu0 %v2059, 16
    %v2208 = vpop.permute.xlu0 %2207
    %2209 = vrot.lane.b32.xlu0 %v2062, 16
    %v2210 = vpop.permute.xlu0 %2209
    %2227 = vrot.lane.b32.xlu0 %v1868, 32
    %v2228 = vpop.permute.xlu0 %2227
    %2229 = vrot.lane.b32.xlu0 %v1871, 32
    %v2230 = vpop.permute.xlu0 %2229
    %2231 = vrot.lane.b32.xlu0 %v1876, 32
    %v2232 = vpop.permute.xlu0 %2231
    %2233 = vrot.lane.b32.xlu0 %v1879, 32
    %v2234 = vpop.permute.xlu0 %2233
    %2235 = vrot.lane.b32.xlu0 %v2112, 32
    %v2236 = vpop.permute.xlu0 %2235
    %2237 = vrot.lane.b32.xlu0 %v2115, 32
    %v2238 = vpop.permute.xlu0 %2237
    %2239 = vrot.lane.b32.xlu0 %v2120, 32
    %v2240 = vpop.permute.xlu0 %2239
    %2241 = vrot.lane.b32.xlu0 %v2123, 32
    %v2242 = vpop.permute.xlu0 %2241
    %2259 = vrot.lane.b32.xlu0 %v1929, 48
    %v2260 = vpop.permute.xlu0 %2259
    %2261 = vrot.lane.b32.xlu0 %v1932, 48
    %v2262 = vpop.permute.xlu0 %2261
    %2263 = vrot.lane.b32.xlu0 %v1937, 48
    %v2264 = vpop.permute.xlu0 %2263
    %2265 = vrot.lane.b32.xlu0 %v1940, 48
    %v2266 = vpop.permute.xlu0 %2265
    %2267 = vrot.lane.b32.xlu0 %v2173, 48
    %v2268 = vpop.permute.xlu0 %2267
    %2269 = vrot.lane.b32.xlu0 %v2176, 48
    %v2270 = vpop.permute.xlu0 %2269
    %2271 = vrot.lane.b32.xlu0 %v2181, 48
    %v2272 = vpop.permute.xlu0 %2271
    %2273 = vrot.lane.b32.xlu0 %v2184, 48
    %v2274 = vpop.permute.xlu0 %2273
    %v2283 = vsel %vm810, %v1746, %v2196
    %v2284 = vsel %vm810, %v1749, %v2198
    %v2285 = vsel %vm810, %v1754, %v2200
    %v2286 = vsel %vm810, %v1757, %v2202
    %v2287 = vsel %vm810, %v1990, %v2204
    %v2288 = vsel %vm810, %v1993, %v2206
    %v2289 = vsel %vm810, %v1998, %v2208
    %v2290 = vsel %vm810, %v2001, %v2210
    %v2291 = vsel %vm561, %v2283, %v2228
    %v2292 = vsel %vm561, %v2284, %v2230
    %v2293 = vsel %vm561, %v2285, %v2232
    %v2294 = vsel %vm561, %v2286, %v2234
    %v2295 = vsel %vm561, %v2287, %v2236
    %v2296 = vsel %vm561, %v2288, %v2238
    %v2297 = vsel %vm561, %v2289, %v2240
    %v2298 = vsel %vm561, %v2290, %v2242
    %vm2299 = vcmask 392192
    %v2300 = vsel %vm2299, %v2291, %v2260
    %v2301 = vsel %vm2299, %v2292, %v2262
    %v2302 = vsel %vm2299, %v2293, %v2264
    %v2303 = vsel %vm2299, %v2294, %v2266
    %v2304 = vsel %vm2299, %v2295, %v2268
    %v2305 = vsel %vm2299, %v2296, %v2270
    %v2306 = vsel %vm2299, %v2297, %v2272
    %v2307 = vsel %vm2299, %v2298, %v2274
    %v2308 = vpack.c.bf16 %v2301, %v2300
    %v2309 = vpack.c.bf16 %v2303, %v2302
    %v2310 = vpack.c.bf16 %v2305, %v2304
    %v2311 = vpack.c.bf16 %v2307, %v2306
    %v2313 = vlaneseq
    %v2314 = vshrl.u32 %v2313, 7
    %v2315 = vsub.s32 0, %v2314
    %v2316 = vrot.slane %v443, %v2315
    %v2326 = vunpack.c.l.b16 %v435
    %v2327 = vunpack.c.l.b16 %v436
    %v2328 = vunpack.c.l.b16 %v437
    %v2329 = vunpack.c.l.b16 %v438
    %v2330 = vunpack.c.l.b16 %v439
    %v2331 = vunpack.c.l.b16 %v440
    %v2332 = vunpack.c.l.b16 %v441
    %v2333 = vunpack.c.l.b16 %v442
    %v2334 = vpack.c.b16 %v2327, %v2326
    %v2335 = vpack.c.b16 %v2329, %v2328
    %v2336 = vpack.c.b16 %v2331, %v2330
    %v2337 = vpack.c.b16 %v2333, %v2332
    %vm2342 = vcmask 523264
    %v2344 = vsel %vm2342, %v2308, 0
    %v2347 = vsel %vm2342, %v2309, 0
    %v2350 = vsel %vm2342, %v2310, 0
    %v2353 = vsel %vm2342, %v2311, 0
    %2355 = vmatprep.subr.bf16.mxu0 0
    %2356 = vmatpush1.bf16.msra.mxu0 %v2334
    %2357 = vmatprep.subr.bf16.mxu0 0
    %2358 = vmatpush1.bf16.msra.mxu0 %v2335
    %2359 = vmatprep.subr.bf16.mxu0 0
    %2360 = vmatpush1.bf16.msra.mxu0 %v2336
    %2361 = vmatprep.subr.bf16.mxu0 0
    %2362 = vmatpush1.bf16.msra.mxu0 %v2337
    %2363 = vmatprep.subr.bf16.mxu0 0
    %2364 = vmatpush1.bf16.msra.mxu0 0
    %2365 = vmatprep.subr.bf16.mxu0 0
    %2366 = vmatpush1.bf16.msra.mxu0 0
    %2367 = vmatprep.subr.bf16.mxu0 0
    %2368 = vmatpush1.bf16.msra.mxu0 0
    %2369 = vmatprep.subr.bf16.mxu0 0
    %2370 = vmatpush1.bf16.msra.mxu0 0
    %2371 = vmatprep.subr.bf16.mxu0 0
    %2372 = vmatpush1.bf16.msra.mxu0 0
    %2373 = vmatprep.subr.bf16.mxu0 0
    %2374 = vmatpush1.bf16.msra.mxu0 0
    %2375 = vmatprep.subr.bf16.mxu0 0
    %2376 = vmatpush1.bf16.msra.mxu0 0
    %2377 = vmatprep.subr.bf16.mxu0 0
    %2378 = vmatpush1.bf16.msra.mxu0 0
    %2379 = vmatprep.subr.bf16.mxu0 0
    %2380 = vmatpush1.bf16.msra.mxu0 0
    %2381 = vmatprep.subr.bf16.mxu0 0
    %2382 = vmatpush1.bf16.msra.mxu0 0
    %2383 = vmatprep.subr.bf16.mxu0 0
    %2384 = vmatpush1.bf16.msra.mxu0 0
    %2385 = vmatprep.subr.bf16.mxu0 0
    %2386 = vmatpush1.bf16.msra.mxu0 0
    %2387 = vmatprep.mubr.bf16.mxu0 0
    %2388 = vmatmul.mubr.bf16.gmra.mrb[0].mxu0 %v2344
    %v2389 = vpop.f32.mrb[0].mxu0
    %v2390 = vadd.f32 %v2316, %v2389
    %v2391 = vpop.f32.mrb[0].mxu0
    %v2392 = vpop.f32.mrb[0].mxu0
    %v2393 = vadd.f32 %v2316, %v2392
    %v2394 = vpop.f32.mrb[0].mxu0
    %2395 = vmatprep.mubr.bf16.mxu0 0
    %2396 = vmatmul.mubr.bf16.gmra.mrb[0].mxu0 %v2347
    %v2397 = vpop.f32.mrb[0].mxu0
    %v2398 = vadd.f32 %v2316, %v2397
    %v2399 = vpop.f32.mrb[0].mxu0
    %v2400 = vpop.f32.mrb[0].mxu0
    %v2401 = vadd.f32 %v2316, %v2400
    %v2402 = vpop.f32.mrb[0].mxu0
    %2403 = vmatprep.mubr.bf16.mxu0 0
    %2404 = vmatmul.mubr.bf16.gmra.mrb[0].mxu0 %v2350
    %v2405 = vpop.f32.mrb[0].mxu0
    %v2406 = vadd.f32 %v2316, %v2405
    %v2407 = vpop.f32.mrb[0].mxu0
    %v2408 = vpop.f32.mrb[0].mxu0
    %v2409 = vadd.f32 %v2316, %v2408
    %v2410 = vpop.f32.mrb[0].mxu0
    %2411 = vmatprep.mubr.bf16.mxu0 0
    %2412 = vmatmul.mubr.bf16.gmra.mrb[0].mxu0 %v2353
    %v2413 = vpop.f32.mrb[0].mxu0
    %v2414 = vadd.f32 %v2316, %v2413
    %v2415 = vpop.f32.mrb[0].mxu0
    %v2416 = vpop.f32.mrb[0].mxu0
    %v2417 = vadd.f32 %v2316, %v2416
    %v2418 = vpop.f32.mrb[0].mxu0
    %2419 = vdwg.mxu0
    %v2420 = vadd.f32 %v2390, %v483
    %v2421 = vadd.f32 %v2393, %v484
    %v2422 = vadd.f32 %v2398, %v485
    %v2423 = vadd.f32 %v2401, %v486
    %v2424 = vadd.f32 %v2406, %v487
    %v2425 = vadd.f32 %v2409, %v488
    %v2426 = vadd.f32 %v2414, %v489
    %v2427 = vadd.f32 %v2417, %v490
    %v2428 = vsel %vm561, %v2420, 0.0
    %2429 = vadd.xlane.f32.xlu0 %v2428
    %v2430 = vpop.xlane.xlu0 %2429
    %v2431 = vsel %vm561, %v2421, 0.0
    %2432 = vadd.xlane.f32.xlu0 %v2431
    %v2433 = vpop.xlane.xlu0 %2432
    %v2434 = vsel %vm561, %v2422, 0.0
    %2435 = vadd.xlane.f32.xlu0 %v2434
    %v2436 = vpop.xlane.xlu0 %2435
    %v2437 = vsel %vm561, %v2423, 0.0
    %2438 = vadd.xlane.f32.xlu0 %v2437
    %v2439 = vpop.xlane.xlu0 %2438
    %v2440 = vsel %vm561, %v2424, 0.0
    %2441 = vadd.xlane.f32.xlu0 %v2440
    %v2442 = vpop.xlane.xlu0 %2441
    %v2443 = vsel %vm561, %v2425, 0.0
    %2444 = vadd.xlane.f32.xlu0 %v2443
    %v2445 = vpop.xlane.xlu0 %2444
    %v2446 = vsel %vm561, %v2426, 0.0
    %2447 = vadd.xlane.f32.xlu0 %v2446
    %v2448 = vpop.xlane.xlu0 %2447
    %v2449 = vsel %vm561, %v2427, 0.0
    %2450 = vadd.xlane.f32.xlu0 %v2449
    %v2451 = vpop.xlane.xlu0 %2450
    %v2452 = vrcp.pop 32.0
    %v2453 = vmul.f32 %v2430, %v2452
    %v2454 = vmul.f32 %v2433, %v2452
    %v2455 = vmul.f32 %v2436, %v2452
    %v2456 = vmul.f32 %v2439, %v2452
    %v2457 = vmul.f32 %v2442, %v2452
    %v2458 = vmul.f32 %v2445, %v2452
    %v2459 = vmul.f32 %v2448, %v2452
    %v2460 = vmul.f32 %v2451, %v2452
    %v2461 = vsub.f32 %v2420, %v2453
    %v2462 = vsub.f32 %v2421, %v2454
    %v2463 = vsub.f32 %v2422, %v2455
    %v2464 = vsub.f32 %v2423, %v2456
    %v2465 = vsub.f32 %v2424, %v2457
    %v2466 = vsub.f32 %v2425, %v2458
    %v2467 = vsub.f32 %v2426, %v2459
    %v2468 = vsub.f32 %v2427, %v2460
    %v2469 = vmul.f32 %v2461, %v2461
    %v2470 = vmul.f32 %v2462, %v2462
    %v2471 = vmul.f32 %v2463, %v2463
    %v2472 = vmul.f32 %v2464, %v2464
    %v2473 = vmul.f32 %v2465, %v2465
    %v2474 = vmul.f32 %v2466, %v2466
    %v2475 = vmul.f32 %v2467, %v2467
    %v2476 = vmul.f32 %v2468, %v2468
    %v2477 = vsel %vm561, %v2469, 0.0
    %2478 = vadd.xlane.f32.xlu0 %v2477
    %v2479 = vpop.xlane.xlu0 %2478
    %v2480 = vsel %vm561, %v2470, 0.0
    %2481 = vadd.xlane.f32.xlu0 %v2480
    %v2482 = vpop.xlane.xlu0 %2481
    %v2483 = vsel %vm561, %v2471, 0.0
    %2484 = vadd.xlane.f32.xlu0 %v2483
    %v2485 = vpop.xlane.xlu0 %2484
    %v2486 = vsel %vm561, %v2472, 0.0
    %2487 = vadd.xlane.f32.xlu0 %v2486
    %v2488 = vpop.xlane.xlu0 %2487
    %v2489 = vsel %vm561, %v2473, 0.0
    %2490 = vadd.xlane.f32.xlu0 %v2489
    %v2491 = vpop.xlane.xlu0 %2490
    %v2492 = vsel %vm561, %v2474, 0.0
    %2493 = vadd.xlane.f32.xlu0 %v2492
    %v2494 = vpop.xlane.xlu0 %2493
    %v2495 = vsel %vm561, %v2475, 0.0
    %2496 = vadd.xlane.f32.xlu0 %v2495
    %v2497 = vpop.xlane.xlu0 %2496
    %v2498 = vsel %vm561, %v2476, 0.0
    %2499 = vadd.xlane.f32.xlu0 %v2498
    %v2500 = vpop.xlane.xlu0 %2499
    %v2501 = vmul.f32 %v2479, %v2452
    %v2502 = vmul.f32 %v2482, %v2452
    %v2503 = vmul.f32 %v2485, %v2452
    %v2504 = vmul.f32 %v2488, %v2452
    %v2505 = vmul.f32 %v2491, %v2452
    %v2506 = vmul.f32 %v2494, %v2452
    %v2507 = vmul.f32 %v2497, %v2452
    %v2508 = vmul.f32 %v2500, %v2452
    %v2509 = vadd.f32 %v2501, 1e-05
    %v2510 = vadd.f32 %v2502, 1e-05
    %v2511 = vadd.f32 %v2503, 1e-05
    %v2512 = vadd.f32 %v2504, 1e-05
    %v2513 = vadd.f32 %v2505, 1e-05
    %v2514 = vadd.f32 %v2506, 1e-05
    %v2515 = vadd.f32 %v2507, 1e-05
    %v2516 = vadd.f32 %v2508, 1e-05
    %v2517 = vrsqrt.pop %v2509
    %v2518 = vrsqrt.pop %v2510
    %v2519 = vrsqrt.pop %v2511
    %v2520 = vrsqrt.pop %v2512
    %v2521 = vrsqrt.pop %v2513
    %v2522 = vrsqrt.pop %v2514
    %v2523 = vrsqrt.pop %v2515
    %v2524 = vrsqrt.pop %v2516
    %v2525 = vmul.f32 %v2461, %v2517
    %v2526 = vmul.f32 %v2462, %v2518
    %v2527 = vmul.f32 %v2463, %v2519
    %v2528 = vmul.f32 %v2464, %v2520
    %v2529 = vmul.f32 %v2465, %v2521
    %v2530 = vmul.f32 %v2466, %v2522
    %v2531 = vmul.f32 %v2467, %v2523
    %v2532 = vmul.f32 %v2468, %v2524
    %v2534 = vlaneseq
    %v2535 = vshrl.u32 %v2534, 7
    %v2536 = vsub.s32 0, %v2535
    %v2537 = vrot.slane %v444, %v2536
    %v2539 = vmul.f32 %v2525, %v2537
    %v2540 = vmul.f32 %v2526, %v2537
    %v2541 = vmul.f32 %v2527, %v2537
    %v2542 = vmul.f32 %v2528, %v2537
    %v2543 = vmul.f32 %v2529, %v2537
    %v2544 = vmul.f32 %v2530, %v2537
    %v2545 = vmul.f32 %v2531, %v2537
    %v2546 = vmul.f32 %v2532, %v2537
    %v2548 = vlaneseq
    %v2549 = vshrl.u32 %v2548, 7
    %v2550 = vsub.s32 0, %v2549
    %v2551 = vrot.slane %v445, %v2550
    %v2553 = vadd.f32 %v2539, %v2551
    %v2554 = vadd.f32 %v2540, %v2551
    %v2555 = vadd.f32 %v2541, %v2551
    %v2556 = vadd.f32 %v2542, %v2551
    %v2557 = vadd.f32 %v2543, %v2551
    %v2558 = vadd.f32 %v2544, %v2551
    %v2559 = vadd.f32 %v2545, %v2551
    %v2560 = vadd.f32 %v2546, %v2551
    %v2561 = vpack.c.bf16 %v2554, %v2553
    %v2562 = vpack.c.bf16 %v2556, %v2555
    %v2563 = vpack.c.bf16 %v2558, %v2557
    %v2564 = vpack.c.bf16 %v2560, %v2559
    %v2566 = vlaneseq
    %v2567 = vshrl.u32 %v2566, 7
    %v2568 = vsub.s32 0, %v2567
    %v2569 = vrot.slane %v450, %v2568
    %v2575 = vunpack.c.l.b16 %v446
    %v2576 = vunpack.c.l.b16 %v447
    %v2577 = vunpack.c.l.b16 %v448
    %v2578 = vunpack.c.l.b16 %v449
    %v2579 = vpack.c.b16 %v2576, %v2575
    %v2580 = vpack.c.b16 %v2578, %v2577
    %v2584 = vsel %vm561, %v2561, 0
    %v2587 = vsel %vm561, %v2562, 0
    %v2590 = vsel %vm561, %v2563, 0
    %v2593 = vsel %vm561, %v2564, 0
    %2595 = vmatprep.subr.bf16.mxu0 0
    %2596 = vmatpush1.bf16.msra.mxu0 %v2579
    %2597 = vmatprep.subr.bf16.mxu0 0
    %2598 = vmatpush1.bf16.msra.mxu0 %v2580
    %2599 = vmatprep.subr.bf16.mxu0 0
    %2600 = vmatpush1.bf16.msra.mxu0 0
    %2601 = vmatprep.subr.bf16.mxu0 0
    %2602 = vmatpush1.bf16.msra.mxu0 0
    %2603 = vmatprep.subr.bf16.mxu0 0
    %2604 = vmatpush1.bf16.msra.mxu0 0
    %2605 = vmatprep.subr.bf16.mxu0 0
    %2606 = vmatpush1.bf16.msra.mxu0 0
    %2607 = vmatprep.subr.bf16.mxu0 0
    %2608 = vmatpush1.bf16.msra.mxu0 0
    %2609 = vmatprep.subr.bf16.mxu0 0
    %2610 = vmatpush1.bf16.msra.mxu0 0
    %2611 = vmatprep.subr.bf16.mxu0 0
    %2612 = vmatpush1.bf16.msra.mxu0 0
    %2613 = vmatprep.subr.bf16.mxu0 0
    %2614 = vmatpush1.bf16.msra.mxu0 0
    %2615 = vmatprep.subr.bf16.mxu0 0
    %2616 = vmatpush1.bf16.msra.mxu0 0
    %2617 = vmatprep.subr.bf16.mxu0 0
    %2618 = vmatpush1.bf16.msra.mxu0 0
    %2619 = vmatprep.subr.bf16.mxu0 0
    %2620 = vmatpush1.bf16.msra.mxu0 0
    %2621 = vmatprep.subr.bf16.mxu0 0
    %2622 = vmatpush1.bf16.msra.mxu0 0
    %2623 = vmatprep.subr.bf16.mxu0 0
    %2624 = vmatpush1.bf16.msra.mxu0 0
    %2625 = vmatprep.subr.bf16.mxu0 0
    %2626 = vmatpush1.bf16.msra.mxu0 0
    %2627 = vmatprep.mubr.bf16.mxu0 0
    %2628 = vmatmul.mubr.bf16.gmra.mrb[0].mxu0 %v2584
    %v2629 = vpop.f32.mrb[0].mxu0
    %v2630 = vadd.f32 %v2569, %v2629
    %v2631 = vpop.f32.mrb[0].mxu0
    %v2632 = vpop.f32.mrb[0].mxu0
    %v2633 = vadd.f32 %v2569, %v2632
    %v2634 = vpop.f32.mrb[0].mxu0
    %2635 = vmatprep.mubr.bf16.mxu0 0
    %2636 = vmatmul.mubr.bf16.gmra.mrb[0].mxu0 %v2587
    %v2637 = vpop.f32.mrb[0].mxu0
    %v2638 = vadd.f32 %v2569, %v2637
    %v2639 = vpop.f32.mrb[0].mxu0
    %v2640 = vpop.f32.mrb[0].mxu0
    %v2641 = vadd.f32 %v2569, %v2640
    %v2642 = vpop.f32.mrb[0].mxu0
    %2643 = vmatprep.mubr.bf16.mxu0 0
    %2644 = vmatmul.mubr.bf16.gmra.mrb[0].mxu0 %v2590
    %v2645 = vpop.f32.mrb[0].mxu0
    %v2646 = vadd.f32 %v2569, %v2645
    %v2647 = vpop.f32.mrb[0].mxu0
    %v2648 = vpop.f32.mrb[0].mxu0
    %v2649 = vadd.f32 %v2569, %v2648
    %v2650 = vpop.f32.mrb[0].mxu0
    %2651 = vmatprep.mubr.bf16.mxu0 0
    %2652 = vmatmul.mubr.bf16.gmra.mrb[0].mxu0 %v2593
    %v2653 = vpop.f32.mrb[0].mxu0
    %v2654 = vadd.f32 %v2569, %v2653
    %v2655 = vpop.f32.mrb[0].mxu0
    %v2656 = vpop.f32.mrb[0].mxu0
    %v2657 = vadd.f32 %v2569, %v2656
    %v2658 = vpop.f32.mrb[0].mxu0
    %2659 = vdwg.mxu0
    %v2660 = vpack.c.bf16 %v500, %v499
    %v2661 = vpack.c.bf16 %v502, %v501
    %v2662 = vpack.c.bf16 %v504, %v503
    %v2663 = vpack.c.bf16 %v506, %v505
    %v2665 = vlaneseq
    %v2666 = vshrl.u32 %v2665, 7
    %v2667 = vsub.s32 0, %v2666
    %v2668 = vrot.slane %v455, %v2667
    %v2674 = vunpack.c.l.b16 %v451
    %v2675 = vunpack.c.l.b16 %v452
    %v2676 = vunpack.c.l.b16 %v453
    %v2677 = vunpack.c.l.b16 %v454
    %v2678 = vpack.c.b16 %v2675, %v2674
    %v2679 = vpack.c.b16 %v2677, %v2676
    %v2683 = vsel %vm561, %v2660, 0
    %v2686 = vsel %vm561, %v2661, 0
    %v2689 = vsel %vm561, %v2662, 0
    %v2692 = vsel %vm561, %v2663, 0
    %2694 = vmatprep.subr.bf16.mxu0 0
    %2695 = vmatpush1.bf16.msra.mxu0 %v2678
    %2696 = vmatprep.subr.bf16.mxu0 0
    %2697 = vmatpush1.bf16.msra.mxu0 %v2679
    %2698 = vmatprep.subr.bf16.mxu0 0
    %2699 = vmatpush1.bf16.msra.mxu0 0
    %2700 = vmatprep.subr.bf16.mxu0 0
    %2701 = vmatpush1.bf16.msra.mxu0 0
    %2702 = vmatprep.subr.bf16.mxu0 0
    %2703 = vmatpush1.bf16.msra.mxu0 0
    %2704 = vmatprep.subr.bf16.mxu0 0
    %2705 = vmatpush1.bf16.msra.mxu0 0
    %2706 = vmatprep.subr.bf16.mxu0 0
    %2707 = vmatpush1.bf16.msra.mxu0 0
    %2708 = vmatprep.subr.bf16.mxu0 0
    %2709 = vmatpush1.bf16.msra.mxu0 0
    %2710 = vmatprep.subr.bf16.mxu0 0
    %2711 = vmatpush1.bf16.msra.mxu0 0
    %2712 = vmatprep.subr.bf16.mxu0 0
    %2713 = vmatpush1.bf16.msra.mxu0 0
    %2714 = vmatprep.subr.bf16.mxu0 0
    %2715 = vmatpush1.bf16.msra.mxu0 0
    %2716 = vmatprep.subr.bf16.mxu0 0
    %2717 = vmatpush1.bf16.msra.mxu0 0
    %2718 = vmatprep.subr.bf16.mxu0 0
    %2719 = vmatpush1.bf16.msra.mxu0 0
    %2720 = vmatprep.subr.bf16.mxu0 0
    %2721 = vmatpush1.bf16.msra.mxu0 0
    %2722 = vmatprep.subr.bf16.mxu0 0
    %2723 = vmatpush1.bf16.msra.mxu0 0
    %2724 = vmatprep.subr.bf16.mxu0 0
    %2725 = vmatpush1.bf16.msra.mxu0 0
    %2726 = vmatprep.mubr.bf16.mxu0 0
    %2727 = vmatmul.mubr.bf16.gmra.mrb[0].mxu0 %v2683
    %v2728 = vpop.f32.mrb[0].mxu0
    %v2729 = vadd.f32 %v2668, %v2728
    %v2730 = vpop.f32.mrb[0].mxu0
    %v2731 = vpop.f32.mrb[0].mxu0
    %v2732 = vadd.f32 %v2668, %v2731
    %v2733 = vpop.f32.mrb[0].mxu0
    %2734 = vmatprep.mubr.bf16.mxu0 0
    %2735 = vmatmul.mubr.bf16.gmra.mrb[0].mxu0 %v2686
    %v2736 = vpop.f32.mrb[0].mxu0
    %v2737 = vadd.f32 %v2668, %v2736
    %v2738 = vpop.f32.mrb[0].mxu0
    %v2739 = vpop.f32.mrb[0].mxu0
    %v2740 = vadd.f32 %v2668, %v2739
    %v2741 = vpop.f32.mrb[0].mxu0
    %2742 = vmatprep.mubr.bf16.mxu0 0
    %2743 = vmatmul.mubr.bf16.gmra.mrb[0].mxu0 %v2689
    %v2744 = vpop.f32.mrb[0].mxu0
    %v2745 = vadd.f32 %v2668, %v2744
    %v2746 = vpop.f32.mrb[0].mxu0
    %v2747 = vpop.f32.mrb[0].mxu0
    %v2748 = vadd.f32 %v2668, %v2747
    %v2749 = vpop.f32.mrb[0].mxu0
    %2750 = vmatprep.mubr.bf16.mxu0 0
    %2751 = vmatmul.mubr.bf16.gmra.mrb[0].mxu0 %v2692
    %v2752 = vpop.f32.mrb[0].mxu0
    %v2753 = vadd.f32 %v2668, %v2752
    %v2754 = vpop.f32.mrb[0].mxu0
    %v2755 = vpop.f32.mrb[0].mxu0
    %v2756 = vadd.f32 %v2668, %v2755
    %v2757 = vpop.f32.mrb[0].mxu0
    %2758 = vdwg.mxu0
    %v2759 = vmul.f32 %v2630, 0.25
    %v2760 = vmul.f32 %v2633, 0.25
    %v2761 = vmul.f32 %v2638, 0.25
    %v2762 = vmul.f32 %v2641, 0.25
    %v2763 = vmul.f32 %v2646, 0.25
    %v2764 = vmul.f32 %v2649, 0.25
    %v2765 = vmul.f32 %v2654, 0.25
    %v2766 = vmul.f32 %v2657, 0.25
    %v2767 = vpack.c.bf16 %v2760, %v2759
    %v2768 = vpack.c.bf16 %v2762, %v2761
    %v2769 = vpack.c.bf16 %v2764, %v2763
    %v2770 = vpack.c.bf16 %v2766, %v2765
    %2775 = vrot.lane.b32.xlu0 %v2767, 112
    %v2776 = vpop.permute.xlu0 %2775
    %2777 = vrot.lane.b32.xlu0 %v2768, 112
    %v2778 = vpop.permute.xlu0 %2777
    %2779 = vrot.lane.b32.xlu0 %v2769, 112
    %v2780 = vpop.permute.xlu0 %2779
    %2781 = vrot.lane.b32.xlu0 %v2770, 112
    %v2782 = vpop.permute.xlu0 %2781
    %2783 = vrot.lane.b32.xlu0 %v2767, 96
    %v2784 = vpop.permute.xlu0 %2783
    %2785 = vrot.lane.b32.xlu0 %v2768, 96
    %v2786 = vpop.permute.xlu0 %2785
    %2787 = vrot.lane.b32.xlu0 %v2769, 96
    %v2788 = vpop.permute.xlu0 %2787
    %2789 = vrot.lane.b32.xlu0 %v2770, 96
    %v2790 = vpop.permute.xlu0 %2789
    %2791 = vrot.lane.b32.xlu0 %v2767, 80
    %v2792 = vpop.permute.xlu0 %2791
    %2793 = vrot.lane.b32.xlu0 %v2768, 80
    %v2794 = vpop.permute.xlu0 %2793
    %2795 = vrot.lane.b32.xlu0 %v2769, 80
    %v2796 = vpop.permute.xlu0 %2795
    %2797 = vrot.lane.b32.xlu0 %v2770, 80
    %v2798 = vpop.permute.xlu0 %2797
    %v2799 = vpack.c.bf16 %v2732, %v2729
    %v2800 = vpack.c.bf16 %v2740, %v2737
    %v2801 = vpack.c.bf16 %v2748, %v2745
    %v2802 = vpack.c.bf16 %v2756, %v2753
    %2807 = vrot.lane.b32.xlu0 %v2799, 112
    %v2808 = vpop.permute.xlu0 %2807
    %2809 = vrot.lane.b32.xlu0 %v2800, 112
    %v2810 = vpop.permute.xlu0 %2809
    %2811 = vrot.lane.b32.xlu0 %v2801, 112
    %v2812 = vpop.permute.xlu0 %2811
    %2813 = vrot.lane.b32.xlu0 %v2802, 112
    %v2814 = vpop.permute.xlu0 %2813
    %2815 = vrot.lane.b32.xlu0 %v2799, 96
    %v2816 = vpop.permute.xlu0 %2815
    %2817 = vrot.lane.b32.xlu0 %v2800, 96
    %v2818 = vpop.permute.xlu0 %2817
    %2819 = vrot.lane.b32.xlu0 %v2801, 96
    %v2820 = vpop.permute.xlu0 %2819
    %2821 = vrot.lane.b32.xlu0 %v2802, 96
    %v2822 = vpop.permute.xlu0 %2821
    %2823 = vrot.lane.b32.xlu0 %v2799, 80
    %v2824 = vpop.permute.xlu0 %2823
    %2825 = vrot.lane.b32.xlu0 %v2800, 80
    %v2826 = vpop.permute.xlu0 %2825
    %2827 = vrot.lane.b32.xlu0 %v2801, 80
    %v2828 = vpop.permute.xlu0 %2827
    %2829 = vrot.lane.b32.xlu0 %v2802, 80
    %v2830 = vpop.permute.xlu0 %2829
    %v2832 = vsel %vm810, %v2767, 0
    %v2835 = vsel %vm810, %v2768, 0
    %v2838 = vsel %vm810, %v2799, 0
    %v2841 = vsel %vm810, %v2800, 0
    %2843 = vmatprep.subr.bf16.mxu0 0
    %2844 = vmatpush1.bf16.xpose.msra.mxu0 %v2838
    %2845 = vmatprep.subr.bf16.mxu0 0
    %2846 = vmatpush1.bf16.xpose.msra.mxu0 %v2841
    %2847 = vmatprep.subr.bf16.mxu0 0
    %2848 = vmatpush1.bf16.xpose.msra.mxu0 0
    %2849 = vmatprep.subr.bf16.mxu0 0
    %2850 = vmatpush1.bf16.xpose.msra.mxu0 0
    %2851 = vmatprep.subr.bf16.mxu0 0
    %2852 = vmatpush1.bf16.xpose.msra.mxu0 0
    %2853 = vmatprep.subr.bf16.mxu0 0
    %2854 = vmatpush1.bf16.xpose.msra.mxu0 0
    %2855 = vmatprep.subr.bf16.mxu0 0
    %2856 = vmatpush1.bf16.xpose.msra.mxu0 0
    %2857 = vmatprep.subr.bf16.mxu0 0
    %2858 = vmatpush1.bf16.xpose.msra.mxu0 0
    %2859 = vmatprep.subr.bf16.mxu0 0
    %2860 = vmatpush1.bf16.xpose.msra.mxu0 0
    %2861 = vmatprep.subr.bf16.mxu0 0
    %2862 = vmatpush1.bf16.xpose.msra.mxu0 0
    %2863 = vmatprep.subr.bf16.mxu0 0
    %2864 = vmatpush1.bf16.xpose.msra.mxu0 0
    %2865 = vmatprep.subr.bf16.mxu0 0
    %2866 = vmatpush1.bf16.xpose.msra.mxu0 0
    %2867 = vmatprep.subr.bf16.mxu0 0
    %2868 = vmatpush1.bf16.xpose.msra.mxu0 0
    %2869 = vmatprep.subr.bf16.mxu0 0
    %2870 = vmatpush1.bf16.xpose.msra.mxu0 0
    %2871 = vmatprep.subr.bf16.mxu0 0
    %2872 = vmatpush1.bf16.xpose.msra.mxu0 0
    %2873 = vmatprep.subr.bf16.mxu0 0
    %2874 = vmatpush1.bf16.xpose.msra.mxu0 0
    %2875 = vmatprep.mubr.bf16.mxu0 0
    %2876 = vmatmul.mubr.bf16.gmra.mrb[0].mxu0 %v2832
    %v2877 = vpop.f32.mrb[0].mxu0
    %v2878 = vadd.f32 0.0, %v2877
    %v2879 = vpop.f32.mrb[0].mxu0
    %v2880 = vpop.f32.mrb[0].mxu0
    %v2881 = vadd.f32 0.0, %v2880
    %v2882 = vpop.f32.mrb[0].mxu0
    %2883 = vmatprep.mubr.bf16.mxu0 0
    %2884 = vmatmul.mubr.bf16.gmra.mrb[0].mxu0 %v2835
    %v2885 = vpop.f32.mrb[0].mxu0
    %v2886 = vadd.f32 0.0, %v2885
    %v2887 = vpop.f32.mrb[0].mxu0
    %v2888 = vpop.f32.mrb[0].mxu0
    %v2889 = vadd.f32 0.0, %v2888
    %v2890 = vpop.f32.mrb[0].mxu0
    %2891 = vdwg.mxu0
    %v2893 = vsel %vm810, %v2776, 0
    %v2896 = vsel %vm810, %v2778, 0
    %v2899 = vsel %vm810, %v2808, 0
    %v2902 = vsel %vm810, %v2810, 0
    %2904 = vmatprep.subr.bf16.mxu0 0
    %2905 = vmatpush1.bf16.xpose.msra.mxu0 %v2899
    %2906 = vmatprep.subr.bf16.mxu0 0
    %2907 = vmatpush1.bf16.xpose.msra.mxu0 %v2902
    %2908 = vmatprep.subr.bf16.mxu0 0
    %2909 = vmatpush1.bf16.xpose.msra.mxu0 0
    %2910 = vmatprep.subr.bf16.mxu0 0
    %2911 = vmatpush1.bf16.xpose.msra.mxu0 0
    %2912 = vmatprep.subr.bf16.mxu0 0
    %2913 = vmatpush1.bf16.xpose.msra.mxu0 0
    %2914 = vmatprep.subr.bf16.mxu0 0
    %2915 = vmatpush1.bf16.xpose.msra.mxu0 0
    %2916 = vmatprep.subr.bf16.mxu0 0
    %2917 = vmatpush1.bf16.xpose.msra.mxu0 0
    %2918 = vmatprep.subr.bf16.mxu0 0
    %2919 = vmatpush1.bf16.xpose.msra.mxu0 0
    %2920 = vmatprep.subr.bf16.mxu0 0
    %2921 = vmatpush1.bf16.xpose.msra.mxu0 0
    %2922 = vmatprep.subr.bf16.mxu0 0
    %2923 = vmatpush1.bf16.xpose.msra.mxu0 0
    %2924 = vmatprep.subr.bf16.mxu0 0
    %2925 = vmatpush1.bf16.xpose.msra.mxu0 0
    %2926 = vmatprep.subr.bf16.mxu0 0
    %2927 = vmatpush1.bf16.xpose.msra.mxu0 0
    %2928 = vmatprep.subr.bf16.mxu0 0
    %2929 = vmatpush1.bf16.xpose.msra.mxu0 0
    %2930 = vmatprep.subr.bf16.mxu0 0
    %2931 = vmatpush1.bf16.xpose.msra.mxu0 0
    %2932 = vmatprep.subr.bf16.mxu0 0
    %2933 = vmatpush1.bf16.xpose.msra.mxu0 0
    %2934 = vmatprep.subr.bf16.mxu0 0
    %2935 = vmatpush1.bf16.xpose.msra.mxu0 0
    %2936 = vmatprep.mubr.bf16.mxu0 0
    %2937 = vmatmul.mubr.bf16.gmra.mrb[0].mxu0 %v2893
    %v2938 = vpop.f32.mrb[0].mxu0
    %v2939 = vadd.f32 0.0, %v2938
    %v2940 = vpop.f32.mrb[0].mxu0
    %v2941 = vpop.f32.mrb[0].mxu0
    %v2942 = vadd.f32 0.0, %v2941
    %v2943 = vpop.f32.mrb[0].mxu0
    %2944 = vmatprep.mubr.bf16.mxu0 0
    %2945 = vmatmul.mubr.bf16.gmra.mrb[0].mxu0 %v2896
    %v2946 = vpop.f32.mrb[0].mxu0
    %v2947 = vadd.f32 0.0, %v2946
    %v2948 = vpop.f32.mrb[0].mxu0
    %v2949 = vpop.f32.mrb[0].mxu0
    %v2950 = vadd.f32 0.0, %v2949
    %v2951 = vpop.f32.mrb[0].mxu0
    %2952 = vdwg.mxu0
    %v2954 = vsel %vm810, %v2784, 0
    %v2957 = vsel %vm810, %v2786, 0
    %v2960 = vsel %vm810, %v2816, 0
    %v2963 = vsel %vm810, %v2818, 0
    %2965 = vmatprep.subr.bf16.mxu0 0
    %2966 = vmatpush1.bf16.xpose.msra.mxu0 %v2960
    %2967 = vmatprep.subr.bf16.mxu0 0
    %2968 = vmatpush1.bf16.xpose.msra.mxu0 %v2963
    %2969 = vmatprep.subr.bf16.mxu0 0
    %2970 = vmatpush1.bf16.xpose.msra.mxu0 0
    %2971 = vmatprep.subr.bf16.mxu0 0
    %2972 = vmatpush1.bf16.xpose.msra.mxu0 0
    %2973 = vmatprep.subr.bf16.mxu0 0
    %2974 = vmatpush1.bf16.xpose.msra.mxu0 0
    %2975 = vmatprep.subr.bf16.mxu0 0
    %2976 = vmatpush1.bf16.xpose.msra.mxu0 0
    %2977 = vmatprep.subr.bf16.mxu0 0
    %2978 = vmatpush1.bf16.xpose.msra.mxu0 0
    %2979 = vmatprep.subr.bf16.mxu0 0
    %2980 = vmatpush1.bf16.xpose.msra.mxu0 0
    %2981 = vmatprep.subr.bf16.mxu0 0
    %2982 = vmatpush1.bf16.xpose.msra.mxu0 0
    %2983 = vmatprep.subr.bf16.mxu0 0
    %2984 = vmatpush1.bf16.xpose.msra.mxu0 0
    %2985 = vmatprep.subr.bf16.mxu0 0
    %2986 = vmatpush1.bf16.xpose.msra.mxu0 0
    %2987 = vmatprep.subr.bf16.mxu0 0
    %2988 = vmatpush1.bf16.xpose.msra.mxu0 0
    %2989 = vmatprep.subr.bf16.mxu0 0
    %2990 = vmatpush1.bf16.xpose.msra.mxu0 0
    %2991 = vmatprep.subr.bf16.mxu0 0
    %2992 = vmatpush1.bf16.xpose.msra.mxu0 0
    %2993 = vmatprep.subr.bf16.mxu0 0
    %2994 = vmatpush1.bf16.xpose.msra.mxu0 0
    %2995 = vmatprep.subr.bf16.mxu0 0
    %2996 = vmatpush1.bf16.xpose.msra.mxu0 0
    %2997 = vmatprep.mubr.bf16.mxu0 0
    %2998 = vmatmul.mubr.bf16.gmra.mrb[0].mxu0 %v2954
    %v2999 = vpop.f32.mrb[0].mxu0
    %v3000 = vadd.f32 0.0, %v2999
    %v3001 = vpop.f32.mrb[0].mxu0
    %v3002 = vpop.f32.mrb[0].mxu0
    %v3003 = vadd.f32 0.0, %v3002
    %v3004 = vpop.f32.mrb[0].mxu0
    %3005 = vmatprep.mubr.bf16.mxu0 0
    %3006 = vmatmul.mubr.bf16.gmra.mrb[0].mxu0 %v2957
    %v3007 = vpop.f32.mrb[0].mxu0
    %v3008 = vadd.f32 0.0, %v3007
    %v3009 = vpop.f32.mrb[0].mxu0
    %v3010 = vpop.f32.mrb[0].mxu0
    %v3011 = vadd.f32 0.0, %v3010
    %v3012 = vpop.f32.mrb[0].mxu0
    %3013 = vdwg.mxu0
    %v3015 = vsel %vm810, %v2792, 0
    %v3018 = vsel %vm810, %v2794, 0
    %v3021 = vsel %vm810, %v2824, 0
    %v3024 = vsel %vm810, %v2826, 0
    %3026 = vmatprep.subr.bf16.mxu0 0
    %3027 = vmatpush1.bf16.xpose.msra.mxu0 %v3021
    %3028 = vmatprep.subr.bf16.mxu0 0
    %3029 = vmatpush1.bf16.xpose.msra.mxu0 %v3024
    %3030 = vmatprep.subr.bf16.mxu0 0
    %3031 = vmatpush1.bf16.xpose.msra.mxu0 0
    %3032 = vmatprep.subr.bf16.mxu0 0
    %3033 = vmatpush1.bf16.xpose.msra.mxu0 0
    %3034 = vmatprep.subr.bf16.mxu0 0
    %3035 = vmatpush1.bf16.xpose.msra.mxu0 0
    %3036 = vmatprep.subr.bf16.mxu0 0
    %3037 = vmatpush1.bf16.xpose.msra.mxu0 0
    %3038 = vmatprep.subr.bf16.mxu0 0
    %3039 = vmatpush1.bf16.xpose.msra.mxu0 0
    %3040 = vmatprep.subr.bf16.mxu0 0
    %3041 = vmatpush1.bf16.xpose.msra.mxu0 0
    %3042 = vmatprep.subr.bf16.mxu0 0
    %3043 = vmatpush1.bf16.xpose.msra.mxu0 0
    %3044 = vmatprep.subr.bf16.mxu0 0
    %3045 = vmatpush1.bf16.xpose.msra.mxu0 0
    %3046 = vmatprep.subr.bf16.mxu0 0
    %3047 = vmatpush1.bf16.xpose.msra.mxu0 0
    %3048 = vmatprep.subr.bf16.mxu0 0
    %3049 = vmatpush1.bf16.xpose.msra.mxu0 0
    %3050 = vmatprep.subr.bf16.mxu0 0
    %3051 = vmatpush1.bf16.xpose.msra.mxu0 0
    %3052 = vmatprep.subr.bf16.mxu0 0
    %3053 = vmatpush1.bf16.xpose.msra.mxu0 0
    %3054 = vmatprep.subr.bf16.mxu0 0
    %3055 = vmatpush1.bf16.xpose.msra.mxu0 0
    %3056 = vmatprep.subr.bf16.mxu0 0
    %3057 = vmatpush1.bf16.xpose.msra.mxu0 0
    %3058 = vmatprep.mubr.bf16.mxu0 0
    %3059 = vmatmul.mubr.bf16.gmra.mrb[0].mxu0 %v3015
    %v3060 = vpop.f32.mrb[0].mxu0
    %v3061 = vadd.f32 0.0, %v3060
    %v3062 = vpop.f32.mrb[0].mxu0
    %v3063 = vpop.f32.mrb[0].mxu0
    %v3064 = vadd.f32 0.0, %v3063
    %v3065 = vpop.f32.mrb[0].mxu0
    %3066 = vmatprep.mubr.bf16.mxu0 0
    %3067 = vmatmul.mubr.bf16.gmra.mrb[0].mxu0 %v3018
    %v3068 = vpop.f32.mrb[0].mxu0
    %v3069 = vadd.f32 0.0, %v3068
    %v3070 = vpop.f32.mrb[0].mxu0
    %v3071 = vpop.f32.mrb[0].mxu0
    %v3072 = vadd.f32 0.0, %v3071
    %v3073 = vpop.f32.mrb[0].mxu0
    %3074 = vdwg.mxu0
    %v3076 = vsel %vm810, %v2769, 0
    %v3079 = vsel %vm810, %v2770, 0
    %v3082 = vsel %vm810, %v2801, 0
    %v3085 = vsel %vm810, %v2802, 0
    %3087 = vmatprep.subr.bf16.mxu0 0
    %3088 = vmatpush1.bf16.xpose.msra.mxu0 %v3082
    %3089 = vmatprep.subr.bf16.mxu0 0
    %3090 = vmatpush1.bf16.xpose.msra.mxu0 %v3085
    %3091 = vmatprep.subr.bf16.mxu0 0
    %3092 = vmatpush1.bf16.xpose.msra.mxu0 0
    %3093 = vmatprep.subr.bf16.mxu0 0
    %3094 = vmatpush1.bf16.xpose.msra.mxu0 0
    %3095 = vmatprep.subr.bf16.mxu0 0
    %3096 = vmatpush1.bf16.xpose.msra.mxu0 0
    %3097 = vmatprep.subr.bf16.mxu0 0
    %3098 = vmatpush1.bf16.xpose.msra.mxu0 0
    %3099 = vmatprep.subr.bf16.mxu0 0
    %3100 = vmatpush1.bf16.xpose.msra.mxu0 0
    %3101 = vmatprep.subr.bf16.mxu0 0
    %3102 = vmatpush1.bf16.xpose.msra.mxu0 0
    %3103 = vmatprep.subr.bf16.mxu0 0
    %3104 = vmatpush1.bf16.xpose.msra.mxu0 0
    %3105 = vmatprep.subr.bf16.mxu0 0
    %3106 = vmatpush1.bf16.xpose.msra.mxu0 0
    %3107 = vmatprep.subr.bf16.mxu0 0
    %3108 = vmatpush1.bf16.xpose.msra.mxu0 0
    %3109 = vmatprep.subr.bf16.mxu0 0
    %3110 = vmatpush1.bf16.xpose.msra.mxu0 0
    %3111 = vmatprep.subr.bf16.mxu0 0
    %3112 = vmatpush1.bf16.xpose.msra.mxu0 0
    %3113 = vmatprep.subr.bf16.mxu0 0
    %3114 = vmatpush1.bf16.xpose.msra.mxu0 0
    %3115 = vmatprep.subr.bf16.mxu0 0
    %3116 = vmatpush1.bf16.xpose.msra.mxu0 0
    %3117 = vmatprep.subr.bf16.mxu0 0
    %3118 = vmatpush1.bf16.xpose.msra.mxu0 0
    %3119 = vmatprep.mubr.bf16.mxu0 0
    %3120 = vmatmul.mubr.bf16.gmra.mrb[0].mxu0 %v3076
    %v3121 = vpop.f32.mrb[0].mxu0
    %v3122 = vadd.f32 0.0, %v3121
    %v3123 = vpop.f32.mrb[0].mxu0
    %v3124 = vpop.f32.mrb[0].mxu0
    %v3125 = vadd.f32 0.0, %v3124
    %v3126 = vpop.f32.mrb[0].mxu0
    %3127 = vmatprep.mubr.bf16.mxu0 0
    %3128 = vmatmul.mubr.bf16.gmra.mrb[0].mxu0 %v3079
    %v3129 = vpop.f32.mrb[0].mxu0
    %v3130 = vadd.f32 0.0, %v3129
    %v3131 = vpop.f32.mrb[0].mxu0
    %v3132 = vpop.f32.mrb[0].mxu0
    %v3133 = vadd.f32 0.0, %v3132
    %v3134 = vpop.f32.mrb[0].mxu0
    %3135 = vdwg.mxu0
    %v3137 = vsel %vm810, %v2780, 0
    %v3140 = vsel %vm810, %v2782, 0
    %v3143 = vsel %vm810, %v2812, 0
    %v3146 = vsel %vm810, %v2814, 0
    %3148 = vmatprep.subr.bf16.mxu0 0
    %3149 = vmatpush1.bf16.xpose.msra.mxu0 %v3143
    %3150 = vmatprep.subr.bf16.mxu0 0
    %3151 = vmatpush1.bf16.xpose.msra.mxu0 %v3146
    %3152 = vmatprep.subr.bf16.mxu0 0
    %3153 = vmatpush1.bf16.xpose.msra.mxu0 0
    %3154 = vmatprep.subr.bf16.mxu0 0
    %3155 = vmatpush1.bf16.xpose.msra.mxu0 0
    %3156 = vmatprep.subr.bf16.mxu0 0
    %3157 = vmatpush1.bf16.xpose.msra.mxu0 0
    %3158 = vmatprep.subr.bf16.mxu0 0
    %3159 = vmatpush1.bf16.xpose.msra.mxu0 0
    %3160 = vmatprep.subr.bf16.mxu0 0
    %3161 = vmatpush1.bf16.xpose.msra.mxu0 0
    %3162 = vmatprep.subr.bf16.mxu0 0
    %3163 = vmatpush1.bf16.xpose.msra.mxu0 0
    %3164 = vmatprep.subr.bf16.mxu0 0
    %3165 = vmatpush1.bf16.xpose.msra.mxu0 0
    %3166 = vmatprep.subr.bf16.mxu0 0
    %3167 = vmatpush1.bf16.xpose.msra.mxu0 0
    %3168 = vmatprep.subr.bf16.mxu0 0
    %3169 = vmatpush1.bf16.xpose.msra.mxu0 0
    %3170 = vmatprep.subr.bf16.mxu0 0
    %3171 = vmatpush1.bf16.xpose.msra.mxu0 0
    %3172 = vmatprep.subr.bf16.mxu0 0
    %3173 = vmatpush1.bf16.xpose.msra.mxu0 0
    %3174 = vmatprep.subr.bf16.mxu0 0
    %3175 = vmatpush1.bf16.xpose.msra.mxu0 0
    %3176 = vmatprep.subr.bf16.mxu0 0
    %3177 = vmatpush1.bf16.xpose.msra.mxu0 0
    %3178 = vmatprep.subr.bf16.mxu0 0
    %3179 = vmatpush1.bf16.xpose.msra.mxu0 0
    %3180 = vmatprep.mubr.bf16.mxu0 0
    %3181 = vmatmul.mubr.bf16.gmra.mrb[0].mxu0 %v3137
    %v3182 = vpop.f32.mrb[0].mxu0
    %v3183 = vadd.f32 0.0, %v3182
    %v3184 = vpop.f32.mrb[0].mxu0
    %v3185 = vpop.f32.mrb[0].mxu0
    %v3186 = vadd.f32 0.0, %v3185
    %v3187 = vpop.f32.mrb[0].mxu0
    %3188 = vmatprep.mubr.bf16.mxu0 0
    %3189 = vmatmul.mubr.bf16.gmra.mrb[0].mxu0 %v3140
    %v3190 = vpop.f32.mrb[0].mxu0
    %v3191 = vadd.f32 0.0, %v3190
    %v3192 = vpop.f32.mrb[0].mxu0
    %v3193 = vpop.f32.mrb[0].mxu0
    %v3194 = vadd.f32 0.0, %v3193
    %v3195 = vpop.f32.mrb[0].mxu0
    %3196 = vdwg.mxu0
    %v3198 = vsel %vm810, %v2788, 0
    %v3201 = vsel %vm810, %v2790, 0
    %v3204 = vsel %vm810, %v2820, 0
    %v3207 = vsel %vm810, %v2822, 0
    %3209 = vmatprep.subr.bf16.mxu0 0
    %3210 = vmatpush1.bf16.xpose.msra.mxu0 %v3204
    %3211 = vmatprep.subr.bf16.mxu0 0
    %3212 = vmatpush1.bf16.xpose.msra.mxu0 %v3207
    %3213 = vmatprep.subr.bf16.mxu0 0
    %3214 = vmatpush1.bf16.xpose.msra.mxu0 0
    %3215 = vmatprep.subr.bf16.mxu0 0
    %3216 = vmatpush1.bf16.xpose.msra.mxu0 0
    %3217 = vmatprep.subr.bf16.mxu0 0
    %3218 = vmatpush1.bf16.xpose.msra.mxu0 0
    %3219 = vmatprep.subr.bf16.mxu0 0
    %3220 = vmatpush1.bf16.xpose.msra.mxu0 0
    %3221 = vmatprep.subr.bf16.mxu0 0
    %3222 = vmatpush1.bf16.xpose.msra.mxu0 0
    %3223 = vmatprep.subr.bf16.mxu0 0
    %3224 = vmatpush1.bf16.xpose.msra.mxu0 0
    %3225 = vmatprep.subr.bf16.mxu0 0
    %3226 = vmatpush1.bf16.xpose.msra.mxu0 0
    %3227 = vmatprep.subr.bf16.mxu0 0
    %3228 = vmatpush1.bf16.xpose.msra.mxu0 0
    %3229 = vmatprep.subr.bf16.mxu0 0
    %3230 = vmatpush1.bf16.xpose.msra.mxu0 0
    %3231 = vmatprep.subr.bf16.mxu0 0
    %3232 = vmatpush1.bf16.xpose.msra.mxu0 0
    %3233 = vmatprep.subr.bf16.mxu0 0
    %3234 = vmatpush1.bf16.xpose.msra.mxu0 0
    %3235 = vmatprep.subr.bf16.mxu0 0
    %3236 = vmatpush1.bf16.xpose.msra.mxu0 0
    %3237 = vmatprep.subr.bf16.mxu0 0
    %3238 = vmatpush1.bf16.xpose.msra.mxu0 0
    %3239 = vmatprep.subr.bf16.mxu0 0
    %3240 = vmatpush1.bf16.xpose.msra.mxu0 0
    %3241 = vmatprep.mubr.bf16.mxu0 0
    %3242 = vmatmul.mubr.bf16.gmra.mrb[0].mxu0 %v3198
    %v3243 = vpop.f32.mrb[0].mxu0
    %v3244 = vadd.f32 0.0, %v3243
    %v3245 = vpop.f32.mrb[0].mxu0
    %v3246 = vpop.f32.mrb[0].mxu0
    %v3247 = vadd.f32 0.0, %v3246
    %v3248 = vpop.f32.mrb[0].mxu0
    %3249 = vmatprep.mubr.bf16.mxu0 0
    %3250 = vmatmul.mubr.bf16.gmra.mrb[0].mxu0 %v3201
    %v3251 = vpop.f32.mrb[0].mxu0
    %v3252 = vadd.f32 0.0, %v3251
    %v3253 = vpop.f32.mrb[0].mxu0
    %v3254 = vpop.f32.mrb[0].mxu0
    %v3255 = vadd.f32 0.0, %v3254
    %v3256 = vpop.f32.mrb[0].mxu0
    %3257 = vdwg.mxu0
    %v3259 = vsel %vm810, %v2796, 0
    %v3262 = vsel %vm810, %v2798, 0
    %v3265 = vsel %vm810, %v2828, 0
    %v3268 = vsel %vm810, %v2830, 0
    %3270 = vmatprep.subr.bf16.mxu0 0
    %3271 = vmatpush1.bf16.xpose.msra.mxu0 %v3265
    %3272 = vmatprep.subr.bf16.mxu0 0
    %3273 = vmatpush1.bf16.xpose.msra.mxu0 %v3268
    %3274 = vmatprep.subr.bf16.mxu0 0
    %3275 = vmatpush1.bf16.xpose.msra.mxu0 0
    %3276 = vmatprep.subr.bf16.mxu0 0
    %3277 = vmatpush1.bf16.xpose.msra.mxu0 0
    %3278 = vmatprep.subr.bf16.mxu0 0
    %3279 = vmatpush1.bf16.xpose.msra.mxu0 0
    %3280 = vmatprep.subr.bf16.mxu0 0
    %3281 = vmatpush1.bf16.xpose.msra.mxu0 0
    %3282 = vmatprep.subr.bf16.mxu0 0
    %3283 = vmatpush1.bf16.xpose.msra.mxu0 0
    %3284 = vmatprep.subr.bf16.mxu0 0
    %3285 = vmatpush1.bf16.xpose.msra.mxu0 0
    %3286 = vmatprep.subr.bf16.mxu0 0
    %3287 = vmatpush1.bf16.xpose.msra.mxu0 0
    %3288 = vmatprep.subr.bf16.mxu0 0
    %3289 = vmatpush1.bf16.xpose.msra.mxu0 0
    %3290 = vmatprep.subr.bf16.mxu0 0
    %3291 = vmatpush1.bf16.xpose.msra.mxu0 0
    %3292 = vmatprep.subr.bf16.mxu0 0
    %3293 = vmatpush1.bf16.xpose.msra.mxu0 0
    %3294 = vmatprep.subr.bf16.mxu0 0
    %3295 = vmatpush1.bf16.xpose.msra.mxu0 0
    %3296 = vmatprep.subr.bf16.mxu0 0
    %3297 = vmatpush1.bf16.xpose.msra.mxu0 0
    %3298 = vmatprep.subr.bf16.mxu0 0
    %3299 = vmatpush1.bf16.xpose.msra.mxu0 0
    %3300 = vmatprep.subr.bf16.mxu0 0
    %3301 = vmatpush1.bf16.xpose.msra.mxu0 0
    %3302 = vmatprep.mubr.bf16.mxu0 0
    %3303 = vmatmul.mubr.bf16.gmra.mrb[0].mxu0 %v3259
    %v3304 = vpop.f32.mrb[0].mxu0
    %v3305 = vadd.f32 0.0, %v3304
    %v3306 = vpop.f32.mrb[0].mxu0
    %v3307 = vpop.f32.mrb[0].mxu0
    %v3308 = vadd.f32 0.0, %v3307
    %v3309 = vpop.f32.mrb[0].mxu0
    %3310 = vmatprep.mubr.bf16.mxu0 0
    %3311 = vmatmul.mubr.bf16.gmra.mrb[0].mxu0 %v3262
    %v3312 = vpop.f32.mrb[0].mxu0
    %v3313 = vadd.f32 0.0, %v3312
    %v3314 = vpop.f32.mrb[0].mxu0
    %v3315 = vpop.f32.mrb[0].mxu0
    %v3316 = vadd.f32 0.0, %v3315
    %v3317 = vpop.f32.mrb[0].mxu0
    %3318 = vdwg.mxu0
    %v3319 = vadd.f32 %v2878, %v531
    %v3320 = vadd.f32 %v2881, %v532
    %v3321 = vadd.f32 %v2886, %v533
    %v3322 = vadd.f32 %v2889, %v534
    %v3323 = vadd.f32 %v2939, %v531
    %v3324 = vadd.f32 %v2942, %v532
    %v3325 = vadd.f32 %v2947, %v533
    %v3326 = vadd.f32 %v2950, %v534
    %v3327 = vadd.f32 %v3000, %v531
    %v3328 = vadd.f32 %v3003, %v532
    %v3329 = vadd.f32 %v3008, %v533
    %v3330 = vadd.f32 %v3011, %v534
    %v3331 = vadd.f32 %v3061, %v531
    %v3332 = vadd.f32 %v3064, %v532
    %v3333 = vadd.f32 %v3069, %v533
    %v3334 = vadd.f32 %v3072, %v534
    %v3335 = vadd.f32 %v3122, %v535
    %v3336 = vadd.f32 %v3125, %v536
    %v3337 = vadd.f32 %v3130, %v537
    %v3338 = vadd.f32 %v3133, %v538
    %v3339 = vadd.f32 %v3183, %v535
    %v3340 = vadd.f32 %v3186, %v536
    %v3341 = vadd.f32 %v3191, %v537
    %v3342 = vadd.f32 %v3194, %v538
    %v3343 = vadd.f32 %v3244, %v535
    %v3344 = vadd.f32 %v3247, %v536
    %v3345 = vadd.f32 %v3252, %v537
    %v3346 = vadd.f32 %v3255, %v538
    %v3347 = vadd.f32 %v3305, %v535
    %v3348 = vadd.f32 %v3308, %v536
    %v3349 = vadd.f32 %v3313, %v537
    %v3350 = vadd.f32 %v3316, %v538
    %v3351 = vsel %vm561, %v3319, -inf
    %3352 = vmax.xlane.f32.xlu0 %v3351
    %v3353 = vpop.xlane.xlu0 %3352
    %v3354 = vsel %vm561, %v3320, -inf
    %3355 = vmax.xlane.f32.xlu0 %v3354
    %v3356 = vpop.xlane.xlu0 %3355
    %v3357 = vsel %vm561, %v3321, -inf
    %3358 = vmax.xlane.f32.xlu0 %v3357
    %v3359 = vpop.xlane.xlu0 %3358
    %v3360 = vsel %vm561, %v3322, -inf
    %3361 = vmax.xlane.f32.xlu0 %v3360
    %v3362 = vpop.xlane.xlu0 %3361
    %v3363 = vsel %vm561, %v3323, -inf
    %3364 = vmax.xlane.f32.xlu0 %v3363
    %v3365 = vpop.xlane.xlu0 %3364
    %v3366 = vsel %vm561, %v3324, -inf
    %3367 = vmax.xlane.f32.xlu0 %v3366
    %v3368 = vpop.xlane.xlu0 %3367
    %v3369 = vsel %vm561, %v3325, -inf
    %3370 = vmax.xlane.f32.xlu0 %v3369
    %v3371 = vpop.xlane.xlu0 %3370
    %v3372 = vsel %vm561, %v3326, -inf
    %3373 = vmax.xlane.f32.xlu0 %v3372
    %v3374 = vpop.xlane.xlu0 %3373
    %v3375 = vsel %vm561, %v3327, -inf
    %3376 = vmax.xlane.f32.xlu0 %v3375
    %v3377 = vpop.xlane.xlu0 %3376
    %v3378 = vsel %vm561, %v3328, -inf
    %3379 = vmax.xlane.f32.xlu0 %v3378
    %v3380 = vpop.xlane.xlu0 %3379
    %v3381 = vsel %vm561, %v3329, -inf
    %3382 = vmax.xlane.f32.xlu0 %v3381
    %v3383 = vpop.xlane.xlu0 %3382
    %v3384 = vsel %vm561, %v3330, -inf
    %3385 = vmax.xlane.f32.xlu0 %v3384
    %v3386 = vpop.xlane.xlu0 %3385
    %v3387 = vsel %vm561, %v3331, -inf
    %3388 = vmax.xlane.f32.xlu0 %v3387
    %v3389 = vpop.xlane.xlu0 %3388
    %v3390 = vsel %vm561, %v3332, -inf
    %3391 = vmax.xlane.f32.xlu0 %v3390
    %v3392 = vpop.xlane.xlu0 %3391
    %v3393 = vsel %vm561, %v3333, -inf
    %3394 = vmax.xlane.f32.xlu0 %v3393
    %v3395 = vpop.xlane.xlu0 %3394
    %v3396 = vsel %vm561, %v3334, -inf
    %3397 = vmax.xlane.f32.xlu0 %v3396
    %v3398 = vpop.xlane.xlu0 %3397
    %v3399 = vsel %vm561, %v3335, -inf
    %3400 = vmax.xlane.f32.xlu0 %v3399
    %v3401 = vpop.xlane.xlu0 %3400
    %v3402 = vsel %vm561, %v3336, -inf
    %3403 = vmax.xlane.f32.xlu0 %v3402
    %v3404 = vpop.xlane.xlu0 %3403
    %v3405 = vsel %vm561, %v3337, -inf
    %3406 = vmax.xlane.f32.xlu0 %v3405
    %v3407 = vpop.xlane.xlu0 %3406
    %v3408 = vsel %vm561, %v3338, -inf
    %3409 = vmax.xlane.f32.xlu0 %v3408
    %v3410 = vpop.xlane.xlu0 %3409
    %v3411 = vsel %vm561, %v3339, -inf
    %3412 = vmax.xlane.f32.xlu0 %v3411
    %v3413 = vpop.xlane.xlu0 %3412
    %v3414 = vsel %vm561, %v3340, -inf
    %3415 = vmax.xlane.f32.xlu0 %v3414
    %v3416 = vpop.xlane.xlu0 %3415
    %v3417 = vsel %vm561, %v3341, -inf
    %3418 = vmax.xlane.f32.xlu0 %v3417
    %v3419 = vpop.xlane.xlu0 %3418
    %v3420 = vsel %vm561, %v3342, -inf
    %3421 = vmax.xlane.f32.xlu0 %v3420
    %v3422 = vpop.xlane.xlu0 %3421
    %v3423 = vsel %vm561, %v3343, -inf
    %3424 = vmax.xlane.f32.xlu0 %v3423
    %v3425 = vpop.xlane.xlu0 %3424
    %v3426 = vsel %vm561, %v3344, -inf
    %3427 = vmax.xlane.f32.xlu0 %v3426
    %v3428 = vpop.xlane.xlu0 %3427
    %v3429 = vsel %vm561, %v3345, -inf
    %3430 = vmax.xlane.f32.xlu0 %v3429
    %v3431 = vpop.xlane.xlu0 %3430
    %v3432 = vsel %vm561, %v3346, -inf
    %3433 = vmax.xlane.f32.xlu0 %v3432
    %v3434 = vpop.xlane.xlu0 %3433
    %v3435 = vsel %vm561, %v3347, -inf
    %3436 = vmax.xlane.f32.xlu0 %v3435
    %v3437 = vpop.xlane.xlu0 %3436
    %v3438 = vsel %vm561, %v3348, -inf
    %3439 = vmax.xlane.f32.xlu0 %v3438
    %v3440 = vpop.xlane.xlu0 %3439
    %v3441 = vsel %vm561, %v3349, -inf
    %3442 = vmax.xlane.f32.xlu0 %v3441
    %v3443 = vpop.xlane.xlu0 %3442
    %v3444 = vsel %vm561, %v3350, -inf
    %3445 = vmax.xlane.f32.xlu0 %v3444
    %v3446 = vpop.xlane.xlu0 %3445
    %v3447 = vsub.f32 %v3319, %v3353
    %v3448 = vsub.f32 %v3320, %v3356
    %v3449 = vsub.f32 %v3321, %v3359
    %v3450 = vsub.f32 %v3322, %v3362
    %v3451 = vsub.f32 %v3323, %v3365
    %v3452 = vsub.f32 %v3324, %v3368
    %v3453 = vsub.f32 %v3325, %v3371
    %v3454 = vsub.f32 %v3326, %v3374
    %v3455 = vsub.f32 %v3327, %v3377
    %v3456 = vsub.f32 %v3328, %v3380
    %v3457 = vsub.f32 %v3329, %v3383
    %v3458 = vsub.f32 %v3330, %v3386
    %v3459 = vsub.f32 %v3331, %v3389
    %v3460 = vsub.f32 %v3332, %v3392
    %v3461 = vsub.f32 %v3333, %v3395
    %v3462 = vsub.f32 %v3334, %v3398
    %v3463 = vsub.f32 %v3335, %v3401
    %v3464 = vsub.f32 %v3336, %v3404
    %v3465 = vsub.f32 %v3337, %v3407
    %v3466 = vsub.f32 %v3338, %v3410
    %v3467 = vsub.f32 %v3339, %v3413
    %v3468 = vsub.f32 %v3340, %v3416
    %v3469 = vsub.f32 %v3341, %v3419
    %v3470 = vsub.f32 %v3342, %v3422
    %v3471 = vsub.f32 %v3343, %v3425
    %v3472 = vsub.f32 %v3344, %v3428
    %v3473 = vsub.f32 %v3345, %v3431
    %v3474 = vsub.f32 %v3346, %v3434
    %v3475 = vsub.f32 %v3347, %v3437
    %v3476 = vsub.f32 %v3348, %v3440
    %v3477 = vsub.f32 %v3349, %v3443
    %v3478 = vsub.f32 %v3350, %v3446
    %v3479 = vmul.f32 %v3447, 1.442695
    %v3480 = vpow.pop %v3479
    %v3481 = vmul.f32 %v3448, 1.442695
    %v3482 = vpow.pop %v3481
    %v3483 = vmul.f32 %v3449, 1.442695
    %v3484 = vpow.pop %v3483
    %v3485 = vmul.f32 %v3450, 1.442695
    %v3486 = vpow.pop %v3485
    %v3487 = vmul.f32 %v3451, 1.442695
    %v3488 = vpow.pop %v3487
    %v3489 = vmul.f32 %v3452, 1.442695
    %v3490 = vpow.pop %v3489
    %v3491 = vmul.f32 %v3453, 1.442695
    %v3492 = vpow.pop %v3491
    %v3493 = vmul.f32 %v3454, 1.442695
    %v3494 = vpow.pop %v3493
    %v3495 = vmul.f32 %v3455, 1.442695
    %v3496 = vpow.pop %v3495
    %v3497 = vmul.f32 %v3456, 1.442695
    %v3498 = vpow.pop %v3497
    %v3499 = vmul.f32 %v3457, 1.442695
    %v3500 = vpow.pop %v3499
    %v3501 = vmul.f32 %v3458, 1.442695
    %v3502 = vpow.pop %v3501
    %v3503 = vmul.f32 %v3459, 1.442695
    %v3504 = vpow.pop %v3503
    %v3505 = vmul.f32 %v3460, 1.442695
    %v3506 = vpow.pop %v3505
    %v3507 = vmul.f32 %v3461, 1.442695
    %v3508 = vpow.pop %v3507
    %v3509 = vmul.f32 %v3462, 1.442695
    %v3510 = vpow.pop %v3509
    %v3511 = vmul.f32 %v3463, 1.442695
    %v3512 = vpow.pop %v3511
    %v3513 = vmul.f32 %v3464, 1.442695
    %v3514 = vpow.pop %v3513
    %v3515 = vmul.f32 %v3465, 1.442695
    %v3516 = vpow.pop %v3515
    %v3517 = vmul.f32 %v3466, 1.442695
    %v3518 = vpow.pop %v3517
    %v3519 = vmul.f32 %v3467, 1.442695
    %v3520 = vpow.pop %v3519
    %v3521 = vmul.f32 %v3468, 1.442695
    %v3522 = vpow.pop %v3521
    %v3523 = vmul.f32 %v3469, 1.442695
    %v3524 = vpow.pop %v3523
    %v3525 = vmul.f32 %v3470, 1.442695
    %v3526 = vpow.pop %v3525
    %v3527 = vmul.f32 %v3471, 1.442695
    %v3528 = vpow.pop %v3527
    %v3529 = vmul.f32 %v3472, 1.442695
    %v3530 = vpow.pop %v3529
    %v3531 = vmul.f32 %v3473, 1.442695
    %v3532 = vpow.pop %v3531
    %v3533 = vmul.f32 %v3474, 1.442695
    %v3534 = vpow.pop %v3533
    %v3535 = vmul.f32 %v3475, 1.442695
    %v3536 = vpow.pop %v3535
    %v3537 = vmul.f32 %v3476, 1.442695
    %v3538 = vpow.pop %v3537
    %v3539 = vmul.f32 %v3477, 1.442695
    %v3540 = vpow.pop %v3539
    %v3541 = vmul.f32 %v3478, 1.442695
    %v3542 = vpow.pop %v3541
    %v3543 = vsel %vm561, %v3480, 0.0
    %3544 = vadd.xlane.f32.xlu0 %v3543
    %v3545 = vpop.xlane.xlu0 %3544
    %v3546 = vsel %vm561, %v3482, 0.0
    %3547 = vadd.xlane.f32.xlu0 %v3546
    %v3548 = vpop.xlane.xlu0 %3547
    %v3549 = vsel %vm561, %v3484, 0.0
    %3550 = vadd.xlane.f32.xlu0 %v3549
    %v3551 = vpop.xlane.xlu0 %3550
    %v3552 = vsel %vm561, %v3486, 0.0
    %3553 = vadd.xlane.f32.xlu0 %v3552
    %v3554 = vpop.xlane.xlu0 %3553
    %v3555 = vsel %vm561, %v3488, 0.0
    %3556 = vadd.xlane.f32.xlu0 %v3555
    %v3557 = vpop.xlane.xlu0 %3556
    %v3558 = vsel %vm561, %v3490, 0.0
    %3559 = vadd.xlane.f32.xlu0 %v3558
    %v3560 = vpop.xlane.xlu0 %3559
    %v3561 = vsel %vm561, %v3492, 0.0
    %3562 = vadd.xlane.f32.xlu0 %v3561
    %v3563 = vpop.xlane.xlu0 %3562
    %v3564 = vsel %vm561, %v3494, 0.0
    %3565 = vadd.xlane.f32.xlu0 %v3564
    %v3566 = vpop.xlane.xlu0 %3565
    %v3567 = vsel %vm561, %v3496, 0.0
    %3568 = vadd.xlane.f32.xlu0 %v3567
    %v3569 = vpop.xlane.xlu0 %3568
    %v3570 = vsel %vm561, %v3498, 0.0
    %3571 = vadd.xlane.f32.xlu0 %v3570
    %v3572 = vpop.xlane.xlu0 %3571
    %v3573 = vsel %vm561, %v3500, 0.0
    %3574 = vadd.xlane.f32.xlu0 %v3573
    %v3575 = vpop.xlane.xlu0 %3574
    %v3576 = vsel %vm561, %v3502, 0.0
    %3577 = vadd.xlane.f32.xlu0 %v3576
    %v3578 = vpop.xlane.xlu0 %3577
    %v3579 = vsel %vm561, %v3504, 0.0
    %3580 = vadd.xlane.f32.xlu0 %v3579
    %v3581 = vpop.xlane.xlu0 %3580
    %v3582 = vsel %vm561, %v3506, 0.0
    %3583 = vadd.xlane.f32.xlu0 %v3582
    %v3584 = vpop.xlane.xlu0 %3583
    %v3585 = vsel %vm561, %v3508, 0.0
    %3586 = vadd.xlane.f32.xlu0 %v3585
    %v3587 = vpop.xlane.xlu0 %3586
    %v3588 = vsel %vm561, %v3510, 0.0
    %3589 = vadd.xlane.f32.xlu0 %v3588
    %v3590 = vpop.xlane.xlu0 %3589
    %v3591 = vsel %vm561, %v3512, 0.0
    %3592 = vadd.xlane.f32.xlu0 %v3591
    %v3593 = vpop.xlane.xlu0 %3592
    %v3594 = vsel %vm561, %v3514, 0.0
    %3595 = vadd.xlane.f32.xlu0 %v3594
    %v3596 = vpop.xlane.xlu0 %3595
    %v3597 = vsel %vm561, %v3516, 0.0
    %3598 = vadd.xlane.f32.xlu0 %v3597
    %v3599 = vpop.xlane.xlu0 %3598
    %v3600 = vsel %vm561, %v3518, 0.0
    %3601 = vadd.xlane.f32.xlu0 %v3600
    %v3602 = vpop.xlane.xlu0 %3601
    %v3603 = vsel %vm561, %v3520, 0.0
    %3604 = vadd.xlane.f32.xlu0 %v3603
    %v3605 = vpop.xlane.xlu0 %3604
    %v3606 = vsel %vm561, %v3522, 0.0
    %3607 = vadd.xlane.f32.xlu0 %v3606
    %v3608 = vpop.xlane.xlu0 %3607
    %v3609 = vsel %vm561, %v3524, 0.0
    %3610 = vadd.xlane.f32.xlu0 %v3609
    %v3611 = vpop.xlane.xlu0 %3610
    %v3612 = vsel %vm561, %v3526, 0.0
    %3613 = vadd.xlane.f32.xlu0 %v3612
    %v3614 = vpop.xlane.xlu0 %3613
    %v3615 = vsel %vm561, %v3528, 0.0
    %3616 = vadd.xlane.f32.xlu0 %v3615
    %v3617 = vpop.xlane.xlu0 %3616
    %v3618 = vsel %vm561, %v3530, 0.0
    %3619 = vadd.xlane.f32.xlu0 %v3618
    %v3620 = vpop.xlane.xlu0 %3619
    %v3621 = vsel %vm561, %v3532, 0.0
    %3622 = vadd.xlane.f32.xlu0 %v3621
    %v3623 = vpop.xlane.xlu0 %3622
    %v3624 = vsel %vm561, %v3534, 0.0
    %3625 = vadd.xlane.f32.xlu0 %v3624
    %v3626 = vpop.xlane.xlu0 %3625
    %v3627 = vsel %vm561, %v3536, 0.0
    %3628 = vadd.xlane.f32.xlu0 %v3627
    %v3629 = vpop.xlane.xlu0 %3628
    %v3630 = vsel %vm561, %v3538, 0.0
    %3631 = vadd.xlane.f32.xlu0 %v3630
    %v3632 = vpop.xlane.xlu0 %3631
    %v3633 = vsel %vm561, %v3540, 0.0
    %3634 = vadd.xlane.f32.xlu0 %v3633
    %v3635 = vpop.xlane.xlu0 %3634
    %v3636 = vsel %vm561, %v3542, 0.0
    %3637 = vadd.xlane.f32.xlu0 %v3636
    %v3638 = vpop.xlane.xlu0 %3637
    %v3639 = vrcp.pop %v3545
    %v3640 = vrcp.pop %v3548
    %v3641 = vrcp.pop %v3551
    %v3642 = vrcp.pop %v3554
    %v3643 = vrcp.pop %v3557
    %v3644 = vrcp.pop %v3560
    %v3645 = vrcp.pop %v3563
    %v3646 = vrcp.pop %v3566
    %v3647 = vrcp.pop %v3569
    %v3648 = vrcp.pop %v3572
    %v3649 = vrcp.pop %v3575
    %v3650 = vrcp.pop %v3578
    %v3651 = vrcp.pop %v3581
    %v3652 = vrcp.pop %v3584
    %v3653 = vrcp.pop %v3587
    %v3654 = vrcp.pop %v3590
    %v3655 = vrcp.pop %v3593
    %v3656 = vrcp.pop %v3596
    %v3657 = vrcp.pop %v3599
    %v3658 = vrcp.pop %v3602
    %v3659 = vrcp.pop %v3605
    %v3660 = vrcp.pop %v3608
    %v3661 = vrcp.pop %v3611
    %v3662 = vrcp.pop %v3614
    %v3663 = vrcp.pop %v3617
    %v3664 = vrcp.pop %v3620
    %v3665 = vrcp.pop %v3623
    %v3666 = vrcp.pop %v3626
    %v3667 = vrcp.pop %v3629
    %v3668 = vrcp.pop %v3632
    %v3669 = vrcp.pop %v3635
    %v3670 = vrcp.pop %v3638
    %v3671 = vmul.f32 %v3480, %v3639
    %v3672 = vmul.f32 %v3482, %v3640
    %v3673 = vmul.f32 %v3484, %v3641
    %v3674 = vmul.f32 %v3486, %v3642
    %v3675 = vmul.f32 %v3488, %v3643
    %v3676 = vmul.f32 %v3490, %v3644
    %v3677 = vmul.f32 %v3492, %v3645
    %v3678 = vmul.f32 %v3494, %v3646
    %v3679 = vmul.f32 %v3496, %v3647
    %v3680 = vmul.f32 %v3498, %v3648
    %v3681 = vmul.f32 %v3500, %v3649
    %v3682 = vmul.f32 %v3502, %v3650
    %v3683 = vmul.f32 %v3504, %v3651
    %v3684 = vmul.f32 %v3506, %v3652
    %v3685 = vmul.f32 %v3508, %v3653
    %v3686 = vmul.f32 %v3510, %v3654
    %v3687 = vmul.f32 %v3512, %v3655
    %v3688 = vmul.f32 %v3514, %v3656
    %v3689 = vmul.f32 %v3516, %v3657
    %v3690 = vmul.f32 %v3518, %v3658
    %v3691 = vmul.f32 %v3520, %v3659
    %v3692 = vmul.f32 %v3522, %v3660
    %v3693 = vmul.f32 %v3524, %v3661
    %v3694 = vmul.f32 %v3526, %v3662
    %v3695 = vmul.f32 %v3528, %v3663
    %v3696 = vmul.f32 %v3530, %v3664
    %v3697 = vmul.f32 %v3532, %v3665
    %v3698 = vmul.f32 %v3534, %v3666
    %v3699 = vmul.f32 %v3536, %v3667
    %v3700 = vmul.f32 %v3538, %v3668
    %v3701 = vmul.f32 %v3540, %v3669
    %v3702 = vmul.f32 %v3542, %v3670
    %v3703 = vpack.c.bf16 %v3672, %v3671
    %v3704 = vpack.c.bf16 %v3674, %v3673
    %v3705 = vpack.c.bf16 %v3676, %v3675
    %v3706 = vpack.c.bf16 %v3678, %v3677
    %v3707 = vpack.c.bf16 %v3680, %v3679
    %v3708 = vpack.c.bf16 %v3682, %v3681
    %v3709 = vpack.c.bf16 %v3684, %v3683
    %v3710 = vpack.c.bf16 %v3686, %v3685
    %v3711 = vpack.c.bf16 %v3688, %v3687
    %v3712 = vpack.c.bf16 %v3690, %v3689
    %v3713 = vpack.c.bf16 %v3692, %v3691
    %v3714 = vpack.c.bf16 %v3694, %v3693
    %v3715 = vpack.c.bf16 %v3696, %v3695
    %v3716 = vpack.c.bf16 %v3698, %v3697
    %v3717 = vpack.c.bf16 %v3700, %v3699
    %v3718 = vpack.c.bf16 %v3702, %v3701
    %3719 = vrot.lane.b32.xlu0 %v2799, 64
    %v3720 = vpop.permute.xlu0 %3719
    %3721 = vrot.lane.b32.xlu0 %v2800, 64
    %v3722 = vpop.permute.xlu0 %3721
    %v3726 = vsel %vm561, %v3703, 0
    %v3729 = vsel %vm561, %v3704, 0
    %3731 = vmatprep.subr.bf16.mxu0 0
    %3732 = vmatpush1.bf16.msra.mxu0 %v3720
    %3733 = vmatprep.subr.bf16.mxu0 0
    %3734 = vmatpush1.bf16.msra.mxu0 %v3722
    %3735 = vmatprep.subr.bf16.mxu0 0
    %3736 = vmatpush1.bf16.msra.mxu0 0
    %3737 = vmatprep.subr.bf16.mxu0 0
    %3738 = vmatpush1.bf16.msra.mxu0 0
    %3739 = vmatprep.subr.bf16.mxu0 0
    %3740 = vmatpush1.bf16.msra.mxu0 0
    %3741 = vmatprep.subr.bf16.mxu0 0
    %3742 = vmatpush1.bf16.msra.mxu0 0
    %3743 = vmatprep.subr.bf16.mxu0 0
    %3744 = vmatpush1.bf16.msra.mxu0 0
    %3745 = vmatprep.subr.bf16.mxu0 0
    %3746 = vmatpush1.bf16.msra.mxu0 0
    %3747 = vmatprep.subr.bf16.mxu0 0
    %3748 = vmatpush1.bf16.msra.mxu0 0
    %3749 = vmatprep.subr.bf16.mxu0 0
    %3750 = vmatpush1.bf16.msra.mxu0 0
    %3751 = vmatprep.subr.bf16.mxu0 0
    %3752 = vmatpush1.bf16.msra.mxu0 0
    %3753 = vmatprep.subr.bf16.mxu0 0
    %3754 = vmatpush1.bf16.msra.mxu0 0
    %3755 = vmatprep.subr.bf16.mxu0 0
    %3756 = vmatpush1.bf16.msra.mxu0 0
    %3757 = vmatprep.subr.bf16.mxu0 0
    %3758 = vmatpush1.bf16.msra.mxu0 0
    %3759 = vmatprep.subr.bf16.mxu0 0
    %3760 = vmatpush1.bf16.msra.mxu0 0
    %3761 = vmatprep.subr.bf16.mxu0 0
    %3762 = vmatpush1.bf16.msra.mxu0 0
    %3763 = vmatprep.mubr.bf16.mxu0 0
    %3764 = vmatmul.mubr.bf16.gmra.mrb[0].mxu0 %v3726
    %v3765 = vpop.f32.mrb[0].mxu0
    %v3766 = vadd.f32 0.0, %v3765
    %v3767 = vpop.f32.mrb[0].mxu0
    %v3768 = vpop.f32.mrb[0].mxu0
    %v3769 = vadd.f32 0.0, %v3768
    %v3770 = vpop.f32.mrb[0].mxu0
    %3771 = vmatprep.mubr.bf16.mxu0 0
    %3772 = vmatmul.mubr.bf16.gmra.mrb[0].mxu0 %v3729
    %v3773 = vpop.f32.mrb[0].mxu0
    %v3774 = vadd.f32 0.0, %v3773
    %v3775 = vpop.f32.mrb[0].mxu0
    %v3776 = vpop.f32.mrb[0].mxu0
    %v3777 = vadd.f32 0.0, %v3776
    %v3778 = vpop.f32.mrb[0].mxu0
    %3779 = vdwg.mxu0
    %3780 = vrot.lane.b32.xlu0 %v2808, 64
    %v3781 = vpop.permute.xlu0 %3780
    %3782 = vrot.lane.b32.xlu0 %v2810, 64
    %v3783 = vpop.permute.xlu0 %3782
    %v3787 = vsel %vm561, %v3705, 0
    %v3790 = vsel %vm561, %v3706, 0
    %3792 = vmatprep.subr.bf16.mxu0 0
    %3793 = vmatpush1.bf16.msra.mxu0 %v3781
    %3794 = vmatprep.subr.bf16.mxu0 0
    %3795 = vmatpush1.bf16.msra.mxu0 %v3783
    %3796 = vmatprep.subr.bf16.mxu0 0
    %3797 = vmatpush1.bf16.msra.mxu0 0
    %3798 = vmatprep.subr.bf16.mxu0 0
    %3799 = vmatpush1.bf16.msra.mxu0 0
    %3800 = vmatprep.subr.bf16.mxu0 0
    %3801 = vmatpush1.bf16.msra.mxu0 0
    %3802 = vmatprep.subr.bf16.mxu0 0
    %3803 = vmatpush1.bf16.msra.mxu0 0
    %3804 = vmatprep.subr.bf16.mxu0 0
    %3805 = vmatpush1.bf16.msra.mxu0 0
    %3806 = vmatprep.subr.bf16.mxu0 0
    %3807 = vmatpush1.bf16.msra.mxu0 0
    %3808 = vmatprep.subr.bf16.mxu0 0
    %3809 = vmatpush1.bf16.msra.mxu0 0
    %3810 = vmatprep.subr.bf16.mxu0 0
    %3811 = vmatpush1.bf16.msra.mxu0 0
    %3812 = vmatprep.subr.bf16.mxu0 0
    %3813 = vmatpush1.bf16.msra.mxu0 0
    %3814 = vmatprep.subr.bf16.mxu0 0
    %3815 = vmatpush1.bf16.msra.mxu0 0
    %3816 = vmatprep.subr.bf16.mxu0 0
    %3817 = vmatpush1.bf16.msra.mxu0 0
    %3818 = vmatprep.subr.bf16.mxu0 0
    %3819 = vmatpush1.bf16.msra.mxu0 0
    %3820 = vmatprep.subr.bf16.mxu0 0
    %3821 = vmatpush1.bf16.msra.mxu0 0
    %3822 = vmatprep.subr.bf16.mxu0 0
    %3823 = vmatpush1.bf16.msra.mxu0 0
    %3824 = vmatprep.mubr.bf16.mxu0 0
    %3825 = vmatmul.mubr.bf16.gmra.mrb[0].mxu0 %v3787
    %v3826 = vpop.f32.mrb[0].mxu0
    %v3827 = vadd.f32 0.0, %v3826
    %v3828 = vpop.f32.mrb[0].mxu0
    %v3829 = vpop.f32.mrb[0].mxu0
    %v3830 = vadd.f32 0.0, %v3829
    %v3831 = vpop.f32.mrb[0].mxu0
    %3832 = vmatprep.mubr.bf16.mxu0 0
    %3833 = vmatmul.mubr.bf16.gmra.mrb[0].mxu0 %v3790
    %v3834 = vpop.f32.mrb[0].mxu0
    %v3835 = vadd.f32 0.0, %v3834
    %v3836 = vpop.f32.mrb[0].mxu0
    %v3837 = vpop.f32.mrb[0].mxu0
    %v3838 = vadd.f32 0.0, %v3837
    %v3839 = vpop.f32.mrb[0].mxu0
    %3840 = vdwg.mxu0
    %3841 = vrot.lane.b32.xlu0 %v2816, 64
    %v3842 = vpop.permute.xlu0 %3841
    %3843 = vrot.lane.b32.xlu0 %v2818, 64
    %v3844 = vpop.permute.xlu0 %3843
    %v3848 = vsel %vm561, %v3707, 0
    %v3851 = vsel %vm561, %v3708, 0
    %3853 = vmatprep.subr.bf16.mxu0 0
    %3854 = vmatpush1.bf16.msra.mxu0 %v3842
    %3855 = vmatprep.subr.bf16.mxu0 0
    %3856 = vmatpush1.bf16.msra.mxu0 %v3844
    %3857 = vmatprep.subr.bf16.mxu0 0
    %3858 = vmatpush1.bf16.msra.mxu0 0
    %3859 = vmatprep.subr.bf16.mxu0 0
    %3860 = vmatpush1.bf16.msra.mxu0 0
    %3861 = vmatprep.subr.bf16.mxu0 0
    %3862 = vmatpush1.bf16.msra.mxu0 0
    %3863 = vmatprep.subr.bf16.mxu0 0
    %3864 = vmatpush1.bf16.msra.mxu0 0
    %3865 = vmatprep.subr.bf16.mxu0 0
    %3866 = vmatpush1.bf16.msra.mxu0 0
    %3867 = vmatprep.subr.bf16.mxu0 0
    %3868 = vmatpush1.bf16.msra.mxu0 0
    %3869 = vmatprep.subr.bf16.mxu0 0
    %3870 = vmatpush1.bf16.msra.mxu0 0
    %3871 = vmatprep.subr.bf16.mxu0 0
    %3872 = vmatpush1.bf16.msra.mxu0 0
    %3873 = vmatprep.subr.bf16.mxu0 0
    %3874 = vmatpush1.bf16.msra.mxu0 0
    %3875 = vmatprep.subr.bf16.mxu0 0
    %3876 = vmatpush1.bf16.msra.mxu0 0
    %3877 = vmatprep.subr.bf16.mxu0 0
    %3878 = vmatpush1.bf16.msra.mxu0 0
    %3879 = vmatprep.subr.bf16.mxu0 0
    %3880 = vmatpush1.bf16.msra.mxu0 0
    %3881 = vmatprep.subr.bf16.mxu0 0
    %3882 = vmatpush1.bf16.msra.mxu0 0
    %3883 = vmatprep.subr.bf16.mxu0 0
    %3884 = vmatpush1.bf16.msra.mxu0 0
    %3885 = vmatprep.mubr.bf16.mxu0 0
    %3886 = vmatmul.mubr.bf16.gmra.mrb[0].mxu0 %v3848
    %v3887 = vpop.f32.mrb[0].mxu0
    %v3888 = vadd.f32 0.0, %v3887
    %v3889 = vpop.f32.mrb[0].mxu0
    %v3890 = vpop.f32.mrb[0].mxu0
    %v3891 = vadd.f32 0.0, %v3890
    %v3892 = vpop.f32.mrb[0].mxu0
    %3893 = vmatprep.mubr.bf16.mxu0 0
    %3894 = vmatmul.mubr.bf16.gmra.mrb[0].mxu0 %v3851
    %v3895 = vpop.f32.mrb[0].mxu0
    %v3896 = vadd.f32 0.0, %v3895
    %v3897 = vpop.f32.mrb[0].mxu0
    %v3898 = vpop.f32.mrb[0].mxu0
    %v3899 = vadd.f32 0.0, %v3898
    %v3900 = vpop.f32.mrb[0].mxu0
    %3901 = vdwg.mxu0
    %3902 = vrot.lane.b32.xlu0 %v2824, 64
    %v3903 = vpop.permute.xlu0 %3902
    %3904 = vrot.lane.b32.xlu0 %v2826, 64
    %v3905 = vpop.permute.xlu0 %3904
    %v3909 = vsel %vm561, %v3709, 0
    %v3912 = vsel %vm561, %v3710, 0
    %3914 = vmatprep.subr.bf16.mxu0 0
    %3915 = vmatpush1.bf16.msra.mxu0 %v3903
    %3916 = vmatprep.subr.bf16.mxu0 0
    %3917 = vmatpush1.bf16.msra.mxu0 %v3905
    %3918 = vmatprep.subr.bf16.mxu0 0
    %3919 = vmatpush1.bf16.msra.mxu0 0
    %3920 = vmatprep.subr.bf16.mxu0 0
    %3921 = vmatpush1.bf16.msra.mxu0 0
    %3922 = vmatprep.subr.bf16.mxu0 0
    %3923 = vmatpush1.bf16.msra.mxu0 0
    %3924 = vmatprep.subr.bf16.mxu0 0
    %3925 = vmatpush1.bf16.msra.mxu0 0
    %3926 = vmatprep.subr.bf16.mxu0 0
    %3927 = vmatpush1.bf16.msra.mxu0 0
    %3928 = vmatprep.subr.bf16.mxu0 0
    %3929 = vmatpush1.bf16.msra.mxu0 0
    %3930 = vmatprep.subr.bf16.mxu0 0
    %3931 = vmatpush1.bf16.msra.mxu0 0
    %3932 = vmatprep.subr.bf16.mxu0 0
    %3933 = vmatpush1.bf16.msra.mxu0 0
    %3934 = vmatprep.subr.bf16.mxu0 0
    %3935 = vmatpush1.bf16.msra.mxu0 0
    %3936 = vmatprep.subr.bf16.mxu0 0
    %3937 = vmatpush1.bf16.msra.mxu0 0
    %3938 = vmatprep.subr.bf16.mxu0 0
    %3939 = vmatpush1.bf16.msra.mxu0 0
    %3940 = vmatprep.subr.bf16.mxu0 0
    %3941 = vmatpush1.bf16.msra.mxu0 0
    %3942 = vmatprep.subr.bf16.mxu0 0
    %3943 = vmatpush1.bf16.msra.mxu0 0
    %3944 = vmatprep.subr.bf16.mxu0 0
    %3945 = vmatpush1.bf16.msra.mxu0 0
    %3946 = vmatprep.mubr.bf16.mxu0 0
    %3947 = vmatmul.mubr.bf16.gmra.mrb[0].mxu0 %v3909
    %v3948 = vpop.f32.mrb[0].mxu0
    %v3949 = vadd.f32 0.0, %v3948
    %v3950 = vpop.f32.mrb[0].mxu0
    %v3951 = vpop.f32.mrb[0].mxu0
    %v3952 = vadd.f32 0.0, %v3951
    %v3953 = vpop.f32.mrb[0].mxu0
    %3954 = vmatprep.mubr.bf16.mxu0 0
    %3955 = vmatmul.mubr.bf16.gmra.mrb[0].mxu0 %v3912
    %v3956 = vpop.f32.mrb[0].mxu0
    %v3957 = vadd.f32 0.0, %v3956
    %v3958 = vpop.f32.mrb[0].mxu0
    %v3959 = vpop.f32.mrb[0].mxu0
    %v3960 = vadd.f32 0.0, %v3959
    %v3961 = vpop.f32.mrb[0].mxu0
    %3962 = vdwg.mxu0
    %3963 = vrot.lane.b32.xlu0 %v2801, 64
    %v3964 = vpop.permute.xlu0 %3963
    %3965 = vrot.lane.b32.xlu0 %v2802, 64
    %v3966 = vpop.permute.xlu0 %3965
    %v3970 = vsel %vm561, %v3711, 0
    %v3973 = vsel %vm561, %v3712, 0
    %3975 = vmatprep.subr.bf16.mxu0 0
    %3976 = vmatpush1.bf16.msra.mxu0 %v3964
    %3977 = vmatprep.subr.bf16.mxu0 0
    %3978 = vmatpush1.bf16.msra.mxu0 %v3966
    %3979 = vmatprep.subr.bf16.mxu0 0
    %3980 = vmatpush1.bf16.msra.mxu0 0
    %3981 = vmatprep.subr.bf16.mxu0 0
    %3982 = vmatpush1.bf16.msra.mxu0 0
    %3983 = vmatprep.subr.bf16.mxu0 0
    %3984 = vmatpush1.bf16.msra.mxu0 0
    %3985 = vmatprep.subr.bf16.mxu0 0
    %3986 = vmatpush1.bf16.msra.mxu0 0
    %3987 = vmatprep.subr.bf16.mxu0 0
    %3988 = vmatpush1.bf16.msra.mxu0 0
    %3989 = vmatprep.subr.bf16.mxu0 0
    %3990 = vmatpush1.bf16.msra.mxu0 0
    %3991 = vmatprep.subr.bf16.mxu0 0
    %3992 = vmatpush1.bf16.msra.mxu0 0
    %3993 = vmatprep.subr.bf16.mxu0 0
    %3994 = vmatpush1.bf16.msra.mxu0 0
    %3995 = vmatprep.subr.bf16.mxu0 0
    %3996 = vmatpush1.bf16.msra.mxu0 0
    %3997 = vmatprep.subr.bf16.mxu0 0
    %3998 = vmatpush1.bf16.msra.mxu0 0
    %3999 = vmatprep.subr.bf16.mxu0 0
    %4000 = vmatpush1.bf16.msra.mxu0 0
    %4001 = vmatprep.subr.bf16.mxu0 0
    %4002 = vmatpush1.bf16.msra.mxu0 0
    %4003 = vmatprep.subr.bf16.mxu0 0
    %4004 = vmatpush1.bf16.msra.mxu0 0
    %4005 = vmatprep.subr.bf16.mxu0 0
    %4006 = vmatpush1.bf16.msra.mxu0 0
    %4007 = vmatprep.mubr.bf16.mxu0 0
    %4008 = vmatmul.mubr.bf16.gmra.mrb[0].mxu0 %v3970
    %v4009 = vpop.f32.mrb[0].mxu0
    %v4010 = vadd.f32 0.0, %v4009
    %v4011 = vpop.f32.mrb[0].mxu0
    %v4012 = vpop.f32.mrb[0].mxu0
    %v4013 = vadd.f32 0.0, %v4012
    %v4014 = vpop.f32.mrb[0].mxu0
    %4015 = vmatprep.mubr.bf16.mxu0 0
    %4016 = vmatmul.mubr.bf16.gmra.mrb[0].mxu0 %v3973
    %v4017 = vpop.f32.mrb[0].mxu0
    %v4018 = vadd.f32 0.0, %v4017
    %v4019 = vpop.f32.mrb[0].mxu0
    %v4020 = vpop.f32.mrb[0].mxu0
    %v4021 = vadd.f32 0.0, %v4020
    %v4022 = vpop.f32.mrb[0].mxu0
    %4023 = vdwg.mxu0
    %4024 = vrot.lane.b32.xlu0 %v2812, 64
    %v4025 = vpop.permute.xlu0 %4024
    %4026 = vrot.lane.b32.xlu0 %v2814, 64
    %v4027 = vpop.permute.xlu0 %4026
    %v4031 = vsel %vm561, %v3713, 0
    %v4034 = vsel %vm561, %v3714, 0
    %4036 = vmatprep.subr.bf16.mxu0 0
    %4037 = vmatpush1.bf16.msra.mxu0 %v4025
    %4038 = vmatprep.subr.bf16.mxu0 0
    %4039 = vmatpush1.bf16.msra.mxu0 %v4027
    %4040 = vmatprep.subr.bf16.mxu0 0
    %4041 = vmatpush1.bf16.msra.mxu0 0
    %4042 = vmatprep.subr.bf16.mxu0 0
    %4043 = vmatpush1.bf16.msra.mxu0 0
    %4044 = vmatprep.subr.bf16.mxu0 0
    %4045 = vmatpush1.bf16.msra.mxu0 0
    %4046 = vmatprep.subr.bf16.mxu0 0
    %4047 = vmatpush1.bf16.msra.mxu0 0
    %4048 = vmatprep.subr.bf16.mxu0 0
    %4049 = vmatpush1.bf16.msra.mxu0 0
    %4050 = vmatprep.subr.bf16.mxu0 0
    %4051 = vmatpush1.bf16.msra.mxu0 0
    %4052 = vmatprep.subr.bf16.mxu0 0
    %4053 = vmatpush1.bf16.msra.mxu0 0
    %4054 = vmatprep.subr.bf16.mxu0 0
    %4055 = vmatpush1.bf16.msra.mxu0 0
    %4056 = vmatprep.subr.bf16.mxu0 0
    %4057 = vmatpush1.bf16.msra.mxu0 0
    %4058 = vmatprep.subr.bf16.mxu0 0
    %4059 = vmatpush1.bf16.msra.mxu0 0
    %4060 = vmatprep.subr.bf16.mxu0 0
    %4061 = vmatpush1.bf16.msra.mxu0 0
    %4062 = vmatprep.subr.bf16.mxu0 0
    %4063 = vmatpush1.bf16.msra.mxu0 0
    %4064 = vmatprep.subr.bf16.mxu0 0
    %4065 = vmatpush1.bf16.msra.mxu0 0
    %4066 = vmatprep.subr.bf16.mxu0 0
    %4067 = vmatpush1.bf16.msra.mxu0 0
    %4068 = vmatprep.mubr.bf16.mxu0 0
    %4069 = vmatmul.mubr.bf16.gmra.mrb[0].mxu0 %v4031
    %v4070 = vpop.f32.mrb[0].mxu0
    %v4071 = vadd.f32 0.0, %v4070
    %v4072 = vpop.f32.mrb[0].mxu0
    %v4073 = vpop.f32.mrb[0].mxu0
    %v4074 = vadd.f32 0.0, %v4073
    %v4075 = vpop.f32.mrb[0].mxu0
    %4076 = vmatprep.mubr.bf16.mxu0 0
    %4077 = vmatmul.mubr.bf16.gmra.mrb[0].mxu0 %v4034
    %v4078 = vpop.f32.mrb[0].mxu0
    %v4079 = vadd.f32 0.0, %v4078
    %v4080 = vpop.f32.mrb[0].mxu0
    %v4081 = vpop.f32.mrb[0].mxu0
    %v4082 = vadd.f32 0.0, %v4081
    %v4083 = vpop.f32.mrb[0].mxu0
    %4084 = vdwg.mxu0
    %4085 = vrot.lane.b32.xlu0 %v2820, 64
    %v4086 = vpop.permute.xlu0 %4085
    %4087 = vrot.lane.b32.xlu0 %v2822, 64
    %v4088 = vpop.permute.xlu0 %4087
    %v4092 = vsel %vm561, %v3715, 0
    %v4095 = vsel %vm561, %v3716, 0
    %4097 = vmatprep.subr.bf16.mxu0 0
    %4098 = vmatpush1.bf16.msra.mxu0 %v4086
    %4099 = vmatprep.subr.bf16.mxu0 0
    %4100 = vmatpush1.bf16.msra.mxu0 %v4088
    %4101 = vmatprep.subr.bf16.mxu0 0
    %4102 = vmatpush1.bf16.msra.mxu0 0
    %4103 = vmatprep.subr.bf16.mxu0 0
    %4104 = vmatpush1.bf16.msra.mxu0 0
    %4105 = vmatprep.subr.bf16.mxu0 0
    %4106 = vmatpush1.bf16.msra.mxu0 0
    %4107 = vmatprep.subr.bf16.mxu0 0
    %4108 = vmatpush1.bf16.msra.mxu0 0
    %4109 = vmatprep.subr.bf16.mxu0 0
    %4110 = vmatpush1.bf16.msra.mxu0 0
    %4111 = vmatprep.subr.bf16.mxu0 0
    %4112 = vmatpush1.bf16.msra.mxu0 0
    %4113 = vmatprep.subr.bf16.mxu0 0
    %4114 = vmatpush1.bf16.msra.mxu0 0
    %4115 = vmatprep.subr.bf16.mxu0 0
    %4116 = vmatpush1.bf16.msra.mxu0 0
    %4117 = vmatprep.subr.bf16.mxu0 0
    %4118 = vmatpush1.bf16.msra.mxu0 0
    %4119 = vmatprep.subr.bf16.mxu0 0
    %4120 = vmatpush1.bf16.msra.mxu0 0
    %4121 = vmatprep.subr.bf16.mxu0 0
    %4122 = vmatpush1.bf16.msra.mxu0 0
    %4123 = vmatprep.subr.bf16.mxu0 0
    %4124 = vmatpush1.bf16.msra.mxu0 0
    %4125 = vmatprep.subr.bf16.mxu0 0
    %4126 = vmatpush1.bf16.msra.mxu0 0
    %4127 = vmatprep.subr.bf16.mxu0 0
    %4128 = vmatpush1.bf16.msra.mxu0 0
    %4129 = vmatprep.mubr.bf16.mxu0 0
    %4130 = vmatmul.mubr.bf16.gmra.mrb[0].mxu0 %v4092
    %v4131 = vpop.f32.mrb[0].mxu0
    %v4132 = vadd.f32 0.0, %v4131
    %v4133 = vpop.f32.mrb[0].mxu0
    %v4134 = vpop.f32.mrb[0].mxu0
    %v4135 = vadd.f32 0.0, %v4134
    %v4136 = vpop.f32.mrb[0].mxu0
    %4137 = vmatprep.mubr.bf16.mxu0 0
    %4138 = vmatmul.mubr.bf16.gmra.mrb[0].mxu0 %v4095
    %v4139 = vpop.f32.mrb[0].mxu0
    %v4140 = vadd.f32 0.0, %v4139
    %v4141 = vpop.f32.mrb[0].mxu0
    %v4142 = vpop.f32.mrb[0].mxu0
    %v4143 = vadd.f32 0.0, %v4142
    %v4144 = vpop.f32.mrb[0].mxu0
    %4145 = vdwg.mxu0
    %4146 = vrot.lane.b32.xlu0 %v2828, 64
    %v4147 = vpop.permute.xlu0 %4146
    %4148 = vrot.lane.b32.xlu0 %v2830, 64
    %v4149 = vpop.permute.xlu0 %4148
    %v4153 = vsel %vm561, %v3717, 0
    %v4156 = vsel %vm561, %v3718, 0
    %4158 = vmatprep.subr.bf16.mxu0 0
    %4159 = vmatpush1.bf16.msra.mxu0 %v4147
    %4160 = vmatprep.subr.bf16.mxu0 0
    %4161 = vmatpush1.bf16.msra.mxu0 %v4149
    %4162 = vmatprep.subr.bf16.mxu0 0
    %4163 = vmatpush1.bf16.msra.mxu0 0
    %4164 = vmatprep.subr.bf16.mxu0 0
    %4165 = vmatpush1.bf16.msra.mxu0 0
    %4166 = vmatprep.subr.bf16.mxu0 0
    %4167 = vmatpush1.bf16.msra.mxu0 0
    %4168 = vmatprep.subr.bf16.mxu0 0
    %4169 = vmatpush1.bf16.msra.mxu0 0
    %4170 = vmatprep.subr.bf16.mxu0 0
    %4171 = vmatpush1.bf16.msra.mxu0 0
    %4172 = vmatprep.subr.bf16.mxu0 0
    %4173 = vmatpush1.bf16.msra.mxu0 0
    %4174 = vmatprep.subr.bf16.mxu0 0
    %4175 = vmatpush1.bf16.msra.mxu0 0
    %4176 = vmatprep.subr.bf16.mxu0 0
    %4177 = vmatpush1.bf16.msra.mxu0 0
    %4178 = vmatprep.subr.bf16.mxu0 0
    %4179 = vmatpush1.bf16.msra.mxu0 0
    %4180 = vmatprep.subr.bf16.mxu0 0
    %4181 = vmatpush1.bf16.msra.mxu0 0
    %4182 = vmatprep.subr.bf16.mxu0 0
    %4183 = vmatpush1.bf16.msra.mxu0 0
    %4184 = vmatprep.subr.bf16.mxu0 0
    %4185 = vmatpush1.bf16.msra.mxu0 0
    %4186 = vmatprep.subr.bf16.mxu0 0
    %4187 = vmatpush1.bf16.msra.mxu0 0
    %4188 = vmatprep.subr.bf16.mxu0 0
    %4189 = vmatpush1.bf16.msra.mxu0 0
    %4190 = vmatprep.mubr.bf16.mxu0 0
    %4191 = vmatmul.mubr.bf16.gmra.mrb[0].mxu0 %v4153
    %v4192 = vpop.f32.mrb[0].mxu0
    %v4193 = vadd.f32 0.0, %v4192
    %v4194 = vpop.f32.mrb[0].mxu0
    %v4195 = vpop.f32.mrb[0].mxu0
    %v4196 = vadd.f32 0.0, %v4195
    %v4197 = vpop.f32.mrb[0].mxu0
    %4198 = vmatprep.mubr.bf16.mxu0 0
    %4199 = vmatmul.mubr.bf16.gmra.mrb[0].mxu0 %v4156
    %v4200 = vpop.f32.mrb[0].mxu0
    %v4201 = vadd.f32 0.0, %v4200
    %v4202 = vpop.f32.mrb[0].mxu0
    %v4203 = vpop.f32.mrb[0].mxu0
    %v4204 = vadd.f32 0.0, %v4203
    %v4205 = vpop.f32.mrb[0].mxu0
    %4206 = vdwg.mxu0
    %4215 = vrot.lane.b32.xlu0 %v3827, 16
    %v4216 = vpop.permute.xlu0 %4215
    %4217 = vrot.lane.b32.xlu0 %v3830, 16
    %v4218 = vpop.permute.xlu0 %4217
    %4219 = vrot.lane.b32.xlu0 %v3835, 16
    %v4220 = vpop.permute.xlu0 %4219
    %4221 = vrot.lane.b32.xlu0 %v3838, 16
    %v4222 = vpop.permute.xlu0 %4221
    %4223 = vrot.lane.b32.xlu0 %v4071, 16
    %v4224 = vpop.permute.xlu0 %4223
    %4225 = vrot.lane.b32.xlu0 %v4074, 16
    %v4226 = vpop.permute.xlu0 %4225
    %4227 = vrot.lane.b32.xlu0 %v4079, 16
    %v4228 = vpop.permute.xlu0 %4227
    %4229 = vrot.lane.b32.xlu0 %v4082, 16
    %v4230 = vpop.permute.xlu0 %4229
    %4247 = vrot.lane.b32.xlu0 %v3888, 32
    %v4248 = vpop.permute.xlu0 %4247
    %4249 = vrot.lane.b32.xlu0 %v3891, 32
    %v4250 = vpop.permute.xlu0 %4249
    %4251 = vrot.lane.b32.xlu0 %v3896, 32
    %v4252 = vpop.permute.xlu0 %4251
    %4253 = vrot.lane.b32.xlu0 %v3899, 32
    %v4254 = vpop.permute.xlu0 %4253
    %4255 = vrot.lane.b32.xlu0 %v4132, 32
    %v4256 = vpop.permute.xlu0 %4255
    %4257 = vrot.lane.b32.xlu0 %v4135, 32
    %v4258 = vpop.permute.xlu0 %4257
    %4259 = vrot.lane.b32.xlu0 %v4140, 32
    %v4260 = vpop.permute.xlu0 %4259
    %4261 = vrot.lane.b32.xlu0 %v4143, 32
    %v4262 = vpop.permute.xlu0 %4261
    %4279 = vrot.lane.b32.xlu0 %v3949, 48
    %v4280 = vpop.permute.xlu0 %4279
    %4281 = vrot.lane.b32.xlu0 %v3952, 48
    %v4282 = vpop.permute.xlu0 %4281
    %4283 = vrot.lane.b32.xlu0 %v3957, 48
    %v4284 = vpop.permute.xlu0 %4283
    %4285 = vrot.lane.b32.xlu0 %v3960, 48
    %v4286 = vpop.permute.xlu0 %4285
    %4287 = vrot.lane.b32.xlu0 %v4193, 48
    %v4288 = vpop.permute.xlu0 %4287
    %4289 = vrot.lane.b32.xlu0 %v4196, 48
    %v4290 = vpop.permute.xlu0 %4289
    %4291 = vrot.lane.b32.xlu0 %v4201, 48
    %v4292 = vpop.permute.xlu0 %4291
    %4293 = vrot.lane.b32.xlu0 %v4204, 48
    %v4294 = vpop.permute.xlu0 %4293
    %v4303 = vsel %vm810, %v3766, %v4216
    %v4304 = vsel %vm810, %v3769, %v4218
    %v4305 = vsel %vm810, %v3774, %v4220
    %v4306 = vsel %vm810, %v3777, %v4222
    %v4307 = vsel %vm810, %v4010, %v4224
    %v4308 = vsel %vm810, %v4013, %v4226
    %v4309 = vsel %vm810, %v4018, %v4228
    %v4310 = vsel %vm810, %v4021, %v4230
    %v4311 = vsel %vm561, %v4303, %v4248
    %v4312 = vsel %vm561, %v4304, %v4250
    %v4313 = vsel %vm561, %v4305, %v4252
    %v4314 = vsel %vm561, %v4306, %v4254
    %v4315 = vsel %vm561, %v4307, %v4256
    %v4316 = vsel %vm561, %v4308, %v4258
    %v4317 = vsel %vm561, %v4309, %v4260
    %v4318 = vsel %vm561, %v4310, %v4262
    %v4319 = vsel %vm2299, %v4311, %v4280
    %v4320 = vsel %vm2299, %v4312, %v4282
    %v4321 = vsel %vm2299, %v4313, %v4284
    %v4322 = vsel %vm2299, %v4314, %v4286
    %v4323 = vsel %vm2299, %v4315, %v4288
    %v4324 = vsel %vm2299, %v4316, %v4290
    %v4325 = vsel %vm2299, %v4317, %v4292
    %v4326 = vsel %vm2299, %v4318, %v4294
    %v4327 = vpack.c.bf16 %v4320, %v4319
    %v4328 = vpack.c.bf16 %v4322, %v4321
    %v4329 = vpack.c.bf16 %v4324, %v4323
    %v4330 = vpack.c.bf16 %v4326, %v4325
    %v4332 = vlaneseq
    %v4333 = vshrl.u32 %v4332, 7
    %v4334 = vsub.s32 0, %v4333
    %v4335 = vrot.slane %v464, %v4334
    %v4345 = vunpack.c.l.b16 %v456
    %v4346 = vunpack.c.l.b16 %v457
    %v4347 = vunpack.c.l.b16 %v458
    %v4348 = vunpack.c.l.b16 %v459
    %v4349 = vunpack.c.l.b16 %v460
    %v4350 = vunpack.c.l.b16 %v461
    %v4351 = vunpack.c.l.b16 %v462
    %v4352 = vunpack.c.l.b16 %v463
    %v4353 = vpack.c.b16 %v4346, %v4345
    %v4354 = vpack.c.b16 %v4348, %v4347
    %v4355 = vpack.c.b16 %v4350, %v4349
    %v4356 = vpack.c.b16 %v4352, %v4351
    %v4362 = vsel %vm2342, %v4327, 0
    %v4365 = vsel %vm2342, %v4328, 0
    %v4368 = vsel %vm2342, %v4329, 0
    %v4371 = vsel %vm2342, %v4330, 0
    %4373 = vmatprep.subr.bf16.mxu0 0
    %4374 = vmatpush1.bf16.msra.mxu0 %v4353
    %4375 = vmatprep.subr.bf16.mxu0 0
    %4376 = vmatpush1.bf16.msra.mxu0 %v4354
    %4377 = vmatprep.subr.bf16.mxu0 0
    %4378 = vmatpush1.bf16.msra.mxu0 %v4355
    %4379 = vmatprep.subr.bf16.mxu0 0
    %4380 = vmatpush1.bf16.msra.mxu0 %v4356
    %4381 = vmatprep.subr.bf16.mxu0 0
    %4382 = vmatpush1.bf16.msra.mxu0 0
    %4383 = vmatprep.subr.bf16.mxu0 0
    %4384 = vmatpush1.bf16.msra.mxu0 0
    %4385 = vmatprep.subr.bf16.mxu0 0
    %4386 = vmatpush1.bf16.msra.mxu0 0
    %4387 = vmatprep.subr.bf16.mxu0 0
    %4388 = vmatpush1.bf16.msra.mxu0 0
    %4389 = vmatprep.subr.bf16.mxu0 0
    %4390 = vmatpush1.bf16.msra.mxu0 0
    %4391 = vmatprep.subr.bf16.mxu0 0
    %4392 = vmatpush1.bf16.msra.mxu0 0
    %4393 = vmatprep.subr.bf16.mxu0 0
    %4394 = vmatpush1.bf16.msra.mxu0 0
    %4395 = vmatprep.subr.bf16.mxu0 0
    %4396 = vmatpush1.bf16.msra.mxu0 0
    %4397 = vmatprep.subr.bf16.mxu0 0
    %4398 = vmatpush1.bf16.msra.mxu0 0
    %4399 = vmatprep.subr.bf16.mxu0 0
    %4400 = vmatpush1.bf16.msra.mxu0 0
    %4401 = vmatprep.subr.bf16.mxu0 0
    %4402 = vmatpush1.bf16.msra.mxu0 0
    %4403 = vmatprep.subr.bf16.mxu0 0
    %4404 = vmatpush1.bf16.msra.mxu0 0
    %4405 = vmatprep.mubr.bf16.mxu0 0
    %4406 = vmatmul.mubr.bf16.gmra.mrb[0].mxu0 %v4362
    %v4407 = vpop.f32.mrb[0].mxu0
    %v4408 = vadd.f32 %v4335, %v4407
    %v4409 = vpop.f32.mrb[0].mxu0
    %v4410 = vpop.f32.mrb[0].mxu0
    %v4411 = vadd.f32 %v4335, %v4410
    %v4412 = vpop.f32.mrb[0].mxu0
    %4413 = vmatprep.mubr.bf16.mxu0 0
    %4414 = vmatmul.mubr.bf16.gmra.mrb[0].mxu0 %v4365
    %v4415 = vpop.f32.mrb[0].mxu0
    %v4416 = vadd.f32 %v4335, %v4415
    %v4417 = vpop.f32.mrb[0].mxu0
    %v4418 = vpop.f32.mrb[0].mxu0
    %v4419 = vadd.f32 %v4335, %v4418
    %v4420 = vpop.f32.mrb[0].mxu0
    %4421 = vmatprep.mubr.bf16.mxu0 0
    %4422 = vmatmul.mubr.bf16.gmra.mrb[0].mxu0 %v4368
    %v4423 = vpop.f32.mrb[0].mxu0
    %v4424 = vadd.f32 %v4335, %v4423
    %v4425 = vpop.f32.mrb[0].mxu0
    %v4426 = vpop.f32.mrb[0].mxu0
    %v4427 = vadd.f32 %v4335, %v4426
    %v4428 = vpop.f32.mrb[0].mxu0
    %4429 = vmatprep.mubr.bf16.mxu0 0
    %4430 = vmatmul.mubr.bf16.gmra.mrb[0].mxu0 %v4371
    %v4431 = vpop.f32.mrb[0].mxu0
    %v4432 = vadd.f32 %v4335, %v4431
    %v4433 = vpop.f32.mrb[0].mxu0
    %v4434 = vpop.f32.mrb[0].mxu0
    %v4435 = vadd.f32 %v4335, %v4434
    %v4436 = vpop.f32.mrb[0].mxu0
    %4437 = vdwg.mxu0
    %v4438 = vadd.f32 %v4408, %v2553
    %v4439 = vadd.f32 %v4411, %v2554
    %v4440 = vadd.f32 %v4416, %v2555
    %v4441 = vadd.f32 %v4419, %v2556
    %v4442 = vadd.f32 %v4424, %v2557
    %v4443 = vadd.f32 %v4427, %v2558
    %v4444 = vadd.f32 %v4432, %v2559
    %v4445 = vadd.f32 %v4435, %v2560
    %v4446 = vsel %vm561, %v4438, 0.0
    %4447 = vadd.xlane.f32.xlu0 %v4446
    %v4448 = vpop.xlane.xlu0 %4447
    %v4449 = vsel %vm561, %v4439, 0.0
    %4450 = vadd.xlane.f32.xlu0 %v4449
    %v4451 = vpop.xlane.xlu0 %4450
    %v4452 = vsel %vm561, %v4440, 0.0
    %4453 = vadd.xlane.f32.xlu0 %v4452
    %v4454 = vpop.xlane.xlu0 %4453
    %v4455 = vsel %vm561, %v4441, 0.0
    %4456 = vadd.xlane.f32.xlu0 %v4455
    %v4457 = vpop.xlane.xlu0 %4456
    %v4458 = vsel %vm561, %v4442, 0.0
    %4459 = vadd.xlane.f32.xlu0 %v4458
    %v4460 = vpop.xlane.xlu0 %4459
    %v4461 = vsel %vm561, %v4443, 0.0
    %4462 = vadd.xlane.f32.xlu0 %v4461
    %v4463 = vpop.xlane.xlu0 %4462
    %v4464 = vsel %vm561, %v4444, 0.0
    %4465 = vadd.xlane.f32.xlu0 %v4464
    %v4466 = vpop.xlane.xlu0 %4465
    %v4467 = vsel %vm561, %v4445, 0.0
    %4468 = vadd.xlane.f32.xlu0 %v4467
    %v4469 = vpop.xlane.xlu0 %4468
    %v4470 = vmul.f32 %v4448, %v2452
    %v4471 = vmul.f32 %v4451, %v2452
    %v4472 = vmul.f32 %v4454, %v2452
    %v4473 = vmul.f32 %v4457, %v2452
    %v4474 = vmul.f32 %v4460, %v2452
    %v4475 = vmul.f32 %v4463, %v2452
    %v4476 = vmul.f32 %v4466, %v2452
    %v4477 = vmul.f32 %v4469, %v2452
    %v4478 = vsub.f32 %v4438, %v4470
    %v4479 = vsub.f32 %v4439, %v4471
    %v4480 = vsub.f32 %v4440, %v4472
    %v4481 = vsub.f32 %v4441, %v4473
    %v4482 = vsub.f32 %v4442, %v4474
    %v4483 = vsub.f32 %v4443, %v4475
    %v4484 = vsub.f32 %v4444, %v4476
    %v4485 = vsub.f32 %v4445, %v4477
    %v4486 = vmul.f32 %v4478, %v4478
    %v4487 = vmul.f32 %v4479, %v4479
    %v4488 = vmul.f32 %v4480, %v4480
    %v4489 = vmul.f32 %v4481, %v4481
    %v4490 = vmul.f32 %v4482, %v4482
    %v4491 = vmul.f32 %v4483, %v4483
    %v4492 = vmul.f32 %v4484, %v4484
    %v4493 = vmul.f32 %v4485, %v4485
    %v4494 = vsel %vm561, %v4486, 0.0
    %4495 = vadd.xlane.f32.xlu0 %v4494
    %v4496 = vpop.xlane.xlu0 %4495
    %v4497 = vsel %vm561, %v4487, 0.0
    %4498 = vadd.xlane.f32.xlu0 %v4497
    %v4499 = vpop.xlane.xlu0 %4498
    %v4500 = vsel %vm561, %v4488, 0.0
    %4501 = vadd.xlane.f32.xlu0 %v4500
    %v4502 = vpop.xlane.xlu0 %4501
    %v4503 = vsel %vm561, %v4489, 0.0
    %4504 = vadd.xlane.f32.xlu0 %v4503
    %v4505 = vpop.xlane.xlu0 %4504
    %v4506 = vsel %vm561, %v4490, 0.0
    %4507 = vadd.xlane.f32.xlu0 %v4506
    %v4508 = vpop.xlane.xlu0 %4507
    %v4509 = vsel %vm561, %v4491, 0.0
    %4510 = vadd.xlane.f32.xlu0 %v4509
    %v4511 = vpop.xlane.xlu0 %4510
    %v4512 = vsel %vm561, %v4492, 0.0
    %4513 = vadd.xlane.f32.xlu0 %v4512
    %v4514 = vpop.xlane.xlu0 %4513
    %v4515 = vsel %vm561, %v4493, 0.0
    %4516 = vadd.xlane.f32.xlu0 %v4515
    %v4517 = vpop.xlane.xlu0 %4516
    %v4518 = vmul.f32 %v4496, %v2452
    %v4519 = vmul.f32 %v4499, %v2452
    %v4520 = vmul.f32 %v4502, %v2452
    %v4521 = vmul.f32 %v4505, %v2452
    %v4522 = vmul.f32 %v4508, %v2452
    %v4523 = vmul.f32 %v4511, %v2452
    %v4524 = vmul.f32 %v4514, %v2452
    %v4525 = vmul.f32 %v4517, %v2452
    %v4526 = vadd.f32 %v4518, 1e-05
    %v4527 = vadd.f32 %v4519, 1e-05
    %v4528 = vadd.f32 %v4520, 1e-05
    %v4529 = vadd.f32 %v4521, 1e-05
    %v4530 = vadd.f32 %v4522, 1e-05
    %v4531 = vadd.f32 %v4523, 1e-05
    %v4532 = vadd.f32 %v4524, 1e-05
    %v4533 = vadd.f32 %v4525, 1e-05
    %v4534 = vrsqrt.pop %v4526
    %v4535 = vrsqrt.pop %v4527
    %v4536 = vrsqrt.pop %v4528
    %v4537 = vrsqrt.pop %v4529
    %v4538 = vrsqrt.pop %v4530
    %v4539 = vrsqrt.pop %v4531
    %v4540 = vrsqrt.pop %v4532
    %v4541 = vrsqrt.pop %v4533
    %v4542 = vmul.f32 %v4478, %v4534
    %v4543 = vmul.f32 %v4479, %v4535
    %v4544 = vmul.f32 %v4480, %v4536
    %v4545 = vmul.f32 %v4481, %v4537
    %v4546 = vmul.f32 %v4482, %v4538
    %v4547 = vmul.f32 %v4483, %v4539
    %v4548 = vmul.f32 %v4484, %v4540
    %v4549 = vmul.f32 %v4485, %v4541
    %v4551 = vlaneseq
    %v4552 = vshrl.u32 %v4551, 7
    %v4553 = vsub.s32 0, %v4552
    %v4554 = vrot.slane %v465, %v4553
    %v4556 = vmul.f32 %v4542, %v4554
    %v4557 = vmul.f32 %v4543, %v4554
    %v4558 = vmul.f32 %v4544, %v4554
    %v4559 = vmul.f32 %v4545, %v4554
    %v4560 = vmul.f32 %v4546, %v4554
    %v4561 = vmul.f32 %v4547, %v4554
    %v4562 = vmul.f32 %v4548, %v4554
    %v4563 = vmul.f32 %v4549, %v4554
    %v4565 = vlaneseq
    %v4566 = vshrl.u32 %v4565, 7
    %v4567 = vsub.s32 0, %v4566
    %v4568 = vrot.slane %v466, %v4567
    %v4570 = vadd.f32 %v4556, %v4568
    %v4571 = vadd.f32 %v4557, %v4568
    %v4572 = vadd.f32 %v4558, %v4568
    %v4573 = vadd.f32 %v4559, %v4568
    %v4574 = vadd.f32 %v4560, %v4568
    %v4575 = vadd.f32 %v4561, %v4568
    %v4576 = vadd.f32 %v4562, %v4568
    %v4577 = vadd.f32 %v4563, %v4568
    %v4578 = vpack.c.bf16 %v4571, %v4570
    %v4579 = vpack.c.bf16 %v4573, %v4572
    %v4580 = vpack.c.bf16 %v4575, %v4574
    %v4581 = vpack.c.bf16 %v4577, %v4576
    %v4583 = vlaneseq
    %v4584 = vshrl.u32 %v4583, 7
    %v4585 = vsub.s32 0, %v4584
    %v4586 = vrot.slane %v471, %v4585
    %v4592 = vunpack.c.l.b16 %v467
    %v4593 = vunpack.c.l.b16 %v468
    %v4594 = vunpack.c.l.b16 %v469
    %v4595 = vunpack.c.l.b16 %v470
    %v4596 = vpack.c.b16 %v4593, %v4592
    %v4597 = vpack.c.b16 %v4595, %v4594
    %v4601 = vsel %vm561, %v4578, 0
    %v4604 = vsel %vm561, %v4579, 0
    %v4607 = vsel %vm561, %v4580, 0
    %v4610 = vsel %vm561, %v4581, 0
    %4612 = vmatprep.subr.bf16.mxu0 0
    %4613 = vmatpush1.bf16.msra.mxu0 %v4596
    %4614 = vmatprep.subr.bf16.mxu0 0
    %4615 = vmatpush1.bf16.msra.mxu0 %v4597
    %4616 = vmatprep.subr.bf16.mxu0 0
    %4617 = vmatpush1.bf16.msra.mxu0 0
    %4618 = vmatprep.subr.bf16.mxu0 0
    %4619 = vmatpush1.bf16.msra.mxu0 0
    %4620 = vmatprep.subr.bf16.mxu0 0
    %4621 = vmatpush1.bf16.msra.mxu0 0
    %4622 = vmatprep.subr.bf16.mxu0 0
    %4623 = vmatpush1.bf16.msra.mxu0 0
    %4624 = vmatprep.subr.bf16.mxu0 0
    %4625 = vmatpush1.bf16.msra.mxu0 0
    %4626 = vmatprep.subr.bf16.mxu0 0
    %4627 = vmatpush1.bf16.msra.mxu0 0
    %4628 = vmatprep.subr.bf16.mxu0 0
    %4629 = vmatpush1.bf16.msra.mxu0 0
    %4630 = vmatprep.subr.bf16.mxu0 0
    %4631 = vmatpush1.bf16.msra.mxu0 0
    %4632 = vmatprep.subr.bf16.mxu0 0
    %4633 = vmatpush1.bf16.msra.mxu0 0
    %4634 = vmatprep.subr.bf16.mxu0 0
    %4635 = vmatpush1.bf16.msra.mxu0 0
    %4636 = vmatprep.subr.bf16.mxu0 0
    %4637 = vmatpush1.bf16.msra.mxu0 0
    %4638 = vmatprep.subr.bf16.mxu0 0
    %4639 = vmatpush1.bf16.msra.mxu0 0
    %4640 = vmatprep.subr.bf16.mxu0 0
    %4641 = vmatpush1.bf16.msra.mxu0 0
    %4642 = vmatprep.subr.bf16.mxu0 0
    %4643 = vmatpush1.bf16.msra.mxu0 0
    %4644 = vmatprep.mubr.bf16.mxu0 0
    %4645 = vmatmul.mubr.bf16.gmra.mrb[0].mxu0 %v4601
    %v4646 = vpop.f32.mrb[0].mxu0
    %v4647 = vadd.f32 %v4586, %v4646
    %v4648 = vpop.f32.mrb[0].mxu0
    %v4649 = vpop.f32.mrb[0].mxu0
    %v4650 = vadd.f32 %v4586, %v4649
    %v4651 = vpop.f32.mrb[0].mxu0
    %4652 = vmatprep.mubr.bf16.mxu0 0
    %4653 = vmatmul.mubr.bf16.gmra.mrb[0].mxu0 %v4604
    %v4654 = vpop.f32.mrb[0].mxu0
    %v4655 = vadd.f32 %v4586, %v4654
    %v4656 = vpop.f32.mrb[0].mxu0
    %v4657 = vpop.f32.mrb[0].mxu0
    %v4658 = vadd.f32 %v4586, %v4657
    %v4659 = vpop.f32.mrb[0].mxu0
    %4660 = vmatprep.mubr.bf16.mxu0 0
    %4661 = vmatmul.mubr.bf16.gmra.mrb[0].mxu0 %v4607
    %v4662 = vpop.f32.mrb[0].mxu0
    %v4663 = vadd.f32 %v4586, %v4662
    %v4664 = vpop.f32.mrb[0].mxu0
    %v4665 = vpop.f32.mrb[0].mxu0
    %v4666 = vadd.f32 %v4586, %v4665
    %v4667 = vpop.f32.mrb[0].mxu0
    %4668 = vmatprep.mubr.bf16.mxu0 0
    %4669 = vmatmul.mubr.bf16.gmra.mrb[0].mxu0 %v4610
    %v4670 = vpop.f32.mrb[0].mxu0
    %v4671 = vadd.f32 %v4586, %v4670
    %v4672 = vpop.f32.mrb[0].mxu0
    %v4673 = vpop.f32.mrb[0].mxu0
    %v4674 = vadd.f32 %v4586, %v4673
    %v4675 = vpop.f32.mrb[0].mxu0
    %4676 = vdwg.mxu0
    %v4677 = vmax.f32 %v4647, 0.0
    %v4678 = vmax.f32 %v4650, 0.0
    %v4679 = vmax.f32 %v4655, 0.0
    %v4680 = vmax.f32 %v4658, 0.0
    %v4681 = vmax.f32 %v4663, 0.0
    %v4682 = vmax.f32 %v4666, 0.0
    %v4683 = vmax.f32 %v4671, 0.0
    %v4684 = vmax.f32 %v4674, 0.0
    %v4685 = vpack.c.bf16 %v4678, %v4677
    %v4686 = vpack.c.bf16 %v4680, %v4679
    %v4687 = vpack.c.bf16 %v4682, %v4681
    %v4688 = vpack.c.bf16 %v4684, %v4683
    %v4690 = vlaneseq
    %v4691 = vshrl.u32 %v4690, 7
    %v4692 = vsub.s32 0, %v4691
    %v4693 = vrot.slane %v480, %v4692
    %v4703 = vunpack.c.l.b16 %v472
    %v4704 = vunpack.c.l.b16 %v473
    %v4705 = vunpack.c.l.b16 %v474
    %v4706 = vunpack.c.l.b16 %v475
    %v4707 = vunpack.c.l.b16 %v476
    %v4708 = vunpack.c.l.b16 %v477
    %v4709 = vunpack.c.l.b16 %v478
    %v4710 = vunpack.c.l.b16 %v479
    %v4711 = vpack.c.b16 %v4704, %v4703
    %v4712 = vpack.c.b16 %v4706, %v4705
    %v4713 = vpack.c.b16 %v4708, %v4707
    %v4714 = vpack.c.b16 %v4710, %v4709
    %v4720 = vsel %vm2342, %v4685, 0
    %v4723 = vsel %vm2342, %v4686, 0
    %v4726 = vsel %vm2342, %v4687, 0
    %v4729 = vsel %vm2342, %v4688, 0
    %4731 = vmatprep.subr.bf16.mxu0 0
    %4732 = vmatpush1.bf16.msra.mxu0 %v4711
    %4733 = vmatprep.subr.bf16.mxu0 0
    %4734 = vmatpush1.bf16.msra.mxu0 %v4712
    %4735 = vmatprep.subr.bf16.mxu0 0
    %4736 = vmatpush1.bf16.msra.mxu0 %v4713
    %4737 = vmatprep.subr.bf16.mxu0 0
    %4738 = vmatpush1.bf16.msra.mxu0 %v4714
    %4739 = vmatprep.subr.bf16.mxu0 0
    %4740 = vmatpush1.bf16.msra.mxu0 0
    %4741 = vmatprep.subr.bf16.mxu0 0
    %4742 = vmatpush1.bf16.msra.mxu0 0
    %4743 = vmatprep.subr.bf16.mxu0 0
    %4744 = vmatpush1.bf16.msra.mxu0 0
    %4745 = vmatprep.subr.bf16.mxu0 0
    %4746 = vmatpush1.bf16.msra.mxu0 0
    %4747 = vmatprep.subr.bf16.mxu0 0
    %4748 = vmatpush1.bf16.msra.mxu0 0
    %4749 = vmatprep.subr.bf16.mxu0 0
    %4750 = vmatpush1.bf16.msra.mxu0 0
    %4751 = vmatprep.subr.bf16.mxu0 0
    %4752 = vmatpush1.bf16.msra.mxu0 0
    %4753 = vmatprep.subr.bf16.mxu0 0
    %4754 = vmatpush1.bf16.msra.mxu0 0
    %4755 = vmatprep.subr.bf16.mxu0 0
    %4756 = vmatpush1.bf16.msra.mxu0 0
    %4757 = vmatprep.subr.bf16.mxu0 0
    %4758 = vmatpush1.bf16.msra.mxu0 0
    %4759 = vmatprep.subr.bf16.mxu0 0
    %4760 = vmatpush1.bf16.msra.mxu0 0
    %4761 = vmatprep.subr.bf16.mxu0 0
    %4762 = vmatpush1.bf16.msra.mxu0 0
    %4763 = vmatprep.mubr.bf16.mxu0 0
    %4764 = vmatmul.mubr.bf16.gmra.mrb[0].mxu0 %v4720
    %v4765 = vpop.f32.mrb[0].mxu0
    %v4766 = vadd.f32 %v4693, %v4765
    %v4767 = vpop.f32.mrb[0].mxu0
    %v4768 = vpop.f32.mrb[0].mxu0
    %v4769 = vadd.f32 %v4693, %v4768
    %v4770 = vpop.f32.mrb[0].mxu0
    %4771 = vmatprep.mubr.bf16.mxu0 0
    %4772 = vmatmul.mubr.bf16.gmra.mrb[0].mxu0 %v4723
    %v4773 = vpop.f32.mrb[0].mxu0
    %v4774 = vadd.f32 %v4693, %v4773
    %v4775 = vpop.f32.mrb[0].mxu0
    %v4776 = vpop.f32.mrb[0].mxu0
    %v4777 = vadd.f32 %v4693, %v4776
    %v4778 = vpop.f32.mrb[0].mxu0
    %4779 = vmatprep.mubr.bf16.mxu0 0
    %4780 = vmatmul.mubr.bf16.gmra.mrb[0].mxu0 %v4726
    %v4781 = vpop.f32.mrb[0].mxu0
    %v4782 = vadd.f32 %v4693, %v4781
    %v4783 = vpop.f32.mrb[0].mxu0
    %v4784 = vpop.f32.mrb[0].mxu0
    %v4785 = vadd.f32 %v4693, %v4784
    %v4786 = vpop.f32.mrb[0].mxu0
    %4787 = vmatprep.mubr.bf16.mxu0 0
    %4788 = vmatmul.mubr.bf16.gmra.mrb[0].mxu0 %v4729
    %v4789 = vpop.f32.mrb[0].mxu0
    %v4790 = vadd.f32 %v4693, %v4789
    %v4791 = vpop.f32.mrb[0].mxu0
    %v4792 = vpop.f32.mrb[0].mxu0
    %v4793 = vadd.f32 %v4693, %v4792
    %v4794 = vpop.f32.mrb[0].mxu0
    %4795 = vdwg.mxu0
    %v4796 = vadd.f32 %v4766, %v4570
    %v4797 = vadd.f32 %v4769, %v4571
    %v4798 = vadd.f32 %v4774, %v4572
    %v4799 = vadd.f32 %v4777, %v4573
    %v4800 = vadd.f32 %v4782, %v4574
    %v4801 = vadd.f32 %v4785, %v4575
    %v4802 = vadd.f32 %v4790, %v4576
    %v4803 = vadd.f32 %v4793, %v4577
    %v4804 = vsel %vm561, %v4796, 0.0
    %4805 = vadd.xlane.f32.xlu0 %v4804
    %v4806 = vpop.xlane.xlu0 %4805
    %v4807 = vsel %vm561, %v4797, 0.0
    %4808 = vadd.xlane.f32.xlu0 %v4807
    %v4809 = vpop.xlane.xlu0 %4808
    %v4810 = vsel %vm561, %v4798, 0.0
    %4811 = vadd.xlane.f32.xlu0 %v4810
    %v4812 = vpop.xlane.xlu0 %4811
    %v4813 = vsel %vm561, %v4799, 0.0
    %4814 = vadd.xlane.f32.xlu0 %v4813
    %v4815 = vpop.xlane.xlu0 %4814
    %v4816 = vsel %vm561, %v4800, 0.0
    %4817 = vadd.xlane.f32.xlu0 %v4816
    %v4818 = vpop.xlane.xlu0 %4817
    %v4819 = vsel %vm561, %v4801, 0.0
    %4820 = vadd.xlane.f32.xlu0 %v4819
    %v4821 = vpop.xlane.xlu0 %4820
    %v4822 = vsel %vm561, %v4802, 0.0
    %4823 = vadd.xlane.f32.xlu0 %v4822
    %v4824 = vpop.xlane.xlu0 %4823
    %v4825 = vsel %vm561, %v4803, 0.0
    %4826 = vadd.xlane.f32.xlu0 %v4825
    %v4827 = vpop.xlane.xlu0 %4826
    %v4828 = vmul.f32 %v4806, %v2452
    %v4829 = vmul.f32 %v4809, %v2452
    %v4830 = vmul.f32 %v4812, %v2452
    %v4831 = vmul.f32 %v4815, %v2452
    %v4832 = vmul.f32 %v4818, %v2452
    %v4833 = vmul.f32 %v4821, %v2452
    %v4834 = vmul.f32 %v4824, %v2452
    %v4835 = vmul.f32 %v4827, %v2452
    %v4836 = vsub.f32 %v4796, %v4828
    %v4837 = vsub.f32 %v4797, %v4829
    %v4838 = vsub.f32 %v4798, %v4830
    %v4839 = vsub.f32 %v4799, %v4831
    %v4840 = vsub.f32 %v4800, %v4832
    %v4841 = vsub.f32 %v4801, %v4833
    %v4842 = vsub.f32 %v4802, %v4834
    %v4843 = vsub.f32 %v4803, %v4835
    %v4844 = vmul.f32 %v4836, %v4836
    %v4845 = vmul.f32 %v4837, %v4837
    %v4846 = vmul.f32 %v4838, %v4838
    %v4847 = vmul.f32 %v4839, %v4839
    %v4848 = vmul.f32 %v4840, %v4840
    %v4849 = vmul.f32 %v4841, %v4841
    %v4850 = vmul.f32 %v4842, %v4842
    %v4851 = vmul.f32 %v4843, %v4843
    %v4852 = vsel %vm561, %v4844, 0.0
    %4853 = vadd.xlane.f32.xlu0 %v4852
    %v4854 = vpop.xlane.xlu0 %4853
    %v4855 = vsel %vm561, %v4845, 0.0
    %4856 = vadd.xlane.f32.xlu0 %v4855
    %v4857 = vpop.xlane.xlu0 %4856
    %v4858 = vsel %vm561, %v4846, 0.0
    %4859 = vadd.xlane.f32.xlu0 %v4858
    %v4860 = vpop.xlane.xlu0 %4859
    %v4861 = vsel %vm561, %v4847, 0.0
    %4862 = vadd.xlane.f32.xlu0 %v4861
    %v4863 = vpop.xlane.xlu0 %4862
    %v4864 = vsel %vm561, %v4848, 0.0
    %4865 = vadd.xlane.f32.xlu0 %v4864
    %v4866 = vpop.xlane.xlu0 %4865
    %v4867 = vsel %vm561, %v4849, 0.0
    %4868 = vadd.xlane.f32.xlu0 %v4867
    %v4869 = vpop.xlane.xlu0 %4868
    %v4870 = vsel %vm561, %v4850, 0.0
    %4871 = vadd.xlane.f32.xlu0 %v4870
    %v4872 = vpop.xlane.xlu0 %4871
    %v4873 = vsel %vm561, %v4851, 0.0
    %4874 = vadd.xlane.f32.xlu0 %v4873
    %v4875 = vpop.xlane.xlu0 %4874
    %v4876 = vmul.f32 %v4854, %v2452
    %v4877 = vmul.f32 %v4857, %v2452
    %v4878 = vmul.f32 %v4860, %v2452
    %v4879 = vmul.f32 %v4863, %v2452
    %v4880 = vmul.f32 %v4866, %v2452
    %v4881 = vmul.f32 %v4869, %v2452
    %v4882 = vmul.f32 %v4872, %v2452
    %v4883 = vmul.f32 %v4875, %v2452
    %v4884 = vadd.f32 %v4876, 1e-05
    %v4885 = vadd.f32 %v4877, 1e-05
    %v4886 = vadd.f32 %v4878, 1e-05
    %v4887 = vadd.f32 %v4879, 1e-05
    %v4888 = vadd.f32 %v4880, 1e-05
    %v4889 = vadd.f32 %v4881, 1e-05
    %v4890 = vadd.f32 %v4882, 1e-05
    %v4891 = vadd.f32 %v4883, 1e-05
    %v4892 = vrsqrt.pop %v4884
    %v4893 = vrsqrt.pop %v4885
    %v4894 = vrsqrt.pop %v4886
    %v4895 = vrsqrt.pop %v4887
    %v4896 = vrsqrt.pop %v4888
    %v4897 = vrsqrt.pop %v4889
    %v4898 = vrsqrt.pop %v4890
    %v4899 = vrsqrt.pop %v4891
    %v4900 = vmul.f32 %v4836, %v4892
    %v4901 = vmul.f32 %v4837, %v4893
    %v4902 = vmul.f32 %v4838, %v4894
    %v4903 = vmul.f32 %v4839, %v4895
    %v4904 = vmul.f32 %v4840, %v4896
    %v4905 = vmul.f32 %v4841, %v4897
    %v4906 = vmul.f32 %v4842, %v4898
    %v4907 = vmul.f32 %v4843, %v4899
    %v4909 = vlaneseq
    %v4910 = vshrl.u32 %v4909, 7
    %v4911 = vsub.s32 0, %v4910
    %v4912 = vrot.slane %v481, %v4911
    %v4914 = vmul.f32 %v4900, %v4912
    %v4915 = vmul.f32 %v4901, %v4912
    %v4916 = vmul.f32 %v4902, %v4912
    %v4917 = vmul.f32 %v4903, %v4912
    %v4918 = vmul.f32 %v4904, %v4912
    %v4919 = vmul.f32 %v4905, %v4912
    %v4920 = vmul.f32 %v4906, %v4912
    %v4921 = vmul.f32 %v4907, %v4912
    %v4923 = vlaneseq
    %v4924 = vshrl.u32 %v4923, 7
    %v4925 = vsub.s32 0, %v4924
    %v4926 = vrot.slane %v482, %v4925
    %v4928 = vadd.f32 %v4914, %v4926
    %v4929 = vadd.f32 %v4915, %v4926
    %v4930 = vadd.f32 %v4916, %v4926
    %v4931 = vadd.f32 %v4917, %v4926
    %v4932 = vadd.f32 %v4918, %v4926
    %v4933 = vadd.f32 %v4919, %v4926
    %v4934 = vadd.f32 %v4920, %v4926
    %v4935 = vadd.f32 %v4921, %v4926
    %4936 = vst.msk [vmem:[#allocation44] sm:$0xff] %vm561, %v4928
    %4937 = vst.msk [vmem:[#allocation44 + $0x8] sm:$0xff] %vm561, %v4929
    %4938 = vst.msk [vmem:[#allocation44 + $0x10] sm:$0xff] %vm561, %v4930
    %4939 = vst.msk [vmem:[#allocation44 + $0x18] sm:$0xff] %vm561, %v4931
    %4940 = vst.msk [vmem:[#allocation44 + $0x20] sm:$0xff] %vm561, %v4932
    %4941 = vst.msk [vmem:[#allocation44 + $0x28] sm:$0xff] %vm561, %v4933
    %4942 = vst.msk [vmem:[#allocation44 + $0x30] sm:$0xff] %vm561, %v4934
    %4943 = vst.msk [vmem:[#allocation44 + $0x38] sm:$0xff] %vm561, %v4935
    // Predicated region
    $region218: #{tpu_custom_call.1} parent=1 // pred_check
      _
    $region219: #{tpu_custom_call.1} parent=1 // pred_check_branch
      %4945 = sbr.rel (0) target = $region221
    $region220: #{tpu_custom_call.1} parent=1 // pred_region
      %s4947 = ssub.s32 1024, 1024
      %4948 = vsyncadd [#allocation4], %s4947
      %s4949 = sshll.u32 [#allocation44], 4
      %s4950 = int_to_ptr.vmem [resolvable:$true] %s4949
      %4955 = dma.vmem_to_hbm [thread:$0]  %s4950, 1024, %s27, [#allocation4], 128, 128, 8
    $region221: #{tpu_custom_call.1} parent=1 // pred_fallthru
      _
    // Predicated region
    $region222: #{tpu_custom_call.1} parent=1 // pred_check
      _
    $region223: #{tpu_custom_call.1} parent=1 // pred_check_branch
      %4957 = sbr.rel (0) target = $region225
    $region224: #{tpu_custom_call.1} parent=1 // pred_region
      %4958 = dma.done [#allocation4], 1024
    $region225: #{tpu_custom_call.1} parent=1 // pred_fallthru
      _
    %4959 = vsyncpa [#allocation3], 1
    %4960 = vsyncpa [#allocation6], 1
    %4961 = vsyncpa [#allocation9], 1
    %4962 = vsyncpa [#allocation12], 1
    %4963 = vsyncpa [#allocation15], 1
    %4964 = vsyncpa [#allocation18], 1
    %4965 = vsyncpa [#allocation21], 1
    %4966 = vsyncpa [#allocation24], 1
    %4967 = vsyncpa [#allocation27], 1
    %4968 = vsyncpa [#allocation30], 1
    %4969 = vsyncpa [#allocation33], 1
    %4970 = vsyncpa [#allocation36], 1
    %4971 = vsyncpa [#allocation39], 1
    %4972 = vsyncpa [#allocation42], 1
    %4973 = vsyncpa [#allocation4], 1

</llo_original>
